<compile_context>
chip_gen: v6e
topology: v6e:2x2x1
jax: 0.10.0
libtpu: 0.0.40
codegen_flags: <defaults>
</compile_context>

<pallas_src>
import functools

import jax
import jax.numpy as jnp
import numpy as np
from jax.experimental import pallas as pl
from jax.experimental.pallas import tpu as pltpu

EPS = 1e-5
EXTRA = 8  # zero safety rows so shifted tap reads never leave the buffer


def _residual_block_kernel(H, W, x_ref, w1_ref, b1_ref, w2_ref, b2_ref,
                           o_ref, pad_ref):
    # x_ref   : (1, H*W, C) bf16   unpadded input image (NHWC, flattened HW)
    # w*_ref  : (3, 3, C, C) bf16  conv weights, HWIO; per-tap (C,C) slices
    # b*_ref  : (1, C) f32         conv biases
    # o_ref   : (1, H, W*C) f32    output (lane-dense last dim)
    # pad_ref : (R, C) bf16        VMEM scratch: flat zero-padded operand slab
    Wp = W + 2
    M = H * Wp                      # flat rows per conv operand (2 junk cols/row)
    C = x_ref.shape[-1]
    R = pad_ref.shape[0]
    inv_n = 1.0 / (H * W)

    # column-validity mask over the flat (H, Wp) grid: last 2 cols are junk
    col = jax.lax.broadcasted_iota(jnp.int32, (H, Wp, 1), 1)
    valid = (col < W).astype(jnp.float32).reshape(M, 1)

    # ---- zero the two scratch segments no interior write ever touches ----
    # (every step, not once: under ("parallel",) 2-TC sharding the second
    #  core never runs program_id 0, and scratch starts uninitialized)
    head = Wp + 1
    pad_ref[pl.ds(0, head), :] = jnp.zeros((head, C), jnp.bfloat16)
    tail_start = (H + 1) * Wp + 1
    tail = R - tail_start
    pad_ref[pl.ds(tail_start, tail), :] = jnp.zeros((tail, C), jnp.bfloat16)

    # ---- in-kernel zero padding of x into the flat layout ----
    # each row padded W -> Wp with zeros; junk cols land exactly on the
    # left/right border columns of the padded grid, so borders stay zero.
    x_rows = x_ref[0].reshape(H, W, C)
    x_slab = jnp.concatenate(
        [x_rows, jnp.zeros((H, 2, C), jnp.bfloat16)], axis=1).reshape(M, C)
    pad_ref[pl.ds(Wp + 1, M), :] = x_slab

    def conv3x3(w_ref, b_ref):
        # 9 matmuls on shifted contiguous views of the padded slab (no concat)
        acc = jnp.zeros((M, C), jnp.float32)
        for dy in range(3):
            for dx in range(3):
                tap = pad_ref[pl.ds(dy * Wp + dx, M), :]      # (M, C) bf16
                acc = acc + jnp.dot(tap, w_ref[dy, dx],
                                    preferred_element_type=jnp.float32)
        return acc + b_ref[...]

    def instance_norm(a):
        # single-pass masked stats; valid is 0/1 so av*av == a*a*valid
        av = a * valid
        s = jnp.sum(av, axis=0, keepdims=True)
        q = jnp.sum(av * av, axis=0, keepdims=True)
        mean = s * inv_n
        var = q * inv_n - mean * mean
        return (a - mean) * jax.lax.rsqrt(var + EPS)

    # ---- conv1 -> InstanceNorm -> ReLU ----
    a1 = conv3x3(w1_ref, b1_ref)
    h = jnp.maximum(instance_norm(a1), 0.0) * valid   # zero junk cols for re-pad

    # ---- re-pad h into the SAME scratch (single bf16 cast per element) ----
    pad_ref[pl.ds(Wp + 1, M), :] = h.astype(jnp.bfloat16)

    # ---- conv2 -> InstanceNorm ----
    a2 = conv3x3(w2_ref, b2_ref)
    y = instance_norm(a2)

    # ---- residual add (f32), drop junk columns, lane-dense store ----
    x_res = x_ref[0].astype(jnp.float32).reshape(H, W, C)
    y_in = y.reshape(H, Wp, C)[:, :W, :]
    o_ref[0] = (x_res + y_in).reshape(H, W * C)


def _vmem_limit_bytes(H, W, C):
    """Derive the VMEM budget from actual buffer sizes; cap under v7x's 64 MiB."""
    Wp = W + 2
    M = H * Wp
    R = (H + 2) * Wp + EXTRA
    est = (2 * H * W * C * 2          # x input, bf16, double-buffered
           + 2 * H * W * C * 4        # output, f32, double-buffered
           + 2 * 9 * C * C * 2        # both conv weights, bf16, single-buffered
           + 2 * 2 * C * 4            # biases (double-buffered, tiny)
           + R * C * 2                # padded-operand scratch, bf16
           + 6 * M * C * 4)           # f32 temporaries (acc / IN / out assembly)
    est = int(est * 1.25) + (1 << 20)
    return max(4 << 20, min(est, 56 << 20))


@jax.jit
def residual_block(x_nchw, w1, b1, w2, b2):
    """x_nchw: (N, C, H, W) float32.  Returns (N, C, H, W) float32."""
    x = jnp.transpose(x_nchw, (0, 2, 3, 1)).astype(jnp.float32)   # NHWC
    N, H, W, C = x.shape
    Wp = W + 2
    R = (H + 2) * Wp + EXTRA

    # unpadded bf16 input; padding happens inside the kernel (saves an HBM
    # round trip and halves input DMA vs f32).
    x_flat = x.astype(jnp.bfloat16).reshape(N, H * W, C)

    w1b = w1.astype(jnp.bfloat16)                 # (3, 3, Cin, Cout) HWIO
    w2b = w2.astype(jnp.bfloat16)
    b1r = b1.reshape(1, C).astype(jnp.float32)
    b2r = b2.reshape(1, C).astype(jnp.float32)

    # invariant weights: single pipeline buffer (index_map is constant)
    weight_spec = pl.BlockSpec((3, 3, C, C), lambda b: (0, 0, 0, 0),
                               pipeline_mode=pl.Buffered(1))
    bias_spec = pl.BlockSpec((1, C), lambda b: (0, 0))

    out = pl.pallas_call(
        functools.partial(_residual_block_kernel, H, W),
        out_shape=jax.ShapeDtypeStruct((N, H, W * C), jnp.float32),
        grid_spec=pltpu.PrefetchScalarGridSpec(
            num_scalar_prefetch=0,
            grid=(N,),
            in_specs=[
                pl.BlockSpec((1, H * W, C), lambda b: (b, 0, 0)),
                weight_spec,
                bias_spec,
                weight_spec,
                bias_spec,
            ],
            out_specs=pl.BlockSpec((1, H, W * C), lambda b: (b, 0, 0)),
            scratch_shapes=[pltpu.VMEM((R, C), jnp.bfloat16)],
        ),
        compiler_params=pltpu.CompilerParams(
            dimension_semantics=("parallel",),
            vmem_limit_bytes=_vmem_limit_bytes(H, W, C)),
    )(x_flat, w1b, b1r, w2b, b2r)

    out = out.reshape(N, H, W, C)
    return jnp.transpose(out, (0, 3, 1, 2))                        # back to NCHW


def _reference_forward(x_nchw, w1, b1, w2, b2):
    """Pure-JAX f32 reference matching nn.Conv2d + nn.InstanceNorm2d semantics."""
    x = jnp.transpose(x_nchw, (0, 2, 3, 1))

    def conv(h, w, b):
        return jax.lax.conv_general_dilated(
            h, w, window_strides=(1, 1), padding="SAME",
            dimension_numbers=("NHWC", "HWIO", "NHWC")) + b[None, None, None, :]

    def inorm(h):
        m = jnp.mean(h, axis=(1, 2), keepdims=True)
        v = jnp.mean((h - m) ** 2, axis=(1, 2), keepdims=True)
        return (h - m) * jax.lax.rsqrt(v + EPS)

    h = jnp.maximum(inorm(conv(x, w1, b1)), 0.0)
    y = inorm(conv(h, w2, b2))
    return jnp.transpose(x + y, (0, 3, 1, 2))


if __name__ == "__main__":
    N, C, H, W = 2, 4, 16, 16
    key = jax.random.PRNGKey(0)
    kx, kw1, kb1, kw2, kb2 = jax.random.split(key, 5)

    x = jax.random.normal(kx, (N, C, H, W), dtype=jnp.float32)
    # Deterministic synthetic parameters (Conv2d(C, C, 3, bias=True) x 2),
    # stored in HWIO layout (3, 3, Cin, Cout).
    w1 = jax.random.normal(kw1, (3, 3, C, C), dtype=jnp.float32) * 0.1
    b1 = jax.random.normal(kb1, (C,), dtype=jnp.float32) * 0.1
    w2 = jax.random.normal(kw2, (3, 3, C, C), dtype=jnp.float32) * 0.1
    b2 = jax.random.normal(kb2, (C,), dtype=jnp.float32) * 0.1

    out = jax.block_until_ready(residual_block(x, w1, b1, w2, b2))
    ref = jax.block_until_ready(_reference_forward(x, w1, b1, w2, b2))

    # bf16 MXU operands and bf16 skip-path input are intentional (per perf
    # review); tolerance sized for bf16 rounding through two convs + INs.
    np.testing.assert_allclose(np.asarray(out), np.asarray(ref),
                               rtol=3e-2, atol=3e-2)

    print("KERNEL_OK")
</pallas_src>

<mosaic_0001>
module attributes {stable_mosaic.version = 11 : i64} {
  func.func @_residual_block_kernel(%arg0: i32, %arg1: memref<1x256x4xbf16, #tpu.memory_space<vmem>>, %arg2: memref<3x3x4x4xbf16, #tpu.memory_space<vmem>>, %arg3: memref<1x4xf32, #tpu.memory_space<vmem>>, %arg4: memref<3x3x4x4xbf16, #tpu.memory_space<vmem>>, %arg5: memref<1x4xf32, #tpu.memory_space<vmem>>, %arg6: memref<1x16x64xf32, #tpu.memory_space<vmem>>, %arg7: memref<332x4xbf16, #tpu.memory_space<vmem>>) attributes {dimension_semantics = [#tpu.dimension_semantics<parallel>], iteration_bounds = array<i64: 2>, scalar_prefetch = 0 : i64, scratch_operands = 1 : i64, tpu.core_type = #tpu.core_type<tc>, window_params = [{transform_indices = @transform_0, window_bounds = array<i64: 1, 256, 4>}, {pipeline_mode = #tpu.pipeline_mode<synchronous>, transform_indices = @transform_1, window_bounds = array<i64: 3, 3, 4, 4>}, {pipeline_mode = #tpu.pipeline_mode<synchronous>, transform_indices = @transform_2, window_bounds = array<i64: 1, 4>}, {pipeline_mode = #tpu.pipeline_mode<synchronous>, transform_indices = @transform_3, window_bounds = array<i64: 3, 3, 4, 4>}, {pipeline_mode = #tpu.pipeline_mode<synchronous>, transform_indices = @transform_4, window_bounds = array<i64: 1, 4>}, {transform_indices = @transform_5, window_bounds = array<i64: 1, 16, 64>}]} {
    %0 = tpu.iota {dimensions = array<i32: 1>} : vector<16x18x1xi32>
    %c16_i32 = arith.constant 16 : i32
    %1 = vector.broadcast %c16_i32 : i32 to vector<16x18x1xi32>
    %2 = arith.cmpi slt, %0, %1 : vector<16x18x1xi32>
    %3 = arith.extui %2 : vector<16x18x1xi1> to vector<16x18x1xi32>
    %4 = arith.sitofp %3 : vector<16x18x1xi32> to vector<16x18x1xf32>
    %5 = vector.shape_cast %4 : vector<16x18x1xf32> to vector<288x1xf32>
    %cst = arith.constant 0.000000e+00 : bf16
    %6 = vector.broadcast %cst : bf16 to vector<19x4xbf16>
    %c0 = arith.constant 0 : index
    %c0_0 = arith.constant 0 : index
    %7 = vector.load %arg7[%c0, %c0_0] : memref<332x4xbf16, #tpu.memory_space<vmem>>, vector<19x4xbf16>
    tpu.vector_store %arg7[%c0, %c0_0], %6 {strides = array<i32>} : memref<332x4xbf16, #tpu.memory_space<vmem>>, vector<19x4xbf16>,
    %cst_1 = arith.constant 0.000000e+00 : bf16
    %8 = vector.broadcast %cst_1 : bf16 to vector<25x4xbf16>
    %c307 = arith.constant 307 : index
    %c0_2 = arith.constant 0 : index
    %9 = vector.load %arg7[%c307, %c0_2] : memref<332x4xbf16, #tpu.memory_space<vmem>>, vector<25x4xbf16>
    tpu.vector_store %arg7[%c307, %c0_2], %8 {strides = array<i32>} : memref<332x4xbf16, #tpu.memory_space<vmem>>, vector<25x4xbf16>,
    %c0_3 = arith.constant 0 : index
    %c0_4 = arith.constant 0 : index
    %c0_5 = arith.constant 0 : index
    %10 = vector.load %arg1[%c0_3, %c0_4, %c0_5] : memref<1x256x4xbf16, #tpu.memory_space<vmem>>, vector<1x256x4xbf16>
    %11 = vector.shape_cast %10 : vector<1x256x4xbf16> to vector<256x4xbf16>
    %12 = vector.shape_cast %11 : vector<256x4xbf16> to vector<16x16x4xbf16>
    %cst_6 = arith.constant 0.000000e+00 : bf16
    %13 = vector.broadcast %cst_6 : bf16 to vector<16x2x4xbf16>
    %14 = tpu.concatenate %12, %13 in 1 : vector<16x16x4xbf16>, vector<16x2x4xbf16> -> vector<16x18x4xbf16>
    %15 = vector.shape_cast %14 : vector<16x18x4xbf16> to vector<288x4xbf16>
    %c19 = arith.constant 19 : index
    %c0_7 = arith.constant 0 : index
    %16 = vector.load %arg7[%c19, %c0_7] : memref<332x4xbf16, #tpu.memory_space<vmem>>, vector<288x4xbf16>
    tpu.vector_store %arg7[%c19, %c0_7], %15 {strides = array<i32>} : memref<332x4xbf16, #tpu.memory_space<vmem>>, vector<288x4xbf16>,
    %cst_8 = arith.constant 0.000000e+00 : f32
    %17 = vector.broadcast %cst_8 : f32 to vector<288x4xf32>
    %c0_9 = arith.constant 0 : index
    %c0_10 = arith.constant 0 : index
    %18 = vector.load %arg7[%c0_9, %c0_10] : memref<332x4xbf16, #tpu.memory_space<vmem>>, vector<288x4xbf16>
    %c0_11 = arith.constant 0 : index
    %c0_12 = arith.constant 0 : index
    %c0_13 = arith.constant 0 : index
    %c0_14 = arith.constant 0 : index
    %19 = vector.load %arg2[%c0_11, %c0_12, %c0_13, %c0_14] : memref<3x3x4x4xbf16, #tpu.memory_space<vmem>>, vector<1x1x4x4xbf16>
    %20 = vector.shape_cast %19 : vector<1x1x4x4xbf16> to vector<4x4xbf16>
    %cst_15 = arith.constant dense<0.000000e+00> : vector<288x4xf32>
    %21 = tpu.matmul %18, %20, %cst_15 {dimension_numbers = #tpu.dot_dimension_numbers<[1], [0], [0], [1], [0, 0, 1, 1], [], []>} : vector<288x4xbf16>, vector<4x4xbf16>, vector<288x4xf32> -> vector<288x4xf32>
    %22 = arith.addf %17, %21 : vector<288x4xf32>
    %c1 = arith.constant 1 : index
    %c0_16 = arith.constant 0 : index
    %23 = vector.load %arg7[%c1, %c0_16] : memref<332x4xbf16, #tpu.memory_space<vmem>>, vector<288x4xbf16>
    %c0_17 = arith.constant 0 : index
    %c1_18 = arith.constant 1 : index
    %c0_19 = arith.constant 0 : index
    %c0_20 = arith.constant 0 : index
    %24 = vector.load %arg2[%c0_17, %c1_18, %c0_19, %c0_20] : memref<3x3x4x4xbf16, #tpu.memory_space<vmem>>, vector<1x1x4x4xbf16>
    %25 = vector.shape_cast %24 : vector<1x1x4x4xbf16> to vector<4x4xbf16>
    %cst_21 = arith.constant dense<0.000000e+00> : vector<288x4xf32>
    %26 = tpu.matmul %23, %25, %cst_21 {dimension_numbers = #tpu.dot_dimension_numbers<[1], [0], [0], [1], [0, 0, 1, 1], [], []>} : vector<288x4xbf16>, vector<4x4xbf16>, vector<288x4xf32> -> vector<288x4xf32>
    %27 = arith.addf %22, %26 : vector<288x4xf32>
    %c2 = arith.constant 2 : index
    %c0_22 = arith.constant 0 : index
    %28 = vector.load %arg7[%c2, %c0_22] : memref<332x4xbf16, #tpu.memory_space<vmem>>, vector<288x4xbf16>
    %c0_23 = arith.constant 0 : index
    %c2_24 = arith.constant 2 : index
    %c0_25 = arith.constant 0 : index
    %c0_26 = arith.constant 0 : index
    %29 = vector.load %arg2[%c0_23, %c2_24, %c0_25, %c0_26] : memref<3x3x4x4xbf16, #tpu.memory_space<vmem>>, vector<1x1x4x4xbf16>
    %30 = vector.shape_cast %29 : vector<1x1x4x4xbf16> to vector<4x4xbf16>
    %cst_27 = arith.constant dense<0.000000e+00> : vector<288x4xf32>
    %31 = tpu.matmul %28, %30, %cst_27 {dimension_numbers = #tpu.dot_dimension_numbers<[1], [0], [0], [1], [0, 0, 1, 1], [], []>} : vector<288x4xbf16>, vector<4x4xbf16>, vector<288x4xf32> -> vector<288x4xf32>
    %32 = arith.addf %27, %31 : vector<288x4xf32>
    %c18 = arith.constant 18 : index
    %c0_28 = arith.constant 0 : index
    %33 = vector.load %arg7[%c18, %c0_28] : memref<332x4xbf16, #tpu.memory_space<vmem>>, vector<288x4xbf16>
    %c1_29 = arith.constant 1 : index
    %c0_30 = arith.constant 0 : index
    %c0_31 = arith.constant 0 : index
    %c0_32 = arith.constant 0 : index
    %34 = vector.load %arg2[%c1_29, %c0_30, %c0_31, %c0_32] : memref<3x3x4x4xbf16, #tpu.memory_space<vmem>>, vector<1x1x4x4xbf16>
    %35 = vector.shape_cast %34 : vector<1x1x4x4xbf16> to vector<4x4xbf16>
    %cst_33 = arith.constant dense<0.000000e+00> : vector<288x4xf32>
    %36 = tpu.matmul %33, %35, %cst_33 {dimension_numbers = #tpu.dot_dimension_numbers<[1], [0], [0], [1], [0, 0, 1, 1], [], []>} : vector<288x4xbf16>, vector<4x4xbf16>, vector<288x4xf32> -> vector<288x4xf32>
    %37 = arith.addf %32, %36 : vector<288x4xf32>
    %c19_34 = arith.constant 19 : index
    %c0_35 = arith.constant 0 : index
    %38 = vector.load %arg7[%c19_34, %c0_35] : memref<332x4xbf16, #tpu.memory_space<vmem>>, vector<288x4xbf16>
    %c1_36 = arith.constant 1 : index
    %c1_37 = arith.constant 1 : index
    %c0_38 = arith.constant 0 : index
    %c0_39 = arith.constant 0 : index
    %39 = vector.load %arg2[%c1_36, %c1_37, %c0_38, %c0_39] : memref<3x3x4x4xbf16, #tpu.memory_space<vmem>>, vector<1x1x4x4xbf16>
    %40 = vector.shape_cast %39 : vector<1x1x4x4xbf16> to vector<4x4xbf16>
    %cst_40 = arith.constant dense<0.000000e+00> : vector<288x4xf32>
    %41 = tpu.matmul %38, %40, %cst_40 {dimension_numbers = #tpu.dot_dimension_numbers<[1], [0], [0], [1], [0, 0, 1, 1], [], []>} : vector<288x4xbf16>, vector<4x4xbf16>, vector<288x4xf32> -> vector<288x4xf32>
    %42 = arith.addf %37, %41 : vector<288x4xf32>
    %c20 = arith.constant 20 : index
    %c0_41 = arith.constant 0 : index
    %43 = vector.load %arg7[%c20, %c0_41] : memref<332x4xbf16, #tpu.memory_space<vmem>>, vector<288x4xbf16>
    %c1_42 = arith.constant 1 : index
    %c2_43 = arith.constant 2 : index
    %c0_44 = arith.constant 0 : index
    %c0_45 = arith.constant 0 : index
    %44 = vector.load %arg2[%c1_42, %c2_43, %c0_44, %c0_45] : memref<3x3x4x4xbf16, #tpu.memory_space<vmem>>, vector<1x1x4x4xbf16>
    %45 = vector.shape_cast %44 : vector<1x1x4x4xbf16> to vector<4x4xbf16>
    %cst_46 = arith.constant dense<0.000000e+00> : vector<288x4xf32>
    %46 = tpu.matmul %43, %45, %cst_46 {dimension_numbers = #tpu.dot_dimension_numbers<[1], [0], [0], [1], [0, 0, 1, 1], [], []>} : vector<288x4xbf16>, vector<4x4xbf16>, vector<288x4xf32> -> vector<288x4xf32>
    %47 = arith.addf %42, %46 : vector<288x4xf32>
    %c36 = arith.constant 36 : index
    %c0_47 = arith.constant 0 : index
    %48 = vector.load %arg7[%c36, %c0_47] : memref<332x4xbf16, #tpu.memory_space<vmem>>, vector<288x4xbf16>
    %c2_48 = arith.constant 2 : index
    %c0_49 = arith.constant 0 : index
    %c0_50 = arith.constant 0 : index
    %c0_51 = arith.constant 0 : index
    %49 = vector.load %arg2[%c2_48, %c0_49, %c0_50, %c0_51] : memref<3x3x4x4xbf16, #tpu.memory_space<vmem>>, vector<1x1x4x4xbf16>
    %50 = vector.shape_cast %49 : vector<1x1x4x4xbf16> to vector<4x4xbf16>
    %cst_52 = arith.constant dense<0.000000e+00> : vector<288x4xf32>
    %51 = tpu.matmul %48, %50, %cst_52 {dimension_numbers = #tpu.dot_dimension_numbers<[1], [0], [0], [1], [0, 0, 1, 1], [], []>} : vector<288x4xbf16>, vector<4x4xbf16>, vector<288x4xf32> -> vector<288x4xf32>
    %52 = arith.addf %47, %51 : vector<288x4xf32>
    %c37 = arith.constant 37 : index
    %c0_53 = arith.constant 0 : index
    %53 = vector.load %arg7[%c37, %c0_53] : memref<332x4xbf16, #tpu.memory_space<vmem>>, vector<288x4xbf16>
    %c2_54 = arith.constant 2 : index
    %c1_55 = arith.constant 1 : index
    %c0_56 = arith.constant 0 : index
    %c0_57 = arith.constant 0 : index
    %54 = vector.load %arg2[%c2_54, %c1_55, %c0_56, %c0_57] : memref<3x3x4x4xbf16, #tpu.memory_space<vmem>>, vector<1x1x4x4xbf16>
    %55 = vector.shape_cast %54 : vector<1x1x4x4xbf16> to vector<4x4xbf16>
    %cst_58 = arith.constant dense<0.000000e+00> : vector<288x4xf32>
    %56 = tpu.matmul %53, %55, %cst_58 {dimension_numbers = #tpu.dot_dimension_numbers<[1], [0], [0], [1], [0, 0, 1, 1], [], []>} : vector<288x4xbf16>, vector<4x4xbf16>, vector<288x4xf32> -> vector<288x4xf32>
    %57 = arith.addf %52, %56 : vector<288x4xf32>
    %c38 = arith.constant 38 : index
    %c0_59 = arith.constant 0 : index
    %58 = vector.load %arg7[%c38, %c0_59] : memref<332x4xbf16, #tpu.memory_space<vmem>>, vector<288x4xbf16>
    %c2_60 = arith.constant 2 : index
    %c2_61 = arith.constant 2 : index
    %c0_62 = arith.constant 0 : index
    %c0_63 = arith.constant 0 : index
    %59 = vector.load %arg2[%c2_60, %c2_61, %c0_62, %c0_63] : memref<3x3x4x4xbf16, #tpu.memory_space<vmem>>, vector<1x1x4x4xbf16>
    %60 = vector.shape_cast %59 : vector<1x1x4x4xbf16> to vector<4x4xbf16>
    %cst_64 = arith.constant dense<0.000000e+00> : vector<288x4xf32>
    %61 = tpu.matmul %58, %60, %cst_64 {dimension_numbers = #tpu.dot_dimension_numbers<[1], [0], [0], [1], [0, 0, 1, 1], [], []>} : vector<288x4xbf16>, vector<4x4xbf16>, vector<288x4xf32> -> vector<288x4xf32>
    %62 = arith.addf %57, %61 : vector<288x4xf32>
    %c0_65 = arith.constant 0 : index
    %c0_66 = arith.constant 0 : index
    %63 = vector.load %arg3[%c0_65, %c0_66] : memref<1x4xf32, #tpu.memory_space<vmem>>, vector<1x4xf32>
    %64 = vector.broadcast %63 : vector<1x4xf32> to vector<288x4xf32>
    %65 = arith.addf %62, %64 : vector<288x4xf32>
    %66 = vector.broadcast %5 : vector<288x1xf32> to vector<288x4xf32>
    %67 = arith.mulf %65, %66 : vector<288x4xf32>
    %cst_67 = arith.constant dense<0.000000e+00> : vector<4xf32>
    %68 = vector.multi_reduction <add>, %67, %cst_67 [0] : vector<288x4xf32> to vector<4xf32>
    %69 = vector.shape_cast %68 : vector<4xf32> to vector<1x4xf32>
    %70 = arith.mulf %67, %67 : vector<288x4xf32>
    %cst_68 = arith.constant dense<0.000000e+00> : vector<4xf32>
    %71 = vector.multi_reduction <add>, %70, %cst_68 [0] : vector<288x4xf32> to vector<4xf32>
    %72 = vector.shape_cast %71 : vector<4xf32> to vector<1x4xf32>
    %cst_69 = arith.constant 3.906250e-03 : f32
    %73 = vector.broadcast %cst_69 : f32 to vector<1x4xf32>
    %74 = arith.mulf %69, %73 : vector<1x4xf32>
    %cst_70 = arith.constant 3.906250e-03 : f32
    %75 = vector.broadcast %cst_70 : f32 to vector<1x4xf32>
    %76 = arith.mulf %72, %75 : vector<1x4xf32>
    %77 = arith.mulf %74, %74 : vector<1x4xf32>
    %78 = arith.subf %76, %77 : vector<1x4xf32>
    %79 = vector.broadcast %74 : vector<1x4xf32> to vector<288x4xf32>
    %80 = arith.subf %65, %79 : vector<288x4xf32>
    %cst_71 = arith.constant 9.99999974E-6 : f32
    %81 = vector.broadcast %cst_71 : f32 to vector<1x4xf32>
    %82 = arith.addf %78, %81 : vector<1x4xf32>
    %83 = math.rsqrt %82 : vector<1x4xf32>
    %84 = vector.broadcast %83 : vector<1x4xf32> to vector<288x4xf32>
    %85 = arith.mulf %80, %84 : vector<288x4xf32>
    %cst_72 = arith.constant 0.000000e+00 : f32
    %86 = vector.broadcast %cst_72 : f32 to vector<288x4xf32>
    %87 = arith.maximumf %85, %86 : vector<288x4xf32>
    %88 = vector.broadcast %5 : vector<288x1xf32> to vector<288x4xf32>
    %89 = arith.mulf %87, %88 : vector<288x4xf32>
    %90 = arith.truncf %89 : vector<288x4xf32> to vector<288x4xbf16>
    %c19_73 = arith.constant 19 : index
    %c0_74 = arith.constant 0 : index
    %91 = vector.load %arg7[%c19_73, %c0_74] : memref<332x4xbf16, #tpu.memory_space<vmem>>, vector<288x4xbf16>
    tpu.vector_store %arg7[%c19_73, %c0_74], %90 {strides = array<i32>} : memref<332x4xbf16, #tpu.memory_space<vmem>>, vector<288x4xbf16>,
    %cst_75 = arith.constant 0.000000e+00 : f32
    %92 = vector.broadcast %cst_75 : f32 to vector<288x4xf32>
    %c0_76 = arith.constant 0 : index
    %c0_77 = arith.constant 0 : index
    %93 = vector.load %arg7[%c0_76, %c0_77] : memref<332x4xbf16, #tpu.memory_space<vmem>>, vector<288x4xbf16>
    %c0_78 = arith.constant 0 : index
    %c0_79 = arith.constant 0 : index
    %c0_80 = arith.constant 0 : index
    %c0_81 = arith.constant 0 : index
    %94 = vector.load %arg4[%c0_78, %c0_79, %c0_80, %c0_81] : memref<3x3x4x4xbf16, #tpu.memory_space<vmem>>, vector<1x1x4x4xbf16>
    %95 = vector.shape_cast %94 : vector<1x1x4x4xbf16> to vector<4x4xbf16>
    %cst_82 = arith.constant dense<0.000000e+00> : vector<288x4xf32>
    %96 = tpu.matmul %93, %95, %cst_82 {dimension_numbers = #tpu.dot_dimension_numbers<[1], [0], [0], [1], [0, 0, 1, 1], [], []>} : vector<288x4xbf16>, vector<4x4xbf16>, vector<288x4xf32> -> vector<288x4xf32>
    %97 = arith.addf %92, %96 : vector<288x4xf32>
    %c1_83 = arith.constant 1 : index
    %c0_84 = arith.constant 0 : index
    %98 = vector.load %arg7[%c1_83, %c0_84] : memref<332x4xbf16, #tpu.memory_space<vmem>>, vector<288x4xbf16>
    %c0_85 = arith.constant 0 : index
    %c1_86 = arith.constant 1 : index
    %c0_87 = arith.constant 0 : index
    %c0_88 = arith.constant 0 : index
    %99 = vector.load %arg4[%c0_85, %c1_86, %c0_87, %c0_88] : memref<3x3x4x4xbf16, #tpu.memory_space<vmem>>, vector<1x1x4x4xbf16>
    %100 = vector.shape_cast %99 : vector<1x1x4x4xbf16> to vector<4x4xbf16>
    %cst_89 = arith.constant dense<0.000000e+00> : vector<288x4xf32>
    %101 = tpu.matmul %98, %100, %cst_89 {dimension_numbers = #tpu.dot_dimension_numbers<[1], [0], [0], [1], [0, 0, 1, 1], [], []>} : vector<288x4xbf16>, vector<4x4xbf16>, vector<288x4xf32> -> vector<288x4xf32>
    %102 = arith.addf %97, %101 : vector<288x4xf32>
    %c2_90 = arith.constant 2 : index
    %c0_91 = arith.constant 0 : index
    %103 = vector.load %arg7[%c2_90, %c0_91] : memref<332x4xbf16, #tpu.memory_space<vmem>>, vector<288x4xbf16>
    %c0_92 = arith.constant 0 : index
    %c2_93 = arith.constant 2 : index
    %c0_94 = arith.constant 0 : index
    %c0_95 = arith.constant 0 : index
    %104 = vector.load %arg4[%c0_92, %c2_93, %c0_94, %c0_95] : memref<3x3x4x4xbf16, #tpu.memory_space<vmem>>, vector<1x1x4x4xbf16>
    %105 = vector.shape_cast %104 : vector<1x1x4x4xbf16> to vector<4x4xbf16>
    %cst_96 = arith.constant dense<0.000000e+00> : vector<288x4xf32>
    %106 = tpu.matmul %103, %105, %cst_96 {dimension_numbers = #tpu.dot_dimension_numbers<[1], [0], [0], [1], [0, 0, 1, 1], [], []>} : vector<288x4xbf16>, vector<4x4xbf16>, vector<288x4xf32> -> vector<288x4xf32>
    %107 = arith.addf %102, %106 : vector<288x4xf32>
    %c18_97 = arith.constant 18 : index
    %c0_98 = arith.constant 0 : index
    %108 = vector.load %arg7[%c18_97, %c0_98] : memref<332x4xbf16, #tpu.memory_space<vmem>>, vector<288x4xbf16>
    %c1_99 = arith.constant 1 : index
    %c0_100 = arith.constant 0 : index
    %c0_101 = arith.constant 0 : index
    %c0_102 = arith.constant 0 : index
    %109 = vector.load %arg4[%c1_99, %c0_100, %c0_101, %c0_102] : memref<3x3x4x4xbf16, #tpu.memory_space<vmem>>, vector<1x1x4x4xbf16>
    %110 = vector.shape_cast %109 : vector<1x1x4x4xbf16> to vector<4x4xbf16>
    %cst_103 = arith.constant dense<0.000000e+00> : vector<288x4xf32>
    %111 = tpu.matmul %108, %110, %cst_103 {dimension_numbers = #tpu.dot_dimension_numbers<[1], [0], [0], [1], [0, 0, 1, 1], [], []>} : vector<288x4xbf16>, vector<4x4xbf16>, vector<288x4xf32> -> vector<288x4xf32>
    %112 = arith.addf %107, %111 : vector<288x4xf32>
    %c19_104 = arith.constant 19 : index
    %c0_105 = arith.constant 0 : index
    %113 = vector.load %arg7[%c19_104, %c0_105] : memref<332x4xbf16, #tpu.memory_space<vmem>>, vector<288x4xbf16>
    %c1_106 = arith.constant 1 : index
    %c1_107 = arith.constant 1 : index
    %c0_108 = arith.constant 0 : index
    %c0_109 = arith.constant 0 : index
    %114 = vector.load %arg4[%c1_106, %c1_107, %c0_108, %c0_109] : memref<3x3x4x4xbf16, #tpu.memory_space<vmem>>, vector<1x1x4x4xbf16>
    %115 = vector.shape_cast %114 : vector<1x1x4x4xbf16> to vector<4x4xbf16>
    %cst_110 = arith.constant dense<0.000000e+00> : vector<288x4xf32>
    %116 = tpu.matmul %113, %115, %cst_110 {dimension_numbers = #tpu.dot_dimension_numbers<[1], [0], [0], [1], [0, 0, 1, 1], [], []>} : vector<288x4xbf16>, vector<4x4xbf16>, vector<288x4xf32> -> vector<288x4xf32>
    %117 = arith.addf %112, %116 : vector<288x4xf32>
    %c20_111 = arith.constant 20 : index
    %c0_112 = arith.constant 0 : index
    %118 = vector.load %arg7[%c20_111, %c0_112] : memref<332x4xbf16, #tpu.memory_space<vmem>>, vector<288x4xbf16>
    %c1_113 = arith.constant 1 : index
    %c2_114 = arith.constant 2 : index
    %c0_115 = arith.constant 0 : index
    %c0_116 = arith.constant 0 : index
    %119 = vector.load %arg4[%c1_113, %c2_114, %c0_115, %c0_116] : memref<3x3x4x4xbf16, #tpu.memory_space<vmem>>, vector<1x1x4x4xbf16>
    %120 = vector.shape_cast %119 : vector<1x1x4x4xbf16> to vector<4x4xbf16>
    %cst_117 = arith.constant dense<0.000000e+00> : vector<288x4xf32>
    %121 = tpu.matmul %118, %120, %cst_117 {dimension_numbers = #tpu.dot_dimension_numbers<[1], [0], [0], [1], [0, 0, 1, 1], [], []>} : vector<288x4xbf16>, vector<4x4xbf16>, vector<288x4xf32> -> vector<288x4xf32>
    %122 = arith.addf %117, %121 : vector<288x4xf32>
    %c36_118 = arith.constant 36 : index
    %c0_119 = arith.constant 0 : index
    %123 = vector.load %arg7[%c36_118, %c0_119] : memref<332x4xbf16, #tpu.memory_space<vmem>>, vector<288x4xbf16>
    %c2_120 = arith.constant 2 : index
    %c0_121 = arith.constant 0 : index
    %c0_122 = arith.constant 0 : index
    %c0_123 = arith.constant 0 : index
    %124 = vector.load %arg4[%c2_120, %c0_121, %c0_122, %c0_123] : memref<3x3x4x4xbf16, #tpu.memory_space<vmem>>, vector<1x1x4x4xbf16>
    %125 = vector.shape_cast %124 : vector<1x1x4x4xbf16> to vector<4x4xbf16>
    %cst_124 = arith.constant dense<0.000000e+00> : vector<288x4xf32>
    %126 = tpu.matmul %123, %125, %cst_124 {dimension_numbers = #tpu.dot_dimension_numbers<[1], [0], [0], [1], [0, 0, 1, 1], [], []>} : vector<288x4xbf16>, vector<4x4xbf16>, vector<288x4xf32> -> vector<288x4xf32>
    %127 = arith.addf %122, %126 : vector<288x4xf32>
    %c37_125 = arith.constant 37 : index
    %c0_126 = arith.constant 0 : index
    %128 = vector.load %arg7[%c37_125, %c0_126] : memref<332x4xbf16, #tpu.memory_space<vmem>>, vector<288x4xbf16>
    %c2_127 = arith.constant 2 : index
    %c1_128 = arith.constant 1 : index
    %c0_129 = arith.constant 0 : index
    %c0_130 = arith.constant 0 : index
    %129 = vector.load %arg4[%c2_127, %c1_128, %c0_129, %c0_130] : memref<3x3x4x4xbf16, #tpu.memory_space<vmem>>, vector<1x1x4x4xbf16>
    %130 = vector.shape_cast %129 : vector<1x1x4x4xbf16> to vector<4x4xbf16>
    %cst_131 = arith.constant dense<0.000000e+00> : vector<288x4xf32>
    %131 = tpu.matmul %128, %130, %cst_131 {dimension_numbers = #tpu.dot_dimension_numbers<[1], [0], [0], [1], [0, 0, 1, 1], [], []>} : vector<288x4xbf16>, vector<4x4xbf16>, vector<288x4xf32> -> vector<288x4xf32>
    %132 = arith.addf %127, %131 : vector<288x4xf32>
    %c38_132 = arith.constant 38 : index
    %c0_133 = arith.constant 0 : index
    %133 = vector.load %arg7[%c38_132, %c0_133] : memref<332x4xbf16, #tpu.memory_space<vmem>>, vector<288x4xbf16>
    %c2_134 = arith.constant 2 : index
    %c2_135 = arith.constant 2 : index
    %c0_136 = arith.constant 0 : index
    %c0_137 = arith.constant 0 : index
    %134 = vector.load %arg4[%c2_134, %c2_135, %c0_136, %c0_137] : memref<3x3x4x4xbf16, #tpu.memory_space<vmem>>, vector<1x1x4x4xbf16>
    %135 = vector.shape_cast %134 : vector<1x1x4x4xbf16> to vector<4x4xbf16>
    %cst_138 = arith.constant dense<0.000000e+00> : vector<288x4xf32>
    %136 = tpu.matmul %133, %135, %cst_138 {dimension_numbers = #tpu.dot_dimension_numbers<[1], [0], [0], [1], [0, 0, 1, 1], [], []>} : vector<288x4xbf16>, vector<4x4xbf16>, vector<288x4xf32> -> vector<288x4xf32>
    %137 = arith.addf %132, %136 : vector<288x4xf32>
    %c0_139 = arith.constant 0 : index
    %c0_140 = arith.constant 0 : index
    %138 = vector.load %arg5[%c0_139, %c0_140] : memref<1x4xf32, #tpu.memory_space<vmem>>, vector<1x4xf32>
    %139 = vector.broadcast %138 : vector<1x4xf32> to vector<288x4xf32>
    %140 = arith.addf %137, %139 : vector<288x4xf32>
    %141 = vector.broadcast %5 : vector<288x1xf32> to vector<288x4xf32>
    %142 = arith.mulf %140, %141 : vector<288x4xf32>
    %cst_141 = arith.constant dense<0.000000e+00> : vector<4xf32>
    %143 = vector.multi_reduction <add>, %142, %cst_141 [0] : vector<288x4xf32> to vector<4xf32>
    %144 = vector.shape_cast %143 : vector<4xf32> to vector<1x4xf32>
    %145 = arith.mulf %142, %142 : vector<288x4xf32>
    %cst_142 = arith.constant dense<0.000000e+00> : vector<4xf32>
    %146 = vector.multi_reduction <add>, %145, %cst_142 [0] : vector<288x4xf32> to vector<4xf32>
    %147 = vector.shape_cast %146 : vector<4xf32> to vector<1x4xf32>
    %cst_143 = arith.constant 3.906250e-03 : f32
    %148 = vector.broadcast %cst_143 : f32 to vector<1x4xf32>
    %149 = arith.mulf %144, %148 : vector<1x4xf32>
    %cst_144 = arith.constant 3.906250e-03 : f32
    %150 = vector.broadcast %cst_144 : f32 to vector<1x4xf32>
    %151 = arith.mulf %147, %150 : vector<1x4xf32>
    %152 = arith.mulf %149, %149 : vector<1x4xf32>
    %153 = arith.subf %151, %152 : vector<1x4xf32>
    %154 = vector.broadcast %149 : vector<1x4xf32> to vector<288x4xf32>
    %155 = arith.subf %140, %154 : vector<288x4xf32>
    %cst_145 = arith.constant 9.99999974E-6 : f32
    %156 = vector.broadcast %cst_145 : f32 to vector<1x4xf32>
    %157 = arith.addf %153, %156 : vector<1x4xf32>
    %158 = math.rsqrt %157 : vector<1x4xf32>
    %159 = vector.broadcast %158 : vector<1x4xf32> to vector<288x4xf32>
    %160 = arith.mulf %155, %159 : vector<288x4xf32>
    %c0_146 = arith.constant 0 : index
    %c0_147 = arith.constant 0 : index
    %c0_148 = arith.constant 0 : index
    %161 = vector.load %arg1[%c0_146, %c0_147, %c0_148] : memref<1x256x4xbf16, #tpu.memory_space<vmem>>, vector<1x256x4xbf16>
    %162 = vector.shape_cast %161 : vector<1x256x4xbf16> to vector<256x4xbf16>
    %163 = arith.extf %162 : vector<256x4xbf16> to vector<256x4xf32>
    %164 = vector.shape_cast %163 : vector<256x4xf32> to vector<16x16x4xf32>
    %165 = vector.shape_cast %160 : vector<288x4xf32> to vector<16x18x4xf32>
    %166 = vector.extract_strided_slice %165 {offsets = [0, 0, 0], sizes = [16, 16, 4], strides = [1, 1, 1]} : vector<16x18x4xf32> to vector<16x16x4xf32>
    %167 = arith.addf %164, %166 : vector<16x16x4xf32>
    %168 = vector.shape_cast %167 : vector<16x16x4xf32> to vector<16x64xf32>
    %c0_149 = arith.constant 0 : index
    %c0_150 = arith.constant 0 : index
    %c0_151 = arith.constant 0 : index
    %169 = vector.load %arg6[%c0_149, %c0_150, %c0_151] : memref<1x16x64xf32, #tpu.memory_space<vmem>>, vector<1x16x64xf32>
    %170 = vector.shape_cast %169 : vector<1x16x64xf32> to vector<16x64xf32>
    %171 = vector.shape_cast %168 : vector<16x64xf32> to vector<1x16x64xf32>
    tpu.vector_store %arg6[%c0_149, %c0_150, %c0_151], %171 {strides = array<i32>} : memref<1x16x64xf32, #tpu.memory_space<vmem>>, vector<1x16x64xf32>,
    return
  }
  func.func @transform_0(%arg0: i32) -> (i32, i32, i32) {
    %c0_i32 = arith.constant 0 : i32
    %c0_i32_0 = arith.constant 0 : i32
    %c0_i32_1 = arith.constant 0 : i32
    return %arg0, %c0_i32, %c0_i32_0 : i32, i32, i32
  }
  func.func @transform_1(%arg0: i32) -> (i32, i32, i32, i32) {
    %c0_i32 = arith.constant 0 : i32
    %c0_i32_0 = arith.constant 0 : i32
    %c0_i32_1 = arith.constant 0 : i32
    %c0_i32_2 = arith.constant 0 : i32
    %c0_i32_3 = arith.constant 0 : i32
    return %c0_i32, %c0_i32_0, %c0_i32_1, %c0_i32_2 : i32, i32, i32, i32
  }
  func.func @transform_2(%arg0: i32) -> (i32, i32) {
    %c0_i32 = arith.constant 0 : i32
    %c0_i32_0 = arith.constant 0 : i32
    %c0_i32_1 = arith.constant 0 : i32
    return %c0_i32, %c0_i32_0 : i32, i32
  }
  func.func @transform_3(%arg0: i32) -> (i32, i32, i32, i32) {
    %c0_i32 = arith.constant 0 : i32
    %c0_i32_0 = arith.constant 0 : i32
    %c0_i32_1 = arith.constant 0 : i32
    %c0_i32_2 = arith.constant 0 : i32
    %c0_i32_3 = arith.constant 0 : i32
    return %c0_i32, %c0_i32_0, %c0_i32_1, %c0_i32_2 : i32, i32, i32, i32
  }
  func.func @transform_4(%arg0: i32) -> (i32, i32) {
    %c0_i32 = arith.constant 0 : i32
    %c0_i32_0 = arith.constant 0 : i32
    %c0_i32_1 = arith.constant 0 : i32
    return %c0_i32, %c0_i32_0 : i32, i32
  }
  func.func @transform_5(%arg0: i32) -> (i32, i32, i32) {
    %c0_i32 = arith.constant 0 : i32
    %c0_i32_0 = arith.constant 0 : i32
    %c0_i32_1 = arith.constant 0 : i32
    return %arg0, %c0_i32, %c0_i32_0 : i32, i32, i32
  }
}

</mosaic_0001>

<llo_original>
// kernel: residual_block.1
$region0: #{residual_block.1}
  #allocation0 [shape = 'u32[]', space=smem, size = 0x4, offset = 0x4, fixed_abs, tag = 'smem constant byte address 0x4 - core index']
  #allocation1 [shape = 'u32[144,128]{1,0:T(1,128)}', space=vmem, size = 0x12000, scoped, tag = 'internal scratch']
  #allocation2 [shape = 'bf16[332,4]{1,0:T(8,128)(2,1)}', space=vmem, size = 0x15000, scoped, tag = 'scratch operand']
  %s0 = inlined_call_operand.vmem [shape: bf16[2,256,4], index: 0, kind: input, shape index: {}]
  %s1 = inlined_call_operand.vmem [shape: bf16[3,3,4,4], index: 1, kind: input, shape index: {}]
  %s2 = inlined_call_operand.vmem [shape: f32[1,4], index: 2, kind: input, shape index: {}]
  %s3 = inlined_call_operand.vmem [shape: bf16[3,3,4,4], index: 3, kind: input, shape index: {}]
  %s4 = inlined_call_operand.vmem [shape: f32[1,4], index: 4, kind: input, shape index: {}]
  %s5 = inlined_call_operand.vmem [shape: f32[2,16,64], index: 5, kind: output, shape index: {}]
  %s6 = sld [smem:[#allocation0]]
  $region53: #{residual_block.1} parent=0
    _
  %s8 = ssub.s32 1, %s6
  %s9 = scalar_select 0, %s8, %s6
  loop: start=0, step=1, limit=4
  $region2: #{residual_block.1} parent=0 // loop_pre_header
    _
  $region3: #{residual_block.1} parent=0 // loop_header
    %s11 = sphi 0, %s15
    %p12 = scmp.ge.s32.totalorder %s11, 4
    %s21 = sphi 0, %s23
    %s24 = sphi 0, %s21
    %s25 = sphi 0, %s24
    %s41 = sphi 0, %s25
    %s45 = sphi 0, %s45
    %s47 = sphi 0, %s45
    %s48 = sphi 0, %s47
    %s62 = sphi 0, %s48
    %s66 = sphi 0, %s66
    %s68 = sphi 0, %s66
    %s69 = sphi 0, %s68
    %s83 = sphi 0, %s69
    %s87 = sphi 0, %s87
    %s89 = sphi 0, %s87
    %s90 = sphi 0, %s89
    %s104 = sphi 0, %s90
    %s108 = sphi 0, %s108
    %s110 = sphi 0, %s108
    %s111 = sphi 0, %s110
    %s125 = sphi 0, %s111
    %s131 = sphi 0, %s133
    %s134 = sphi 0, %s131
    %s135 = sphi 0, %s134
    %s151 = sphi 0, %s135
  $region4: #{residual_block.1} parent=0 // loop_header_branch
    %14 = sbr.rel (%p12) target = $region8
  $region5: #{residual_block.1} parent=0 // loop_body
    %s16 = ssub.s32 %s11, 1
    %s17 = ssub.s32 %s11, 2
    %s18 = sadd.s32 %s11, 1
    %s19 = ssub.s32 %s11, %s18
    %p20 = scmp.eq.s32.totalorder %s19, 0
    %s22 = sadd.s32 %s21, 1
    %s23 = scalar_select %p20, %s21, %s22
    %p26 = pneg %p20
    %p27 = scmp.eq.s32.totalorder %s11, 1
    %p28 = por %p26, %p27
    %p29 = scmp.ne.s32.totalorder %s21, %s24
    %p30 = scmp.eq.s32.totalorder %s11, 0
    %p31 = por %p29, %p30
    %p32 = scmp.ne.s32.totalorder %s21, %s24
    %p33 = scmp.eq.s32.totalorder %s16, 1
    %p34 = por %p32, %p33
    %p35 = scmp.ne.s32.totalorder %s24, %s25
    %p36 = scmp.eq.s32.totalorder %s16, 0
    %p37 = por %p35, %p36
    %p38 = scmp.ne.s32.totalorder %s24, %s25
    %p39 = scmp.eq.s32.totalorder %s17, 1
    %p40 = por %p38, %p39
    %p42 = scmp.ne.s32.totalorder %s25, %s41
    %p43 = scmp.eq.s32.totalorder %s17, 0
    %p44 = por %p42, %p43
    %s46 = sadd.s32 %s45, 1
    %p49 = scmp.eq.s32.totalorder %s11, 1
    %p50 = scmp.ne.s32.totalorder %s45, %s47
    %p51 = scmp.eq.s32.totalorder %s11, 0
    %p52 = por %p50, %p51
    %p53 = scmp.ne.s32.totalorder %s45, %s47
    %p54 = scmp.eq.s32.totalorder %s16, 1
    %p55 = por %p53, %p54
    %p56 = scmp.ne.s32.totalorder %s47, %s48
    %p57 = scmp.eq.s32.totalorder %s16, 0
    %p58 = por %p56, %p57
    %p59 = scmp.ne.s32.totalorder %s47, %s48
    %p60 = scmp.eq.s32.totalorder %s17, 1
    %p61 = por %p59, %p60
    %p63 = scmp.ne.s32.totalorder %s48, %s62
    %p64 = scmp.eq.s32.totalorder %s17, 0
    %p65 = por %p63, %p64
    %s67 = sadd.s32 %s66, 1
    %p70 = scmp.eq.s32.totalorder %s11, 1
    %p71 = scmp.ne.s32.totalorder %s66, %s68
    %p72 = scmp.eq.s32.totalorder %s11, 0
    %p73 = por %p71, %p72
    %p74 = scmp.ne.s32.totalorder %s66, %s68
    %p75 = scmp.eq.s32.totalorder %s16, 1
    %p76 = por %p74, %p75
    %p77 = scmp.ne.s32.totalorder %s68, %s69
    %p78 = scmp.eq.s32.totalorder %s16, 0
    %p79 = por %p77, %p78
    %p80 = scmp.ne.s32.totalorder %s68, %s69
    %p81 = scmp.eq.s32.totalorder %s17, 1
    %p82 = por %p80, %p81
    %p84 = scmp.ne.s32.totalorder %s69, %s83
    %p85 = scmp.eq.s32.totalorder %s17, 0
    %p86 = por %p84, %p85
    %s88 = sadd.s32 %s87, 1
    %p91 = scmp.eq.s32.totalorder %s11, 1
    %p92 = scmp.ne.s32.totalorder %s87, %s89
    %p93 = scmp.eq.s32.totalorder %s11, 0
    %p94 = por %p92, %p93
    %p95 = scmp.ne.s32.totalorder %s87, %s89
    %p96 = scmp.eq.s32.totalorder %s16, 1
    %p97 = por %p95, %p96
    %p98 = scmp.ne.s32.totalorder %s89, %s90
    %p99 = scmp.eq.s32.totalorder %s16, 0
    %p100 = por %p98, %p99
    %p101 = scmp.ne.s32.totalorder %s89, %s90
    %p102 = scmp.eq.s32.totalorder %s17, 1
    %p103 = por %p101, %p102
    %p105 = scmp.ne.s32.totalorder %s90, %s104
    %p106 = scmp.eq.s32.totalorder %s17, 0
    %p107 = por %p105, %p106
    %s109 = sadd.s32 %s108, 1
    %p112 = scmp.eq.s32.totalorder %s11, 1
    %p113 = scmp.ne.s32.totalorder %s108, %s110
    %p114 = scmp.eq.s32.totalorder %s11, 0
    %p115 = por %p113, %p114
    %p116 = scmp.ne.s32.totalorder %s108, %s110
    %p117 = scmp.eq.s32.totalorder %s16, 1
    %p118 = por %p116, %p117
    %p119 = scmp.ne.s32.totalorder %s110, %s111
    %p120 = scmp.eq.s32.totalorder %s16, 0
    %p121 = por %p119, %p120
    %p122 = scmp.ne.s32.totalorder %s110, %s111
    %p123 = scmp.eq.s32.totalorder %s17, 1
    %p124 = por %p122, %p123
    %p126 = scmp.ne.s32.totalorder %s111, %s125
    %p127 = scmp.eq.s32.totalorder %s17, 0
    %p128 = por %p126, %p127
    %s129 = ssub.s32 %s11, %s18
    %p130 = scmp.eq.s32.totalorder %s129, 0
    %s132 = sadd.s32 %s131, 1
    %s133 = scalar_select %p130, %s131, %s132
    %p136 = pneg %p130
    %p137 = scmp.eq.s32.totalorder %s11, 1
    %p138 = por %p136, %p137
    %p139 = scmp.ne.s32.totalorder %s131, %s134
    %p140 = scmp.eq.s32.totalorder %s11, 0
    %p141 = por %p139, %p140
    %p142 = scmp.ne.s32.totalorder %s131, %s134
    %p143 = scmp.eq.s32.totalorder %s16, 1
    %p144 = por %p142, %p143
    %p145 = scmp.ne.s32.totalorder %s134, %s135
    %p146 = scmp.eq.s32.totalorder %s16, 0
    %p147 = por %p145, %p146
    %p148 = scmp.ne.s32.totalorder %s134, %s135
    %p149 = scmp.eq.s32.totalorder %s17, 1
    %p150 = por %p148, %p149
    %p152 = scmp.ne.s32.totalorder %s135, %s151
    %p153 = scmp.eq.s32.totalorder %s17, 0
    %p154 = por %p152, %p153
    %p155 = scmp.le.s32.totalorder 1, %s11
    %p156 = scmp.lt.s32.totalorder %s11, 3
    %p157 = pnand %p155, %p156
    %p158 = pneg %p157
    // Predicated region
    $region9: #{residual_block.1} parent=5 // pred_check
      _
    $region10: #{residual_block.1} parent=5 // pred_check_branch
      %160 = sbr.rel (%p157) target = $region12
    $region11: #{residual_block.1} parent=5 // pred_region
      %s161 = ssub.s32 %s11, 1
      // Predicated region
      $region13: #{residual_block.1} parent=11 // pred_check
        %p162 = pneg %p58
      $region14: #{residual_block.1} parent=11 // pred_check_branch
        %164 = sbr.rel (%p162) target = $region16
      $region15: #{residual_block.1} parent=11 // pred_region
        _
      $region16: #{residual_block.1} parent=11 // pred_fallthru
        _
      // Predicated region
      $region17: #{residual_block.1} parent=11 // pred_check
        %p165 = pneg %p79
      $region18: #{residual_block.1} parent=11 // pred_check_branch
        %167 = sbr.rel (%p165) target = $region20
      $region19: #{residual_block.1} parent=11 // pred_region
        _
      $region20: #{residual_block.1} parent=11 // pred_fallthru
        _
      // Predicated region
      $region21: #{residual_block.1} parent=11 // pred_check
        %p168 = pneg %p100
      $region22: #{residual_block.1} parent=11 // pred_check_branch
        %170 = sbr.rel (%p168) target = $region24
      $region23: #{residual_block.1} parent=11 // pred_region
        _
      $region24: #{residual_block.1} parent=11 // pred_fallthru
        _
      // Predicated region
      $region25: #{residual_block.1} parent=11 // pred_check
        %p171 = pneg %p121
      $region26: #{residual_block.1} parent=11 // pred_check_branch
        %173 = sbr.rel (%p171) target = $region28
      $region27: #{residual_block.1} parent=11 // pred_region
        _
      $region28: #{residual_block.1} parent=11 // pred_fallthru
        _
    $region12: #{residual_block.1} parent=5 // pred_fallthru
      _
    %p174 = scmp.lt.s32.totalorder %s11, 2
    // Predicated region
    $region29: #{residual_block.1} parent=5 // pred_check
      %p175 = pneg %p174
    $region30: #{residual_block.1} parent=5 // pred_check_branch
      %177 = sbr.rel (%p175) target = $region32
    $region31: #{residual_block.1} parent=5 // pred_region
      // Predicated region
      $region33: #{residual_block.1} parent=31 // pred_check
        %p178 = pneg %p31
      $region34: #{residual_block.1} parent=31 // pred_check_branch
        %180 = sbr.rel (%p178) target = $region36
      $region35: #{residual_block.1} parent=31 // pred_region
        %p181 = scmp.lt.s32.totalorder %s11, 1
        %s182 = scalar_select %p181, %s11, 1
        %s183 = smul.addr %s182, 32
        %s184 = smul.addr %s183, 4
        %s185 = scalar_lea.vmem %s0, %s184
      $region36: #{residual_block.1} parent=31 // pred_fallthru
        _
    $region32: #{residual_block.1} parent=5 // pred_fallthru
      _
    %p186 = scmp.le.s32.totalorder 1, %s11
    %p187 = scmp.lt.s32.totalorder %s11, 3
    %p188 = pnand %p186, %p187
    %p189 = pneg %p188
    // Predicated region
    $region37: #{residual_block.1} parent=5 // pred_check
      _
    $region38: #{residual_block.1} parent=5 // pred_check_branch
      %191 = sbr.rel (%p188) target = $region40
    $region39: #{residual_block.1} parent=5 // pred_region
      %s192 = ssub.s32 %s11, 1
      %p193 = scmp.lt.s32.totalorder %s16, 1
      %s194 = scalar_select %p193, %s16, 1
      %s195 = smul.addr %s194, 32
      %s196 = smul.addr %s195, 4
      %s197 = scalar_lea.vmem %s0, %s196
      %p198 = pneg %p37
      %p199 = pneg %p34
      %p200 = pneg %p58
      %p201 = pneg %p55
      %p202 = pneg %p79
      %p203 = pneg %p76
      %p204 = pneg %p100
      %p205 = pneg %p97
      %p206 = pneg %p121
      %p207 = pneg %p118
      %p208 = pneg %p147
      %p209 = pneg %p144
      %p210 = scmp.lt.s32.totalorder %s16, 1
      %s211 = scalar_select %p210, %s16, 1
      %s212 = smul.addr %s211, 2
      %s213 = smul.addr %s212, 8
      %s214 = scalar_lea.vmem %s5, %s213
      %p215 = scmp.lt.s32.totalorder %s16, 1
      %s216 = scalar_select %p215, %s16, 1
      %s217 = smul.addr %s216, 32
      %s218 = smul.addr %s217, 4
      %s219 = scalar_lea.vmem %s0, %s218
      %p220 = scmp.lt.s32.totalorder %s16, 1
      %s221 = scalar_select %p220, %s16, 1
      %s222 = smul.addr %s221, 2
      %s223 = smul.addr %s222, 8
      %s224 = scalar_lea.vmem %s5, %s223
      %v226 = vlaneseq
      %v227 = vshrl.u32 %v226, 7
      %v228 = vadd.s32 %v227, 8
      %v229 = vadd.s32 %v227, 16
      %vm230 = vcmp.lt.s32.totalorder %v227, 16
      %vm231 = vcmp.lt.s32.totalorder %v228, 16
      %vm232 = vcmp.lt.s32.totalorder %v229, 16
      %v233 = vsel %vm230, 1, 0
      %v234 = vsel %vm231, 1, 0
      %v235 = vsel %vm232, 1, 0
      %v236 = vcvt.s32.f32 %v233
      %v237 = vcvt.s32.f32 %v234
      %v238 = vcvt.s32.f32 %v235
      %v243 = vunpack.c.l.s4 269488144
      %v244 = vunpack.c.0.s8 %v243
      %v245 = vlaneseq
      %v246 = vshrl.u32 %v245, 7
      %v247 = vsub.s32 %v244, %v246
      %v248 = vrot.slane %v236, %v247
      %v250 = vunpack.c.l.s4 842150450
      %v251 = vunpack.c.0.s8 %v250
      %v252 = vlaneseq
      %v253 = vshrl.u32 %v252, 7
      %v254 = vsub.s32 %v251, %v253
      %v255 = vrot.slane %v236, %v254
      %v257 = vunpack.c.l.s4 1414812756
      %v258 = vunpack.c.0.s8 %v257
      %v259 = vlaneseq
      %v260 = vshrl.u32 %v259, 7
      %v261 = vsub.s32 %v258, %v260
      %v262 = vrot.slane %v236, %v261
      %v264 = vunpack.c.l.s4 1987475062
      %v265 = vunpack.c.0.s8 %v264
      %v266 = vlaneseq
      %v267 = vshrl.u32 %v266, 7
      %v268 = vsub.s32 %v265, %v267
      %v269 = vrot.slane %v236, %v268
      %v271 = vunpack.c.l.s4 269488144
      %v272 = vunpack.c.0.s8 %v271
      %v273 = vlaneseq
      %v274 = vshrl.u32 %v273, 7
      %v275 = vsub.s32 %v272, %v274
      %v276 = vrot.slane %v237, %v275
      %v278 = vunpack.c.l.s4 842150450
      %v279 = vunpack.c.0.s8 %v278
      %v280 = vlaneseq
      %v281 = vshrl.u32 %v280, 7
      %v282 = vsub.s32 %v279, %v281
      %v283 = vrot.slane %v237, %v282
      %v285 = vunpack.c.l.s4 1414812756
      %v286 = vunpack.c.0.s8 %v285
      %v287 = vlaneseq
      %v288 = vshrl.u32 %v287, 7
      %v289 = vsub.s32 %v286, %v288
      %v290 = vrot.slane %v237, %v289
      %v292 = vunpack.c.l.s4 1987475062
      %v293 = vunpack.c.0.s8 %v292
      %v294 = vlaneseq
      %v295 = vshrl.u32 %v294, 7
      %v296 = vsub.s32 %v293, %v295
      %v297 = vrot.slane %v237, %v296
      %v299 = vunpack.c.l.s4 269488144
      %v300 = vunpack.c.0.s8 %v299
      %v301 = vlaneseq
      %v302 = vshrl.u32 %v301, 7
      %v303 = vsub.s32 %v300, %v302
      %v304 = vrot.slane %v238, %v303
      %vm305 = vcmask 27648
      %306 = vst.msk [vmem:[#allocation2] sm:$0xf] %vm305, 0
      %307 = vst.msk [vmem:[#allocation2 + $0x4] sm:$0xf] %vm305, 0
      %vm308 = vcmask 25600
      %vm309 = vsmask.f32 1280
      %vm310 = vmand %vm308, %vm309
      %v311 = vld [vmem:[#allocation2 + $0x8] sm:$0x3]
      %v312 = vsel %vm310, 0, %v311
      %313 = vst [vmem:[#allocation2 + $0x8] sm:$0x3] %v312
      %vm314 = vcmask 27649
      %vm315 = vsmask.f32 7942
      %vm316 = vmand %vm314, %vm315
      %v317 = vld [vmem:[#allocation2 + $0x98] sm:$0xe]
      %v318 = vsel %vm316, 0, %v317
      %319 = vst [vmem:[#allocation2 + $0x98] sm:$0xe] %v318
      %320 = vst.msk [vmem:[#allocation2 + $0x9c] sm:$0xf] %vm305, 0
      %321 = vst.msk [vmem:[#allocation2 + $0xa0] sm:$0xf] %vm305, 0
      %vm322 = vcmask 25600
      %323 = vst.msk [vmem:[#allocation2 + $0xa4] sm:$0x3] %vm322, 0
      %v324 = vld [vmem:[%s219] sm:$0xf]
      %v325 = vld [vmem:[%s219 + $0x4] sm:$0xf]
      %v326 = vld [vmem:[%s219 + $0x8] sm:$0xf]
      %v327 = vld [vmem:[%s219 + $0xc] sm:$0xf]
      %v328 = vld [vmem:[%s219 + $0x10] sm:$0xf]
      %v329 = vld [vmem:[%s219 + $0x14] sm:$0xf]
      %v330 = vld [vmem:[%s219 + $0x18] sm:$0xf]
      %v331 = vld [vmem:[%s219 + $0x1c] sm:$0xf]
      %v332 = vld [vmem:[%s219 + $0x20] sm:$0xf]
      %v333 = vld [vmem:[%s219 + $0x24] sm:$0xf]
      %v334 = vld [vmem:[%s219 + $0x28] sm:$0xf]
      %v335 = vld [vmem:[%s219 + $0x2c] sm:$0xf]
      %v336 = vld [vmem:[%s219 + $0x30] sm:$0xf]
      %v337 = vld [vmem:[%s219 + $0x34] sm:$0xf]
      %v338 = vld [vmem:[%s219 + $0x38] sm:$0xf]
      %v339 = vld [vmem:[%s219 + $0x3c] sm:$0xf]
      %v340 = vld [vmem:[%s219 + $0x40] sm:$0xf]
      %v341 = vld [vmem:[%s219 + $0x44] sm:$0xf]
      %v342 = vld [vmem:[%s219 + $0x48] sm:$0xf]
      %v343 = vld [vmem:[%s219 + $0x4c] sm:$0xf]
      %v344 = vld [vmem:[%s219 + $0x50] sm:$0xf]
      %v345 = vld [vmem:[%s219 + $0x54] sm:$0xf]
      %v346 = vld [vmem:[%s219 + $0x58] sm:$0xf]
      %v347 = vld [vmem:[%s219 + $0x5c] sm:$0xf]
      %v348 = vld [vmem:[%s219 + $0x60] sm:$0xf]
      %v349 = vld [vmem:[%s219 + $0x64] sm:$0xf]
      %v350 = vld [vmem:[%s219 + $0x68] sm:$0xf]
      %v351 = vld [vmem:[%s219 + $0x6c] sm:$0xf]
      %v352 = vld [vmem:[%s219 + $0x70] sm:$0xf]
      %v353 = vld [vmem:[%s219 + $0x74] sm:$0xf]
      %v354 = vld [vmem:[%s219 + $0x78] sm:$0xf]
      %v355 = vld [vmem:[%s219 + $0x7c] sm:$0xf]
      %v388 = vunpack.c.l.b16 %v324
      %v389 = vunpack.c.l.b16 %v325
      %v390 = vunpack.c.l.b16 %v326
      %v391 = vunpack.c.l.b16 %v327
      %v392 = vunpack.c.l.b16 %v328
      %v393 = vunpack.c.l.b16 %v329
      %v394 = vunpack.c.l.b16 %v330
      %v395 = vunpack.c.l.b16 %v331
      %v396 = vunpack.c.l.b16 %v332
      %v397 = vunpack.c.l.b16 %v333
      %v398 = vunpack.c.l.b16 %v334
      %v399 = vunpack.c.l.b16 %v335
      %v400 = vunpack.c.l.b16 %v336
      %v401 = vunpack.c.l.b16 %v337
      %v402 = vunpack.c.l.b16 %v338
      %v403 = vunpack.c.l.b16 %v339
      %v404 = vunpack.c.l.b16 %v340
      %v405 = vunpack.c.l.b16 %v341
      %v406 = vunpack.c.l.b16 %v342
      %v407 = vunpack.c.l.b16 %v343
      %v408 = vunpack.c.l.b16 %v344
      %v409 = vunpack.c.l.b16 %v345
      %v410 = vunpack.c.l.b16 %v346
      %v411 = vunpack.c.l.b16 %v347
      %v412 = vunpack.c.l.b16 %v348
      %v413 = vunpack.c.l.b16 %v349
      %v414 = vunpack.c.l.b16 %v350
      %v415 = vunpack.c.l.b16 %v351
      %v416 = vunpack.c.l.b16 %v352
      %v417 = vunpack.c.l.b16 %v353
      %v418 = vunpack.c.l.b16 %v354
      %v419 = vunpack.c.l.b16 %v355
      %v420 = vpack.c.b16 %v389, %v388
      %v421 = vpack.c.b16 %v391, %v390
      %v422 = vpack.c.b16 %v393, %v392
      %v423 = vpack.c.b16 %v395, %v394
      %v424 = vpack.c.b16 %v397, %v396
      %v425 = vpack.c.b16 %v399, %v398
      %v426 = vpack.c.b16 %v401, %v400
      %v427 = vpack.c.b16 %v403, %v402
      %v428 = vpack.c.b16 %v405, %v404
      %v429 = vpack.c.b16 %v407, %v406
      %v430 = vpack.c.b16 %v409, %v408
      %v431 = vpack.c.b16 %v411, %v410
      %v432 = vpack.c.b16 %v413, %v412
      %v433 = vpack.c.b16 %v415, %v414
      %v434 = vpack.c.b16 %v417, %v416
      %v435 = vpack.c.b16 %v419, %v418
      %v437 = vcombine.high %v420, %v420
      %v439 = vunpack.c.l.s4 1966171168
      %v440 = vunpack.c.0.s8 %v439
      %v441 = vlaneseq
      %v442 = vshrl.u32 %v441, 7
      %v443 = vsub.s32 %v440, %v442
      %v444 = vrot.slane %v420, %v443
      %v446 = vunpack.c.l.s4 1966171168
      %v447 = vunpack.c.0.s8 %v446
      %v448 = vlaneseq
      %v449 = vshrl.u32 %v448, 7
      %v450 = vsub.s32 %v447, %v449
      %v451 = vrot.slane %v437, %v450
      %v452 = vcombine.high %v444, %v444
      %v453 = vcombine.high %v451, %v451
      %v455 = vunpack.c.l.s4 1966171168
      %v456 = vunpack.c.0.s8 %v455
      %v457 = vlaneseq
      %v458 = vshrl.u32 %v457, 7
      %v459 = vsub.s32 %v456, %v458
      %v460 = vrot.slane %v444, %v459
      %v462 = vunpack.c.l.s4 1966171168
      %v463 = vunpack.c.0.s8 %v462
      %v464 = vlaneseq
      %v465 = vshrl.u32 %v464, 7
      %v466 = vsub.s32 %v463, %v465
      %v467 = vrot.slane %v451, %v466
      %v469 = vunpack.c.l.s4 1966171168
      %v470 = vunpack.c.0.s8 %v469
      %v471 = vlaneseq
      %v472 = vshrl.u32 %v471, 7
      %v473 = vsub.s32 %v470, %v472
      %v474 = vrot.slane %v452, %v473
      %v476 = vunpack.c.l.s4 1966171168
      %v477 = vunpack.c.0.s8 %v476
      %v478 = vlaneseq
      %v479 = vshrl.u32 %v478, 7
      %v480 = vsub.s32 %v477, %v479
      %v481 = vrot.slane %v453, %v480
      %v482 = vcombine.high %v460, %v460
      %v483 = vcombine.high %v467, %v467
      %v484 = vcombine.high %v474, %v474
      %v485 = vcombine.high %v481, %v481
      %v487 = vunpack.c.l.s4 1966171168
      %v488 = vunpack.c.0.s8 %v487
      %v489 = vlaneseq
      %v490 = vshrl.u32 %v489, 7
      %v491 = vsub.s32 %v488, %v490
      %v492 = vrot.slane 0, %v491
      %v494 = vunpack.c.l.s4 1966171168
      %v495 = vunpack.c.0.s8 %v494
      %v496 = vlaneseq
      %v497 = vshrl.u32 %v496, 7
      %v498 = vsub.s32 %v495, %v497
      %v499 = vrot.slane %v492, %v498
      %v500 = vcombine.high %v421, %v421
      %v502 = vunpack.c.l.s4 1966171168
      %v503 = vunpack.c.0.s8 %v502
      %v504 = vlaneseq
      %v505 = vshrl.u32 %v504, 7
      %v506 = vsub.s32 %v503, %v505
      %v507 = vrot.slane %v421, %v506
      %v509 = vunpack.c.l.s4 1966171168
      %v510 = vunpack.c.0.s8 %v509
      %v511 = vlaneseq
      %v512 = vshrl.u32 %v511, 7
      %v513 = vsub.s32 %v510, %v512
      %v514 = vrot.slane %v500, %v513
      %v515 = vcombine.high %v507, %v507
      %v516 = vcombine.high %v514, %v514
      %v518 = vunpack.c.l.s4 1966171168
      %v519 = vunpack.c.0.s8 %v518
      %v520 = vlaneseq
      %v521 = vshrl.u32 %v520, 7
      %v522 = vsub.s32 %v519, %v521
      %v523 = vrot.slane %v507, %v522
      %v525 = vunpack.c.l.s4 1966171168
      %v526 = vunpack.c.0.s8 %v525
      %v527 = vlaneseq
      %v528 = vshrl.u32 %v527, 7
      %v529 = vsub.s32 %v526, %v528
      %v530 = vrot.slane %v514, %v529
      %v532 = vunpack.c.l.s4 1966171168
      %v533 = vunpack.c.0.s8 %v532
      %v534 = vlaneseq
      %v535 = vshrl.u32 %v534, 7
      %v536 = vsub.s32 %v533, %v535
      %v537 = vrot.slane %v515, %v536
      %v539 = vunpack.c.l.s4 1966171168
      %v540 = vunpack.c.0.s8 %v539
      %v541 = vlaneseq
      %v542 = vshrl.u32 %v541, 7
      %v543 = vsub.s32 %v540, %v542
      %v544 = vrot.slane %v516, %v543
      %v545 = vcombine.high %v523, %v523
      %v546 = vcombine.high %v530, %v530
      %v547 = vcombine.high %v537, %v537
      %v548 = vcombine.high %v544, %v544
      %v549 = vcombine.high %v422, %v422
      %v551 = vunpack.c.l.s4 1966171168
      %v552 = vunpack.c.0.s8 %v551
      %v553 = vlaneseq
      %v554 = vshrl.u32 %v553, 7
      %v555 = vsub.s32 %v552, %v554
      %v556 = vrot.slane %v422, %v555
      %v558 = vunpack.c.l.s4 1966171168
      %v559 = vunpack.c.0.s8 %v558
      %v560 = vlaneseq
      %v561 = vshrl.u32 %v560, 7
      %v562 = vsub.s32 %v559, %v561
      %v563 = vrot.slane %v549, %v562
      %v564 = vcombine.high %v556, %v556
      %v565 = vcombine.high %v563, %v563
      %v567 = vunpack.c.l.s4 1966171168
      %v568 = vunpack.c.0.s8 %v567
      %v569 = vlaneseq
      %v570 = vshrl.u32 %v569, 7
      %v571 = vsub.s32 %v568, %v570
      %v572 = vrot.slane %v556, %v571
      %v574 = vunpack.c.l.s4 1966171168
      %v575 = vunpack.c.0.s8 %v574
      %v576 = vlaneseq
      %v577 = vshrl.u32 %v576, 7
      %v578 = vsub.s32 %v575, %v577
      %v579 = vrot.slane %v563, %v578
      %v581 = vunpack.c.l.s4 1966171168
      %v582 = vunpack.c.0.s8 %v581
      %v583 = vlaneseq
      %v584 = vshrl.u32 %v583, 7
      %v585 = vsub.s32 %v582, %v584
      %v586 = vrot.slane %v564, %v585
      %v588 = vunpack.c.l.s4 1966171168
      %v589 = vunpack.c.0.s8 %v588
      %v590 = vlaneseq
      %v591 = vshrl.u32 %v590, 7
      %v592 = vsub.s32 %v589, %v591
      %v593 = vrot.slane %v565, %v592
      %v594 = vcombine.high %v572, %v572
      %v595 = vcombine.high %v579, %v579
      %v596 = vcombine.high %v586, %v586
      %v597 = vcombine.high %v593, %v593
      %v598 = vcombine.high %v423, %v423
      %v600 = vunpack.c.l.s4 1966171168
      %v601 = vunpack.c.0.s8 %v600
      %v602 = vlaneseq
      %v603 = vshrl.u32 %v602, 7
      %v604 = vsub.s32 %v601, %v603
      %v605 = vrot.slane %v423, %v604
      %v607 = vunpack.c.l.s4 1966171168
      %v608 = vunpack.c.0.s8 %v607
      %v609 = vlaneseq
      %v610 = vshrl.u32 %v609, 7
      %v611 = vsub.s32 %v608, %v610
      %v612 = vrot.slane %v598, %v611
      %v613 = vcombine.high %v605, %v605
      %v614 = vcombine.high %v612, %v612
      %v616 = vunpack.c.l.s4 1966171168
      %v617 = vunpack.c.0.s8 %v616
      %v618 = vlaneseq
      %v619 = vshrl.u32 %v618, 7
      %v620 = vsub.s32 %v617, %v619
      %v621 = vrot.slane %v605, %v620
      %v623 = vunpack.c.l.s4 1966171168
      %v624 = vunpack.c.0.s8 %v623
      %v625 = vlaneseq
      %v626 = vshrl.u32 %v625, 7
      %v627 = vsub.s32 %v624, %v626
      %v628 = vrot.slane %v612, %v627
      %v630 = vunpack.c.l.s4 1966171168
      %v631 = vunpack.c.0.s8 %v630
      %v632 = vlaneseq
      %v633 = vshrl.u32 %v632, 7
      %v634 = vsub.s32 %v631, %v633
      %v635 = vrot.slane %v613, %v634
      %v637 = vunpack.c.l.s4 1966171168
      %v638 = vunpack.c.0.s8 %v637
      %v639 = vlaneseq
      %v640 = vshrl.u32 %v639, 7
      %v641 = vsub.s32 %v638, %v640
      %v642 = vrot.slane %v614, %v641
      %v643 = vcombine.high %v621, %v621
      %v644 = vcombine.high %v628, %v628
      %v645 = vcombine.high %v635, %v635
      %v646 = vcombine.high %v642, %v642
      %v647 = vcombine.high %v424, %v424
      %v649 = vunpack.c.l.s4 1966171168
      %v650 = vunpack.c.0.s8 %v649
      %v651 = vlaneseq
      %v652 = vshrl.u32 %v651, 7
      %v653 = vsub.s32 %v650, %v652
      %v654 = vrot.slane %v424, %v653
      %v656 = vunpack.c.l.s4 1966171168
      %v657 = vunpack.c.0.s8 %v656
      %v658 = vlaneseq
      %v659 = vshrl.u32 %v658, 7
      %v660 = vsub.s32 %v657, %v659
      %v661 = vrot.slane %v647, %v660
      %v662 = vcombine.high %v654, %v654
      %v663 = vcombine.high %v661, %v661
      %v665 = vunpack.c.l.s4 1966171168
      %v666 = vunpack.c.0.s8 %v665
      %v667 = vlaneseq
      %v668 = vshrl.u32 %v667, 7
      %v669 = vsub.s32 %v666, %v668
      %v670 = vrot.slane %v654, %v669
      %v672 = vunpack.c.l.s4 1966171168
      %v673 = vunpack.c.0.s8 %v672
      %v674 = vlaneseq
      %v675 = vshrl.u32 %v674, 7
      %v676 = vsub.s32 %v673, %v675
      %v677 = vrot.slane %v661, %v676
      %v679 = vunpack.c.l.s4 1966171168
      %v680 = vunpack.c.0.s8 %v679
      %v681 = vlaneseq
      %v682 = vshrl.u32 %v681, 7
      %v683 = vsub.s32 %v680, %v682
      %v684 = vrot.slane %v662, %v683
      %v686 = vunpack.c.l.s4 1966171168
      %v687 = vunpack.c.0.s8 %v686
      %v688 = vlaneseq
      %v689 = vshrl.u32 %v688, 7
      %v690 = vsub.s32 %v687, %v689
      %v691 = vrot.slane %v663, %v690
      %v692 = vcombine.high %v670, %v670
      %v693 = vcombine.high %v677, %v677
      %v694 = vcombine.high %v684, %v684
      %v695 = vcombine.high %v691, %v691
      %v696 = vcombine.high %v425, %v425
      %v698 = vunpack.c.l.s4 1966171168
      %v699 = vunpack.c.0.s8 %v698
      %v700 = vlaneseq
      %v701 = vshrl.u32 %v700, 7
      %v702 = vsub.s32 %v699, %v701
      %v703 = vrot.slane %v425, %v702
      %v705 = vunpack.c.l.s4 1966171168
      %v706 = vunpack.c.0.s8 %v705
      %v707 = vlaneseq
      %v708 = vshrl.u32 %v707, 7
      %v709 = vsub.s32 %v706, %v708
      %v710 = vrot.slane %v696, %v709
      %v711 = vcombine.high %v703, %v703
      %v712 = vcombine.high %v710, %v710
      %v714 = vunpack.c.l.s4 1966171168
      %v715 = vunpack.c.0.s8 %v714
      %v716 = vlaneseq
      %v717 = vshrl.u32 %v716, 7
      %v718 = vsub.s32 %v715, %v717
      %v719 = vrot.slane %v703, %v718
      %v721 = vunpack.c.l.s4 1966171168
      %v722 = vunpack.c.0.s8 %v721
      %v723 = vlaneseq
      %v724 = vshrl.u32 %v723, 7
      %v725 = vsub.s32 %v722, %v724
      %v726 = vrot.slane %v710, %v725
      %v728 = vunpack.c.l.s4 1966171168
      %v729 = vunpack.c.0.s8 %v728
      %v730 = vlaneseq
      %v731 = vshrl.u32 %v730, 7
      %v732 = vsub.s32 %v729, %v731
      %v733 = vrot.slane %v711, %v732
      %v735 = vunpack.c.l.s4 1966171168
      %v736 = vunpack.c.0.s8 %v735
      %v737 = vlaneseq
      %v738 = vshrl.u32 %v737, 7
      %v739 = vsub.s32 %v736, %v738
      %v740 = vrot.slane %v712, %v739
      %v741 = vcombine.high %v719, %v719
      %v742 = vcombine.high %v726, %v726
      %v743 = vcombine.high %v733, %v733
      %v744 = vcombine.high %v740, %v740
      %v745 = vcombine.high %v426, %v426
      %v747 = vunpack.c.l.s4 1966171168
      %v748 = vunpack.c.0.s8 %v747
      %v749 = vlaneseq
      %v750 = vshrl.u32 %v749, 7
      %v751 = vsub.s32 %v748, %v750
      %v752 = vrot.slane %v426, %v751
      %v754 = vunpack.c.l.s4 1966171168
      %v755 = vunpack.c.0.s8 %v754
      %v756 = vlaneseq
      %v757 = vshrl.u32 %v756, 7
      %v758 = vsub.s32 %v755, %v757
      %v759 = vrot.slane %v745, %v758
      %v760 = vcombine.high %v752, %v752
      %v761 = vcombine.high %v759, %v759
      %v763 = vunpack.c.l.s4 1966171168
      %v764 = vunpack.c.0.s8 %v763
      %v765 = vlaneseq
      %v766 = vshrl.u32 %v765, 7
      %v767 = vsub.s32 %v764, %v766
      %v768 = vrot.slane %v752, %v767
      %v770 = vunpack.c.l.s4 1966171168
      %v771 = vunpack.c.0.s8 %v770
      %v772 = vlaneseq
      %v773 = vshrl.u32 %v772, 7
      %v774 = vsub.s32 %v771, %v773
      %v775 = vrot.slane %v759, %v774
      %v777 = vunpack.c.l.s4 1966171168
      %v778 = vunpack.c.0.s8 %v777
      %v779 = vlaneseq
      %v780 = vshrl.u32 %v779, 7
      %v781 = vsub.s32 %v778, %v780
      %v782 = vrot.slane %v760, %v781
      %v784 = vunpack.c.l.s4 1966171168
      %v785 = vunpack.c.0.s8 %v784
      %v786 = vlaneseq
      %v787 = vshrl.u32 %v786, 7
      %v788 = vsub.s32 %v785, %v787
      %v789 = vrot.slane %v761, %v788
      %v790 = vcombine.high %v768, %v768
      %v791 = vcombine.high %v775, %v775
      %v792 = vcombine.high %v782, %v782
      %v793 = vcombine.high %v789, %v789
      %v794 = vcombine.high %v427, %v427
      %v796 = vunpack.c.l.s4 1966171168
      %v797 = vunpack.c.0.s8 %v796
      %v798 = vlaneseq
      %v799 = vshrl.u32 %v798, 7
      %v800 = vsub.s32 %v797, %v799
      %v801 = vrot.slane %v427, %v800
      %v803 = vunpack.c.l.s4 1966171168
      %v804 = vunpack.c.0.s8 %v803
      %v805 = vlaneseq
      %v806 = vshrl.u32 %v805, 7
      %v807 = vsub.s32 %v804, %v806
      %v808 = vrot.slane %v794, %v807
      %v809 = vcombine.high %v801, %v801
      %v810 = vcombine.high %v808, %v808
      %v812 = vunpack.c.l.s4 1966171168
      %v813 = vunpack.c.0.s8 %v812
      %v814 = vlaneseq
      %v815 = vshrl.u32 %v814, 7
      %v816 = vsub.s32 %v813, %v815
      %v817 = vrot.slane %v801, %v816
      %v819 = vunpack.c.l.s4 1966171168
      %v820 = vunpack.c.0.s8 %v819
      %v821 = vlaneseq
      %v822 = vshrl.u32 %v821, 7
      %v823 = vsub.s32 %v820, %v822
      %v824 = vrot.slane %v808, %v823
      %v826 = vunpack.c.l.s4 1966171168
      %v827 = vunpack.c.0.s8 %v826
      %v828 = vlaneseq
      %v829 = vshrl.u32 %v828, 7
      %v830 = vsub.s32 %v827, %v829
      %v831 = vrot.slane %v809, %v830
      %v833 = vunpack.c.l.s4 1966171168
      %v834 = vunpack.c.0.s8 %v833
      %v835 = vlaneseq
      %v836 = vshrl.u32 %v835, 7
      %v837 = vsub.s32 %v834, %v836
      %v838 = vrot.slane %v810, %v837
      %v839 = vcombine.high %v817, %v817
      %v840 = vcombine.high %v824, %v824
      %v841 = vcombine.high %v831, %v831
      %v842 = vcombine.high %v838, %v838
      %v843 = vcombine.high %v428, %v428
      %v845 = vunpack.c.l.s4 1966171168
      %v846 = vunpack.c.0.s8 %v845
      %v847 = vlaneseq
      %v848 = vshrl.u32 %v847, 7
      %v849 = vsub.s32 %v846, %v848
      %v850 = vrot.slane %v428, %v849
      %v852 = vunpack.c.l.s4 1966171168
      %v853 = vunpack.c.0.s8 %v852
      %v854 = vlaneseq
      %v855 = vshrl.u32 %v854, 7
      %v856 = vsub.s32 %v853, %v855
      %v857 = vrot.slane %v843, %v856
      %v858 = vcombine.high %v850, %v850
      %v859 = vcombine.high %v857, %v857
      %v861 = vunpack.c.l.s4 1966171168
      %v862 = vunpack.c.0.s8 %v861
      %v863 = vlaneseq
      %v864 = vshrl.u32 %v863, 7
      %v865 = vsub.s32 %v862, %v864
      %v866 = vrot.slane %v850, %v865
      %v868 = vunpack.c.l.s4 1966171168
      %v869 = vunpack.c.0.s8 %v868
      %v870 = vlaneseq
      %v871 = vshrl.u32 %v870, 7
      %v872 = vsub.s32 %v869, %v871
      %v873 = vrot.slane %v857, %v872
      %v875 = vunpack.c.l.s4 1966171168
      %v876 = vunpack.c.0.s8 %v875
      %v877 = vlaneseq
      %v878 = vshrl.u32 %v877, 7
      %v879 = vsub.s32 %v876, %v878
      %v880 = vrot.slane %v858, %v879
      %v882 = vunpack.c.l.s4 1966171168
      %v883 = vunpack.c.0.s8 %v882
      %v884 = vlaneseq
      %v885 = vshrl.u32 %v884, 7
      %v886 = vsub.s32 %v883, %v885
      %v887 = vrot.slane %v859, %v886
      %v888 = vcombine.high %v866, %v866
      %v889 = vcombine.high %v873, %v873
      %v890 = vcombine.high %v880, %v880
      %v891 = vcombine.high %v887, %v887
      %v892 = vcombine.high %v429, %v429
      %v894 = vunpack.c.l.s4 1966171168
      %v895 = vunpack.c.0.s8 %v894
      %v896 = vlaneseq
      %v897 = vshrl.u32 %v896, 7
      %v898 = vsub.s32 %v895, %v897
      %v899 = vrot.slane %v429, %v898
      %v901 = vunpack.c.l.s4 1966171168
      %v902 = vunpack.c.0.s8 %v901
      %v903 = vlaneseq
      %v904 = vshrl.u32 %v903, 7
      %v905 = vsub.s32 %v902, %v904
      %v906 = vrot.slane %v892, %v905
      %v907 = vcombine.high %v899, %v899
      %v908 = vcombine.high %v906, %v906
      %v910 = vunpack.c.l.s4 1966171168
      %v911 = vunpack.c.0.s8 %v910
      %v912 = vlaneseq
      %v913 = vshrl.u32 %v912, 7
      %v914 = vsub.s32 %v911, %v913
      %v915 = vrot.slane %v899, %v914
      %v917 = vunpack.c.l.s4 1966171168
      %v918 = vunpack.c.0.s8 %v917
      %v919 = vlaneseq
      %v920 = vshrl.u32 %v919, 7
      %v921 = vsub.s32 %v918, %v920
      %v922 = vrot.slane %v906, %v921
      %v924 = vunpack.c.l.s4 1966171168
      %v925 = vunpack.c.0.s8 %v924
      %v926 = vlaneseq
      %v927 = vshrl.u32 %v926, 7
      %v928 = vsub.s32 %v925, %v927
      %v929 = vrot.slane %v907, %v928
      %v931 = vunpack.c.l.s4 1966171168
      %v932 = vunpack.c.0.s8 %v931
      %v933 = vlaneseq
      %v934 = vshrl.u32 %v933, 7
      %v935 = vsub.s32 %v932, %v934
      %v936 = vrot.slane %v908, %v935
      %v937 = vcombine.high %v915, %v915
      %v938 = vcombine.high %v922, %v922
      %v939 = vcombine.high %v929, %v929
      %v940 = vcombine.high %v936, %v936
      %v941 = vcombine.high %v430, %v430
      %v943 = vunpack.c.l.s4 1966171168
      %v944 = vunpack.c.0.s8 %v943
      %v945 = vlaneseq
      %v946 = vshrl.u32 %v945, 7
      %v947 = vsub.s32 %v944, %v946
      %v948 = vrot.slane %v430, %v947
      %v950 = vunpack.c.l.s4 1966171168
      %v951 = vunpack.c.0.s8 %v950
      %v952 = vlaneseq
      %v953 = vshrl.u32 %v952, 7
      %v954 = vsub.s32 %v951, %v953
      %v955 = vrot.slane %v941, %v954
      %v956 = vcombine.high %v948, %v948
      %v957 = vcombine.high %v955, %v955
      %v959 = vunpack.c.l.s4 1966171168
      %v960 = vunpack.c.0.s8 %v959
      %v961 = vlaneseq
      %v962 = vshrl.u32 %v961, 7
      %v963 = vsub.s32 %v960, %v962
      %v964 = vrot.slane %v948, %v963
      %v966 = vunpack.c.l.s4 1966171168
      %v967 = vunpack.c.0.s8 %v966
      %v968 = vlaneseq
      %v969 = vshrl.u32 %v968, 7
      %v970 = vsub.s32 %v967, %v969
      %v971 = vrot.slane %v955, %v970
      %v973 = vunpack.c.l.s4 1966171168
      %v974 = vunpack.c.0.s8 %v973
      %v975 = vlaneseq
      %v976 = vshrl.u32 %v975, 7
      %v977 = vsub.s32 %v974, %v976
      %v978 = vrot.slane %v956, %v977
      %v980 = vunpack.c.l.s4 1966171168
      %v981 = vunpack.c.0.s8 %v980
      %v982 = vlaneseq
      %v983 = vshrl.u32 %v982, 7
      %v984 = vsub.s32 %v981, %v983
      %v985 = vrot.slane %v957, %v984
      %v986 = vcombine.high %v964, %v964
      %v987 = vcombine.high %v971, %v971
      %v988 = vcombine.high %v978, %v978
      %v989 = vcombine.high %v985, %v985
      %v990 = vcombine.high %v431, %v431
      %v992 = vunpack.c.l.s4 1966171168
      %v993 = vunpack.c.0.s8 %v992
      %v994 = vlaneseq
      %v995 = vshrl.u32 %v994, 7
      %v996 = vsub.s32 %v993, %v995
      %v997 = vrot.slane %v431, %v996
      %v999 = vunpack.c.l.s4 1966171168
      %v1000 = vunpack.c.0.s8 %v999
      %v1001 = vlaneseq
      %v1002 = vshrl.u32 %v1001, 7
      %v1003 = vsub.s32 %v1000, %v1002
      %v1004 = vrot.slane %v990, %v1003
      %v1005 = vcombine.high %v997, %v997
      %v1006 = vcombine.high %v1004, %v1004
      %v1008 = vunpack.c.l.s4 1966171168
      %v1009 = vunpack.c.0.s8 %v1008
      %v1010 = vlaneseq
      %v1011 = vshrl.u32 %v1010, 7
      %v1012 = vsub.s32 %v1009, %v1011
      %v1013 = vrot.slane %v997, %v1012
      %v1015 = vunpack.c.l.s4 1966171168
      %v1016 = vunpack.c.0.s8 %v1015
      %v1017 = vlaneseq
      %v1018 = vshrl.u32 %v1017, 7
      %v1019 = vsub.s32 %v1016, %v1018
      %v1020 = vrot.slane %v1004, %v1019
      %v1022 = vunpack.c.l.s4 1966171168
      %v1023 = vunpack.c.0.s8 %v1022
      %v1024 = vlaneseq
      %v1025 = vshrl.u32 %v1024, 7
      %v1026 = vsub.s32 %v1023, %v1025
      %v1027 = vrot.slane %v1005, %v1026
      %v1029 = vunpack.c.l.s4 1966171168
      %v1030 = vunpack.c.0.s8 %v1029
      %v1031 = vlaneseq
      %v1032 = vshrl.u32 %v1031, 7
      %v1033 = vsub.s32 %v1030, %v1032
      %v1034 = vrot.slane %v1006, %v1033
      %v1035 = vcombine.high %v1013, %v1013
      %v1036 = vcombine.high %v1020, %v1020
      %v1037 = vcombine.high %v1027, %v1027
      %v1038 = vcombine.high %v1034, %v1034
      %v1039 = vcombine.high %v432, %v432
      %v1041 = vunpack.c.l.s4 1966171168
      %v1042 = vunpack.c.0.s8 %v1041
      %v1043 = vlaneseq
      %v1044 = vshrl.u32 %v1043, 7
      %v1045 = vsub.s32 %v1042, %v1044
      %v1046 = vrot.slane %v432, %v1045
      %v1048 = vunpack.c.l.s4 1966171168
      %v1049 = vunpack.c.0.s8 %v1048
      %v1050 = vlaneseq
      %v1051 = vshrl.u32 %v1050, 7
      %v1052 = vsub.s32 %v1049, %v1051
      %v1053 = vrot.slane %v1039, %v1052
      %v1054 = vcombine.high %v1046, %v1046
      %v1055 = vcombine.high %v1053, %v1053
      %v1057 = vunpack.c.l.s4 1966171168
      %v1058 = vunpack.c.0.s8 %v1057
      %v1059 = vlaneseq
      %v1060 = vshrl.u32 %v1059, 7
      %v1061 = vsub.s32 %v1058, %v1060
      %v1062 = vrot.slane %v1046, %v1061
      %v1064 = vunpack.c.l.s4 1966171168
      %v1065 = vunpack.c.0.s8 %v1064
      %v1066 = vlaneseq
      %v1067 = vshrl.u32 %v1066, 7
      %v1068 = vsub.s32 %v1065, %v1067
      %v1069 = vrot.slane %v1053, %v1068
      %v1071 = vunpack.c.l.s4 1966171168
      %v1072 = vunpack.c.0.s8 %v1071
      %v1073 = vlaneseq
      %v1074 = vshrl.u32 %v1073, 7
      %v1075 = vsub.s32 %v1072, %v1074
      %v1076 = vrot.slane %v1054, %v1075
      %v1078 = vunpack.c.l.s4 1966171168
      %v1079 = vunpack.c.0.s8 %v1078
      %v1080 = vlaneseq
      %v1081 = vshrl.u32 %v1080, 7
      %v1082 = vsub.s32 %v1079, %v1081
      %v1083 = vrot.slane %v1055, %v1082
      %v1084 = vcombine.high %v1062, %v1062
      %v1085 = vcombine.high %v1069, %v1069
      %v1086 = vcombine.high %v1076, %v1076
      %v1087 = vcombine.high %v1083, %v1083
      %v1088 = vcombine.high %v433, %v433
      %v1090 = vunpack.c.l.s4 1966171168
      %v1091 = vunpack.c.0.s8 %v1090
      %v1092 = vlaneseq
      %v1093 = vshrl.u32 %v1092, 7
      %v1094 = vsub.s32 %v1091, %v1093
      %v1095 = vrot.slane %v433, %v1094
      %v1097 = vunpack.c.l.s4 1966171168
      %v1098 = vunpack.c.0.s8 %v1097
      %v1099 = vlaneseq
      %v1100 = vshrl.u32 %v1099, 7
      %v1101 = vsub.s32 %v1098, %v1100
      %v1102 = vrot.slane %v1088, %v1101
      %v1103 = vcombine.high %v1095, %v1095
      %v1104 = vcombine.high %v1102, %v1102
      %v1106 = vunpack.c.l.s4 1966171168
      %v1107 = vunpack.c.0.s8 %v1106
      %v1108 = vlaneseq
      %v1109 = vshrl.u32 %v1108, 7
      %v1110 = vsub.s32 %v1107, %v1109
      %v1111 = vrot.slane %v1095, %v1110
      %v1113 = vunpack.c.l.s4 1966171168
      %v1114 = vunpack.c.0.s8 %v1113
      %v1115 = vlaneseq
      %v1116 = vshrl.u32 %v1115, 7
      %v1117 = vsub.s32 %v1114, %v1116
      %v1118 = vrot.slane %v1102, %v1117
      %v1120 = vunpack.c.l.s4 1966171168
      %v1121 = vunpack.c.0.s8 %v1120
      %v1122 = vlaneseq
      %v1123 = vshrl.u32 %v1122, 7
      %v1124 = vsub.s32 %v1121, %v1123
      %v1125 = vrot.slane %v1103, %v1124
      %v1127 = vunpack.c.l.s4 1966171168
      %v1128 = vunpack.c.0.s8 %v1127
      %v1129 = vlaneseq
      %v1130 = vshrl.u32 %v1129, 7
      %v1131 = vsub.s32 %v1128, %v1130
      %v1132 = vrot.slane %v1104, %v1131
      %v1133 = vcombine.high %v1111, %v1111
      %v1134 = vcombine.high %v1118, %v1118
      %v1135 = vcombine.high %v1125, %v1125
      %v1136 = vcombine.high %v1132, %v1132
      %v1137 = vcombine.high %v434, %v434
      %v1139 = vunpack.c.l.s4 1966171168
      %v1140 = vunpack.c.0.s8 %v1139
      %v1141 = vlaneseq
      %v1142 = vshrl.u32 %v1141, 7
      %v1143 = vsub.s32 %v1140, %v1142
      %v1144 = vrot.slane %v434, %v1143
      %v1146 = vunpack.c.l.s4 1966171168
      %v1147 = vunpack.c.0.s8 %v1146
      %v1148 = vlaneseq
      %v1149 = vshrl.u32 %v1148, 7
      %v1150 = vsub.s32 %v1147, %v1149
      %v1151 = vrot.slane %v1137, %v1150
      %v1152 = vcombine.high %v1144, %v1144
      %v1153 = vcombine.high %v1151, %v1151
      %v1155 = vunpack.c.l.s4 1966171168
      %v1156 = vunpack.c.0.s8 %v1155
      %v1157 = vlaneseq
      %v1158 = vshrl.u32 %v1157, 7
      %v1159 = vsub.s32 %v1156, %v1158
      %v1160 = vrot.slane %v1144, %v1159
      %v1162 = vunpack.c.l.s4 1966171168
      %v1163 = vunpack.c.0.s8 %v1162
      %v1164 = vlaneseq
      %v1165 = vshrl.u32 %v1164, 7
      %v1166 = vsub.s32 %v1163, %v1165
      %v1167 = vrot.slane %v1151, %v1166
      %v1169 = vunpack.c.l.s4 1966171168
      %v1170 = vunpack.c.0.s8 %v1169
      %v1171 = vlaneseq
      %v1172 = vshrl.u32 %v1171, 7
      %v1173 = vsub.s32 %v1170, %v1172
      %v1174 = vrot.slane %v1152, %v1173
      %v1176 = vunpack.c.l.s4 1966171168
      %v1177 = vunpack.c.0.s8 %v1176
      %v1178 = vlaneseq
      %v1179 = vshrl.u32 %v1178, 7
      %v1180 = vsub.s32 %v1177, %v1179
      %v1181 = vrot.slane %v1153, %v1180
      %v1182 = vcombine.high %v1160, %v1160
      %v1183 = vcombine.high %v1167, %v1167
      %v1184 = vcombine.high %v1174, %v1174
      %v1185 = vcombine.high %v1181, %v1181
      %v1186 = vcombine.high %v435, %v435
      %v1188 = vunpack.c.l.s4 1966171168
      %v1189 = vunpack.c.0.s8 %v1188
      %v1190 = vlaneseq
      %v1191 = vshrl.u32 %v1190, 7
      %v1192 = vsub.s32 %v1189, %v1191
      %v1193 = vrot.slane %v435, %v1192
      %v1195 = vunpack.c.l.s4 1966171168
      %v1196 = vunpack.c.0.s8 %v1195
      %v1197 = vlaneseq
      %v1198 = vshrl.u32 %v1197, 7
      %v1199 = vsub.s32 %v1196, %v1198
      %v1200 = vrot.slane %v1186, %v1199
      %v1201 = vcombine.high %v1193, %v1193
      %v1202 = vcombine.high %v1200, %v1200
      %v1204 = vunpack.c.l.s4 1966171168
      %v1205 = vunpack.c.0.s8 %v1204
      %v1206 = vlaneseq
      %v1207 = vshrl.u32 %v1206, 7
      %v1208 = vsub.s32 %v1205, %v1207
      %v1209 = vrot.slane %v1193, %v1208
      %v1211 = vunpack.c.l.s4 1966171168
      %v1212 = vunpack.c.0.s8 %v1211
      %v1213 = vlaneseq
      %v1214 = vshrl.u32 %v1213, 7
      %v1215 = vsub.s32 %v1212, %v1214
      %v1216 = vrot.slane %v1200, %v1215
      %v1218 = vunpack.c.l.s4 1966171168
      %v1219 = vunpack.c.0.s8 %v1218
      %v1220 = vlaneseq
      %v1221 = vshrl.u32 %v1220, 7
      %v1222 = vsub.s32 %v1219, %v1221
      %v1223 = vrot.slane %v1201, %v1222
      %v1225 = vunpack.c.l.s4 1966171168
      %v1226 = vunpack.c.0.s8 %v1225
      %v1227 = vlaneseq
      %v1228 = vshrl.u32 %v1227, 7
      %v1229 = vsub.s32 %v1226, %v1228
      %v1230 = vrot.slane %v1202, %v1229
      %v1231 = vcombine.high %v1209, %v1209
      %v1232 = vcombine.high %v1216, %v1216
      %v1233 = vcombine.high %v1223, %v1223
      %v1234 = vcombine.high %v1230, %v1230
      %v1235 = vcombine.low %v460, %v482
      %v1236 = vcombine.low %v474, %v484
      %v1238 = vunpack.c.l.s4 1935823168
      %v1239 = vunpack.c.0.s8 %v1238
      %v1240 = vlaneseq
      %v1241 = vshrl.u32 %v1240, 7
      %v1242 = vsub.s32 %v1239, %v1241
      %v1243 = vrot.slane %v1235, %v1242
      %v1245 = vunpack.c.l.s4 1935823168
      %v1246 = vunpack.c.0.s8 %v1245
      %v1247 = vlaneseq
      %v1248 = vshrl.u32 %v1247, 7
      %v1249 = vsub.s32 %v1246, %v1248
      %v1250 = vrot.slane %v1236, %v1249
      %v1251 = vcombine.low %v1243, %v1250
      %v1253 = vunpack.c.l.s4 1935823168
      %v1254 = vunpack.c.0.s8 %v1253
      %v1255 = vlaneseq
      %v1256 = vshrl.u32 %v1255, 7
      %v1257 = vsub.s32 %v1254, %v1256
      %v1258 = vrot.slane %v1251, %v1257
      %v1259 = vcombine.low %v467, %v483
      %v1260 = vcombine.low %v481, %v485
      %v1262 = vunpack.c.l.s4 1935823168
      %v1263 = vunpack.c.0.s8 %v1262
      %v1264 = vlaneseq
      %v1265 = vshrl.u32 %v1264, 7
      %v1266 = vsub.s32 %v1263, %v1265
      %v1267 = vrot.slane %v1259, %v1266
      %v1269 = vunpack.c.l.s4 1935823168
      %v1270 = vunpack.c.0.s8 %v1269
      %v1271 = vlaneseq
      %v1272 = vshrl.u32 %v1271, 7
      %v1273 = vsub.s32 %v1270, %v1272
      %v1274 = vrot.slane %v1260, %v1273
      %v1275 = vcombine.low %v1267, %v1274
      %v1277 = vunpack.c.l.s4 1935823168
      %v1278 = vunpack.c.0.s8 %v1277
      %v1279 = vlaneseq
      %v1280 = vshrl.u32 %v1279, 7
      %v1281 = vsub.s32 %v1278, %v1280
      %v1282 = vrot.slane %v1275, %v1281
      %v1283 = vcombine.low %v499, %v537
      %v1284 = vcombine.low %v523, %v545
      %v1286 = vunpack.c.l.s4 1935823168
      %v1287 = vunpack.c.0.s8 %v1286
      %v1288 = vlaneseq
      %v1289 = vshrl.u32 %v1288, 7
      %v1290 = vsub.s32 %v1287, %v1289
      %v1291 = vrot.slane %v1283, %v1290
      %v1293 = vunpack.c.l.s4 1935823168
      %v1294 = vunpack.c.0.s8 %v1293
      %v1295 = vlaneseq
      %v1296 = vshrl.u32 %v1295, 7
      %v1297 = vsub.s32 %v1294, %v1296
      %v1298 = vrot.slane %v1284, %v1297
      %v1299 = vcombine.low %v1291, %v1298
      %v1301 = vunpack.c.l.s4 1935823168
      %v1302 = vunpack.c.0.s8 %v1301
      %v1303 = vlaneseq
      %v1304 = vshrl.u32 %v1303, 7
      %v1305 = vsub.s32 %v1302, %v1304
      %v1306 = vrot.slane %v1299, %v1305
      %v1307 = vcombine.low %v547, %v544
      %v1308 = vcombine.low %v530, %v546
      %v1310 = vunpack.c.l.s4 1935823168
      %v1311 = vunpack.c.0.s8 %v1310
      %v1312 = vlaneseq
      %v1313 = vshrl.u32 %v1312, 7
      %v1314 = vsub.s32 %v1311, %v1313
      %v1315 = vrot.slane %v1307, %v1314
      %v1317 = vunpack.c.l.s4 1935823168
      %v1318 = vunpack.c.0.s8 %v1317
      %v1319 = vlaneseq
      %v1320 = vshrl.u32 %v1319, 7
      %v1321 = vsub.s32 %v1318, %v1320
      %v1322 = vrot.slane %v1308, %v1321
      %v1323 = vcombine.low %v1315, %v1322
      %v1325 = vunpack.c.l.s4 1935823168
      %v1326 = vunpack.c.0.s8 %v1325
      %v1327 = vlaneseq
      %v1328 = vshrl.u32 %v1327, 7
      %v1329 = vsub.s32 %v1326, %v1328
      %v1330 = vrot.slane %v1323, %v1329
      %v1331 = vcombine.low %v548, %v572
      %v1332 = vcombine.low %v499, %v586
      %v1334 = vunpack.c.l.s4 1935823168
      %v1335 = vunpack.c.0.s8 %v1334
      %v1336 = vlaneseq
      %v1337 = vshrl.u32 %v1336, 7
      %v1338 = vsub.s32 %v1335, %v1337
      %v1339 = vrot.slane %v1331, %v1338
      %v1341 = vunpack.c.l.s4 1935823168
      %v1342 = vunpack.c.0.s8 %v1341
      %v1343 = vlaneseq
      %v1344 = vshrl.u32 %v1343, 7
      %v1345 = vsub.s32 %v1342, %v1344
      %v1346 = vrot.slane %v1332, %v1345
      %v1347 = vcombine.low %v1339, %v1346
      %v1349 = vunpack.c.l.s4 1935823168
      %v1350 = vunpack.c.0.s8 %v1349
      %v1351 = vlaneseq
      %v1352 = vshrl.u32 %v1351, 7
      %v1353 = vsub.s32 %v1350, %v1352
      %v1354 = vrot.slane %v1347, %v1353
      %v1355 = vcombine.low %v594, %v579
      %v1356 = vcombine.low %v596, %v593
      %v1358 = vunpack.c.l.s4 1935823168
      %v1359 = vunpack.c.0.s8 %v1358
      %v1360 = vlaneseq
      %v1361 = vshrl.u32 %v1360, 7
      %v1362 = vsub.s32 %v1359, %v1361
      %v1363 = vrot.slane %v1355, %v1362
      %v1365 = vunpack.c.l.s4 1935823168
      %v1366 = vunpack.c.0.s8 %v1365
      %v1367 = vlaneseq
      %v1368 = vshrl.u32 %v1367, 7
      %v1369 = vsub.s32 %v1366, %v1368
      %v1370 = vrot.slane %v1356, %v1369
      %v1371 = vcombine.low %v1363, %v1370
      %v1373 = vunpack.c.l.s4 1935823168
      %v1374 = vunpack.c.0.s8 %v1373
      %v1375 = vlaneseq
      %v1376 = vshrl.u32 %v1375, 7
      %v1377 = vsub.s32 %v1374, %v1376
      %v1378 = vrot.slane %v1371, %v1377
      %v1379 = vcombine.low %v595, %v499
      %v1380 = vcombine.low %v597, %v621
      %v1382 = vunpack.c.l.s4 1935823168
      %v1383 = vunpack.c.0.s8 %v1382
      %v1384 = vlaneseq
      %v1385 = vshrl.u32 %v1384, 7
      %v1386 = vsub.s32 %v1383, %v1385
      %v1387 = vrot.slane %v1379, %v1386
      %v1389 = vunpack.c.l.s4 1935823168
      %v1390 = vunpack.c.0.s8 %v1389
      %v1391 = vlaneseq
      %v1392 = vshrl.u32 %v1391, 7
      %v1393 = vsub.s32 %v1390, %v1392
      %v1394 = vrot.slane %v1380, %v1393
      %v1395 = vcombine.low %v1387, %v1394
      %v1397 = vunpack.c.l.s4 1935823168
      %v1398 = vunpack.c.0.s8 %v1397
      %v1399 = vlaneseq
      %v1400 = vshrl.u32 %v1399, 7
      %v1401 = vsub.s32 %v1398, %v1400
      %v1402 = vrot.slane %v1395, %v1401
      %v1403 = vcombine.low %v635, %v645
      %v1404 = vcombine.low %v643, %v628
      %v1406 = vunpack.c.l.s4 1935823168
      %v1407 = vunpack.c.0.s8 %v1406
      %v1408 = vlaneseq
      %v1409 = vshrl.u32 %v1408, 7
      %v1410 = vsub.s32 %v1407, %v1409
      %v1411 = vrot.slane %v1403, %v1410
      %v1413 = vunpack.c.l.s4 1935823168
      %v1414 = vunpack.c.0.s8 %v1413
      %v1415 = vlaneseq
      %v1416 = vshrl.u32 %v1415, 7
      %v1417 = vsub.s32 %v1414, %v1416
      %v1418 = vrot.slane %v1404, %v1417
      %v1419 = vcombine.low %v1411, %v1418
      %v1421 = vunpack.c.l.s4 1935823168
      %v1422 = vunpack.c.0.s8 %v1421
      %v1423 = vlaneseq
      %v1424 = vshrl.u32 %v1423, 7
      %v1425 = vsub.s32 %v1422, %v1424
      %v1426 = vrot.slane %v1419, %v1425
      %v1427 = vcombine.low %v642, %v646
      %v1428 = vcombine.low %v644, %v499
      %v1430 = vunpack.c.l.s4 1935823168
      %v1431 = vunpack.c.0.s8 %v1430
      %v1432 = vlaneseq
      %v1433 = vshrl.u32 %v1432, 7
      %v1434 = vsub.s32 %v1431, %v1433
      %v1435 = vrot.slane %v1427, %v1434
      %v1437 = vunpack.c.l.s4 1935823168
      %v1438 = vunpack.c.0.s8 %v1437
      %v1439 = vlaneseq
      %v1440 = vshrl.u32 %v1439, 7
      %v1441 = vsub.s32 %v1438, %v1440
      %v1442 = vrot.slane %v1428, %v1441
      %v1443 = vcombine.low %v1435, %v1442
      %v1445 = vunpack.c.l.s4 1935823168
      %v1446 = vunpack.c.0.s8 %v1445
      %v1447 = vlaneseq
      %v1448 = vshrl.u32 %v1447, 7
      %v1449 = vsub.s32 %v1446, %v1448
      %v1450 = vrot.slane %v1443, %v1449
      %v1451 = vcombine.low %v670, %v692
      %v1452 = vcombine.low %v684, %v694
      %v1454 = vunpack.c.l.s4 1935823168
      %v1455 = vunpack.c.0.s8 %v1454
      %v1456 = vlaneseq
      %v1457 = vshrl.u32 %v1456, 7
      %v1458 = vsub.s32 %v1455, %v1457
      %v1459 = vrot.slane %v1451, %v1458
      %v1461 = vunpack.c.l.s4 1935823168
      %v1462 = vunpack.c.0.s8 %v1461
      %v1463 = vlaneseq
      %v1464 = vshrl.u32 %v1463, 7
      %v1465 = vsub.s32 %v1462, %v1464
      %v1466 = vrot.slane %v1452, %v1465
      %v1467 = vcombine.low %v1459, %v1466
      %v1469 = vunpack.c.l.s4 1935823168
      %v1470 = vunpack.c.0.s8 %v1469
      %v1471 = vlaneseq
      %v1472 = vshrl.u32 %v1471, 7
      %v1473 = vsub.s32 %v1470, %v1472
      %v1474 = vrot.slane %v1467, %v1473
      %v1475 = vcombine.low %v677, %v693
      %v1476 = vcombine.low %v691, %v695
      %v1478 = vunpack.c.l.s4 1935823168
      %v1479 = vunpack.c.0.s8 %v1478
      %v1480 = vlaneseq
      %v1481 = vshrl.u32 %v1480, 7
      %v1482 = vsub.s32 %v1479, %v1481
      %v1483 = vrot.slane %v1475, %v1482
      %v1485 = vunpack.c.l.s4 1935823168
      %v1486 = vunpack.c.0.s8 %v1485
      %v1487 = vlaneseq
      %v1488 = vshrl.u32 %v1487, 7
      %v1489 = vsub.s32 %v1486, %v1488
      %v1490 = vrot.slane %v1476, %v1489
      %v1491 = vcombine.low %v1483, %v1490
      %v1493 = vunpack.c.l.s4 1935823168
      %v1494 = vunpack.c.0.s8 %v1493
      %v1495 = vlaneseq
      %v1496 = vshrl.u32 %v1495, 7
      %v1497 = vsub.s32 %v1494, %v1496
      %v1498 = vrot.slane %v1491, %v1497
      %v1499 = vcombine.low %v499, %v733
      %v1500 = vcombine.low %v719, %v741
      %v1502 = vunpack.c.l.s4 1935823168
      %v1503 = vunpack.c.0.s8 %v1502
      %v1504 = vlaneseq
      %v1505 = vshrl.u32 %v1504, 7
      %v1506 = vsub.s32 %v1503, %v1505
      %v1507 = vrot.slane %v1499, %v1506
      %v1509 = vunpack.c.l.s4 1935823168
      %v1510 = vunpack.c.0.s8 %v1509
      %v1511 = vlaneseq
      %v1512 = vshrl.u32 %v1511, 7
      %v1513 = vsub.s32 %v1510, %v1512
      %v1514 = vrot.slane %v1500, %v1513
      %v1515 = vcombine.low %v1507, %v1514
      %v1517 = vunpack.c.l.s4 1935823168
      %v1518 = vunpack.c.0.s8 %v1517
      %v1519 = vlaneseq
      %v1520 = vshrl.u32 %v1519, 7
      %v1521 = vsub.s32 %v1518, %v1520
      %v1522 = vrot.slane %v1515, %v1521
      %v1523 = vcombine.low %v743, %v740
      %v1524 = vcombine.low %v726, %v742
      %v1526 = vunpack.c.l.s4 1935823168
      %v1527 = vunpack.c.0.s8 %v1526
      %v1528 = vlaneseq
      %v1529 = vshrl.u32 %v1528, 7
      %v1530 = vsub.s32 %v1527, %v1529
      %v1531 = vrot.slane %v1523, %v1530
      %v1533 = vunpack.c.l.s4 1935823168
      %v1534 = vunpack.c.0.s8 %v1533
      %v1535 = vlaneseq
      %v1536 = vshrl.u32 %v1535, 7
      %v1537 = vsub.s32 %v1534, %v1536
      %v1538 = vrot.slane %v1524, %v1537
      %v1539 = vcombine.low %v1531, %v1538
      %v1541 = vunpack.c.l.s4 1935823168
      %v1542 = vunpack.c.0.s8 %v1541
      %v1543 = vlaneseq
      %v1544 = vshrl.u32 %v1543, 7
      %v1545 = vsub.s32 %v1542, %v1544
      %v1546 = vrot.slane %v1539, %v1545
      %v1547 = vcombine.low %v744, %v768
      %v1548 = vcombine.low %v499, %v782
      %v1550 = vunpack.c.l.s4 1935823168
      %v1551 = vunpack.c.0.s8 %v1550
      %v1552 = vlaneseq
      %v1553 = vshrl.u32 %v1552, 7
      %v1554 = vsub.s32 %v1551, %v1553
      %v1555 = vrot.slane %v1547, %v1554
      %v1557 = vunpack.c.l.s4 1935823168
      %v1558 = vunpack.c.0.s8 %v1557
      %v1559 = vlaneseq
      %v1560 = vshrl.u32 %v1559, 7
      %v1561 = vsub.s32 %v1558, %v1560
      %v1562 = vrot.slane %v1548, %v1561
      %v1563 = vcombine.low %v1555, %v1562
      %v1565 = vunpack.c.l.s4 1935823168
      %v1566 = vunpack.c.0.s8 %v1565
      %v1567 = vlaneseq
      %v1568 = vshrl.u32 %v1567, 7
      %v1569 = vsub.s32 %v1566, %v1568
      %v1570 = vrot.slane %v1563, %v1569
      %v1571 = vcombine.low %v790, %v775
      %v1572 = vcombine.low %v792, %v789
      %v1574 = vunpack.c.l.s4 1935823168
      %v1575 = vunpack.c.0.s8 %v1574
      %v1576 = vlaneseq
      %v1577 = vshrl.u32 %v1576, 7
      %v1578 = vsub.s32 %v1575, %v1577
      %v1579 = vrot.slane %v1571, %v1578
      %v1581 = vunpack.c.l.s4 1935823168
      %v1582 = vunpack.c.0.s8 %v1581
      %v1583 = vlaneseq
      %v1584 = vshrl.u32 %v1583, 7
      %v1585 = vsub.s32 %v1582, %v1584
      %v1586 = vrot.slane %v1572, %v1585
      %v1587 = vcombine.low %v1579, %v1586
      %v1589 = vunpack.c.l.s4 1935823168
      %v1590 = vunpack.c.0.s8 %v1589
      %v1591 = vlaneseq
      %v1592 = vshrl.u32 %v1591, 7
      %v1593 = vsub.s32 %v1590, %v1592
      %v1594 = vrot.slane %v1587, %v1593
      %v1595 = vcombine.low %v791, %v499
      %v1596 = vcombine.low %v793, %v817
      %v1598 = vunpack.c.l.s4 1935823168
      %v1599 = vunpack.c.0.s8 %v1598
      %v1600 = vlaneseq
      %v1601 = vshrl.u32 %v1600, 7
      %v1602 = vsub.s32 %v1599, %v1601
      %v1603 = vrot.slane %v1595, %v1602
      %v1605 = vunpack.c.l.s4 1935823168
      %v1606 = vunpack.c.0.s8 %v1605
      %v1607 = vlaneseq
      %v1608 = vshrl.u32 %v1607, 7
      %v1609 = vsub.s32 %v1606, %v1608
      %v1610 = vrot.slane %v1596, %v1609
      %v1611 = vcombine.low %v1603, %v1610
      %v1613 = vunpack.c.l.s4 1935823168
      %v1614 = vunpack.c.0.s8 %v1613
      %v1615 = vlaneseq
      %v1616 = vshrl.u32 %v1615, 7
      %v1617 = vsub.s32 %v1614, %v1616
      %v1618 = vrot.slane %v1611, %v1617
      %v1619 = vcombine.low %v831, %v841
      %v1620 = vcombine.low %v839, %v824
      %v1622 = vunpack.c.l.s4 1935823168
      %v1623 = vunpack.c.0.s8 %v1622
      %v1624 = vlaneseq
      %v1625 = vshrl.u32 %v1624, 7
      %v1626 = vsub.s32 %v1623, %v1625
      %v1627 = vrot.slane %v1619, %v1626
      %v1629 = vunpack.c.l.s4 1935823168
      %v1630 = vunpack.c.0.s8 %v1629
      %v1631 = vlaneseq
      %v1632 = vshrl.u32 %v1631, 7
      %v1633 = vsub.s32 %v1630, %v1632
      %v1634 = vrot.slane %v1620, %v1633
      %v1635 = vcombine.low %v1627, %v1634
      %v1637 = vunpack.c.l.s4 1935823168
      %v1638 = vunpack.c.0.s8 %v1637
      %v1639 = vlaneseq
      %v1640 = vshrl.u32 %v1639, 7
      %v1641 = vsub.s32 %v1638, %v1640
      %v1642 = vrot.slane %v1635, %v1641
      %v1643 = vcombine.low %v838, %v842
      %v1644 = vcombine.low %v840, %v499
      %v1646 = vunpack.c.l.s4 1935823168
      %v1647 = vunpack.c.0.s8 %v1646
      %v1648 = vlaneseq
      %v1649 = vshrl.u32 %v1648, 7
      %v1650 = vsub.s32 %v1647, %v1649
      %v1651 = vrot.slane %v1643, %v1650
      %v1653 = vunpack.c.l.s4 1935823168
      %v1654 = vunpack.c.0.s8 %v1653
      %v1655 = vlaneseq
      %v1656 = vshrl.u32 %v1655, 7
      %v1657 = vsub.s32 %v1654, %v1656
      %v1658 = vrot.slane %v1644, %v1657
      %v1659 = vcombine.low %v1651, %v1658
      %v1661 = vunpack.c.l.s4 1935823168
      %v1662 = vunpack.c.0.s8 %v1661
      %v1663 = vlaneseq
      %v1664 = vshrl.u32 %v1663, 7
      %v1665 = vsub.s32 %v1662, %v1664
      %v1666 = vrot.slane %v1659, %v1665
      %v1667 = vcombine.low %v866, %v888
      %v1668 = vcombine.low %v880, %v890
      %v1670 = vunpack.c.l.s4 1935823168
      %v1671 = vunpack.c.0.s8 %v1670
      %v1672 = vlaneseq
      %v1673 = vshrl.u32 %v1672, 7
      %v1674 = vsub.s32 %v1671, %v1673
      %v1675 = vrot.slane %v1667, %v1674
      %v1677 = vunpack.c.l.s4 1935823168
      %v1678 = vunpack.c.0.s8 %v1677
      %v1679 = vlaneseq
      %v1680 = vshrl.u32 %v1679, 7
      %v1681 = vsub.s32 %v1678, %v1680
      %v1682 = vrot.slane %v1668, %v1681
      %v1683 = vcombine.low %v1675, %v1682
      %v1685 = vunpack.c.l.s4 1935823168
      %v1686 = vunpack.c.0.s8 %v1685
      %v1687 = vlaneseq
      %v1688 = vshrl.u32 %v1687, 7
      %v1689 = vsub.s32 %v1686, %v1688
      %v1690 = vrot.slane %v1683, %v1689
      %v1691 = vcombine.low %v873, %v889
      %v1692 = vcombine.low %v887, %v891
      %v1694 = vunpack.c.l.s4 1935823168
      %v1695 = vunpack.c.0.s8 %v1694
      %v1696 = vlaneseq
      %v1697 = vshrl.u32 %v1696, 7
      %v1698 = vsub.s32 %v1695, %v1697
      %v1699 = vrot.slane %v1691, %v1698
      %v1701 = vunpack.c.l.s4 1935823168
      %v1702 = vunpack.c.0.s8 %v1701
      %v1703 = vlaneseq
      %v1704 = vshrl.u32 %v1703, 7
      %v1705 = vsub.s32 %v1702, %v1704
      %v1706 = vrot.slane %v1692, %v1705
      %v1707 = vcombine.low %v1699, %v1706
      %v1709 = vunpack.c.l.s4 1935823168
      %v1710 = vunpack.c.0.s8 %v1709
      %v1711 = vlaneseq
      %v1712 = vshrl.u32 %v1711, 7
      %v1713 = vsub.s32 %v1710, %v1712
      %v1714 = vrot.slane %v1707, %v1713
      %v1715 = vcombine.low %v499, %v929
      %v1716 = vcombine.low %v915, %v937
      %v1718 = vunpack.c.l.s4 1935823168
      %v1719 = vunpack.c.0.s8 %v1718
      %v1720 = vlaneseq
      %v1721 = vshrl.u32 %v1720, 7
      %v1722 = vsub.s32 %v1719, %v1721
      %v1723 = vrot.slane %v1715, %v1722
      %v1725 = vunpack.c.l.s4 1935823168
      %v1726 = vunpack.c.0.s8 %v1725
      %v1727 = vlaneseq
      %v1728 = vshrl.u32 %v1727, 7
      %v1729 = vsub.s32 %v1726, %v1728
      %v1730 = vrot.slane %v1716, %v1729
      %v1731 = vcombine.low %v1723, %v1730
      %v1733 = vunpack.c.l.s4 1935823168
      %v1734 = vunpack.c.0.s8 %v1733
      %v1735 = vlaneseq
      %v1736 = vshrl.u32 %v1735, 7
      %v1737 = vsub.s32 %v1734, %v1736
      %v1738 = vrot.slane %v1731, %v1737
      %v1739 = vcombine.low %v939, %v936
      %v1740 = vcombine.low %v922, %v938
      %v1742 = vunpack.c.l.s4 1935823168
      %v1743 = vunpack.c.0.s8 %v1742
      %v1744 = vlaneseq
      %v1745 = vshrl.u32 %v1744, 7
      %v1746 = vsub.s32 %v1743, %v1745
      %v1747 = vrot.slane %v1739, %v1746
      %v1749 = vunpack.c.l.s4 1935823168
      %v1750 = vunpack.c.0.s8 %v1749
      %v1751 = vlaneseq
      %v1752 = vshrl.u32 %v1751, 7
      %v1753 = vsub.s32 %v1750, %v1752
      %v1754 = vrot.slane %v1740, %v1753
      %v1755 = vcombine.low %v1747, %v1754
      %v1757 = vunpack.c.l.s4 1935823168
      %v1758 = vunpack.c.0.s8 %v1757
      %v1759 = vlaneseq
      %v1760 = vshrl.u32 %v1759, 7
      %v1761 = vsub.s32 %v1758, %v1760
      %v1762 = vrot.slane %v1755, %v1761
      %v1763 = vcombine.low %v940, %v964
      %v1764 = vcombine.low %v499, %v978
      %v1766 = vunpack.c.l.s4 1935823168
      %v1767 = vunpack.c.0.s8 %v1766
      %v1768 = vlaneseq
      %v1769 = vshrl.u32 %v1768, 7
      %v1770 = vsub.s32 %v1767, %v1769
      %v1771 = vrot.slane %v1763, %v1770
      %v1773 = vunpack.c.l.s4 1935823168
      %v1774 = vunpack.c.0.s8 %v1773
      %v1775 = vlaneseq
      %v1776 = vshrl.u32 %v1775, 7
      %v1777 = vsub.s32 %v1774, %v1776
      %v1778 = vrot.slane %v1764, %v1777
      %v1779 = vcombine.low %v1771, %v1778
      %v1781 = vunpack.c.l.s4 1935823168
      %v1782 = vunpack.c.0.s8 %v1781
      %v1783 = vlaneseq
      %v1784 = vshrl.u32 %v1783, 7
      %v1785 = vsub.s32 %v1782, %v1784
      %v1786 = vrot.slane %v1779, %v1785
      %v1787 = vcombine.low %v986, %v971
      %v1788 = vcombine.low %v988, %v985
      %v1790 = vunpack.c.l.s4 1935823168
      %v1791 = vunpack.c.0.s8 %v1790
      %v1792 = vlaneseq
      %v1793 = vshrl.u32 %v1792, 7
      %v1794 = vsub.s32 %v1791, %v1793
      %v1795 = vrot.slane %v1787, %v1794
      %v1797 = vunpack.c.l.s4 1935823168
      %v1798 = vunpack.c.0.s8 %v1797
      %v1799 = vlaneseq
      %v1800 = vshrl.u32 %v1799, 7
      %v1801 = vsub.s32 %v1798, %v1800
      %v1802 = vrot.slane %v1788, %v1801
      %v1803 = vcombine.low %v1795, %v1802
      %v1805 = vunpack.c.l.s4 1935823168
      %v1806 = vunpack.c.0.s8 %v1805
      %v1807 = vlaneseq
      %v1808 = vshrl.u32 %v1807, 7
      %v1809 = vsub.s32 %v1806, %v1808
      %v1810 = vrot.slane %v1803, %v1809
      %v1811 = vcombine.low %v987, %v499
      %v1812 = vcombine.low %v989, %v1013
      %v1814 = vunpack.c.l.s4 1935823168
      %v1815 = vunpack.c.0.s8 %v1814
      %v1816 = vlaneseq
      %v1817 = vshrl.u32 %v1816, 7
      %v1818 = vsub.s32 %v1815, %v1817
      %v1819 = vrot.slane %v1811, %v1818
      %v1821 = vunpack.c.l.s4 1935823168
      %v1822 = vunpack.c.0.s8 %v1821
      %v1823 = vlaneseq
      %v1824 = vshrl.u32 %v1823, 7
      %v1825 = vsub.s32 %v1822, %v1824
      %v1826 = vrot.slane %v1812, %v1825
      %v1827 = vcombine.low %v1819, %v1826
      %v1829 = vunpack.c.l.s4 1935823168
      %v1830 = vunpack.c.0.s8 %v1829
      %v1831 = vlaneseq
      %v1832 = vshrl.u32 %v1831, 7
      %v1833 = vsub.s32 %v1830, %v1832
      %v1834 = vrot.slane %v1827, %v1833
      %v1835 = vcombine.low %v1027, %v1037
      %v1836 = vcombine.low %v1035, %v1020
      %v1838 = vunpack.c.l.s4 1935823168
      %v1839 = vunpack.c.0.s8 %v1838
      %v1840 = vlaneseq
      %v1841 = vshrl.u32 %v1840, 7
      %v1842 = vsub.s32 %v1839, %v1841
      %v1843 = vrot.slane %v1835, %v1842
      %v1845 = vunpack.c.l.s4 1935823168
      %v1846 = vunpack.c.0.s8 %v1845
      %v1847 = vlaneseq
      %v1848 = vshrl.u32 %v1847, 7
      %v1849 = vsub.s32 %v1846, %v1848
      %v1850 = vrot.slane %v1836, %v1849
      %v1851 = vcombine.low %v1843, %v1850
      %v1853 = vunpack.c.l.s4 1935823168
      %v1854 = vunpack.c.0.s8 %v1853
      %v1855 = vlaneseq
      %v1856 = vshrl.u32 %v1855, 7
      %v1857 = vsub.s32 %v1854, %v1856
      %v1858 = vrot.slane %v1851, %v1857
      %v1859 = vcombine.low %v1034, %v1038
      %v1860 = vcombine.low %v1036, %v499
      %v1862 = vunpack.c.l.s4 1935823168
      %v1863 = vunpack.c.0.s8 %v1862
      %v1864 = vlaneseq
      %v1865 = vshrl.u32 %v1864, 7
      %v1866 = vsub.s32 %v1863, %v1865
      %v1867 = vrot.slane %v1859, %v1866
      %v1869 = vunpack.c.l.s4 1935823168
      %v1870 = vunpack.c.0.s8 %v1869
      %v1871 = vlaneseq
      %v1872 = vshrl.u32 %v1871, 7
      %v1873 = vsub.s32 %v1870, %v1872
      %v1874 = vrot.slane %v1860, %v1873
      %v1875 = vcombine.low %v1867, %v1874
      %v1877 = vunpack.c.l.s4 1935823168
      %v1878 = vunpack.c.0.s8 %v1877
      %v1879 = vlaneseq
      %v1880 = vshrl.u32 %v1879, 7
      %v1881 = vsub.s32 %v1878, %v1880
      %v1882 = vrot.slane %v1875, %v1881
      %v1883 = vcombine.low %v1062, %v1084
      %v1884 = vcombine.low %v1076, %v1086
      %v1886 = vunpack.c.l.s4 1935823168
      %v1887 = vunpack.c.0.s8 %v1886
      %v1888 = vlaneseq
      %v1889 = vshrl.u32 %v1888, 7
      %v1890 = vsub.s32 %v1887, %v1889
      %v1891 = vrot.slane %v1883, %v1890
      %v1893 = vunpack.c.l.s4 1935823168
      %v1894 = vunpack.c.0.s8 %v1893
      %v1895 = vlaneseq
      %v1896 = vshrl.u32 %v1895, 7
      %v1897 = vsub.s32 %v1894, %v1896
      %v1898 = vrot.slane %v1884, %v1897
      %v1899 = vcombine.low %v1891, %v1898
      %v1901 = vunpack.c.l.s4 1935823168
      %v1902 = vunpack.c.0.s8 %v1901
      %v1903 = vlaneseq
      %v1904 = vshrl.u32 %v1903, 7
      %v1905 = vsub.s32 %v1902, %v1904
      %v1906 = vrot.slane %v1899, %v1905
      %v1907 = vcombine.low %v1069, %v1085
      %v1908 = vcombine.low %v1083, %v1087
      %v1910 = vunpack.c.l.s4 1935823168
      %v1911 = vunpack.c.0.s8 %v1910
      %v1912 = vlaneseq
      %v1913 = vshrl.u32 %v1912, 7
      %v1914 = vsub.s32 %v1911, %v1913
      %v1915 = vrot.slane %v1907, %v1914
      %v1917 = vunpack.c.l.s4 1935823168
      %v1918 = vunpack.c.0.s8 %v1917
      %v1919 = vlaneseq
      %v1920 = vshrl.u32 %v1919, 7
      %v1921 = vsub.s32 %v1918, %v1920
      %v1922 = vrot.slane %v1908, %v1921
      %v1923 = vcombine.low %v1915, %v1922
      %v1925 = vunpack.c.l.s4 1935823168
      %v1926 = vunpack.c.0.s8 %v1925
      %v1927 = vlaneseq
      %v1928 = vshrl.u32 %v1927, 7
      %v1929 = vsub.s32 %v1926, %v1928
      %v1930 = vrot.slane %v1923, %v1929
      %v1931 = vcombine.low %v499, %v1125
      %v1932 = vcombine.low %v1111, %v1133
      %v1934 = vunpack.c.l.s4 1935823168
      %v1935 = vunpack.c.0.s8 %v1934
      %v1936 = vlaneseq
      %v1937 = vshrl.u32 %v1936, 7
      %v1938 = vsub.s32 %v1935, %v1937
      %v1939 = vrot.slane %v1931, %v1938
      %v1941 = vunpack.c.l.s4 1935823168
      %v1942 = vunpack.c.0.s8 %v1941
      %v1943 = vlaneseq
      %v1944 = vshrl.u32 %v1943, 7
      %v1945 = vsub.s32 %v1942, %v1944
      %v1946 = vrot.slane %v1932, %v1945
      %v1947 = vcombine.low %v1939, %v1946
      %v1949 = vunpack.c.l.s4 1935823168
      %v1950 = vunpack.c.0.s8 %v1949
      %v1951 = vlaneseq
      %v1952 = vshrl.u32 %v1951, 7
      %v1953 = vsub.s32 %v1950, %v1952
      %v1954 = vrot.slane %v1947, %v1953
      %v1955 = vcombine.low %v1135, %v1132
      %v1956 = vcombine.low %v1118, %v1134
      %v1958 = vunpack.c.l.s4 1935823168
      %v1959 = vunpack.c.0.s8 %v1958
      %v1960 = vlaneseq
      %v1961 = vshrl.u32 %v1960, 7
      %v1962 = vsub.s32 %v1959, %v1961
      %v1963 = vrot.slane %v1955, %v1962
      %v1965 = vunpack.c.l.s4 1935823168
      %v1966 = vunpack.c.0.s8 %v1965
      %v1967 = vlaneseq
      %v1968 = vshrl.u32 %v1967, 7
      %v1969 = vsub.s32 %v1966, %v1968
      %v1970 = vrot.slane %v1956, %v1969
      %v1971 = vcombine.low %v1963, %v1970
      %v1973 = vunpack.c.l.s4 1935823168
      %v1974 = vunpack.c.0.s8 %v1973
      %v1975 = vlaneseq
      %v1976 = vshrl.u32 %v1975, 7
      %v1977 = vsub.s32 %v1974, %v1976
      %v1978 = vrot.slane %v1971, %v1977
      %v1979 = vcombine.low %v1136, %v1160
      %v1980 = vcombine.low %v499, %v1174
      %v1982 = vunpack.c.l.s4 1935823168
      %v1983 = vunpack.c.0.s8 %v1982
      %v1984 = vlaneseq
      %v1985 = vshrl.u32 %v1984, 7
      %v1986 = vsub.s32 %v1983, %v1985
      %v1987 = vrot.slane %v1979, %v1986
      %v1989 = vunpack.c.l.s4 1935823168
      %v1990 = vunpack.c.0.s8 %v1989
      %v1991 = vlaneseq
      %v1992 = vshrl.u32 %v1991, 7
      %v1993 = vsub.s32 %v1990, %v1992
      %v1994 = vrot.slane %v1980, %v1993
      %v1995 = vcombine.low %v1987, %v1994
      %v1997 = vunpack.c.l.s4 1935823168
      %v1998 = vunpack.c.0.s8 %v1997
      %v1999 = vlaneseq
      %v2000 = vshrl.u32 %v1999, 7
      %v2001 = vsub.s32 %v1998, %v2000
      %v2002 = vrot.slane %v1995, %v2001
      %v2003 = vcombine.low %v1182, %v1167
      %v2004 = vcombine.low %v1184, %v1181
      %v2006 = vunpack.c.l.s4 1935823168
      %v2007 = vunpack.c.0.s8 %v2006
      %v2008 = vlaneseq
      %v2009 = vshrl.u32 %v2008, 7
      %v2010 = vsub.s32 %v2007, %v2009
      %v2011 = vrot.slane %v2003, %v2010
      %v2013 = vunpack.c.l.s4 1935823168
      %v2014 = vunpack.c.0.s8 %v2013
      %v2015 = vlaneseq
      %v2016 = vshrl.u32 %v2015, 7
      %v2017 = vsub.s32 %v2014, %v2016
      %v2018 = vrot.slane %v2004, %v2017
      %v2019 = vcombine.low %v2011, %v2018
      %v2021 = vunpack.c.l.s4 1935823168
      %v2022 = vunpack.c.0.s8 %v2021
      %v2023 = vlaneseq
      %v2024 = vshrl.u32 %v2023, 7
      %v2025 = vsub.s32 %v2022, %v2024
      %v2026 = vrot.slane %v2019, %v2025
      %v2027 = vcombine.low %v1183, %v499
      %v2028 = vcombine.low %v1185, %v1209
      %v2030 = vunpack.c.l.s4 1935823168
      %v2031 = vunpack.c.0.s8 %v2030
      %v2032 = vlaneseq
      %v2033 = vshrl.u32 %v2032, 7
      %v2034 = vsub.s32 %v2031, %v2033
      %v2035 = vrot.slane %v2027, %v2034
      %v2037 = vunpack.c.l.s4 1935823168
      %v2038 = vunpack.c.0.s8 %v2037
      %v2039 = vlaneseq
      %v2040 = vshrl.u32 %v2039, 7
      %v2041 = vsub.s32 %v2038, %v2040
      %v2042 = vrot.slane %v2028, %v2041
      %v2043 = vcombine.low %v2035, %v2042
      %v2045 = vunpack.c.l.s4 1935823168
      %v2046 = vunpack.c.0.s8 %v2045
      %v2047 = vlaneseq
      %v2048 = vshrl.u32 %v2047, 7
      %v2049 = vsub.s32 %v2046, %v2048
      %v2050 = vrot.slane %v2043, %v2049
      %v2051 = vcombine.low %v1223, %v1233
      %v2052 = vcombine.low %v1231, %v1216
      %v2054 = vunpack.c.l.s4 1935823168
      %v2055 = vunpack.c.0.s8 %v2054
      %v2056 = vlaneseq
      %v2057 = vshrl.u32 %v2056, 7
      %v2058 = vsub.s32 %v2055, %v2057
      %v2059 = vrot.slane %v2051, %v2058
      %v2061 = vunpack.c.l.s4 1935823168
      %v2062 = vunpack.c.0.s8 %v2061
      %v2063 = vlaneseq
      %v2064 = vshrl.u32 %v2063, 7
      %v2065 = vsub.s32 %v2062, %v2064
      %v2066 = vrot.slane %v2052, %v2065
      %v2067 = vcombine.low %v2059, %v2066
      %v2069 = vunpack.c.l.s4 1935823168
      %v2070 = vunpack.c.0.s8 %v2069
      %v2071 = vlaneseq
      %v2072 = vshrl.u32 %v2071, 7
      %v2073 = vsub.s32 %v2070, %v2072
      %v2074 = vrot.slane %v2067, %v2073
      %v2075 = vcombine.low %v1230, %v1234
      %v2076 = vcombine.low %v1232, %v499
      %v2078 = vunpack.c.l.s4 1935823168
      %v2079 = vunpack.c.0.s8 %v2078
      %v2080 = vlaneseq
      %v2081 = vshrl.u32 %v2080, 7
      %v2082 = vsub.s32 %v2079, %v2081
      %v2083 = vrot.slane %v2075, %v2082
      %v2085 = vunpack.c.l.s4 1935823168
      %v2086 = vunpack.c.0.s8 %v2085
      %v2087 = vlaneseq
      %v2088 = vshrl.u32 %v2087, 7
      %v2089 = vsub.s32 %v2086, %v2088
      %v2090 = vrot.slane %v2076, %v2089
      %v2091 = vcombine.low %v2083, %v2090
      %v2093 = vunpack.c.l.s4 1935823168
      %v2094 = vunpack.c.0.s8 %v2093
      %v2095 = vlaneseq
      %v2096 = vshrl.u32 %v2095, 7
      %v2097 = vsub.s32 %v2094, %v2096
      %v2098 = vrot.slane %v2091, %v2097
      %vm2099 = vsmask.f32 5392
      %vm2100 = vmor %vm309, %vm2099
      %v2102 = vshrl.u32 %v1258, 16
      %v2104 = vrot.slane %v2102, 6
      %v2105 = vshll.u32 %v1258, 16
      %v2107 = vrot.slane %v2105, 7
      %v2108 = vor.u32 %v2104, %v2107
      %v2109 = vrot.slane %v2108, 4
      %v2111 = vshrl.u32 %v1282, 16
      %v2113 = vrot.slane %v2111, 6
      %v2114 = vshll.u32 %v1282, 16
      %v2116 = vrot.slane %v2114, 7
      %v2117 = vor.u32 %v2113, %v2116
      %v2118 = vsel %vm2100, %v2109, %v2117
      %v2119 = vrot.slane %v2117, 4
      %v2121 = vshrl.u32 %v1306, 16
      %v2123 = vrot.slane %v2121, 6
      %v2124 = vshll.u32 %v1306, 16
      %v2126 = vrot.slane %v2124, 7
      %v2127 = vor.u32 %v2123, %v2126
      %v2128 = vsel %vm2100, %v2119, %v2127
      %v2129 = vrot.slane %v2127, 4
      %v2131 = vshrl.u32 %v1330, 16
      %v2133 = vrot.slane %v2131, 6
      %v2134 = vshll.u32 %v1330, 16
      %v2136 = vrot.slane %v2134, 7
      %v2137 = vor.u32 %v2133, %v2136
      %v2138 = vsel %vm2100, %v2129, %v2137
      %v2139 = vrot.slane %v2137, 4
      %v2141 = vshrl.u32 %v1354, 16
      %v2143 = vrot.slane %v2141, 6
      %v2144 = vshll.u32 %v1354, 16
      %v2146 = vrot.slane %v2144, 7
      %v2147 = vor.u32 %v2143, %v2146
      %v2148 = vsel %vm2100, %v2139, %v2147
      %v2149 = vrot.slane %v2147, 4
      %v2151 = vshrl.u32 %v1378, 16
      %v2153 = vrot.slane %v2151, 6
      %v2154 = vshll.u32 %v1378, 16
      %v2156 = vrot.slane %v2154, 7
      %v2157 = vor.u32 %v2153, %v2156
      %v2158 = vsel %vm2100, %v2149, %v2157
      %v2159 = vrot.slane %v2157, 4
      %v2161 = vshrl.u32 %v1402, 16
      %v2163 = vrot.slane %v2161, 6
      %v2164 = vshll.u32 %v1402, 16
      %v2166 = vrot.slane %v2164, 7
      %v2167 = vor.u32 %v2163, %v2166
      %v2168 = vsel %vm2100, %v2159, %v2167
      %v2169 = vrot.slane %v2167, 4
      %v2171 = vshrl.u32 %v1426, 16
      %v2173 = vrot.slane %v2171, 6
      %v2174 = vshll.u32 %v1426, 16
      %v2176 = vrot.slane %v2174, 7
      %v2177 = vor.u32 %v2173, %v2176
      %v2178 = vsel %vm2100, %v2169, %v2177
      %v2179 = vrot.slane %v2177, 4
      %v2181 = vshrl.u32 %v1450, 16
      %v2183 = vrot.slane %v2181, 6
      %v2184 = vshll.u32 %v1450, 16
      %v2186 = vrot.slane %v2184, 7
      %v2187 = vor.u32 %v2183, %v2186
      %v2188 = vsel %vm2100, %v2179, %v2187
      %v2189 = vrot.slane %v2187, 4
      %v2191 = vshrl.u32 %v1474, 16
      %v2193 = vrot.slane %v2191, 6
      %v2194 = vshll.u32 %v1474, 16
      %v2196 = vrot.slane %v2194, 7
      %v2197 = vor.u32 %v2193, %v2196
      %v2198 = vsel %vm2100, %v2189, %v2197
      %v2199 = vrot.slane %v2197, 4
      %v2201 = vshrl.u32 %v1498, 16
      %v2203 = vrot.slane %v2201, 6
      %v2204 = vshll.u32 %v1498, 16
      %v2206 = vrot.slane %v2204, 7
      %v2207 = vor.u32 %v2203, %v2206
      %v2208 = vsel %vm2100, %v2199, %v2207
      %v2209 = vrot.slane %v2207, 4
      %v2211 = vshrl.u32 %v1522, 16
      %v2213 = vrot.slane %v2211, 6
      %v2214 = vshll.u32 %v1522, 16
      %v2216 = vrot.slane %v2214, 7
      %v2217 = vor.u32 %v2213, %v2216
      %v2218 = vsel %vm2100, %v2209, %v2217
      %v2219 = vrot.slane %v2217, 4
      %v2221 = vshrl.u32 %v1546, 16
      %v2223 = vrot.slane %v2221, 6
      %v2224 = vshll.u32 %v1546, 16
      %v2226 = vrot.slane %v2224, 7
      %v2227 = vor.u32 %v2223, %v2226
      %v2228 = vsel %vm2100, %v2219, %v2227
      %v2229 = vrot.slane %v2227, 4
      %v2231 = vshrl.u32 %v1570, 16
      %v2233 = vrot.slane %v2231, 6
      %v2234 = vshll.u32 %v1570, 16
      %v2236 = vrot.slane %v2234, 7
      %v2237 = vor.u32 %v2233, %v2236
      %v2238 = vsel %vm2100, %v2229, %v2237
      %v2239 = vrot.slane %v2237, 4
      %v2241 = vshrl.u32 %v1594, 16
      %v2243 = vrot.slane %v2241, 6
      %v2244 = vshll.u32 %v1594, 16
      %v2246 = vrot.slane %v2244, 7
      %v2247 = vor.u32 %v2243, %v2246
      %v2248 = vsel %vm2100, %v2239, %v2247
      %v2249 = vrot.slane %v2247, 4
      %v2251 = vshrl.u32 %v1618, 16
      %v2253 = vrot.slane %v2251, 6
      %v2254 = vshll.u32 %v1618, 16
      %v2256 = vrot.slane %v2254, 7
      %v2257 = vor.u32 %v2253, %v2256
      %v2258 = vsel %vm2100, %v2249, %v2257
      %v2259 = vrot.slane %v2257, 4
      %v2261 = vshrl.u32 %v1642, 16
      %v2263 = vrot.slane %v2261, 6
      %v2264 = vshll.u32 %v1642, 16
      %v2266 = vrot.slane %v2264, 7
      %v2267 = vor.u32 %v2263, %v2266
      %v2268 = vsel %vm2100, %v2259, %v2267
      %v2269 = vrot.slane %v2267, 4
      %v2271 = vshrl.u32 %v1666, 16
      %v2273 = vrot.slane %v2271, 6
      %v2274 = vshll.u32 %v1666, 16
      %v2276 = vrot.slane %v2274, 7
      %v2277 = vor.u32 %v2273, %v2276
      %v2278 = vsel %vm2100, %v2269, %v2277
      %v2279 = vrot.slane %v2277, 4
      %v2281 = vshrl.u32 %v1690, 16
      %v2283 = vrot.slane %v2281, 6
      %v2284 = vshll.u32 %v1690, 16
      %v2286 = vrot.slane %v2284, 7
      %v2287 = vor.u32 %v2283, %v2286
      %v2288 = vsel %vm2100, %v2279, %v2287
      %v2289 = vrot.slane %v2287, 4
      %v2291 = vshrl.u32 %v1714, 16
      %v2293 = vrot.slane %v2291, 6
      %v2294 = vshll.u32 %v1714, 16
      %v2296 = vrot.slane %v2294, 7
      %v2297 = vor.u32 %v2293, %v2296
      %v2298 = vsel %vm2100, %v2289, %v2297
      %v2299 = vrot.slane %v2297, 4
      %v2301 = vshrl.u32 %v1738, 16
      %v2303 = vrot.slane %v2301, 6
      %v2304 = vshll.u32 %v1738, 16
      %v2306 = vrot.slane %v2304, 7
      %v2307 = vor.u32 %v2303, %v2306
      %v2308 = vsel %vm2100, %v2299, %v2307
      %v2309 = vrot.slane %v2307, 4
      %v2311 = vshrl.u32 %v1762, 16
      %v2313 = vrot.slane %v2311, 6
      %v2314 = vshll.u32 %v1762, 16
      %v2316 = vrot.slane %v2314, 7
      %v2317 = vor.u32 %v2313, %v2316
      %v2318 = vsel %vm2100, %v2309, %v2317
      %v2319 = vrot.slane %v2317, 4
      %v2321 = vshrl.u32 %v1786, 16
      %v2323 = vrot.slane %v2321, 6
      %v2324 = vshll.u32 %v1786, 16
      %v2326 = vrot.slane %v2324, 7
      %v2327 = vor.u32 %v2323, %v2326
      %v2328 = vsel %vm2100, %v2319, %v2327
      %v2329 = vrot.slane %v2327, 4
      %v2331 = vshrl.u32 %v1810, 16
      %v2333 = vrot.slane %v2331, 6
      %v2334 = vshll.u32 %v1810, 16
      %v2336 = vrot.slane %v2334, 7
      %v2337 = vor.u32 %v2333, %v2336
      %v2338 = vsel %vm2100, %v2329, %v2337
      %v2339 = vrot.slane %v2337, 4
      %v2341 = vshrl.u32 %v1834, 16
      %v2343 = vrot.slane %v2341, 6
      %v2344 = vshll.u32 %v1834, 16
      %v2346 = vrot.slane %v2344, 7
      %v2347 = vor.u32 %v2343, %v2346
      %v2348 = vsel %vm2100, %v2339, %v2347
      %v2349 = vrot.slane %v2347, 4
      %v2351 = vshrl.u32 %v1858, 16
      %v2353 = vrot.slane %v2351, 6
      %v2354 = vshll.u32 %v1858, 16
      %v2356 = vrot.slane %v2354, 7
      %v2357 = vor.u32 %v2353, %v2356
      %v2358 = vsel %vm2100, %v2349, %v2357
      %v2359 = vrot.slane %v2357, 4
      %v2361 = vshrl.u32 %v1882, 16
      %v2363 = vrot.slane %v2361, 6
      %v2364 = vshll.u32 %v1882, 16
      %v2366 = vrot.slane %v2364, 7
      %v2367 = vor.u32 %v2363, %v2366
      %v2368 = vsel %vm2100, %v2359, %v2367
      %v2369 = vrot.slane %v2367, 4
      %v2371 = vshrl.u32 %v1906, 16
      %v2373 = vrot.slane %v2371, 6
      %v2374 = vshll.u32 %v1906, 16
      %v2376 = vrot.slane %v2374, 7
      %v2377 = vor.u32 %v2373, %v2376
      %v2378 = vsel %vm2100, %v2369, %v2377
      %v2379 = vrot.slane %v2377, 4
      %v2381 = vshrl.u32 %v1930, 16
      %v2383 = vrot.slane %v2381, 6
      %v2384 = vshll.u32 %v1930, 16
      %v2386 = vrot.slane %v2384, 7
      %v2387 = vor.u32 %v2383, %v2386
      %v2388 = vsel %vm2100, %v2379, %v2387
      %v2389 = vrot.slane %v2387, 4
      %v2391 = vshrl.u32 %v1954, 16
      %v2393 = vrot.slane %v2391, 6
      %v2394 = vshll.u32 %v1954, 16
      %v2396 = vrot.slane %v2394, 7
      %v2397 = vor.u32 %v2393, %v2396
      %v2398 = vsel %vm2100, %v2389, %v2397
      %v2399 = vrot.slane %v2397, 4
      %v2401 = vshrl.u32 %v1978, 16
      %v2403 = vrot.slane %v2401, 6
      %v2404 = vshll.u32 %v1978, 16
      %v2406 = vrot.slane %v2404, 7
      %v2407 = vor.u32 %v2403, %v2406
      %v2408 = vsel %vm2100, %v2399, %v2407
      %v2409 = vrot.slane %v2407, 4
      %v2411 = vshrl.u32 %v2002, 16
      %v2413 = vrot.slane %v2411, 6
      %v2414 = vshll.u32 %v2002, 16
      %v2416 = vrot.slane %v2414, 7
      %v2417 = vor.u32 %v2413, %v2416
      %v2418 = vsel %vm2100, %v2409, %v2417
      %v2419 = vrot.slane %v2417, 4
      %v2421 = vshrl.u32 %v2026, 16
      %v2423 = vrot.slane %v2421, 6
      %v2424 = vshll.u32 %v2026, 16
      %v2426 = vrot.slane %v2424, 7
      %v2427 = vor.u32 %v2423, %v2426
      %v2428 = vsel %vm2100, %v2419, %v2427
      %v2429 = vrot.slane %v2427, 4
      %v2431 = vshrl.u32 %v2050, 16
      %v2433 = vrot.slane %v2431, 6
      %v2434 = vshll.u32 %v2050, 16
      %v2436 = vrot.slane %v2434, 7
      %v2437 = vor.u32 %v2433, %v2436
      %v2438 = vsel %vm2100, %v2429, %v2437
      %v2439 = vrot.slane %v2437, 4
      %v2441 = vshrl.u32 %v2074, 16
      %v2443 = vrot.slane %v2441, 6
      %v2444 = vshll.u32 %v2074, 16
      %v2446 = vrot.slane %v2444, 7
      %v2447 = vor.u32 %v2443, %v2446
      %v2448 = vsel %vm2100, %v2439, %v2447
      %v2449 = vrot.slane %v2447, 4
      %v2451 = vshrl.u32 %v2098, 16
      %v2453 = vrot.slane %v2451, 6
      %v2454 = vshll.u32 %v2098, 16
      %v2456 = vrot.slane %v2454, 7
      %v2457 = vor.u32 %v2453, %v2456
      %v2458 = vsel %vm2100, %v2449, %v2457
      %v2459 = vrot.slane %v2457, 4
      %v2497 = vld [vmem:[#allocation2 + $0x8] sm:$0xe]
      %v2498 = vsel %vm316, %v2108, %v2497
      %2499 = vst [vmem:[#allocation2 + $0x8] sm:$0xe] %v2498
      %2500 = vst.msk [vmem:[#allocation2 + $0xc] sm:$0xf] %vm305, %v2118
      %2501 = vst.msk [vmem:[#allocation2 + $0x10] sm:$0xf] %vm305, %v2128
      %2502 = vst.msk [vmem:[#allocation2 + $0x14] sm:$0xf] %vm305, %v2138
      %2503 = vst.msk [vmem:[#allocation2 + $0x18] sm:$0xf] %vm305, %v2148
      %2504 = vst.msk [vmem:[#allocation2 + $0x1c] sm:$0xf] %vm305, %v2158
      %2505 = vst.msk [vmem:[#allocation2 + $0x20] sm:$0xf] %vm305, %v2168
      %2506 = vst.msk [vmem:[#allocation2 + $0x24] sm:$0xf] %vm305, %v2178
      %2507 = vst.msk [vmem:[#allocation2 + $0x28] sm:$0xf] %vm305, %v2188
      %2508 = vst.msk [vmem:[#allocation2 + $0x2c] sm:$0xf] %vm305, %v2198
      %2509 = vst.msk [vmem:[#allocation2 + $0x30] sm:$0xf] %vm305, %v2208
      %2510 = vst.msk [vmem:[#allocation2 + $0x34] sm:$0xf] %vm305, %v2218
      %2511 = vst.msk [vmem:[#allocation2 + $0x38] sm:$0xf] %vm305, %v2228
      %2512 = vst.msk [vmem:[#allocation2 + $0x3c] sm:$0xf] %vm305, %v2238
      %2513 = vst.msk [vmem:[#allocation2 + $0x40] sm:$0xf] %vm305, %v2248
      %2514 = vst.msk [vmem:[#allocation2 + $0x44] sm:$0xf] %vm305, %v2258
      %2515 = vst.msk [vmem:[#allocation2 + $0x48] sm:$0xf] %vm305, %v2268
      %2516 = vst.msk [vmem:[#allocation2 + $0x4c] sm:$0xf] %vm305, %v2278
      %2517 = vst.msk [vmem:[#allocation2 + $0x50] sm:$0xf] %vm305, %v2288
      %2518 = vst.msk [vmem:[#allocation2 + $0x54] sm:$0xf] %vm305, %v2298
      %2519 = vst.msk [vmem:[#allocation2 + $0x58] sm:$0xf] %vm305, %v2308
      %2520 = vst.msk [vmem:[#allocation2 + $0x5c] sm:$0xf] %vm305, %v2318
      %2521 = vst.msk [vmem:[#allocation2 + $0x60] sm:$0xf] %vm305, %v2328
      %2522 = vst.msk [vmem:[#allocation2 + $0x64] sm:$0xf] %vm305, %v2338
      %2523 = vst.msk [vmem:[#allocation2 + $0x68] sm:$0xf] %vm305, %v2348
      %2524 = vst.msk [vmem:[#allocation2 + $0x6c] sm:$0xf] %vm305, %v2358
      %2525 = vst.msk [vmem:[#allocation2 + $0x70] sm:$0xf] %vm305, %v2368
      %2526 = vst.msk [vmem:[#allocation2 + $0x74] sm:$0xf] %vm305, %v2378
      %2527 = vst.msk [vmem:[#allocation2 + $0x78] sm:$0xf] %vm305, %v2388
      %2528 = vst.msk [vmem:[#allocation2 + $0x7c] sm:$0xf] %vm305, %v2398
      %2529 = vst.msk [vmem:[#allocation2 + $0x80] sm:$0xf] %vm305, %v2408
      %2530 = vst.msk [vmem:[#allocation2 + $0x84] sm:$0xf] %vm305, %v2418
      %2531 = vst.msk [vmem:[#allocation2 + $0x88] sm:$0xf] %vm305, %v2428
      %2532 = vst.msk [vmem:[#allocation2 + $0x8c] sm:$0xf] %vm305, %v2438
      %2533 = vst.msk [vmem:[#allocation2 + $0x90] sm:$0xf] %vm305, %v2448
      %2534 = vst.msk [vmem:[#allocation2 + $0x94] sm:$0xf] %vm305, %v2458
      %v2535 = vld [vmem:[#allocation2 + $0x98] sm:$0x3]
      %v2536 = vsel %vm310, %v2459, %v2535
      %2537 = vst [vmem:[#allocation2 + $0x98] sm:$0x3] %v2536
      %v2538 = vld [vmem:[#allocation2] sm:$0xf]
      %v2539 = vld [vmem:[#allocation2 + $0x4] sm:$0xf]
      %v2540 = vld [vmem:[#allocation2 + $0x8] sm:$0xf]
      %v2541 = vld [vmem:[#allocation2 + $0xc] sm:$0xf]
      %v2542 = vld [vmem:[#allocation2 + $0x10] sm:$0xf]
      %v2543 = vld [vmem:[#allocation2 + $0x14] sm:$0xf]
      %v2544 = vld [vmem:[#allocation2 + $0x18] sm:$0xf]
      %v2545 = vld [vmem:[#allocation2 + $0x1c] sm:$0xf]
      %v2546 = vld [vmem:[#allocation2 + $0x20] sm:$0xf]
      %v2547 = vld [vmem:[#allocation2 + $0x24] sm:$0xf]
      %v2548 = vld [vmem:[#allocation2 + $0x28] sm:$0xf]
      %v2549 = vld [vmem:[#allocation2 + $0x2c] sm:$0xf]
      %v2550 = vld [vmem:[#allocation2 + $0x30] sm:$0xf]
      %v2551 = vld [vmem:[#allocation2 + $0x34] sm:$0xf]
      %v2552 = vld [vmem:[#allocation2 + $0x38] sm:$0xf]
      %v2553 = vld [vmem:[#allocation2 + $0x3c] sm:$0xf]
      %v2554 = vld [vmem:[#allocation2 + $0x40] sm:$0xf]
      %v2555 = vld [vmem:[#allocation2 + $0x44] sm:$0xf]
      %v2556 = vld [vmem:[#allocation2 + $0x48] sm:$0xf]
      %v2557 = vld [vmem:[#allocation2 + $0x4c] sm:$0xf]
      %v2558 = vld [vmem:[#allocation2 + $0x50] sm:$0xf]
      %v2559 = vld [vmem:[#allocation2 + $0x54] sm:$0xf]
      %v2560 = vld [vmem:[#allocation2 + $0x58] sm:$0xf]
      %v2561 = vld [vmem:[#allocation2 + $0x5c] sm:$0xf]
      %v2562 = vld [vmem:[#allocation2 + $0x60] sm:$0xf]
      %v2563 = vld [vmem:[#allocation2 + $0x64] sm:$0xf]
      %v2564 = vld [vmem:[#allocation2 + $0x68] sm:$0xf]
      %v2565 = vld [vmem:[#allocation2 + $0x6c] sm:$0xf]
      %v2566 = vld [vmem:[#allocation2 + $0x70] sm:$0xf]
      %v2567 = vld [vmem:[#allocation2 + $0x74] sm:$0xf]
      %v2568 = vld [vmem:[#allocation2 + $0x78] sm:$0xf]
      %v2569 = vld [vmem:[#allocation2 + $0x7c] sm:$0xf]
      %v2570 = vld [vmem:[#allocation2 + $0x80] sm:$0xf]
      %v2571 = vld [vmem:[#allocation2 + $0x84] sm:$0xf]
      %v2572 = vld [vmem:[#allocation2 + $0x88] sm:$0xf]
      %v2573 = vld [vmem:[#allocation2 + $0x8c] sm:$0xf]
      %v2574 = vld [vmem:[%s1] sm:$0x3]
      %v2575 = vld [vmem:[#allocation2 + $0x90] sm:$0x1]
      %s2576 = scalar_lea.vmem %s1, 2
      %v2577 = vld [vmem:[%s2576] sm:$0x3]
      %v2615 = vunpack.c.l.b16 %v2538
      %v2616 = vunpack.c.l.b16 %v2539
      %v2617 = vunpack.c.l.b16 %v2540
      %v2618 = vunpack.c.l.b16 %v2541
      %v2619 = vunpack.c.l.b16 %v2542
      %v2620 = vunpack.c.l.b16 %v2543
      %v2621 = vunpack.c.l.b16 %v2544
      %v2622 = vunpack.c.l.b16 %v2545
      %v2623 = vunpack.c.l.b16 %v2546
      %v2624 = vunpack.c.l.b16 %v2547
      %v2625 = vunpack.c.l.b16 %v2548
      %v2626 = vunpack.c.l.b16 %v2549
      %v2627 = vunpack.c.l.b16 %v2550
      %v2628 = vunpack.c.l.b16 %v2551
      %v2629 = vunpack.c.l.b16 %v2552
      %v2630 = vunpack.c.l.b16 %v2553
      %v2631 = vunpack.c.l.b16 %v2554
      %v2632 = vunpack.c.l.b16 %v2555
      %v2633 = vunpack.c.l.b16 %v2556
      %v2634 = vunpack.c.l.b16 %v2557
      %v2635 = vunpack.c.l.b16 %v2558
      %v2636 = vunpack.c.l.b16 %v2559
      %v2637 = vunpack.c.l.b16 %v2560
      %v2638 = vunpack.c.l.b16 %v2561
      %v2639 = vunpack.c.l.b16 %v2562
      %v2640 = vunpack.c.l.b16 %v2563
      %v2641 = vunpack.c.l.b16 %v2564
      %v2642 = vunpack.c.l.b16 %v2565
      %v2643 = vunpack.c.l.b16 %v2566
      %v2644 = vunpack.c.l.b16 %v2567
      %v2645 = vunpack.c.l.b16 %v2568
      %v2646 = vunpack.c.l.b16 %v2569
      %v2647 = vunpack.c.l.b16 %v2570
      %v2648 = vunpack.c.l.b16 %v2571
      %v2649 = vunpack.c.l.b16 %v2572
      %v2650 = vunpack.c.l.b16 %v2573
      %v2651 = vunpack.c.l.b16 %v2575
      %v2652 = vpack.c.b16 %v2616, %v2615
      %v2653 = vpack.c.b16 %v2618, %v2617
      %v2654 = vpack.c.b16 %v2620, %v2619
      %v2655 = vpack.c.b16 %v2622, %v2621
      %v2656 = vpack.c.b16 %v2624, %v2623
      %v2657 = vpack.c.b16 %v2626, %v2625
      %v2658 = vpack.c.b16 %v2628, %v2627
      %v2659 = vpack.c.b16 %v2630, %v2629
      %v2660 = vpack.c.b16 %v2632, %v2631
      %v2661 = vpack.c.b16 %v2634, %v2633
      %v2662 = vpack.c.b16 %v2636, %v2635
      %v2663 = vpack.c.b16 %v2638, %v2637
      %v2664 = vpack.c.b16 %v2640, %v2639
      %v2665 = vpack.c.b16 %v2642, %v2641
      %v2666 = vpack.c.b16 %v2644, %v2643
      %v2667 = vpack.c.b16 %v2646, %v2645
      %v2668 = vpack.c.b16 %v2648, %v2647
      %v2669 = vpack.c.b16 %v2650, %v2649
      %v2670 = vpack.c.b16 %v2651, %v2651
      %vm2671 = vsmask.f32 7424
      %v2673 = vshrl.u32 %v2652, 16
      %v2675 = vshll.u32 %v2652, 16
      %v2677 = vrot.slane %v2675, 1
      %v2678 = vor.u32 %v2673, %v2677
      %v2680 = vshll.u32 %v2653, 16
      %v2682 = vrot.slane %v2680, 1
      %v2683 = vsel %vm2671, %v2678, %v2682
      %v2684 = vshrl.u32 %v2653, 16
      %v2686 = vor.u32 %v2684, %v2682
      %v2688 = vshll.u32 %v2654, 16
      %v2690 = vrot.slane %v2688, 1
      %v2691 = vsel %vm2671, %v2686, %v2690
      %v2692 = vshrl.u32 %v2654, 16
      %v2694 = vor.u32 %v2692, %v2690
      %v2696 = vshll.u32 %v2655, 16
      %v2698 = vrot.slane %v2696, 1
      %v2699 = vsel %vm2671, %v2694, %v2698
      %v2700 = vshrl.u32 %v2655, 16
      %v2702 = vor.u32 %v2700, %v2698
      %v2704 = vshll.u32 %v2656, 16
      %v2706 = vrot.slane %v2704, 1
      %v2707 = vsel %vm2671, %v2702, %v2706
      %v2708 = vshrl.u32 %v2656, 16
      %v2710 = vor.u32 %v2708, %v2706
      %v2712 = vshll.u32 %v2657, 16
      %v2714 = vrot.slane %v2712, 1
      %v2715 = vsel %vm2671, %v2710, %v2714
      %v2716 = vshrl.u32 %v2657, 16
      %v2718 = vor.u32 %v2716, %v2714
      %v2720 = vshll.u32 %v2658, 16
      %v2722 = vrot.slane %v2720, 1
      %v2723 = vsel %vm2671, %v2718, %v2722
      %v2724 = vshrl.u32 %v2658, 16
      %v2726 = vor.u32 %v2724, %v2722
      %v2728 = vshll.u32 %v2659, 16
      %v2730 = vrot.slane %v2728, 1
      %v2731 = vsel %vm2671, %v2726, %v2730
      %v2732 = vshrl.u32 %v2659, 16
      %v2734 = vor.u32 %v2732, %v2730
      %v2736 = vshll.u32 %v2660, 16
      %v2738 = vrot.slane %v2736, 1
      %v2739 = vsel %vm2671, %v2734, %v2738
      %v2740 = vshrl.u32 %v2660, 16
      %v2742 = vor.u32 %v2740, %v2738
      %v2744 = vshll.u32 %v2661, 16
      %v2746 = vrot.slane %v2744, 1
      %v2747 = vsel %vm2671, %v2742, %v2746
      %v2748 = vshrl.u32 %v2661, 16
      %v2750 = vor.u32 %v2748, %v2746
      %v2752 = vshll.u32 %v2662, 16
      %v2754 = vrot.slane %v2752, 1
      %v2755 = vsel %vm2671, %v2750, %v2754
      %v2756 = vshrl.u32 %v2662, 16
      %v2758 = vor.u32 %v2756, %v2754
      %v2760 = vshll.u32 %v2663, 16
      %v2762 = vrot.slane %v2760, 1
      %v2763 = vsel %vm2671, %v2758, %v2762
      %v2764 = vshrl.u32 %v2663, 16
      %v2766 = vor.u32 %v2764, %v2762
      %v2768 = vshll.u32 %v2664, 16
      %v2770 = vrot.slane %v2768, 1
      %v2771 = vsel %vm2671, %v2766, %v2770
      %v2772 = vshrl.u32 %v2664, 16
      %v2774 = vor.u32 %v2772, %v2770
      %v2776 = vshll.u32 %v2665, 16
      %v2778 = vrot.slane %v2776, 1
      %v2779 = vsel %vm2671, %v2774, %v2778
      %v2780 = vshrl.u32 %v2665, 16
      %v2782 = vor.u32 %v2780, %v2778
      %v2784 = vshll.u32 %v2666, 16
      %v2786 = vrot.slane %v2784, 1
      %v2787 = vsel %vm2671, %v2782, %v2786
      %v2788 = vshrl.u32 %v2666, 16
      %v2790 = vor.u32 %v2788, %v2786
      %v2792 = vshll.u32 %v2667, 16
      %v2794 = vrot.slane %v2792, 1
      %v2795 = vsel %vm2671, %v2790, %v2794
      %v2796 = vshrl.u32 %v2667, 16
      %v2798 = vor.u32 %v2796, %v2794
      %v2800 = vshll.u32 %v2668, 16
      %v2802 = vrot.slane %v2800, 1
      %v2803 = vsel %vm2671, %v2798, %v2802
      %v2804 = vshrl.u32 %v2668, 16
      %v2806 = vor.u32 %v2804, %v2802
      %v2808 = vshll.u32 %v2669, 16
      %v2810 = vrot.slane %v2808, 1
      %v2811 = vsel %vm2671, %v2806, %v2810
      %v2812 = vshrl.u32 %v2669, 16
      %v2814 = vor.u32 %v2812, %v2810
      %v2816 = vshll.u32 %v2670, 16
      %v2818 = vrot.slane %v2816, 1
      %v2819 = vsel %vm2671, %v2814, %v2818
      %vm2820 = vcmask 31744
      %v2822 = vsel %vm2820, %v2683, 0
      %v2825 = vsel %vm2820, %v2691, 0
      %v2828 = vsel %vm2820, %v2699, 0
      %v2831 = vsel %vm2820, %v2707, 0
      %v2834 = vsel %vm2820, %v2715, 0
      %v2837 = vsel %vm2820, %v2723, 0
      %v2840 = vsel %vm2820, %v2731, 0
      %v2843 = vsel %vm2820, %v2739, 0
      %v2846 = vsel %vm2820, %v2747, 0
      %v2849 = vsel %vm2820, %v2755, 0
      %v2852 = vsel %vm2820, %v2763, 0
      %v2855 = vsel %vm2820, %v2771, 0
      %v2858 = vsel %vm2820, %v2779, 0
      %v2861 = vsel %vm2820, %v2787, 0
      %v2864 = vsel %vm2820, %v2795, 0
      %v2867 = vsel %vm2820, %v2803, 0
      %v2870 = vsel %vm2820, %v2811, 0
      %v2873 = vsel %vm2820, %v2819, 0
      %vm2875 = vcmask 1041408
      %v2877 = vsel %vm2875, %v2577, 0
      %2879 = vmatprep.subr.bf16.mxu0 0
      %2880 = vmatpush1.bf16.msra.mxu0 0
      %2881 = vmatprep.subr.bf16.mxu0 0
      %2882 = vmatpush1.bf16.msra.mxu0 0
      %2883 = vmatprep.subr.bf16.mxu0 0
      %2884 = vmatpush1.bf16.msra.mxu0 0
      %2885 = vmatprep.subr.bf16.mxu0 0
      %2886 = vmatpush1.bf16.msra.mxu0 0
      %2887 = vmatprep.subr.bf16.mxu0 0
      %2888 = vmatpush1.bf16.msra.mxu0 0
      %2889 = vmatprep.subr.bf16.mxu0 0
      %2890 = vmatpush1.bf16.msra.mxu0 0
      %2891 = vmatprep.subr.bf16.mxu0 0
      %2892 = vmatpush1.bf16.msra.mxu0 0
      %2893 = vmatprep.subr.bf16.mxu0 0
      %2894 = vmatpush1.bf16.msra.mxu0 %v2877
      %2895 = vmatprep.subr.bf16.mxu0 0
      %2896 = vmatpush2.bf16.msra.mxu0 0
      %2897 = vmatprep.subr.bf16.mxu0 0
      %2898 = vmatpush2.bf16.msra.mxu0 0
      %2899 = vmatprep.subr.bf16.mxu0 0
      %2900 = vmatpush2.bf16.msra.mxu0 0
      %2901 = vmatprep.subr.bf16.mxu0 0
      %2902 = vmatpush2.bf16.msra.mxu0 0
      %2903 = vmatprep.subr.bf16.mxu0 0
      %2904 = vmatpush2.bf16.msra.mxu0 0
      %2905 = vmatprep.subr.bf16.mxu0 0
      %2906 = vmatpush2.bf16.msra.mxu0 0
      %2907 = vmatprep.subr.bf16.mxu0 0
      %2908 = vmatpush2.bf16.msra.mxu0 0
      %2909 = vmatprep.subr.bf16.mxu0 0
      %2910 = vmatpush2.bf16.msra.mxu0 0
      %2911 = vmatprep.mubr.bf16.mxu0 0
      %2912 = vmatmul.mubr.bf16.gmra.mxu0 %v2822
      %v2913 = vpop.f32.mrf.mxu0
      %v2914 = vadd.f32 0.0, %v2913
      %v2915 = vpop.f32.mrf.mxu0
      %v2916 = vpop.f32.mrf.mxu0
      %v2917 = vadd.f32 0.0, %v2916
      %v2918 = vpop.f32.mrf.mxu0
      %2919 = vmatprep.mubr.bf16.mxu0 0
      %2920 = vmatmul.mubr.bf16.gmra.mxu0 %v2825
      %v2921 = vpop.f32.mrf.mxu0
      %v2922 = vadd.f32 0.0, %v2921
      %v2923 = vpop.f32.mrf.mxu0
      %v2924 = vpop.f32.mrf.mxu0
      %v2925 = vadd.f32 0.0, %v2924
      %v2926 = vpop.f32.mrf.mxu0
      %2927 = vmatprep.mubr.bf16.mxu0 0
      %2928 = vmatmul.mubr.bf16.gmra.mxu0 %v2828
      %v2929 = vpop.f32.mrf.mxu0
      %v2930 = vadd.f32 0.0, %v2929
      %v2931 = vpop.f32.mrf.mxu0
      %v2932 = vpop.f32.mrf.mxu0
      %v2933 = vadd.f32 0.0, %v2932
      %v2934 = vpop.f32.mrf.mxu0
      %2935 = vmatprep.mubr.bf16.mxu0 0
      %2936 = vmatmul.mubr.bf16.gmra.mxu0 %v2831
      %v2937 = vpop.f32.mrf.mxu0
      %v2938 = vadd.f32 0.0, %v2937
      %v2939 = vpop.f32.mrf.mxu0
      %v2940 = vpop.f32.mrf.mxu0
      %v2941 = vadd.f32 0.0, %v2940
      %v2942 = vpop.f32.mrf.mxu0
      %2943 = vmatprep.mubr.bf16.mxu0 0
      %2944 = vmatmul.mubr.bf16.gmra.mxu0 %v2834
      %v2945 = vpop.f32.mrf.mxu0
      %v2946 = vadd.f32 0.0, %v2945
      %v2947 = vpop.f32.mrf.mxu0
      %v2948 = vpop.f32.mrf.mxu0
      %v2949 = vadd.f32 0.0, %v2948
      %v2950 = vpop.f32.mrf.mxu0
      %2951 = vmatprep.mubr.bf16.mxu0 0
      %2952 = vmatmul.mubr.bf16.gmra.mxu0 %v2837
      %v2953 = vpop.f32.mrf.mxu0
      %v2954 = vadd.f32 0.0, %v2953
      %v2955 = vpop.f32.mrf.mxu0
      %v2956 = vpop.f32.mrf.mxu0
      %v2957 = vadd.f32 0.0, %v2956
      %v2958 = vpop.f32.mrf.mxu0
      %2959 = vmatprep.mubr.bf16.mxu0 0
      %2960 = vmatmul.mubr.bf16.gmra.mxu0 %v2840
      %v2961 = vpop.f32.mrf.mxu0
      %v2962 = vadd.f32 0.0, %v2961
      %v2963 = vpop.f32.mrf.mxu0
      %v2964 = vpop.f32.mrf.mxu0
      %v2965 = vadd.f32 0.0, %v2964
      %v2966 = vpop.f32.mrf.mxu0
      %2967 = vmatprep.mubr.bf16.mxu0 0
      %2968 = vmatmul.mubr.bf16.gmra.mxu0 %v2843
      %v2969 = vpop.f32.mrf.mxu0
      %v2970 = vadd.f32 0.0, %v2969
      %v2971 = vpop.f32.mrf.mxu0
      %v2972 = vpop.f32.mrf.mxu0
      %v2973 = vadd.f32 0.0, %v2972
      %v2974 = vpop.f32.mrf.mxu0
      %2975 = vmatprep.mubr.bf16.mxu0 0
      %2976 = vmatmul.mubr.bf16.gmra.mxu0 %v2846
      %v2977 = vpop.f32.mrf.mxu0
      %v2978 = vadd.f32 0.0, %v2977
      %v2979 = vpop.f32.mrf.mxu0
      %v2980 = vpop.f32.mrf.mxu0
      %v2981 = vadd.f32 0.0, %v2980
      %v2982 = vpop.f32.mrf.mxu0
      %2983 = vmatprep.mubr.bf16.mxu0 0
      %2984 = vmatmul.mubr.bf16.gmra.mxu0 %v2849
      %v2985 = vpop.f32.mrf.mxu0
      %v2986 = vadd.f32 0.0, %v2985
      %v2987 = vpop.f32.mrf.mxu0
      %v2988 = vpop.f32.mrf.mxu0
      %v2989 = vadd.f32 0.0, %v2988
      %v2990 = vpop.f32.mrf.mxu0
      %2991 = vmatprep.mubr.bf16.mxu0 0
      %2992 = vmatmul.mubr.bf16.gmra.mxu0 %v2852
      %v2993 = vpop.f32.mrf.mxu0
      %v2994 = vadd.f32 0.0, %v2993
      %v2995 = vpop.f32.mrf.mxu0
      %v2996 = vpop.f32.mrf.mxu0
      %v2997 = vadd.f32 0.0, %v2996
      %v2998 = vpop.f32.mrf.mxu0
      %2999 = vmatprep.mubr.bf16.mxu0 0
      %3000 = vmatmul.mubr.bf16.gmra.mxu0 %v2855
      %v3001 = vpop.f32.mrf.mxu0
      %v3002 = vadd.f32 0.0, %v3001
      %v3003 = vpop.f32.mrf.mxu0
      %v3004 = vpop.f32.mrf.mxu0
      %v3005 = vadd.f32 0.0, %v3004
      %v3006 = vpop.f32.mrf.mxu0
      %3007 = vmatprep.mubr.bf16.mxu0 0
      %3008 = vmatmul.mubr.bf16.gmra.mxu0 %v2858
      %v3009 = vpop.f32.mrf.mxu0
      %v3010 = vadd.f32 0.0, %v3009
      %v3011 = vpop.f32.mrf.mxu0
      %v3012 = vpop.f32.mrf.mxu0
      %v3013 = vadd.f32 0.0, %v3012
      %v3014 = vpop.f32.mrf.mxu0
      %3015 = vmatprep.mubr.bf16.mxu0 0
      %3016 = vmatmul.mubr.bf16.gmra.mxu0 %v2861
      %v3017 = vpop.f32.mrf.mxu0
      %v3018 = vadd.f32 0.0, %v3017
      %v3019 = vpop.f32.mrf.mxu0
      %v3020 = vpop.f32.mrf.mxu0
      %v3021 = vadd.f32 0.0, %v3020
      %v3022 = vpop.f32.mrf.mxu0
      %3023 = vmatprep.mubr.bf16.mxu0 0
      %3024 = vmatmul.mubr.bf16.gmra.mxu0 %v2864
      %v3025 = vpop.f32.mrf.mxu0
      %v3026 = vadd.f32 0.0, %v3025
      %v3027 = vpop.f32.mrf.mxu0
      %v3028 = vpop.f32.mrf.mxu0
      %v3029 = vadd.f32 0.0, %v3028
      %v3030 = vpop.f32.mrf.mxu0
      %3031 = vmatprep.mubr.bf16.mxu0 0
      %3032 = vmatmul.mubr.bf16.gmra.mxu0 %v2867
      %v3033 = vpop.f32.mrf.mxu0
      %v3034 = vadd.f32 0.0, %v3033
      %v3035 = vpop.f32.mrf.mxu0
      %v3036 = vpop.f32.mrf.mxu0
      %v3037 = vadd.f32 0.0, %v3036
      %v3038 = vpop.f32.mrf.mxu0
      %3039 = vmatprep.mubr.bf16.mxu0 0
      %3040 = vmatmul.mubr.bf16.gmra.mxu0 %v2870
      %v3041 = vpop.f32.mrf.mxu0
      %v3042 = vadd.f32 0.0, %v3041
      %v3043 = vpop.f32.mrf.mxu0
      %v3044 = vpop.f32.mrf.mxu0
      %v3045 = vadd.f32 0.0, %v3044
      %v3046 = vpop.f32.mrf.mxu0
      %3047 = vmatprep.mubr.bf16.mxu0 0
      %3048 = vmatmul.mubr.bf16.gmra.mxu0 %v2873
      %v3049 = vpop.f32.mrf.mxu0
      %v3050 = vadd.f32 0.0, %v3049
      %v3051 = vpop.f32.mrf.mxu0
      %v3052 = vpop.f32.mrf.mxu0
      %v3053 = vadd.f32 0.0, %v3052
      %v3054 = vpop.f32.mrf.mxu0
      %3055 = vdwg.mxu0
      %v3056 = vsel %vm2820, %v2652, 0
      %v3058 = vsel %vm2820, %v2653, 0
      %v3060 = vsel %vm2820, %v2654, 0
      %v3062 = vsel %vm2820, %v2655, 0
      %v3064 = vsel %vm2820, %v2656, 0
      %v3066 = vsel %vm2820, %v2657, 0
      %v3068 = vsel %vm2820, %v2658, 0
      %v3070 = vsel %vm2820, %v2659, 0
      %v3072 = vsel %vm2820, %v2660, 0
      %v3074 = vsel %vm2820, %v2661, 0
      %v3076 = vsel %vm2820, %v2662, 0
      %v3078 = vsel %vm2820, %v2663, 0
      %v3080 = vsel %vm2820, %v2664, 0
      %v3082 = vsel %vm2820, %v2665, 0
      %v3084 = vsel %vm2820, %v2666, 0
      %v3086 = vsel %vm2820, %v2667, 0
      %v3088 = vsel %vm2820, %v2668, 0
      %v3090 = vsel %vm2820, %v2669, 0
      %v3093 = vsel %vm2875, %v2574, 0
      %3095 = vmatprep.subr.bf16.mxu0 0
      %3096 = vmatpush1.bf16.msra.mxu0 0
      %3097 = vmatprep.subr.bf16.mxu0 0
      %3098 = vmatpush1.bf16.msra.mxu0 0
      %3099 = vmatprep.subr.bf16.mxu0 0
      %3100 = vmatpush1.bf16.msra.mxu0 0
      %3101 = vmatprep.subr.bf16.mxu0 0
      %3102 = vmatpush1.bf16.msra.mxu0 0
      %3103 = vmatprep.subr.bf16.mxu0 0
      %3104 = vmatpush1.bf16.msra.mxu0 0
      %3105 = vmatprep.subr.bf16.mxu0 0
      %3106 = vmatpush1.bf16.msra.mxu0 0
      %3107 = vmatprep.subr.bf16.mxu0 0
      %3108 = vmatpush1.bf16.msra.mxu0 0
      %3109 = vmatprep.subr.bf16.mxu0 0
      %3110 = vmatpush1.bf16.msra.mxu0 %v3093
      %3111 = vmatprep.subr.bf16.mxu0 0
      %3112 = vmatpush2.bf16.msra.mxu0 0
      %3113 = vmatprep.subr.bf16.mxu0 0
      %3114 = vmatpush2.bf16.msra.mxu0 0
      %3115 = vmatprep.subr.bf16.mxu0 0
      %3116 = vmatpush2.bf16.msra.mxu0 0
      %3117 = vmatprep.subr.bf16.mxu0 0
      %3118 = vmatpush2.bf16.msra.mxu0 0
      %3119 = vmatprep.subr.bf16.mxu0 0
      %3120 = vmatpush2.bf16.msra.mxu0 0
      %3121 = vmatprep.subr.bf16.mxu0 0
      %3122 = vmatpush2.bf16.msra.mxu0 0
      %3123 = vmatprep.subr.bf16.mxu0 0
      %3124 = vmatpush2.bf16.msra.mxu0 0
      %3125 = vmatprep.subr.bf16.mxu0 0
      %3126 = vmatpush2.bf16.msra.mxu0 0
      %3127 = vmatprep.mubr.bf16.mxu0 0
      %3128 = vmatmul.mubr.bf16.gmra.mxu0 %v3056
      %v3129 = vpop.f32.mrf.mxu0
      %v3130 = vadd.f32 %v2914, %v3129
      %v3131 = vpop.f32.mrf.mxu0
      %v3132 = vpop.f32.mrf.mxu0
      %v3133 = vadd.f32 %v2917, %v3132
      %v3134 = vpop.f32.mrf.mxu0
      %3135 = vmatprep.mubr.bf16.mxu0 0
      %3136 = vmatmul.mubr.bf16.gmra.mxu0 %v3058
      %v3137 = vpop.f32.mrf.mxu0
      %v3138 = vadd.f32 %v2922, %v3137
      %v3139 = vpop.f32.mrf.mxu0
      %v3140 = vpop.f32.mrf.mxu0
      %v3141 = vadd.f32 %v2925, %v3140
      %v3142 = vpop.f32.mrf.mxu0
      %3143 = vmatprep.mubr.bf16.mxu0 0
      %3144 = vmatmul.mubr.bf16.gmra.mxu0 %v3060
      %v3145 = vpop.f32.mrf.mxu0
      %v3146 = vadd.f32 %v2930, %v3145
      %v3147 = vpop.f32.mrf.mxu0
      %v3148 = vpop.f32.mrf.mxu0
      %v3149 = vadd.f32 %v2933, %v3148
      %v3150 = vpop.f32.mrf.mxu0
      %3151 = vmatprep.mubr.bf16.mxu0 0
      %3152 = vmatmul.mubr.bf16.gmra.mxu0 %v3062
      %v3153 = vpop.f32.mrf.mxu0
      %v3154 = vadd.f32 %v2938, %v3153
      %v3155 = vpop.f32.mrf.mxu0
      %v3156 = vpop.f32.mrf.mxu0
      %v3157 = vadd.f32 %v2941, %v3156
      %v3158 = vpop.f32.mrf.mxu0
      %3159 = vmatprep.mubr.bf16.mxu0 0
      %3160 = vmatmul.mubr.bf16.gmra.mxu0 %v3064
      %v3161 = vpop.f32.mrf.mxu0
      %v3162 = vadd.f32 %v2946, %v3161
      %v3163 = vpop.f32.mrf.mxu0
      %v3164 = vpop.f32.mrf.mxu0
      %v3165 = vadd.f32 %v2949, %v3164
      %v3166 = vpop.f32.mrf.mxu0
      %3167 = vmatprep.mubr.bf16.mxu0 0
      %3168 = vmatmul.mubr.bf16.gmra.mxu0 %v3066
      %v3169 = vpop.f32.mrf.mxu0
      %v3170 = vadd.f32 %v2954, %v3169
      %v3171 = vpop.f32.mrf.mxu0
      %v3172 = vpop.f32.mrf.mxu0
      %v3173 = vadd.f32 %v2957, %v3172
      %v3174 = vpop.f32.mrf.mxu0
      %3175 = vmatprep.mubr.bf16.mxu0 0
      %3176 = vmatmul.mubr.bf16.gmra.mxu0 %v3068
      %v3177 = vpop.f32.mrf.mxu0
      %v3178 = vadd.f32 %v2962, %v3177
      %v3179 = vpop.f32.mrf.mxu0
      %v3180 = vpop.f32.mrf.mxu0
      %v3181 = vadd.f32 %v2965, %v3180
      %v3182 = vpop.f32.mrf.mxu0
      %3183 = vmatprep.mubr.bf16.mxu0 0
      %3184 = vmatmul.mubr.bf16.gmra.mxu0 %v3070
      %v3185 = vpop.f32.mrf.mxu0
      %v3186 = vadd.f32 %v2970, %v3185
      %v3187 = vpop.f32.mrf.mxu0
      %v3188 = vpop.f32.mrf.mxu0
      %v3189 = vadd.f32 %v2973, %v3188
      %v3190 = vpop.f32.mrf.mxu0
      %3191 = vmatprep.mubr.bf16.mxu0 0
      %3192 = vmatmul.mubr.bf16.gmra.mxu0 %v3072
      %v3193 = vpop.f32.mrf.mxu0
      %v3194 = vadd.f32 %v2978, %v3193
      %v3195 = vpop.f32.mrf.mxu0
      %v3196 = vpop.f32.mrf.mxu0
      %v3197 = vadd.f32 %v2981, %v3196
      %v3198 = vpop.f32.mrf.mxu0
      %3199 = vmatprep.mubr.bf16.mxu0 0
      %3200 = vmatmul.mubr.bf16.gmra.mxu0 %v3074
      %v3201 = vpop.f32.mrf.mxu0
      %v3202 = vadd.f32 %v2986, %v3201
      %v3203 = vpop.f32.mrf.mxu0
      %v3204 = vpop.f32.mrf.mxu0
      %v3205 = vadd.f32 %v2989, %v3204
      %v3206 = vpop.f32.mrf.mxu0
      %3207 = vmatprep.mubr.bf16.mxu0 0
      %3208 = vmatmul.mubr.bf16.gmra.mxu0 %v3076
      %v3209 = vpop.f32.mrf.mxu0
      %v3210 = vadd.f32 %v2994, %v3209
      %v3211 = vpop.f32.mrf.mxu0
      %v3212 = vpop.f32.mrf.mxu0
      %v3213 = vadd.f32 %v2997, %v3212
      %v3214 = vpop.f32.mrf.mxu0
      %3215 = vmatprep.mubr.bf16.mxu0 0
      %3216 = vmatmul.mubr.bf16.gmra.mxu0 %v3078
      %v3217 = vpop.f32.mrf.mxu0
      %v3218 = vadd.f32 %v3002, %v3217
      %v3219 = vpop.f32.mrf.mxu0
      %v3220 = vpop.f32.mrf.mxu0
      %v3221 = vadd.f32 %v3005, %v3220
      %v3222 = vpop.f32.mrf.mxu0
      %3223 = vmatprep.mubr.bf16.mxu0 0
      %3224 = vmatmul.mubr.bf16.gmra.mxu0 %v3080
      %v3225 = vpop.f32.mrf.mxu0
      %v3226 = vadd.f32 %v3010, %v3225
      %v3227 = vpop.f32.mrf.mxu0
      %v3228 = vpop.f32.mrf.mxu0
      %v3229 = vadd.f32 %v3013, %v3228
      %v3230 = vpop.f32.mrf.mxu0
      %3231 = vmatprep.mubr.bf16.mxu0 0
      %3232 = vmatmul.mubr.bf16.gmra.mxu0 %v3082
      %v3233 = vpop.f32.mrf.mxu0
      %v3234 = vadd.f32 %v3018, %v3233
      %v3235 = vpop.f32.mrf.mxu0
      %v3236 = vpop.f32.mrf.mxu0
      %v3237 = vadd.f32 %v3021, %v3236
      %v3238 = vpop.f32.mrf.mxu0
      %3239 = vmatprep.mubr.bf16.mxu0 0
      %3240 = vmatmul.mubr.bf16.gmra.mxu0 %v3084
      %v3241 = vpop.f32.mrf.mxu0
      %v3242 = vadd.f32 %v3026, %v3241
      %v3243 = vpop.f32.mrf.mxu0
      %v3244 = vpop.f32.mrf.mxu0
      %v3245 = vadd.f32 %v3029, %v3244
      %v3246 = vpop.f32.mrf.mxu0
      %3247 = vmatprep.mubr.bf16.mxu0 0
      %3248 = vmatmul.mubr.bf16.gmra.mxu0 %v3086
      %v3249 = vpop.f32.mrf.mxu0
      %v3250 = vadd.f32 %v3034, %v3249
      %v3251 = vpop.f32.mrf.mxu0
      %v3252 = vpop.f32.mrf.mxu0
      %v3253 = vadd.f32 %v3037, %v3252
      %v3254 = vpop.f32.mrf.mxu0
      %3255 = vmatprep.mubr.bf16.mxu0 0
      %3256 = vmatmul.mubr.bf16.gmra.mxu0 %v3088
      %v3257 = vpop.f32.mrf.mxu0
      %v3258 = vadd.f32 %v3042, %v3257
      %v3259 = vpop.f32.mrf.mxu0
      %v3260 = vpop.f32.mrf.mxu0
      %v3261 = vadd.f32 %v3045, %v3260
      %v3262 = vpop.f32.mrf.mxu0
      %3263 = vmatprep.mubr.bf16.mxu0 0
      %3264 = vmatmul.mubr.bf16.gmra.mxu0 %v3090
      %v3265 = vpop.f32.mrf.mxu0
      %v3266 = vadd.f32 %v3050, %v3265
      %v3267 = vpop.f32.mrf.mxu0
      %v3268 = vpop.f32.mrf.mxu0
      %v3269 = vadd.f32 %v3053, %v3268
      %v3270 = vpop.f32.mrf.mxu0
      %3271 = vdwg.mxu0
      %v3272 = vld [vmem:[#allocation2] sm:$0xe]
      %s3273 = scalar_lea.vmem %s1, 4
      %v3274 = vld [vmem:[%s3273] sm:$0x3]
      %v3276 = vunpack.c.l.b16 %v3272
      %v3277 = vpack.c.b16 %v2616, %v3276
      %vm3278 = vcmask 1046528
      %v3279 = vrot.slane %v3277, 1
      %v3280 = vrot.slane %v2653, 1
      %v3281 = vsel %vm3278, %v3279, %v3280
      %v3282 = vrot.slane %v2654, 1
      %v3283 = vsel %vm3278, %v3280, %v3282
      %v3284 = vrot.slane %v2655, 1
      %v3285 = vsel %vm3278, %v3282, %v3284
      %v3286 = vrot.slane %v2656, 1
      %v3287 = vsel %vm3278, %v3284, %v3286
      %v3288 = vrot.slane %v2657, 1
      %v3289 = vsel %vm3278, %v3286, %v3288
      %v3290 = vrot.slane %v2658, 1
      %v3291 = vsel %vm3278, %v3288, %v3290
      %v3292 = vrot.slane %v2659, 1
      %v3293 = vsel %vm3278, %v3290, %v3292
      %v3294 = vrot.slane %v2660, 1
      %v3295 = vsel %vm3278, %v3292, %v3294
      %v3296 = vrot.slane %v2661, 1
      %v3297 = vsel %vm3278, %v3294, %v3296
      %v3298 = vrot.slane %v2662, 1
      %v3299 = vsel %vm3278, %v3296, %v3298
      %v3300 = vrot.slane %v2663, 1
      %v3301 = vsel %vm3278, %v3298, %v3300
      %v3302 = vrot.slane %v2664, 1
      %v3303 = vsel %vm3278, %v3300, %v3302
      %v3304 = vrot.slane %v2665, 1
      %v3305 = vsel %vm3278, %v3302, %v3304
      %v3306 = vrot.slane %v2666, 1
      %v3307 = vsel %vm3278, %v3304, %v3306
      %v3308 = vrot.slane %v2667, 1
      %v3309 = vsel %vm3278, %v3306, %v3308
      %v3310 = vrot.slane %v2668, 1
      %v3311 = vsel %vm3278, %v3308, %v3310
      %v3312 = vrot.slane %v2669, 1
      %v3313 = vsel %vm3278, %v3310, %v3312
      %v3314 = vrot.slane %v2670, 1
      %v3315 = vsel %vm3278, %v3312, %v3314
      %v3317 = vsel %vm2820, %v3281, 0
      %v3320 = vsel %vm2820, %v3283, 0
      %v3323 = vsel %vm2820, %v3285, 0
      %v3326 = vsel %vm2820, %v3287, 0
      %v3329 = vsel %vm2820, %v3289, 0
      %v3332 = vsel %vm2820, %v3291, 0
      %v3335 = vsel %vm2820, %v3293, 0
      %v3338 = vsel %vm2820, %v3295, 0
      %v3341 = vsel %vm2820, %v3297, 0
      %v3344 = vsel %vm2820, %v3299, 0
      %v3347 = vsel %vm2820, %v3301, 0
      %v3350 = vsel %vm2820, %v3303, 0
      %v3353 = vsel %vm2820, %v3305, 0
      %v3356 = vsel %vm2820, %v3307, 0
      %v3359 = vsel %vm2820, %v3309, 0
      %v3362 = vsel %vm2820, %v3311, 0
      %v3365 = vsel %vm2820, %v3313, 0
      %v3368 = vsel %vm2820, %v3315, 0
      %v3371 = vsel %vm2875, %v3274, 0
      %3373 = vmatprep.subr.bf16.mxu0 0
      %3374 = vmatpush1.bf16.msra.mxu0 0
      %3375 = vmatprep.subr.bf16.mxu0 0
      %3376 = vmatpush1.bf16.msra.mxu0 0
      %3377 = vmatprep.subr.bf16.mxu0 0
      %3378 = vmatpush1.bf16.msra.mxu0 0
      %3379 = vmatprep.subr.bf16.mxu0 0
      %3380 = vmatpush1.bf16.msra.mxu0 0
      %3381 = vmatprep.subr.bf16.mxu0 0
      %3382 = vmatpush1.bf16.msra.mxu0 0
      %3383 = vmatprep.subr.bf16.mxu0 0
      %3384 = vmatpush1.bf16.msra.mxu0 0
      %3385 = vmatprep.subr.bf16.mxu0 0
      %3386 = vmatpush1.bf16.msra.mxu0 0
      %3387 = vmatprep.subr.bf16.mxu0 0
      %3388 = vmatpush1.bf16.msra.mxu0 %v3371
      %3389 = vmatprep.subr.bf16.mxu0 0
      %3390 = vmatpush2.bf16.msra.mxu0 0
      %3391 = vmatprep.subr.bf16.mxu0 0
      %3392 = vmatpush2.bf16.msra.mxu0 0
      %3393 = vmatprep.subr.bf16.mxu0 0
      %3394 = vmatpush2.bf16.msra.mxu0 0
      %3395 = vmatprep.subr.bf16.mxu0 0
      %3396 = vmatpush2.bf16.msra.mxu0 0
      %3397 = vmatprep.subr.bf16.mxu0 0
      %3398 = vmatpush2.bf16.msra.mxu0 0
      %3399 = vmatprep.subr.bf16.mxu0 0
      %3400 = vmatpush2.bf16.msra.mxu0 0
      %3401 = vmatprep.subr.bf16.mxu0 0
      %3402 = vmatpush2.bf16.msra.mxu0 0
      %3403 = vmatprep.subr.bf16.mxu0 0
      %3404 = vmatpush2.bf16.msra.mxu0 0
      %3405 = vmatprep.mubr.bf16.mxu0 0
      %3406 = vmatmul.mubr.bf16.gmra.mxu0 %v3317
      %v3407 = vpop.f32.mrf.mxu0
      %v3408 = vadd.f32 0.0, %v3407
      %v3409 = vpop.f32.mrf.mxu0
      %v3410 = vpop.f32.mrf.mxu0
      %v3411 = vadd.f32 0.0, %v3410
      %v3412 = vpop.f32.mrf.mxu0
      %3413 = vmatprep.mubr.bf16.mxu0 0
      %3414 = vmatmul.mubr.bf16.gmra.mxu0 %v3320
      %v3415 = vpop.f32.mrf.mxu0
      %v3416 = vadd.f32 0.0, %v3415
      %v3417 = vpop.f32.mrf.mxu0
      %v3418 = vpop.f32.mrf.mxu0
      %v3419 = vadd.f32 0.0, %v3418
      %v3420 = vpop.f32.mrf.mxu0
      %3421 = vmatprep.mubr.bf16.mxu0 0
      %3422 = vmatmul.mubr.bf16.gmra.mxu0 %v3323
      %v3423 = vpop.f32.mrf.mxu0
      %v3424 = vadd.f32 0.0, %v3423
      %v3425 = vpop.f32.mrf.mxu0
      %v3426 = vpop.f32.mrf.mxu0
      %v3427 = vadd.f32 0.0, %v3426
      %v3428 = vpop.f32.mrf.mxu0
      %3429 = vmatprep.mubr.bf16.mxu0 0
      %3430 = vmatmul.mubr.bf16.gmra.mxu0 %v3326
      %v3431 = vpop.f32.mrf.mxu0
      %v3432 = vadd.f32 0.0, %v3431
      %v3433 = vpop.f32.mrf.mxu0
      %v3434 = vpop.f32.mrf.mxu0
      %v3435 = vadd.f32 0.0, %v3434
      %v3436 = vpop.f32.mrf.mxu0
      %3437 = vmatprep.mubr.bf16.mxu0 0
      %3438 = vmatmul.mubr.bf16.gmra.mxu0 %v3329
      %v3439 = vpop.f32.mrf.mxu0
      %v3440 = vadd.f32 0.0, %v3439
      %v3441 = vpop.f32.mrf.mxu0
      %v3442 = vpop.f32.mrf.mxu0
      %v3443 = vadd.f32 0.0, %v3442
      %v3444 = vpop.f32.mrf.mxu0
      %3445 = vmatprep.mubr.bf16.mxu0 0
      %3446 = vmatmul.mubr.bf16.gmra.mxu0 %v3332
      %v3447 = vpop.f32.mrf.mxu0
      %v3448 = vadd.f32 0.0, %v3447
      %v3449 = vpop.f32.mrf.mxu0
      %v3450 = vpop.f32.mrf.mxu0
      %v3451 = vadd.f32 0.0, %v3450
      %v3452 = vpop.f32.mrf.mxu0
      %3453 = vmatprep.mubr.bf16.mxu0 0
      %3454 = vmatmul.mubr.bf16.gmra.mxu0 %v3335
      %v3455 = vpop.f32.mrf.mxu0
      %v3456 = vadd.f32 0.0, %v3455
      %v3457 = vpop.f32.mrf.mxu0
      %v3458 = vpop.f32.mrf.mxu0
      %v3459 = vadd.f32 0.0, %v3458
      %v3460 = vpop.f32.mrf.mxu0
      %3461 = vmatprep.mubr.bf16.mxu0 0
      %3462 = vmatmul.mubr.bf16.gmra.mxu0 %v3338
      %v3463 = vpop.f32.mrf.mxu0
      %v3464 = vadd.f32 0.0, %v3463
      %v3465 = vpop.f32.mrf.mxu0
      %v3466 = vpop.f32.mrf.mxu0
      %v3467 = vadd.f32 0.0, %v3466
      %v3468 = vpop.f32.mrf.mxu0
      %3469 = vmatprep.mubr.bf16.mxu0 0
      %3470 = vmatmul.mubr.bf16.gmra.mxu0 %v3341
      %v3471 = vpop.f32.mrf.mxu0
      %v3472 = vadd.f32 0.0, %v3471
      %v3473 = vpop.f32.mrf.mxu0
      %v3474 = vpop.f32.mrf.mxu0
      %v3475 = vadd.f32 0.0, %v3474
      %v3476 = vpop.f32.mrf.mxu0
      %3477 = vmatprep.mubr.bf16.mxu0 0
      %3478 = vmatmul.mubr.bf16.gmra.mxu0 %v3344
      %v3479 = vpop.f32.mrf.mxu0
      %v3480 = vadd.f32 0.0, %v3479
      %v3481 = vpop.f32.mrf.mxu0
      %v3482 = vpop.f32.mrf.mxu0
      %v3483 = vadd.f32 0.0, %v3482
      %v3484 = vpop.f32.mrf.mxu0
      %3485 = vmatprep.mubr.bf16.mxu0 0
      %3486 = vmatmul.mubr.bf16.gmra.mxu0 %v3347
      %v3487 = vpop.f32.mrf.mxu0
      %v3488 = vadd.f32 0.0, %v3487
      %v3489 = vpop.f32.mrf.mxu0
      %v3490 = vpop.f32.mrf.mxu0
      %v3491 = vadd.f32 0.0, %v3490
      %v3492 = vpop.f32.mrf.mxu0
      %3493 = vmatprep.mubr.bf16.mxu0 0
      %3494 = vmatmul.mubr.bf16.gmra.mxu0 %v3350
      %v3495 = vpop.f32.mrf.mxu0
      %v3496 = vadd.f32 0.0, %v3495
      %v3497 = vpop.f32.mrf.mxu0
      %v3498 = vpop.f32.mrf.mxu0
      %v3499 = vadd.f32 0.0, %v3498
      %v3500 = vpop.f32.mrf.mxu0
      %3501 = vmatprep.mubr.bf16.mxu0 0
      %3502 = vmatmul.mubr.bf16.gmra.mxu0 %v3353
      %v3503 = vpop.f32.mrf.mxu0
      %v3504 = vadd.f32 0.0, %v3503
      %v3505 = vpop.f32.mrf.mxu0
      %v3506 = vpop.f32.mrf.mxu0
      %v3507 = vadd.f32 0.0, %v3506
      %v3508 = vpop.f32.mrf.mxu0
      %3509 = vmatprep.mubr.bf16.mxu0 0
      %3510 = vmatmul.mubr.bf16.gmra.mxu0 %v3356
      %v3511 = vpop.f32.mrf.mxu0
      %v3512 = vadd.f32 0.0, %v3511
      %v3513 = vpop.f32.mrf.mxu0
      %v3514 = vpop.f32.mrf.mxu0
      %v3515 = vadd.f32 0.0, %v3514
      %v3516 = vpop.f32.mrf.mxu0
      %3517 = vmatprep.mubr.bf16.mxu0 0
      %3518 = vmatmul.mubr.bf16.gmra.mxu0 %v3359
      %v3519 = vpop.f32.mrf.mxu0
      %v3520 = vadd.f32 0.0, %v3519
      %v3521 = vpop.f32.mrf.mxu0
      %v3522 = vpop.f32.mrf.mxu0
      %v3523 = vadd.f32 0.0, %v3522
      %v3524 = vpop.f32.mrf.mxu0
      %3525 = vmatprep.mubr.bf16.mxu0 0
      %3526 = vmatmul.mubr.bf16.gmra.mxu0 %v3362
      %v3527 = vpop.f32.mrf.mxu0
      %v3528 = vadd.f32 0.0, %v3527
      %v3529 = vpop.f32.mrf.mxu0
      %v3530 = vpop.f32.mrf.mxu0
      %v3531 = vadd.f32 0.0, %v3530
      %v3532 = vpop.f32.mrf.mxu0
      %3533 = vmatprep.mubr.bf16.mxu0 0
      %3534 = vmatmul.mubr.bf16.gmra.mxu0 %v3365
      %v3535 = vpop.f32.mrf.mxu0
      %v3536 = vadd.f32 0.0, %v3535
      %v3537 = vpop.f32.mrf.mxu0
      %v3538 = vpop.f32.mrf.mxu0
      %v3539 = vadd.f32 0.0, %v3538
      %v3540 = vpop.f32.mrf.mxu0
      %3541 = vmatprep.mubr.bf16.mxu0 0
      %3542 = vmatmul.mubr.bf16.gmra.mxu0 %v3368
      %v3543 = vpop.f32.mrf.mxu0
      %v3544 = vadd.f32 0.0, %v3543
      %v3545 = vpop.f32.mrf.mxu0
      %v3546 = vpop.f32.mrf.mxu0
      %v3547 = vadd.f32 0.0, %v3546
      %v3548 = vpop.f32.mrf.mxu0
      %3549 = vdwg.mxu0
      %v3550 = vadd.f32 %v3130, %v3408
      %v3551 = vadd.f32 %v3133, %v3411
      %v3552 = vadd.f32 %v3138, %v3416
      %v3553 = vadd.f32 %v3141, %v3419
      %v3554 = vadd.f32 %v3146, %v3424
      %v3555 = vadd.f32 %v3149, %v3427
      %v3556 = vadd.f32 %v3154, %v3432
      %v3557 = vadd.f32 %v3157, %v3435
      %v3558 = vadd.f32 %v3162, %v3440
      %v3559 = vadd.f32 %v3165, %v3443
      %v3560 = vadd.f32 %v3170, %v3448
      %v3561 = vadd.f32 %v3173, %v3451
      %v3562 = vadd.f32 %v3178, %v3456
      %v3563 = vadd.f32 %v3181, %v3459
      %v3564 = vadd.f32 %v3186, %v3464
      %v3565 = vadd.f32 %v3189, %v3467
      %v3566 = vadd.f32 %v3194, %v3472
      %v3567 = vadd.f32 %v3197, %v3475
      %v3568 = vadd.f32 %v3202, %v3480
      %v3569 = vadd.f32 %v3205, %v3483
      %v3570 = vadd.f32 %v3210, %v3488
      %v3571 = vadd.f32 %v3213, %v3491
      %v3572 = vadd.f32 %v3218, %v3496
      %v3573 = vadd.f32 %v3221, %v3499
      %v3574 = vadd.f32 %v3226, %v3504
      %v3575 = vadd.f32 %v3229, %v3507
      %v3576 = vadd.f32 %v3234, %v3512
      %v3577 = vadd.f32 %v3237, %v3515
      %v3578 = vadd.f32 %v3242, %v3520
      %v3579 = vadd.f32 %v3245, %v3523
      %v3580 = vadd.f32 %v3250, %v3528
      %v3581 = vadd.f32 %v3253, %v3531
      %v3582 = vadd.f32 %v3258, %v3536
      %v3583 = vadd.f32 %v3261, %v3539
      %v3584 = vadd.f32 %v3266, %v3544
      %v3585 = vadd.f32 %v3269, %v3547
      %v3586 = vld [vmem:[#allocation2 + $0x8] sm:$0xe]
      %v3587 = vld [vmem:[#allocation2 + $0xc] sm:$0xf]
      %v3588 = vld [vmem:[#allocation2 + $0x10] sm:$0xf]
      %v3589 = vld [vmem:[#allocation2 + $0x14] sm:$0xf]
      %v3590 = vld [vmem:[#allocation2 + $0x18] sm:$0xf]
      %v3591 = vld [vmem:[#allocation2 + $0x1c] sm:$0xf]
      %v3592 = vld [vmem:[#allocation2 + $0x20] sm:$0xf]
      %v3593 = vld [vmem:[#allocation2 + $0x24] sm:$0xf]
      %v3594 = vld [vmem:[#allocation2 + $0x28] sm:$0xf]
      %v3595 = vld [vmem:[#allocation2 + $0x2c] sm:$0xf]
      %v3596 = vld [vmem:[#allocation2 + $0x30] sm:$0xf]
      %v3597 = vld [vmem:[#allocation2 + $0x34] sm:$0xf]
      %v3598 = vld [vmem:[#allocation2 + $0x38] sm:$0xf]
      %v3599 = vld [vmem:[#allocation2 + $0x3c] sm:$0xf]
      %v3600 = vld [vmem:[#allocation2 + $0x40] sm:$0xf]
      %v3601 = vld [vmem:[#allocation2 + $0x44] sm:$0xf]
      %v3602 = vld [vmem:[#allocation2 + $0x48] sm:$0xf]
      %v3603 = vld [vmem:[#allocation2 + $0x4c] sm:$0xf]
      %v3604 = vld [vmem:[#allocation2 + $0x50] sm:$0xf]
      %v3605 = vld [vmem:[#allocation2 + $0x54] sm:$0xf]
      %v3606 = vld [vmem:[#allocation2 + $0x58] sm:$0xf]
      %v3607 = vld [vmem:[#allocation2 + $0x5c] sm:$0xf]
      %v3608 = vld [vmem:[#allocation2 + $0x60] sm:$0xf]
      %v3609 = vld [vmem:[#allocation2 + $0x64] sm:$0xf]
      %v3610 = vld [vmem:[#allocation2 + $0x68] sm:$0xf]
      %v3611 = vld [vmem:[#allocation2 + $0x6c] sm:$0xf]
      %v3612 = vld [vmem:[#allocation2 + $0x70] sm:$0xf]
      %v3613 = vld [vmem:[#allocation2 + $0x74] sm:$0xf]
      %v3614 = vld [vmem:[#allocation2 + $0x78] sm:$0xf]
      %v3615 = vld [vmem:[#allocation2 + $0x7c] sm:$0xf]
      %v3616 = vld [vmem:[#allocation2 + $0x80] sm:$0xf]
      %v3617 = vld [vmem:[#allocation2 + $0x84] sm:$0xf]
      %v3618 = vld [vmem:[#allocation2 + $0x88] sm:$0xf]
      %v3619 = vld [vmem:[#allocation2 + $0x8c] sm:$0xf]
      %v3620 = vld [vmem:[#allocation2 + $0x90] sm:$0xf]
      %v3621 = vld [vmem:[#allocation2 + $0x94] sm:$0xf]
      %v3622 = vld [vmem:[#allocation2 + $0x98] sm:$0x1]
      %s3623 = scalar_lea.vmem %s1, 6
      %v3624 = vld [vmem:[%s3623] sm:$0x3]
      %v3662 = vunpack.c.l.b16 %v3586
      %v3663 = vunpack.c.l.b16 %v3587
      %v3664 = vunpack.c.l.b16 %v3588
      %v3665 = vunpack.c.l.b16 %v3589
      %v3666 = vunpack.c.l.b16 %v3590
      %v3667 = vunpack.c.l.b16 %v3591
      %v3668 = vunpack.c.l.b16 %v3592
      %v3669 = vunpack.c.l.b16 %v3593
      %v3670 = vunpack.c.l.b16 %v3594
      %v3671 = vunpack.c.l.b16 %v3595
      %v3672 = vunpack.c.l.b16 %v3596
      %v3673 = vunpack.c.l.b16 %v3597
      %v3674 = vunpack.c.l.b16 %v3598
      %v3675 = vunpack.c.l.b16 %v3599
      %v3676 = vunpack.c.l.b16 %v3600
      %v3677 = vunpack.c.l.b16 %v3601
      %v3678 = vunpack.c.l.b16 %v3602
      %v3679 = vunpack.c.l.b16 %v3603
      %v3680 = vunpack.c.l.b16 %v3604
      %v3681 = vunpack.c.l.b16 %v3605
      %v3682 = vunpack.c.l.b16 %v3606
      %v3683 = vunpack.c.l.b16 %v3607
      %v3684 = vunpack.c.l.b16 %v3608
      %v3685 = vunpack.c.l.b16 %v3609
      %v3686 = vunpack.c.l.b16 %v3610
      %v3687 = vunpack.c.l.b16 %v3611
      %v3688 = vunpack.c.l.b16 %v3612
      %v3689 = vunpack.c.l.b16 %v3613
      %v3690 = vunpack.c.l.b16 %v3614
      %v3691 = vunpack.c.l.b16 %v3615
      %v3692 = vunpack.c.l.b16 %v3616
      %v3693 = vunpack.c.l.b16 %v3617
      %v3694 = vunpack.c.l.b16 %v3618
      %v3695 = vunpack.c.l.b16 %v3619
      %v3696 = vunpack.c.l.b16 %v3620
      %v3697 = vunpack.c.l.b16 %v3621
      %v3698 = vunpack.c.l.b16 %v3622
      %v3699 = vpack.c.b16 %v3663, %v3662
      %v3700 = vpack.c.b16 %v3665, %v3664
      %v3701 = vpack.c.b16 %v3667, %v3666
      %v3702 = vpack.c.b16 %v3669, %v3668
      %v3703 = vpack.c.b16 %v3671, %v3670
      %v3704 = vpack.c.b16 %v3673, %v3672
      %v3705 = vpack.c.b16 %v3675, %v3674
      %v3706 = vpack.c.b16 %v3677, %v3676
      %v3707 = vpack.c.b16 %v3679, %v3678
      %v3708 = vpack.c.b16 %v3681, %v3680
      %v3709 = vpack.c.b16 %v3683, %v3682
      %v3710 = vpack.c.b16 %v3685, %v3684
      %v3711 = vpack.c.b16 %v3687, %v3686
      %v3712 = vpack.c.b16 %v3689, %v3688
      %v3713 = vpack.c.b16 %v3691, %v3690
      %v3714 = vpack.c.b16 %v3693, %v3692
      %v3715 = vpack.c.b16 %v3695, %v3694
      %v3716 = vpack.c.b16 %v3697, %v3696
      %v3717 = vpack.c.b16 %v3698, %v3698
      %v3718 = vrot.slane %v3699, 1
      %v3719 = vrot.slane %v3700, 1
      %v3720 = vsel %vm3278, %v3718, %v3719
      %v3721 = vrot.slane %v3701, 1
      %v3722 = vsel %vm3278, %v3719, %v3721
      %v3723 = vrot.slane %v3702, 1
      %v3724 = vsel %vm3278, %v3721, %v3723
      %v3725 = vrot.slane %v3703, 1
      %v3726 = vsel %vm3278, %v3723, %v3725
      %v3727 = vrot.slane %v3704, 1
      %v3728 = vsel %vm3278, %v3725, %v3727
      %v3729 = vrot.slane %v3705, 1
      %v3730 = vsel %vm3278, %v3727, %v3729
      %v3731 = vrot.slane %v3706, 1
      %v3732 = vsel %vm3278, %v3729, %v3731
      %v3733 = vrot.slane %v3707, 1
      %v3734 = vsel %vm3278, %v3731, %v3733
      %v3735 = vrot.slane %v3708, 1
      %v3736 = vsel %vm3278, %v3733, %v3735
      %v3737 = vrot.slane %v3709, 1
      %v3738 = vsel %vm3278, %v3735, %v3737
      %v3739 = vrot.slane %v3710, 1
      %v3740 = vsel %vm3278, %v3737, %v3739
      %v3741 = vrot.slane %v3711, 1
      %v3742 = vsel %vm3278, %v3739, %v3741
      %v3743 = vrot.slane %v3712, 1
      %v3744 = vsel %vm3278, %v3741, %v3743
      %v3745 = vrot.slane %v3713, 1
      %v3746 = vsel %vm3278, %v3743, %v3745
      %v3747 = vrot.slane %v3714, 1
      %v3748 = vsel %vm3278, %v3745, %v3747
      %v3749 = vrot.slane %v3715, 1
      %v3750 = vsel %vm3278, %v3747, %v3749
      %v3751 = vrot.slane %v3716, 1
      %v3752 = vsel %vm3278, %v3749, %v3751
      %v3753 = vrot.slane %v3717, 1
      %v3754 = vsel %vm3278, %v3751, %v3753
      %v3756 = vsel %vm2820, %v3720, 0
      %v3759 = vsel %vm2820, %v3722, 0
      %v3762 = vsel %vm2820, %v3724, 0
      %v3765 = vsel %vm2820, %v3726, 0
      %v3768 = vsel %vm2820, %v3728, 0
      %v3771 = vsel %vm2820, %v3730, 0
      %v3774 = vsel %vm2820, %v3732, 0
      %v3777 = vsel %vm2820, %v3734, 0
      %v3780 = vsel %vm2820, %v3736, 0
      %v3783 = vsel %vm2820, %v3738, 0
      %v3786 = vsel %vm2820, %v3740, 0
      %v3789 = vsel %vm2820, %v3742, 0
      %v3792 = vsel %vm2820, %v3744, 0
      %v3795 = vsel %vm2820, %v3746, 0
      %v3798 = vsel %vm2820, %v3748, 0
      %v3801 = vsel %vm2820, %v3750, 0
      %v3804 = vsel %vm2820, %v3752, 0
      %v3807 = vsel %vm2820, %v3754, 0
      %v3810 = vsel %vm2875, %v3624, 0
      %3812 = vmatprep.subr.bf16.mxu0 0
      %3813 = vmatpush1.bf16.msra.mxu0 0
      %3814 = vmatprep.subr.bf16.mxu0 0
      %3815 = vmatpush1.bf16.msra.mxu0 0
      %3816 = vmatprep.subr.bf16.mxu0 0
      %3817 = vmatpush1.bf16.msra.mxu0 0
      %3818 = vmatprep.subr.bf16.mxu0 0
      %3819 = vmatpush1.bf16.msra.mxu0 0
      %3820 = vmatprep.subr.bf16.mxu0 0
      %3821 = vmatpush1.bf16.msra.mxu0 0
      %3822 = vmatprep.subr.bf16.mxu0 0
      %3823 = vmatpush1.bf16.msra.mxu0 0
      %3824 = vmatprep.subr.bf16.mxu0 0
      %3825 = vmatpush1.bf16.msra.mxu0 0
      %3826 = vmatprep.subr.bf16.mxu0 0
      %3827 = vmatpush1.bf16.msra.mxu0 %v3810
      %3828 = vmatprep.subr.bf16.mxu0 0
      %3829 = vmatpush2.bf16.msra.mxu0 0
      %3830 = vmatprep.subr.bf16.mxu0 0
      %3831 = vmatpush2.bf16.msra.mxu0 0
      %3832 = vmatprep.subr.bf16.mxu0 0
      %3833 = vmatpush2.bf16.msra.mxu0 0
      %3834 = vmatprep.subr.bf16.mxu0 0
      %3835 = vmatpush2.bf16.msra.mxu0 0
      %3836 = vmatprep.subr.bf16.mxu0 0
      %3837 = vmatpush2.bf16.msra.mxu0 0
      %3838 = vmatprep.subr.bf16.mxu0 0
      %3839 = vmatpush2.bf16.msra.mxu0 0
      %3840 = vmatprep.subr.bf16.mxu0 0
      %3841 = vmatpush2.bf16.msra.mxu0 0
      %3842 = vmatprep.subr.bf16.mxu0 0
      %3843 = vmatpush2.bf16.msra.mxu0 0
      %3844 = vmatprep.mubr.bf16.mxu0 0
      %3845 = vmatmul.mubr.bf16.gmra.mxu0 %v3756
      %v3846 = vpop.f32.mrf.mxu0
      %v3847 = vadd.f32 0.0, %v3846
      %v3848 = vpop.f32.mrf.mxu0
      %v3849 = vpop.f32.mrf.mxu0
      %v3850 = vadd.f32 0.0, %v3849
      %v3851 = vpop.f32.mrf.mxu0
      %3852 = vmatprep.mubr.bf16.mxu0 0
      %3853 = vmatmul.mubr.bf16.gmra.mxu0 %v3759
      %v3854 = vpop.f32.mrf.mxu0
      %v3855 = vadd.f32 0.0, %v3854
      %v3856 = vpop.f32.mrf.mxu0
      %v3857 = vpop.f32.mrf.mxu0
      %v3858 = vadd.f32 0.0, %v3857
      %v3859 = vpop.f32.mrf.mxu0
      %3860 = vmatprep.mubr.bf16.mxu0 0
      %3861 = vmatmul.mubr.bf16.gmra.mxu0 %v3762
      %v3862 = vpop.f32.mrf.mxu0
      %v3863 = vadd.f32 0.0, %v3862
      %v3864 = vpop.f32.mrf.mxu0
      %v3865 = vpop.f32.mrf.mxu0
      %v3866 = vadd.f32 0.0, %v3865
      %v3867 = vpop.f32.mrf.mxu0
      %3868 = vmatprep.mubr.bf16.mxu0 0
      %3869 = vmatmul.mubr.bf16.gmra.mxu0 %v3765
      %v3870 = vpop.f32.mrf.mxu0
      %v3871 = vadd.f32 0.0, %v3870
      %v3872 = vpop.f32.mrf.mxu0
      %v3873 = vpop.f32.mrf.mxu0
      %v3874 = vadd.f32 0.0, %v3873
      %v3875 = vpop.f32.mrf.mxu0
      %3876 = vmatprep.mubr.bf16.mxu0 0
      %3877 = vmatmul.mubr.bf16.gmra.mxu0 %v3768
      %v3878 = vpop.f32.mrf.mxu0
      %v3879 = vadd.f32 0.0, %v3878
      %v3880 = vpop.f32.mrf.mxu0
      %v3881 = vpop.f32.mrf.mxu0
      %v3882 = vadd.f32 0.0, %v3881
      %v3883 = vpop.f32.mrf.mxu0
      %3884 = vmatprep.mubr.bf16.mxu0 0
      %3885 = vmatmul.mubr.bf16.gmra.mxu0 %v3771
      %v3886 = vpop.f32.mrf.mxu0
      %v3887 = vadd.f32 0.0, %v3886
      %v3888 = vpop.f32.mrf.mxu0
      %v3889 = vpop.f32.mrf.mxu0
      %v3890 = vadd.f32 0.0, %v3889
      %v3891 = vpop.f32.mrf.mxu0
      %3892 = vmatprep.mubr.bf16.mxu0 0
      %3893 = vmatmul.mubr.bf16.gmra.mxu0 %v3774
      %v3894 = vpop.f32.mrf.mxu0
      %v3895 = vadd.f32 0.0, %v3894
      %v3896 = vpop.f32.mrf.mxu0
      %v3897 = vpop.f32.mrf.mxu0
      %v3898 = vadd.f32 0.0, %v3897
      %v3899 = vpop.f32.mrf.mxu0
      %3900 = vmatprep.mubr.bf16.mxu0 0
      %3901 = vmatmul.mubr.bf16.gmra.mxu0 %v3777
      %v3902 = vpop.f32.mrf.mxu0
      %v3903 = vadd.f32 0.0, %v3902
      %v3904 = vpop.f32.mrf.mxu0
      %v3905 = vpop.f32.mrf.mxu0
      %v3906 = vadd.f32 0.0, %v3905
      %v3907 = vpop.f32.mrf.mxu0
      %3908 = vmatprep.mubr.bf16.mxu0 0
      %3909 = vmatmul.mubr.bf16.gmra.mxu0 %v3780
      %v3910 = vpop.f32.mrf.mxu0
      %v3911 = vadd.f32 0.0, %v3910
      %v3912 = vpop.f32.mrf.mxu0
      %v3913 = vpop.f32.mrf.mxu0
      %v3914 = vadd.f32 0.0, %v3913
      %v3915 = vpop.f32.mrf.mxu0
      %3916 = vmatprep.mubr.bf16.mxu0 0
      %3917 = vmatmul.mubr.bf16.gmra.mxu0 %v3783
      %v3918 = vpop.f32.mrf.mxu0
      %v3919 = vadd.f32 0.0, %v3918
      %v3920 = vpop.f32.mrf.mxu0
      %v3921 = vpop.f32.mrf.mxu0
      %v3922 = vadd.f32 0.0, %v3921
      %v3923 = vpop.f32.mrf.mxu0
      %3924 = vmatprep.mubr.bf16.mxu0 0
      %3925 = vmatmul.mubr.bf16.gmra.mxu0 %v3786
      %v3926 = vpop.f32.mrf.mxu0
      %v3927 = vadd.f32 0.0, %v3926
      %v3928 = vpop.f32.mrf.mxu0
      %v3929 = vpop.f32.mrf.mxu0
      %v3930 = vadd.f32 0.0, %v3929
      %v3931 = vpop.f32.mrf.mxu0
      %3932 = vmatprep.mubr.bf16.mxu0 0
      %3933 = vmatmul.mubr.bf16.gmra.mxu0 %v3789
      %v3934 = vpop.f32.mrf.mxu0
      %v3935 = vadd.f32 0.0, %v3934
      %v3936 = vpop.f32.mrf.mxu0
      %v3937 = vpop.f32.mrf.mxu0
      %v3938 = vadd.f32 0.0, %v3937
      %v3939 = vpop.f32.mrf.mxu0
      %3940 = vmatprep.mubr.bf16.mxu0 0
      %3941 = vmatmul.mubr.bf16.gmra.mxu0 %v3792
      %v3942 = vpop.f32.mrf.mxu0
      %v3943 = vadd.f32 0.0, %v3942
      %v3944 = vpop.f32.mrf.mxu0
      %v3945 = vpop.f32.mrf.mxu0
      %v3946 = vadd.f32 0.0, %v3945
      %v3947 = vpop.f32.mrf.mxu0
      %3948 = vmatprep.mubr.bf16.mxu0 0
      %3949 = vmatmul.mubr.bf16.gmra.mxu0 %v3795
      %v3950 = vpop.f32.mrf.mxu0
      %v3951 = vadd.f32 0.0, %v3950
      %v3952 = vpop.f32.mrf.mxu0
      %v3953 = vpop.f32.mrf.mxu0
      %v3954 = vadd.f32 0.0, %v3953
      %v3955 = vpop.f32.mrf.mxu0
      %3956 = vmatprep.mubr.bf16.mxu0 0
      %3957 = vmatmul.mubr.bf16.gmra.mxu0 %v3798
      %v3958 = vpop.f32.mrf.mxu0
      %v3959 = vadd.f32 0.0, %v3958
      %v3960 = vpop.f32.mrf.mxu0
      %v3961 = vpop.f32.mrf.mxu0
      %v3962 = vadd.f32 0.0, %v3961
      %v3963 = vpop.f32.mrf.mxu0
      %3964 = vmatprep.mubr.bf16.mxu0 0
      %3965 = vmatmul.mubr.bf16.gmra.mxu0 %v3801
      %v3966 = vpop.f32.mrf.mxu0
      %v3967 = vadd.f32 0.0, %v3966
      %v3968 = vpop.f32.mrf.mxu0
      %v3969 = vpop.f32.mrf.mxu0
      %v3970 = vadd.f32 0.0, %v3969
      %v3971 = vpop.f32.mrf.mxu0
      %3972 = vmatprep.mubr.bf16.mxu0 0
      %3973 = vmatmul.mubr.bf16.gmra.mxu0 %v3804
      %v3974 = vpop.f32.mrf.mxu0
      %v3975 = vadd.f32 0.0, %v3974
      %v3976 = vpop.f32.mrf.mxu0
      %v3977 = vpop.f32.mrf.mxu0
      %v3978 = vadd.f32 0.0, %v3977
      %v3979 = vpop.f32.mrf.mxu0
      %3980 = vmatprep.mubr.bf16.mxu0 0
      %3981 = vmatmul.mubr.bf16.gmra.mxu0 %v3807
      %v3982 = vpop.f32.mrf.mxu0
      %v3983 = vadd.f32 0.0, %v3982
      %v3984 = vpop.f32.mrf.mxu0
      %v3985 = vpop.f32.mrf.mxu0
      %v3986 = vadd.f32 0.0, %v3985
      %v3987 = vpop.f32.mrf.mxu0
      %3988 = vdwg.mxu0
      %v3989 = vadd.f32 %v3550, %v3847
      %v3990 = vadd.f32 %v3551, %v3850
      %v3991 = vadd.f32 %v3552, %v3855
      %v3992 = vadd.f32 %v3553, %v3858
      %v3993 = vadd.f32 %v3554, %v3863
      %v3994 = vadd.f32 %v3555, %v3866
      %v3995 = vadd.f32 %v3556, %v3871
      %v3996 = vadd.f32 %v3557, %v3874
      %v3997 = vadd.f32 %v3558, %v3879
      %v3998 = vadd.f32 %v3559, %v3882
      %v3999 = vadd.f32 %v3560, %v3887
      %v4000 = vadd.f32 %v3561, %v3890
      %v4001 = vadd.f32 %v3562, %v3895
      %v4002 = vadd.f32 %v3563, %v3898
      %v4003 = vadd.f32 %v3564, %v3903
      %v4004 = vadd.f32 %v3565, %v3906
      %v4005 = vadd.f32 %v3566, %v3911
      %v4006 = vadd.f32 %v3567, %v3914
      %v4007 = vadd.f32 %v3568, %v3919
      %v4008 = vadd.f32 %v3569, %v3922
      %v4009 = vadd.f32 %v3570, %v3927
      %v4010 = vadd.f32 %v3571, %v3930
      %v4011 = vadd.f32 %v3572, %v3935
      %v4012 = vadd.f32 %v3573, %v3938
      %v4013 = vadd.f32 %v3574, %v3943
      %v4014 = vadd.f32 %v3575, %v3946
      %v4015 = vadd.f32 %v3576, %v3951
      %v4016 = vadd.f32 %v3577, %v3954
      %v4017 = vadd.f32 %v3578, %v3959
      %v4018 = vadd.f32 %v3579, %v3962
      %v4019 = vadd.f32 %v3580, %v3967
      %v4020 = vadd.f32 %v3581, %v3970
      %v4021 = vadd.f32 %v3582, %v3975
      %v4022 = vadd.f32 %v3583, %v3978
      %v4023 = vadd.f32 %v3584, %v3983
      %v4024 = vadd.f32 %v3585, %v3986
      %v4025 = vld [vmem:[#allocation2 + $0x98] sm:$0x3]
      %s4026 = scalar_lea.vmem %s1, 8
      %v4027 = vld [vmem:[%s4026] sm:$0x3]
      %v4029 = vunpack.c.l.b16 %v4025
      %v4030 = vpack.c.b16 %v4029, %v4029
      %vm4031 = vsmask.f32 6400
      %v4033 = vshrl.u32 %v3699, 16
      %v4035 = vrot.slane %v4033, 1
      %v4036 = vshll.u32 %v3699, 16
      %v4038 = vrot.slane %v4036, 2
      %v4039 = vor.u32 %v4035, %v4038
      %v4041 = vshrl.u32 %v3700, 16
      %v4043 = vrot.slane %v4041, 1
      %v4044 = vshll.u32 %v3700, 16
      %v4046 = vrot.slane %v4044, 2
      %v4047 = vor.u32 %v4043, %v4046
      %v4048 = vsel %vm4031, %v4039, %v4047
      %v4050 = vshrl.u32 %v3701, 16
      %v4052 = vrot.slane %v4050, 1
      %v4053 = vshll.u32 %v3701, 16
      %v4055 = vrot.slane %v4053, 2
      %v4056 = vor.u32 %v4052, %v4055
      %v4057 = vsel %vm4031, %v4047, %v4056
      %v4059 = vshrl.u32 %v3702, 16
      %v4061 = vrot.slane %v4059, 1
      %v4062 = vshll.u32 %v3702, 16
      %v4064 = vrot.slane %v4062, 2
      %v4065 = vor.u32 %v4061, %v4064
      %v4066 = vsel %vm4031, %v4056, %v4065
      %v4068 = vshrl.u32 %v3703, 16
      %v4070 = vrot.slane %v4068, 1
      %v4071 = vshll.u32 %v3703, 16
      %v4073 = vrot.slane %v4071, 2
      %v4074 = vor.u32 %v4070, %v4073
      %v4075 = vsel %vm4031, %v4065, %v4074
      %v4077 = vshrl.u32 %v3704, 16
      %v4079 = vrot.slane %v4077, 1
      %v4080 = vshll.u32 %v3704, 16
      %v4082 = vrot.slane %v4080, 2
      %v4083 = vor.u32 %v4079, %v4082
      %v4084 = vsel %vm4031, %v4074, %v4083
      %v4086 = vshrl.u32 %v3705, 16
      %v4088 = vrot.slane %v4086, 1
      %v4089 = vshll.u32 %v3705, 16
      %v4091 = vrot.slane %v4089, 2
      %v4092 = vor.u32 %v4088, %v4091
      %v4093 = vsel %vm4031, %v4083, %v4092
      %v4095 = vshrl.u32 %v3706, 16
      %v4097 = vrot.slane %v4095, 1
      %v4098 = vshll.u32 %v3706, 16
      %v4100 = vrot.slane %v4098, 2
      %v4101 = vor.u32 %v4097, %v4100
      %v4102 = vsel %vm4031, %v4092, %v4101
      %v4104 = vshrl.u32 %v3707, 16
      %v4106 = vrot.slane %v4104, 1
      %v4107 = vshll.u32 %v3707, 16
      %v4109 = vrot.slane %v4107, 2
      %v4110 = vor.u32 %v4106, %v4109
      %v4111 = vsel %vm4031, %v4101, %v4110
      %v4113 = vshrl.u32 %v3708, 16
      %v4115 = vrot.slane %v4113, 1
      %v4116 = vshll.u32 %v3708, 16
      %v4118 = vrot.slane %v4116, 2
      %v4119 = vor.u32 %v4115, %v4118
      %v4120 = vsel %vm4031, %v4110, %v4119
      %v4122 = vshrl.u32 %v3709, 16
      %v4124 = vrot.slane %v4122, 1
      %v4125 = vshll.u32 %v3709, 16
      %v4127 = vrot.slane %v4125, 2
      %v4128 = vor.u32 %v4124, %v4127
      %v4129 = vsel %vm4031, %v4119, %v4128
      %v4131 = vshrl.u32 %v3710, 16
      %v4133 = vrot.slane %v4131, 1
      %v4134 = vshll.u32 %v3710, 16
      %v4136 = vrot.slane %v4134, 2
      %v4137 = vor.u32 %v4133, %v4136
      %v4138 = vsel %vm4031, %v4128, %v4137
      %v4140 = vshrl.u32 %v3711, 16
      %v4142 = vrot.slane %v4140, 1
      %v4143 = vshll.u32 %v3711, 16
      %v4145 = vrot.slane %v4143, 2
      %v4146 = vor.u32 %v4142, %v4145
      %v4147 = vsel %vm4031, %v4137, %v4146
      %v4149 = vshrl.u32 %v3712, 16
      %v4151 = vrot.slane %v4149, 1
      %v4152 = vshll.u32 %v3712, 16
      %v4154 = vrot.slane %v4152, 2
      %v4155 = vor.u32 %v4151, %v4154
      %v4156 = vsel %vm4031, %v4146, %v4155
      %v4158 = vshrl.u32 %v3713, 16
      %v4160 = vrot.slane %v4158, 1
      %v4161 = vshll.u32 %v3713, 16
      %v4163 = vrot.slane %v4161, 2
      %v4164 = vor.u32 %v4160, %v4163
      %v4165 = vsel %vm4031, %v4155, %v4164
      %v4167 = vshrl.u32 %v3714, 16
      %v4169 = vrot.slane %v4167, 1
      %v4170 = vshll.u32 %v3714, 16
      %v4172 = vrot.slane %v4170, 2
      %v4173 = vor.u32 %v4169, %v4172
      %v4174 = vsel %vm4031, %v4164, %v4173
      %v4176 = vshrl.u32 %v3715, 16
      %v4178 = vrot.slane %v4176, 1
      %v4179 = vshll.u32 %v3715, 16
      %v4181 = vrot.slane %v4179, 2
      %v4182 = vor.u32 %v4178, %v4181
      %v4183 = vsel %vm4031, %v4173, %v4182
      %v4185 = vshrl.u32 %v3716, 16
      %v4187 = vrot.slane %v4185, 1
      %v4188 = vshll.u32 %v3716, 16
      %v4190 = vrot.slane %v4188, 2
      %v4191 = vor.u32 %v4187, %v4190
      %v4192 = vsel %vm4031, %v4182, %v4191
      %v4194 = vshrl.u32 %v4030, 16
      %v4196 = vrot.slane %v4194, 1
      %v4197 = vshll.u32 %v4030, 16
      %v4199 = vrot.slane %v4197, 2
      %v4200 = vor.u32 %v4196, %v4199
      %v4201 = vsel %vm4031, %v4191, %v4200
      %v4203 = vsel %vm2820, %v4048, 0
      %v4206 = vsel %vm2820, %v4057, 0
      %v4209 = vsel %vm2820, %v4066, 0
      %v4212 = vsel %vm2820, %v4075, 0
      %v4215 = vsel %vm2820, %v4084, 0
      %v4218 = vsel %vm2820, %v4093, 0
      %v4221 = vsel %vm2820, %v4102, 0
      %v4224 = vsel %vm2820, %v4111, 0
      %v4227 = vsel %vm2820, %v4120, 0
      %v4230 = vsel %vm2820, %v4129, 0
      %v4233 = vsel %vm2820, %v4138, 0
      %v4236 = vsel %vm2820, %v4147, 0
      %v4239 = vsel %vm2820, %v4156, 0
      %v4242 = vsel %vm2820, %v4165, 0
      %v4245 = vsel %vm2820, %v4174, 0
      %v4248 = vsel %vm2820, %v4183, 0
      %v4251 = vsel %vm2820, %v4192, 0
      %v4254 = vsel %vm2820, %v4201, 0
      %v4257 = vsel %vm2875, %v4027, 0
      %4259 = vmatprep.subr.bf16.mxu0 0
      %4260 = vmatpush1.bf16.msra.mxu0 0
      %4261 = vmatprep.subr.bf16.mxu0 0
      %4262 = vmatpush1.bf16.msra.mxu0 0
      %4263 = vmatprep.subr.bf16.mxu0 0
      %4264 = vmatpush1.bf16.msra.mxu0 0
      %4265 = vmatprep.subr.bf16.mxu0 0
      %4266 = vmatpush1.bf16.msra.mxu0 0
      %4267 = vmatprep.subr.bf16.mxu0 0
      %4268 = vmatpush1.bf16.msra.mxu0 0
      %4269 = vmatprep.subr.bf16.mxu0 0
      %4270 = vmatpush1.bf16.msra.mxu0 0
      %4271 = vmatprep.subr.bf16.mxu0 0
      %4272 = vmatpush1.bf16.msra.mxu0 0
      %4273 = vmatprep.subr.bf16.mxu0 0
      %4274 = vmatpush1.bf16.msra.mxu0 %v4257
      %4275 = vmatprep.subr.bf16.mxu0 0
      %4276 = vmatpush2.bf16.msra.mxu0 0
      %4277 = vmatprep.subr.bf16.mxu0 0
      %4278 = vmatpush2.bf16.msra.mxu0 0
      %4279 = vmatprep.subr.bf16.mxu0 0
      %4280 = vmatpush2.bf16.msra.mxu0 0
      %4281 = vmatprep.subr.bf16.mxu0 0
      %4282 = vmatpush2.bf16.msra.mxu0 0
      %4283 = vmatprep.subr.bf16.mxu0 0
      %4284 = vmatpush2.bf16.msra.mxu0 0
      %4285 = vmatprep.subr.bf16.mxu0 0
      %4286 = vmatpush2.bf16.msra.mxu0 0
      %4287 = vmatprep.subr.bf16.mxu0 0
      %4288 = vmatpush2.bf16.msra.mxu0 0
      %4289 = vmatprep.subr.bf16.mxu0 0
      %4290 = vmatpush2.bf16.msra.mxu0 0
      %4291 = vmatprep.mubr.bf16.mxu0 0
      %4292 = vmatmul.mubr.bf16.gmra.mxu0 %v4203
      %v4293 = vpop.f32.mrf.mxu0
      %v4294 = vadd.f32 0.0, %v4293
      %v4295 = vpop.f32.mrf.mxu0
      %v4296 = vpop.f32.mrf.mxu0
      %v4297 = vadd.f32 0.0, %v4296
      %v4298 = vpop.f32.mrf.mxu0
      %4299 = vmatprep.mubr.bf16.mxu0 0
      %4300 = vmatmul.mubr.bf16.gmra.mxu0 %v4206
      %v4301 = vpop.f32.mrf.mxu0
      %v4302 = vadd.f32 0.0, %v4301
      %v4303 = vpop.f32.mrf.mxu0
      %v4304 = vpop.f32.mrf.mxu0
      %v4305 = vadd.f32 0.0, %v4304
      %v4306 = vpop.f32.mrf.mxu0
      %4307 = vmatprep.mubr.bf16.mxu0 0
      %4308 = vmatmul.mubr.bf16.gmra.mxu0 %v4209
      %v4309 = vpop.f32.mrf.mxu0
      %v4310 = vadd.f32 0.0, %v4309
      %v4311 = vpop.f32.mrf.mxu0
      %v4312 = vpop.f32.mrf.mxu0
      %v4313 = vadd.f32 0.0, %v4312
      %v4314 = vpop.f32.mrf.mxu0
      %4315 = vmatprep.mubr.bf16.mxu0 0
      %4316 = vmatmul.mubr.bf16.gmra.mxu0 %v4212
      %v4317 = vpop.f32.mrf.mxu0
      %v4318 = vadd.f32 0.0, %v4317
      %v4319 = vpop.f32.mrf.mxu0
      %v4320 = vpop.f32.mrf.mxu0
      %v4321 = vadd.f32 0.0, %v4320
      %v4322 = vpop.f32.mrf.mxu0
      %4323 = vmatprep.mubr.bf16.mxu0 0
      %4324 = vmatmul.mubr.bf16.gmra.mxu0 %v4215
      %v4325 = vpop.f32.mrf.mxu0
      %v4326 = vadd.f32 0.0, %v4325
      %v4327 = vpop.f32.mrf.mxu0
      %v4328 = vpop.f32.mrf.mxu0
      %v4329 = vadd.f32 0.0, %v4328
      %v4330 = vpop.f32.mrf.mxu0
      %4331 = vmatprep.mubr.bf16.mxu0 0
      %4332 = vmatmul.mubr.bf16.gmra.mxu0 %v4218
      %v4333 = vpop.f32.mrf.mxu0
      %v4334 = vadd.f32 0.0, %v4333
      %v4335 = vpop.f32.mrf.mxu0
      %v4336 = vpop.f32.mrf.mxu0
      %v4337 = vadd.f32 0.0, %v4336
      %v4338 = vpop.f32.mrf.mxu0
      %4339 = vmatprep.mubr.bf16.mxu0 0
      %4340 = vmatmul.mubr.bf16.gmra.mxu0 %v4221
      %v4341 = vpop.f32.mrf.mxu0
      %v4342 = vadd.f32 0.0, %v4341
      %v4343 = vpop.f32.mrf.mxu0
      %v4344 = vpop.f32.mrf.mxu0
      %v4345 = vadd.f32 0.0, %v4344
      %v4346 = vpop.f32.mrf.mxu0
      %4347 = vmatprep.mubr.bf16.mxu0 0
      %4348 = vmatmul.mubr.bf16.gmra.mxu0 %v4224
      %v4349 = vpop.f32.mrf.mxu0
      %v4350 = vadd.f32 0.0, %v4349
      %v4351 = vpop.f32.mrf.mxu0
      %v4352 = vpop.f32.mrf.mxu0
      %v4353 = vadd.f32 0.0, %v4352
      %v4354 = vpop.f32.mrf.mxu0
      %4355 = vmatprep.mubr.bf16.mxu0 0
      %4356 = vmatmul.mubr.bf16.gmra.mxu0 %v4227
      %v4357 = vpop.f32.mrf.mxu0
      %v4358 = vadd.f32 0.0, %v4357
      %v4359 = vpop.f32.mrf.mxu0
      %v4360 = vpop.f32.mrf.mxu0
      %v4361 = vadd.f32 0.0, %v4360
      %v4362 = vpop.f32.mrf.mxu0
      %4363 = vmatprep.mubr.bf16.mxu0 0
      %4364 = vmatmul.mubr.bf16.gmra.mxu0 %v4230
      %v4365 = vpop.f32.mrf.mxu0
      %v4366 = vadd.f32 0.0, %v4365
      %v4367 = vpop.f32.mrf.mxu0
      %v4368 = vpop.f32.mrf.mxu0
      %v4369 = vadd.f32 0.0, %v4368
      %v4370 = vpop.f32.mrf.mxu0
      %4371 = vmatprep.mubr.bf16.mxu0 0
      %4372 = vmatmul.mubr.bf16.gmra.mxu0 %v4233
      %v4373 = vpop.f32.mrf.mxu0
      %v4374 = vadd.f32 0.0, %v4373
      %v4375 = vpop.f32.mrf.mxu0
      %v4376 = vpop.f32.mrf.mxu0
      %v4377 = vadd.f32 0.0, %v4376
      %v4378 = vpop.f32.mrf.mxu0
      %4379 = vmatprep.mubr.bf16.mxu0 0
      %4380 = vmatmul.mubr.bf16.gmra.mxu0 %v4236
      %v4381 = vpop.f32.mrf.mxu0
      %v4382 = vadd.f32 0.0, %v4381
      %v4383 = vpop.f32.mrf.mxu0
      %v4384 = vpop.f32.mrf.mxu0
      %v4385 = vadd.f32 0.0, %v4384
      %v4386 = vpop.f32.mrf.mxu0
      %4387 = vmatprep.mubr.bf16.mxu0 0
      %4388 = vmatmul.mubr.bf16.gmra.mxu0 %v4239
      %v4389 = vpop.f32.mrf.mxu0
      %v4390 = vadd.f32 0.0, %v4389
      %v4391 = vpop.f32.mrf.mxu0
      %v4392 = vpop.f32.mrf.mxu0
      %v4393 = vadd.f32 0.0, %v4392
      %v4394 = vpop.f32.mrf.mxu0
      %4395 = vmatprep.mubr.bf16.mxu0 0
      %4396 = vmatmul.mubr.bf16.gmra.mxu0 %v4242
      %v4397 = vpop.f32.mrf.mxu0
      %v4398 = vadd.f32 0.0, %v4397
      %v4399 = vpop.f32.mrf.mxu0
      %v4400 = vpop.f32.mrf.mxu0
      %v4401 = vadd.f32 0.0, %v4400
      %v4402 = vpop.f32.mrf.mxu0
      %4403 = vmatprep.mubr.bf16.mxu0 0
      %4404 = vmatmul.mubr.bf16.gmra.mxu0 %v4245
      %v4405 = vpop.f32.mrf.mxu0
      %v4406 = vadd.f32 0.0, %v4405
      %v4407 = vpop.f32.mrf.mxu0
      %v4408 = vpop.f32.mrf.mxu0
      %v4409 = vadd.f32 0.0, %v4408
      %v4410 = vpop.f32.mrf.mxu0
      %4411 = vmatprep.mubr.bf16.mxu0 0
      %4412 = vmatmul.mubr.bf16.gmra.mxu0 %v4248
      %v4413 = vpop.f32.mrf.mxu0
      %v4414 = vadd.f32 0.0, %v4413
      %v4415 = vpop.f32.mrf.mxu0
      %v4416 = vpop.f32.mrf.mxu0
      %v4417 = vadd.f32 0.0, %v4416
      %v4418 = vpop.f32.mrf.mxu0
      %4419 = vmatprep.mubr.bf16.mxu0 0
      %4420 = vmatmul.mubr.bf16.gmra.mxu0 %v4251
      %v4421 = vpop.f32.mrf.mxu0
      %v4422 = vadd.f32 0.0, %v4421
      %v4423 = vpop.f32.mrf.mxu0
      %v4424 = vpop.f32.mrf.mxu0
      %v4425 = vadd.f32 0.0, %v4424
      %v4426 = vpop.f32.mrf.mxu0
      %4427 = vmatprep.mubr.bf16.mxu0 0
      %4428 = vmatmul.mubr.bf16.gmra.mxu0 %v4254
      %v4429 = vpop.f32.mrf.mxu0
      %v4430 = vadd.f32 0.0, %v4429
      %v4431 = vpop.f32.mrf.mxu0
      %v4432 = vpop.f32.mrf.mxu0
      %v4433 = vadd.f32 0.0, %v4432
      %v4434 = vpop.f32.mrf.mxu0
      %4435 = vdwg.mxu0
      %v4436 = vadd.f32 %v3989, %v4294
      %v4437 = vadd.f32 %v3990, %v4297
      %v4438 = vadd.f32 %v3991, %v4302
      %v4439 = vadd.f32 %v3992, %v4305
      %v4440 = vadd.f32 %v3993, %v4310
      %v4441 = vadd.f32 %v3994, %v4313
      %v4442 = vadd.f32 %v3995, %v4318
      %v4443 = vadd.f32 %v3996, %v4321
      %v4444 = vadd.f32 %v3997, %v4326
      %v4445 = vadd.f32 %v3998, %v4329
      %v4446 = vadd.f32 %v3999, %v4334
      %v4447 = vadd.f32 %v4000, %v4337
      %v4448 = vadd.f32 %v4001, %v4342
      %v4449 = vadd.f32 %v4002, %v4345
      %v4450 = vadd.f32 %v4003, %v4350
      %v4451 = vadd.f32 %v4004, %v4353
      %v4452 = vadd.f32 %v4005, %v4358
      %v4453 = vadd.f32 %v4006, %v4361
      %v4454 = vadd.f32 %v4007, %v4366
      %v4455 = vadd.f32 %v4008, %v4369
      %v4456 = vadd.f32 %v4009, %v4374
      %v4457 = vadd.f32 %v4010, %v4377
      %v4458 = vadd.f32 %v4011, %v4382
      %v4459 = vadd.f32 %v4012, %v4385
      %v4460 = vadd.f32 %v4013, %v4390
      %v4461 = vadd.f32 %v4014, %v4393
      %v4462 = vadd.f32 %v4015, %v4398
      %v4463 = vadd.f32 %v4016, %v4401
      %v4464 = vadd.f32 %v4017, %v4406
      %v4465 = vadd.f32 %v4018, %v4409
      %v4466 = vadd.f32 %v4019, %v4414
      %v4467 = vadd.f32 %v4020, %v4417
      %v4468 = vadd.f32 %v4021, %v4422
      %v4469 = vadd.f32 %v4022, %v4425
      %v4470 = vadd.f32 %v4023, %v4430
      %v4471 = vadd.f32 %v4024, %v4433
      %v4472 = vld [vmem:[#allocation2 + $0x8] sm:$0xc]
      %s4473 = scalar_lea.vmem %s1, 10
      %v4474 = vld [vmem:[%s4473] sm:$0x3]
      %v4476 = vunpack.c.l.b16 %v4472
      %v4477 = vpack.c.b16 %v3663, %v4476
      %vm4478 = vcmask 1045504
      %v4479 = vrot.slane %v4477, 2
      %v4480 = vrot.slane %v3700, 2
      %v4481 = vsel %vm4478, %v4479, %v4480
      %v4482 = vrot.slane %v3701, 2
      %v4483 = vsel %vm4478, %v4480, %v4482
      %v4484 = vrot.slane %v3702, 2
      %v4485 = vsel %vm4478, %v4482, %v4484
      %v4486 = vrot.slane %v3703, 2
      %v4487 = vsel %vm4478, %v4484, %v4486
      %v4488 = vrot.slane %v3704, 2
      %v4489 = vsel %vm4478, %v4486, %v4488
      %v4490 = vrot.slane %v3705, 2
      %v4491 = vsel %vm4478, %v4488, %v4490
      %v4492 = vrot.slane %v3706, 2
      %v4493 = vsel %vm4478, %v4490, %v4492
      %v4494 = vrot.slane %v3707, 2
      %v4495 = vsel %vm4478, %v4492, %v4494
      %v4496 = vrot.slane %v3708, 2
      %v4497 = vsel %vm4478, %v4494, %v4496
      %v4498 = vrot.slane %v3709, 2
      %v4499 = vsel %vm4478, %v4496, %v4498
      %v4500 = vrot.slane %v3710, 2
      %v4501 = vsel %vm4478, %v4498, %v4500
      %v4502 = vrot.slane %v3711, 2
      %v4503 = vsel %vm4478, %v4500, %v4502
      %v4504 = vrot.slane %v3712, 2
      %v4505 = vsel %vm4478, %v4502, %v4504
      %v4506 = vrot.slane %v3713, 2
      %v4507 = vsel %vm4478, %v4504, %v4506
      %v4508 = vrot.slane %v3714, 2
      %v4509 = vsel %vm4478, %v4506, %v4508
      %v4510 = vrot.slane %v3715, 2
      %v4511 = vsel %vm4478, %v4508, %v4510
      %v4512 = vrot.slane %v3716, 2
      %v4513 = vsel %vm4478, %v4510, %v4512
      %v4514 = vrot.slane %v4030, 2
      %v4515 = vsel %vm4478, %v4512, %v4514
      %v4517 = vsel %vm2820, %v4481, 0
      %v4520 = vsel %vm2820, %v4483, 0
      %v4523 = vsel %vm2820, %v4485, 0
      %v4526 = vsel %vm2820, %v4487, 0
      %v4529 = vsel %vm2820, %v4489, 0
      %v4532 = vsel %vm2820, %v4491, 0
      %v4535 = vsel %vm2820, %v4493, 0
      %v4538 = vsel %vm2820, %v4495, 0
      %v4541 = vsel %vm2820, %v4497, 0
      %v4544 = vsel %vm2820, %v4499, 0
      %v4547 = vsel %vm2820, %v4501, 0
      %v4550 = vsel %vm2820, %v4503, 0
      %v4553 = vsel %vm2820, %v4505, 0
      %v4556 = vsel %vm2820, %v4507, 0
      %v4559 = vsel %vm2820, %v4509, 0
      %v4562 = vsel %vm2820, %v4511, 0
      %v4565 = vsel %vm2820, %v4513, 0
      %v4568 = vsel %vm2820, %v4515, 0
      %v4571 = vsel %vm2875, %v4474, 0
      %4573 = vmatprep.subr.bf16.mxu0 0
      %4574 = vmatpush1.bf16.msra.mxu0 0
      %4575 = vmatprep.subr.bf16.mxu0 0
      %4576 = vmatpush1.bf16.msra.mxu0 0
      %4577 = vmatprep.subr.bf16.mxu0 0
      %4578 = vmatpush1.bf16.msra.mxu0 0
      %4579 = vmatprep.subr.bf16.mxu0 0
      %4580 = vmatpush1.bf16.msra.mxu0 0
      %4581 = vmatprep.subr.bf16.mxu0 0
      %4582 = vmatpush1.bf16.msra.mxu0 0
      %4583 = vmatprep.subr.bf16.mxu0 0
      %4584 = vmatpush1.bf16.msra.mxu0 0
      %4585 = vmatprep.subr.bf16.mxu0 0
      %4586 = vmatpush1.bf16.msra.mxu0 0
      %4587 = vmatprep.subr.bf16.mxu0 0
      %4588 = vmatpush1.bf16.msra.mxu0 %v4571
      %4589 = vmatprep.subr.bf16.mxu0 0
      %4590 = vmatpush2.bf16.msra.mxu0 0
      %4591 = vmatprep.subr.bf16.mxu0 0
      %4592 = vmatpush2.bf16.msra.mxu0 0
      %4593 = vmatprep.subr.bf16.mxu0 0
      %4594 = vmatpush2.bf16.msra.mxu0 0
      %4595 = vmatprep.subr.bf16.mxu0 0
      %4596 = vmatpush2.bf16.msra.mxu0 0
      %4597 = vmatprep.subr.bf16.mxu0 0
      %4598 = vmatpush2.bf16.msra.mxu0 0
      %4599 = vmatprep.subr.bf16.mxu0 0
      %4600 = vmatpush2.bf16.msra.mxu0 0
      %4601 = vmatprep.subr.bf16.mxu0 0
      %4602 = vmatpush2.bf16.msra.mxu0 0
      %4603 = vmatprep.subr.bf16.mxu0 0
      %4604 = vmatpush2.bf16.msra.mxu0 0
      %4605 = vmatprep.mubr.bf16.mxu0 0
      %4606 = vmatmul.mubr.bf16.gmra.mxu0 %v4517
      %v4607 = vpop.f32.mrf.mxu0
      %v4608 = vadd.f32 0.0, %v4607
      %v4609 = vpop.f32.mrf.mxu0
      %v4610 = vpop.f32.mrf.mxu0
      %v4611 = vadd.f32 0.0, %v4610
      %v4612 = vpop.f32.mrf.mxu0
      %4613 = vmatprep.mubr.bf16.mxu0 0
      %4614 = vmatmul.mubr.bf16.gmra.mxu0 %v4520
      %v4615 = vpop.f32.mrf.mxu0
      %v4616 = vadd.f32 0.0, %v4615
      %v4617 = vpop.f32.mrf.mxu0
      %v4618 = vpop.f32.mrf.mxu0
      %v4619 = vadd.f32 0.0, %v4618
      %v4620 = vpop.f32.mrf.mxu0
      %4621 = vmatprep.mubr.bf16.mxu0 0
      %4622 = vmatmul.mubr.bf16.gmra.mxu0 %v4523
      %v4623 = vpop.f32.mrf.mxu0
      %v4624 = vadd.f32 0.0, %v4623
      %v4625 = vpop.f32.mrf.mxu0
      %v4626 = vpop.f32.mrf.mxu0
      %v4627 = vadd.f32 0.0, %v4626
      %v4628 = vpop.f32.mrf.mxu0
      %4629 = vmatprep.mubr.bf16.mxu0 0
      %4630 = vmatmul.mubr.bf16.gmra.mxu0 %v4526
      %v4631 = vpop.f32.mrf.mxu0
      %v4632 = vadd.f32 0.0, %v4631
      %v4633 = vpop.f32.mrf.mxu0
      %v4634 = vpop.f32.mrf.mxu0
      %v4635 = vadd.f32 0.0, %v4634
      %v4636 = vpop.f32.mrf.mxu0
      %4637 = vmatprep.mubr.bf16.mxu0 0
      %4638 = vmatmul.mubr.bf16.gmra.mxu0 %v4529
      %v4639 = vpop.f32.mrf.mxu0
      %v4640 = vadd.f32 0.0, %v4639
      %v4641 = vpop.f32.mrf.mxu0
      %v4642 = vpop.f32.mrf.mxu0
      %v4643 = vadd.f32 0.0, %v4642
      %v4644 = vpop.f32.mrf.mxu0
      %4645 = vmatprep.mubr.bf16.mxu0 0
      %4646 = vmatmul.mubr.bf16.gmra.mxu0 %v4532
      %v4647 = vpop.f32.mrf.mxu0
      %v4648 = vadd.f32 0.0, %v4647
      %v4649 = vpop.f32.mrf.mxu0
      %v4650 = vpop.f32.mrf.mxu0
      %v4651 = vadd.f32 0.0, %v4650
      %v4652 = vpop.f32.mrf.mxu0
      %4653 = vmatprep.mubr.bf16.mxu0 0
      %4654 = vmatmul.mubr.bf16.gmra.mxu0 %v4535
      %v4655 = vpop.f32.mrf.mxu0
      %v4656 = vadd.f32 0.0, %v4655
      %v4657 = vpop.f32.mrf.mxu0
      %v4658 = vpop.f32.mrf.mxu0
      %v4659 = vadd.f32 0.0, %v4658
      %v4660 = vpop.f32.mrf.mxu0
      %4661 = vmatprep.mubr.bf16.mxu0 0
      %4662 = vmatmul.mubr.bf16.gmra.mxu0 %v4538
      %v4663 = vpop.f32.mrf.mxu0
      %v4664 = vadd.f32 0.0, %v4663
      %v4665 = vpop.f32.mrf.mxu0
      %v4666 = vpop.f32.mrf.mxu0
      %v4667 = vadd.f32 0.0, %v4666
      %v4668 = vpop.f32.mrf.mxu0
      %4669 = vmatprep.mubr.bf16.mxu0 0
      %4670 = vmatmul.mubr.bf16.gmra.mxu0 %v4541
      %v4671 = vpop.f32.mrf.mxu0
      %v4672 = vadd.f32 0.0, %v4671
      %v4673 = vpop.f32.mrf.mxu0
      %v4674 = vpop.f32.mrf.mxu0
      %v4675 = vadd.f32 0.0, %v4674
      %v4676 = vpop.f32.mrf.mxu0
      %4677 = vmatprep.mubr.bf16.mxu0 0
      %4678 = vmatmul.mubr.bf16.gmra.mxu0 %v4544
      %v4679 = vpop.f32.mrf.mxu0
      %v4680 = vadd.f32 0.0, %v4679
      %v4681 = vpop.f32.mrf.mxu0
      %v4682 = vpop.f32.mrf.mxu0
      %v4683 = vadd.f32 0.0, %v4682
      %v4684 = vpop.f32.mrf.mxu0
      %4685 = vmatprep.mubr.bf16.mxu0 0
      %4686 = vmatmul.mubr.bf16.gmra.mxu0 %v4547
      %v4687 = vpop.f32.mrf.mxu0
      %v4688 = vadd.f32 0.0, %v4687
      %v4689 = vpop.f32.mrf.mxu0
      %v4690 = vpop.f32.mrf.mxu0
      %v4691 = vadd.f32 0.0, %v4690
      %v4692 = vpop.f32.mrf.mxu0
      %4693 = vmatprep.mubr.bf16.mxu0 0
      %4694 = vmatmul.mubr.bf16.gmra.mxu0 %v4550
      %v4695 = vpop.f32.mrf.mxu0
      %v4696 = vadd.f32 0.0, %v4695
      %v4697 = vpop.f32.mrf.mxu0
      %v4698 = vpop.f32.mrf.mxu0
      %v4699 = vadd.f32 0.0, %v4698
      %v4700 = vpop.f32.mrf.mxu0
      %4701 = vmatprep.mubr.bf16.mxu0 0
      %4702 = vmatmul.mubr.bf16.gmra.mxu0 %v4553
      %v4703 = vpop.f32.mrf.mxu0
      %v4704 = vadd.f32 0.0, %v4703
      %v4705 = vpop.f32.mrf.mxu0
      %v4706 = vpop.f32.mrf.mxu0
      %v4707 = vadd.f32 0.0, %v4706
      %v4708 = vpop.f32.mrf.mxu0
      %4709 = vmatprep.mubr.bf16.mxu0 0
      %4710 = vmatmul.mubr.bf16.gmra.mxu0 %v4556
      %v4711 = vpop.f32.mrf.mxu0
      %v4712 = vadd.f32 0.0, %v4711
      %v4713 = vpop.f32.mrf.mxu0
      %v4714 = vpop.f32.mrf.mxu0
      %v4715 = vadd.f32 0.0, %v4714
      %v4716 = vpop.f32.mrf.mxu0
      %4717 = vmatprep.mubr.bf16.mxu0 0
      %4718 = vmatmul.mubr.bf16.gmra.mxu0 %v4559
      %v4719 = vpop.f32.mrf.mxu0
      %v4720 = vadd.f32 0.0, %v4719
      %v4721 = vpop.f32.mrf.mxu0
      %v4722 = vpop.f32.mrf.mxu0
      %v4723 = vadd.f32 0.0, %v4722
      %v4724 = vpop.f32.mrf.mxu0
      %4725 = vmatprep.mubr.bf16.mxu0 0
      %4726 = vmatmul.mubr.bf16.gmra.mxu0 %v4562
      %v4727 = vpop.f32.mrf.mxu0
      %v4728 = vadd.f32 0.0, %v4727
      %v4729 = vpop.f32.mrf.mxu0
      %v4730 = vpop.f32.mrf.mxu0
      %v4731 = vadd.f32 0.0, %v4730
      %v4732 = vpop.f32.mrf.mxu0
      %4733 = vmatprep.mubr.bf16.mxu0 0
      %4734 = vmatmul.mubr.bf16.gmra.mxu0 %v4565
      %v4735 = vpop.f32.mrf.mxu0
      %v4736 = vadd.f32 0.0, %v4735
      %v4737 = vpop.f32.mrf.mxu0
      %v4738 = vpop.f32.mrf.mxu0
      %v4739 = vadd.f32 0.0, %v4738
      %v4740 = vpop.f32.mrf.mxu0
      %4741 = vmatprep.mubr.bf16.mxu0 0
      %4742 = vmatmul.mubr.bf16.gmra.mxu0 %v4568
      %v4743 = vpop.f32.mrf.mxu0
      %v4744 = vadd.f32 0.0, %v4743
      %v4745 = vpop.f32.mrf.mxu0
      %v4746 = vpop.f32.mrf.mxu0
      %v4747 = vadd.f32 0.0, %v4746
      %v4748 = vpop.f32.mrf.mxu0
      %4749 = vdwg.mxu0
      %v4750 = vadd.f32 %v4436, %v4608
      %v4751 = vadd.f32 %v4437, %v4611
      %v4752 = vadd.f32 %v4438, %v4616
      %v4753 = vadd.f32 %v4439, %v4619
      %v4754 = vadd.f32 %v4440, %v4624
      %v4755 = vadd.f32 %v4441, %v4627
      %v4756 = vadd.f32 %v4442, %v4632
      %v4757 = vadd.f32 %v4443, %v4635
      %v4758 = vadd.f32 %v4444, %v4640
      %v4759 = vadd.f32 %v4445, %v4643
      %v4760 = vadd.f32 %v4446, %v4648
      %v4761 = vadd.f32 %v4447, %v4651
      %v4762 = vadd.f32 %v4448, %v4656
      %v4763 = vadd.f32 %v4449, %v4659
      %v4764 = vadd.f32 %v4450, %v4664
      %v4765 = vadd.f32 %v4451, %v4667
      %v4766 = vadd.f32 %v4452, %v4672
      %v4767 = vadd.f32 %v4453, %v4675
      %v4768 = vadd.f32 %v4454, %v4680
      %v4769 = vadd.f32 %v4455, %v4683
      %v4770 = vadd.f32 %v4456, %v4688
      %v4771 = vadd.f32 %v4457, %v4691
      %v4772 = vadd.f32 %v4458, %v4696
      %v4773 = vadd.f32 %v4459, %v4699
      %v4774 = vadd.f32 %v4460, %v4704
      %v4775 = vadd.f32 %v4461, %v4707
      %v4776 = vadd.f32 %v4462, %v4712
      %v4777 = vadd.f32 %v4463, %v4715
      %v4778 = vadd.f32 %v4464, %v4720
      %v4779 = vadd.f32 %v4465, %v4723
      %v4780 = vadd.f32 %v4466, %v4728
      %v4781 = vadd.f32 %v4467, %v4731
      %v4782 = vadd.f32 %v4468, %v4736
      %v4783 = vadd.f32 %v4469, %v4739
      %v4784 = vadd.f32 %v4470, %v4744
      %v4785 = vadd.f32 %v4471, %v4747
      %v4786 = vld [vmem:[#allocation2 + $0x10] sm:$0xc]
      %v4787 = vld [vmem:[#allocation2 + $0x14] sm:$0xf]
      %v4788 = vld [vmem:[#allocation2 + $0x18] sm:$0xf]
      %v4789 = vld [vmem:[#allocation2 + $0x1c] sm:$0xf]
      %v4790 = vld [vmem:[#allocation2 + $0x20] sm:$0xf]
      %v4791 = vld [vmem:[#allocation2 + $0x24] sm:$0xf]
      %v4792 = vld [vmem:[#allocation2 + $0x28] sm:$0xf]
      %v4793 = vld [vmem:[#allocation2 + $0x2c] sm:$0xf]
      %v4794 = vld [vmem:[#allocation2 + $0x30] sm:$0xf]
      %v4795 = vld [vmem:[#allocation2 + $0x34] sm:$0xf]
      %v4796 = vld [vmem:[#allocation2 + $0x38] sm:$0xf]
      %v4797 = vld [vmem:[#allocation2 + $0x3c] sm:$0xf]
      %v4798 = vld [vmem:[#allocation2 + $0x40] sm:$0xf]
      %v4799 = vld [vmem:[#allocation2 + $0x44] sm:$0xf]
      %v4800 = vld [vmem:[#allocation2 + $0x48] sm:$0xf]
      %v4801 = vld [vmem:[#allocation2 + $0x4c] sm:$0xf]
      %v4802 = vld [vmem:[#allocation2 + $0x50] sm:$0xf]
      %v4803 = vld [vmem:[#allocation2 + $0x54] sm:$0xf]
      %v4804 = vld [vmem:[#allocation2 + $0x58] sm:$0xf]
      %v4805 = vld [vmem:[#allocation2 + $0x5c] sm:$0xf]
      %v4806 = vld [vmem:[#allocation2 + $0x60] sm:$0xf]
      %v4807 = vld [vmem:[#allocation2 + $0x64] sm:$0xf]
      %v4808 = vld [vmem:[#allocation2 + $0x68] sm:$0xf]
      %v4809 = vld [vmem:[#allocation2 + $0x6c] sm:$0xf]
      %v4810 = vld [vmem:[#allocation2 + $0x70] sm:$0xf]
      %v4811 = vld [vmem:[#allocation2 + $0x74] sm:$0xf]
      %v4812 = vld [vmem:[#allocation2 + $0x78] sm:$0xf]
      %v4813 = vld [vmem:[#allocation2 + $0x7c] sm:$0xf]
      %v4814 = vld [vmem:[#allocation2 + $0x80] sm:$0xf]
      %v4815 = vld [vmem:[#allocation2 + $0x84] sm:$0xf]
      %v4816 = vld [vmem:[#allocation2 + $0x88] sm:$0xf]
      %v4817 = vld [vmem:[#allocation2 + $0x8c] sm:$0xf]
      %v4818 = vld [vmem:[#allocation2 + $0x90] sm:$0xf]
      %v4819 = vld [vmem:[#allocation2 + $0x94] sm:$0xf]
      %v4820 = vld [vmem:[#allocation2 + $0x98] sm:$0xf]
      %v4821 = vld [vmem:[#allocation2 + $0x9c] sm:$0xf]
      %v4822 = vld [vmem:[#allocation2 + $0xa0] sm:$0x3]
      %s4823 = scalar_lea.vmem %s1, 12
      %v4824 = vld [vmem:[%s4823] sm:$0x3]
      %v4862 = vunpack.c.l.b16 %v4786
      %v4863 = vunpack.c.l.b16 %v4787
      %v4864 = vunpack.c.l.b16 %v4788
      %v4865 = vunpack.c.l.b16 %v4789
      %v4866 = vunpack.c.l.b16 %v4790
      %v4867 = vunpack.c.l.b16 %v4791
      %v4868 = vunpack.c.l.b16 %v4792
      %v4869 = vunpack.c.l.b16 %v4793
      %v4870 = vunpack.c.l.b16 %v4794
      %v4871 = vunpack.c.l.b16 %v4795
      %v4872 = vunpack.c.l.b16 %v4796
      %v4873 = vunpack.c.l.b16 %v4797
      %v4874 = vunpack.c.l.b16 %v4798
      %v4875 = vunpack.c.l.b16 %v4799
      %v4876 = vunpack.c.l.b16 %v4800
      %v4877 = vunpack.c.l.b16 %v4801
      %v4878 = vunpack.c.l.b16 %v4802
      %v4879 = vunpack.c.l.b16 %v4803
      %v4880 = vunpack.c.l.b16 %v4804
      %v4881 = vunpack.c.l.b16 %v4805
      %v4882 = vunpack.c.l.b16 %v4806
      %v4883 = vunpack.c.l.b16 %v4807
      %v4884 = vunpack.c.l.b16 %v4808
      %v4885 = vunpack.c.l.b16 %v4809
      %v4886 = vunpack.c.l.b16 %v4810
      %v4887 = vunpack.c.l.b16 %v4811
      %v4888 = vunpack.c.l.b16 %v4812
      %v4889 = vunpack.c.l.b16 %v4813
      %v4890 = vunpack.c.l.b16 %v4814
      %v4891 = vunpack.c.l.b16 %v4815
      %v4892 = vunpack.c.l.b16 %v4816
      %v4893 = vunpack.c.l.b16 %v4817
      %v4894 = vunpack.c.l.b16 %v4818
      %v4895 = vunpack.c.l.b16 %v4819
      %v4896 = vunpack.c.l.b16 %v4820
      %v4897 = vunpack.c.l.b16 %v4821
      %v4898 = vunpack.c.l.b16 %v4822
      %v4899 = vpack.c.b16 %v4863, %v4862
      %v4900 = vpack.c.b16 %v4865, %v4864
      %v4901 = vpack.c.b16 %v4867, %v4866
      %v4902 = vpack.c.b16 %v4869, %v4868
      %v4903 = vpack.c.b16 %v4871, %v4870
      %v4904 = vpack.c.b16 %v4873, %v4872
      %v4905 = vpack.c.b16 %v4875, %v4874
      %v4906 = vpack.c.b16 %v4877, %v4876
      %v4907 = vpack.c.b16 %v4879, %v4878
      %v4908 = vpack.c.b16 %v4881, %v4880
      %v4909 = vpack.c.b16 %v4883, %v4882
      %v4910 = vpack.c.b16 %v4885, %v4884
      %v4911 = vpack.c.b16 %v4887, %v4886
      %v4912 = vpack.c.b16 %v4889, %v4888
      %v4913 = vpack.c.b16 %v4891, %v4890
      %v4914 = vpack.c.b16 %v4893, %v4892
      %v4915 = vpack.c.b16 %v4895, %v4894
      %v4916 = vpack.c.b16 %v4897, %v4896
      %v4917 = vpack.c.b16 %v4898, %v4898
      %v4918 = vrot.slane %v4899, 2
      %v4919 = vrot.slane %v4900, 2
      %v4920 = vsel %vm4478, %v4918, %v4919
      %v4921 = vrot.slane %v4901, 2
      %v4922 = vsel %vm4478, %v4919, %v4921
      %v4923 = vrot.slane %v4902, 2
      %v4924 = vsel %vm4478, %v4921, %v4923
      %v4925 = vrot.slane %v4903, 2
      %v4926 = vsel %vm4478, %v4923, %v4925
      %v4927 = vrot.slane %v4904, 2
      %v4928 = vsel %vm4478, %v4925, %v4927
      %v4929 = vrot.slane %v4905, 2
      %v4930 = vsel %vm4478, %v4927, %v4929
      %v4931 = vrot.slane %v4906, 2
      %v4932 = vsel %vm4478, %v4929, %v4931
      %v4933 = vrot.slane %v4907, 2
      %v4934 = vsel %vm4478, %v4931, %v4933
      %v4935 = vrot.slane %v4908, 2
      %v4936 = vsel %vm4478, %v4933, %v4935
      %v4937 = vrot.slane %v4909, 2
      %v4938 = vsel %vm4478, %v4935, %v4937
      %v4939 = vrot.slane %v4910, 2
      %v4940 = vsel %vm4478, %v4937, %v4939
      %v4941 = vrot.slane %v4911, 2
      %v4942 = vsel %vm4478, %v4939, %v4941
      %v4943 = vrot.slane %v4912, 2
      %v4944 = vsel %vm4478, %v4941, %v4943
      %v4945 = vrot.slane %v4913, 2
      %v4946 = vsel %vm4478, %v4943, %v4945
      %v4947 = vrot.slane %v4914, 2
      %v4948 = vsel %vm4478, %v4945, %v4947
      %v4949 = vrot.slane %v4915, 2
      %v4950 = vsel %vm4478, %v4947, %v4949
      %v4951 = vrot.slane %v4916, 2
      %v4952 = vsel %vm4478, %v4949, %v4951
      %v4953 = vrot.slane %v4917, 2
      %v4954 = vsel %vm4478, %v4951, %v4953
      %v4956 = vsel %vm2820, %v4920, 0
      %v4959 = vsel %vm2820, %v4922, 0
      %v4962 = vsel %vm2820, %v4924, 0
      %v4965 = vsel %vm2820, %v4926, 0
      %v4968 = vsel %vm2820, %v4928, 0
      %v4971 = vsel %vm2820, %v4930, 0
      %v4974 = vsel %vm2820, %v4932, 0
      %v4977 = vsel %vm2820, %v4934, 0
      %v4980 = vsel %vm2820, %v4936, 0
      %v4983 = vsel %vm2820, %v4938, 0
      %v4986 = vsel %vm2820, %v4940, 0
      %v4989 = vsel %vm2820, %v4942, 0
      %v4992 = vsel %vm2820, %v4944, 0
      %v4995 = vsel %vm2820, %v4946, 0
      %v4998 = vsel %vm2820, %v4948, 0
      %v5001 = vsel %vm2820, %v4950, 0
      %v5004 = vsel %vm2820, %v4952, 0
      %v5007 = vsel %vm2820, %v4954, 0
      %v5010 = vsel %vm2875, %v4824, 0
      %5012 = vmatprep.subr.bf16.mxu0 0
      %5013 = vmatpush1.bf16.msra.mxu0 0
      %5014 = vmatprep.subr.bf16.mxu0 0
      %5015 = vmatpush1.bf16.msra.mxu0 0
      %5016 = vmatprep.subr.bf16.mxu0 0
      %5017 = vmatpush1.bf16.msra.mxu0 0
      %5018 = vmatprep.subr.bf16.mxu0 0
      %5019 = vmatpush1.bf16.msra.mxu0 0
      %5020 = vmatprep.subr.bf16.mxu0 0
      %5021 = vmatpush1.bf16.msra.mxu0 0
      %5022 = vmatprep.subr.bf16.mxu0 0
      %5023 = vmatpush1.bf16.msra.mxu0 0
      %5024 = vmatprep.subr.bf16.mxu0 0
      %5025 = vmatpush1.bf16.msra.mxu0 0
      %5026 = vmatprep.subr.bf16.mxu0 0
      %5027 = vmatpush1.bf16.msra.mxu0 %v5010
      %5028 = vmatprep.subr.bf16.mxu0 0
      %5029 = vmatpush2.bf16.msra.mxu0 0
      %5030 = vmatprep.subr.bf16.mxu0 0
      %5031 = vmatpush2.bf16.msra.mxu0 0
      %5032 = vmatprep.subr.bf16.mxu0 0
      %5033 = vmatpush2.bf16.msra.mxu0 0
      %5034 = vmatprep.subr.bf16.mxu0 0
      %5035 = vmatpush2.bf16.msra.mxu0 0
      %5036 = vmatprep.subr.bf16.mxu0 0
      %5037 = vmatpush2.bf16.msra.mxu0 0
      %5038 = vmatprep.subr.bf16.mxu0 0
      %5039 = vmatpush2.bf16.msra.mxu0 0
      %5040 = vmatprep.subr.bf16.mxu0 0
      %5041 = vmatpush2.bf16.msra.mxu0 0
      %5042 = vmatprep.subr.bf16.mxu0 0
      %5043 = vmatpush2.bf16.msra.mxu0 0
      %5044 = vmatprep.mubr.bf16.mxu0 0
      %5045 = vmatmul.mubr.bf16.gmra.mxu0 %v4956
      %v5046 = vpop.f32.mrf.mxu0
      %v5047 = vadd.f32 0.0, %v5046
      %v5048 = vpop.f32.mrf.mxu0
      %v5049 = vpop.f32.mrf.mxu0
      %v5050 = vadd.f32 0.0, %v5049
      %v5051 = vpop.f32.mrf.mxu0
      %5052 = vmatprep.mubr.bf16.mxu0 0
      %5053 = vmatmul.mubr.bf16.gmra.mxu0 %v4959
      %v5054 = vpop.f32.mrf.mxu0
      %v5055 = vadd.f32 0.0, %v5054
      %v5056 = vpop.f32.mrf.mxu0
      %v5057 = vpop.f32.mrf.mxu0
      %v5058 = vadd.f32 0.0, %v5057
      %v5059 = vpop.f32.mrf.mxu0
      %5060 = vmatprep.mubr.bf16.mxu0 0
      %5061 = vmatmul.mubr.bf16.gmra.mxu0 %v4962
      %v5062 = vpop.f32.mrf.mxu0
      %v5063 = vadd.f32 0.0, %v5062
      %v5064 = vpop.f32.mrf.mxu0
      %v5065 = vpop.f32.mrf.mxu0
      %v5066 = vadd.f32 0.0, %v5065
      %v5067 = vpop.f32.mrf.mxu0
      %5068 = vmatprep.mubr.bf16.mxu0 0
      %5069 = vmatmul.mubr.bf16.gmra.mxu0 %v4965
      %v5070 = vpop.f32.mrf.mxu0
      %v5071 = vadd.f32 0.0, %v5070
      %v5072 = vpop.f32.mrf.mxu0
      %v5073 = vpop.f32.mrf.mxu0
      %v5074 = vadd.f32 0.0, %v5073
      %v5075 = vpop.f32.mrf.mxu0
      %5076 = vmatprep.mubr.bf16.mxu0 0
      %5077 = vmatmul.mubr.bf16.gmra.mxu0 %v4968
      %v5078 = vpop.f32.mrf.mxu0
      %v5079 = vadd.f32 0.0, %v5078
      %v5080 = vpop.f32.mrf.mxu0
      %v5081 = vpop.f32.mrf.mxu0
      %v5082 = vadd.f32 0.0, %v5081
      %v5083 = vpop.f32.mrf.mxu0
      %5084 = vmatprep.mubr.bf16.mxu0 0
      %5085 = vmatmul.mubr.bf16.gmra.mxu0 %v4971
      %v5086 = vpop.f32.mrf.mxu0
      %v5087 = vadd.f32 0.0, %v5086
      %v5088 = vpop.f32.mrf.mxu0
      %v5089 = vpop.f32.mrf.mxu0
      %v5090 = vadd.f32 0.0, %v5089
      %v5091 = vpop.f32.mrf.mxu0
      %5092 = vmatprep.mubr.bf16.mxu0 0
      %5093 = vmatmul.mubr.bf16.gmra.mxu0 %v4974
      %v5094 = vpop.f32.mrf.mxu0
      %v5095 = vadd.f32 0.0, %v5094
      %v5096 = vpop.f32.mrf.mxu0
      %v5097 = vpop.f32.mrf.mxu0
      %v5098 = vadd.f32 0.0, %v5097
      %v5099 = vpop.f32.mrf.mxu0
      %5100 = vmatprep.mubr.bf16.mxu0 0
      %5101 = vmatmul.mubr.bf16.gmra.mxu0 %v4977
      %v5102 = vpop.f32.mrf.mxu0
      %v5103 = vadd.f32 0.0, %v5102
      %v5104 = vpop.f32.mrf.mxu0
      %v5105 = vpop.f32.mrf.mxu0
      %v5106 = vadd.f32 0.0, %v5105
      %v5107 = vpop.f32.mrf.mxu0
      %5108 = vmatprep.mubr.bf16.mxu0 0
      %5109 = vmatmul.mubr.bf16.gmra.mxu0 %v4980
      %v5110 = vpop.f32.mrf.mxu0
      %v5111 = vadd.f32 0.0, %v5110
      %v5112 = vpop.f32.mrf.mxu0
      %v5113 = vpop.f32.mrf.mxu0
      %v5114 = vadd.f32 0.0, %v5113
      %v5115 = vpop.f32.mrf.mxu0
      %5116 = vmatprep.mubr.bf16.mxu0 0
      %5117 = vmatmul.mubr.bf16.gmra.mxu0 %v4983
      %v5118 = vpop.f32.mrf.mxu0
      %v5119 = vadd.f32 0.0, %v5118
      %v5120 = vpop.f32.mrf.mxu0
      %v5121 = vpop.f32.mrf.mxu0
      %v5122 = vadd.f32 0.0, %v5121
      %v5123 = vpop.f32.mrf.mxu0
      %5124 = vmatprep.mubr.bf16.mxu0 0
      %5125 = vmatmul.mubr.bf16.gmra.mxu0 %v4986
      %v5126 = vpop.f32.mrf.mxu0
      %v5127 = vadd.f32 0.0, %v5126
      %v5128 = vpop.f32.mrf.mxu0
      %v5129 = vpop.f32.mrf.mxu0
      %v5130 = vadd.f32 0.0, %v5129
      %v5131 = vpop.f32.mrf.mxu0
      %5132 = vmatprep.mubr.bf16.mxu0 0
      %5133 = vmatmul.mubr.bf16.gmra.mxu0 %v4989
      %v5134 = vpop.f32.mrf.mxu0
      %v5135 = vadd.f32 0.0, %v5134
      %v5136 = vpop.f32.mrf.mxu0
      %v5137 = vpop.f32.mrf.mxu0
      %v5138 = vadd.f32 0.0, %v5137
      %v5139 = vpop.f32.mrf.mxu0
      %5140 = vmatprep.mubr.bf16.mxu0 0
      %5141 = vmatmul.mubr.bf16.gmra.mxu0 %v4992
      %v5142 = vpop.f32.mrf.mxu0
      %v5143 = vadd.f32 0.0, %v5142
      %v5144 = vpop.f32.mrf.mxu0
      %v5145 = vpop.f32.mrf.mxu0
      %v5146 = vadd.f32 0.0, %v5145
      %v5147 = vpop.f32.mrf.mxu0
      %5148 = vmatprep.mubr.bf16.mxu0 0
      %5149 = vmatmul.mubr.bf16.gmra.mxu0 %v4995
      %v5150 = vpop.f32.mrf.mxu0
      %v5151 = vadd.f32 0.0, %v5150
      %v5152 = vpop.f32.mrf.mxu0
      %v5153 = vpop.f32.mrf.mxu0
      %v5154 = vadd.f32 0.0, %v5153
      %v5155 = vpop.f32.mrf.mxu0
      %5156 = vmatprep.mubr.bf16.mxu0 0
      %5157 = vmatmul.mubr.bf16.gmra.mxu0 %v4998
      %v5158 = vpop.f32.mrf.mxu0
      %v5159 = vadd.f32 0.0, %v5158
      %v5160 = vpop.f32.mrf.mxu0
      %v5161 = vpop.f32.mrf.mxu0
      %v5162 = vadd.f32 0.0, %v5161
      %v5163 = vpop.f32.mrf.mxu0
      %5164 = vmatprep.mubr.bf16.mxu0 0
      %5165 = vmatmul.mubr.bf16.gmra.mxu0 %v5001
      %v5166 = vpop.f32.mrf.mxu0
      %v5167 = vadd.f32 0.0, %v5166
      %v5168 = vpop.f32.mrf.mxu0
      %v5169 = vpop.f32.mrf.mxu0
      %v5170 = vadd.f32 0.0, %v5169
      %v5171 = vpop.f32.mrf.mxu0
      %5172 = vmatprep.mubr.bf16.mxu0 0
      %5173 = vmatmul.mubr.bf16.gmra.mxu0 %v5004
      %v5174 = vpop.f32.mrf.mxu0
      %v5175 = vadd.f32 0.0, %v5174
      %v5176 = vpop.f32.mrf.mxu0
      %v5177 = vpop.f32.mrf.mxu0
      %v5178 = vadd.f32 0.0, %v5177
      %v5179 = vpop.f32.mrf.mxu0
      %5180 = vmatprep.mubr.bf16.mxu0 0
      %5181 = vmatmul.mubr.bf16.gmra.mxu0 %v5007
      %v5182 = vpop.f32.mrf.mxu0
      %v5183 = vadd.f32 0.0, %v5182
      %v5184 = vpop.f32.mrf.mxu0
      %v5185 = vpop.f32.mrf.mxu0
      %v5186 = vadd.f32 0.0, %v5185
      %v5187 = vpop.f32.mrf.mxu0
      %5188 = vdwg.mxu0
      %v5189 = vadd.f32 %v4750, %v5047
      %v5190 = vadd.f32 %v4751, %v5050
      %v5191 = vadd.f32 %v4752, %v5055
      %v5192 = vadd.f32 %v4753, %v5058
      %v5193 = vadd.f32 %v4754, %v5063
      %v5194 = vadd.f32 %v4755, %v5066
      %v5195 = vadd.f32 %v4756, %v5071
      %v5196 = vadd.f32 %v4757, %v5074
      %v5197 = vadd.f32 %v4758, %v5079
      %v5198 = vadd.f32 %v4759, %v5082
      %v5199 = vadd.f32 %v4760, %v5087
      %v5200 = vadd.f32 %v4761, %v5090
      %v5201 = vadd.f32 %v4762, %v5095
      %v5202 = vadd.f32 %v4763, %v5098
      %v5203 = vadd.f32 %v4764, %v5103
      %v5204 = vadd.f32 %v4765, %v5106
      %v5205 = vadd.f32 %v4766, %v5111
      %v5206 = vadd.f32 %v4767, %v5114
      %v5207 = vadd.f32 %v4768, %v5119
      %v5208 = vadd.f32 %v4769, %v5122
      %v5209 = vadd.f32 %v4770, %v5127
      %v5210 = vadd.f32 %v4771, %v5130
      %v5211 = vadd.f32 %v4772, %v5135
      %v5212 = vadd.f32 %v4773, %v5138
      %v5213 = vadd.f32 %v4774, %v5143
      %v5214 = vadd.f32 %v4775, %v5146
      %v5215 = vadd.f32 %v4776, %v5151
      %v5216 = vadd.f32 %v4777, %v5154
      %v5217 = vadd.f32 %v4778, %v5159
      %v5218 = vadd.f32 %v4779, %v5162
      %v5219 = vadd.f32 %v4780, %v5167
      %v5220 = vadd.f32 %v4781, %v5170
      %v5221 = vadd.f32 %v4782, %v5175
      %v5222 = vadd.f32 %v4783, %v5178
      %v5223 = vadd.f32 %v4784, %v5183
      %v5224 = vadd.f32 %v4785, %v5186
      %v5225 = vld [vmem:[#allocation2 + $0xa0] sm:$0x7]
      %s5226 = scalar_lea.vmem %s1, 14
      %v5227 = vld [vmem:[%s5226] sm:$0x3]
      %v5229 = vunpack.c.l.b16 %v5225
      %v5230 = vpack.c.b16 %v5229, %v5229
      %vm5231 = vsmask.f32 5376
      %v5233 = vshrl.u32 %v4899, 16
      %v5235 = vrot.slane %v5233, 2
      %v5236 = vshll.u32 %v4899, 16
      %v5238 = vrot.slane %v5236, 3
      %v5239 = vor.u32 %v5235, %v5238
      %v5241 = vshrl.u32 %v4900, 16
      %v5243 = vrot.slane %v5241, 2
      %v5244 = vshll.u32 %v4900, 16
      %v5246 = vrot.slane %v5244, 3
      %v5247 = vor.u32 %v5243, %v5246
      %v5248 = vsel %vm5231, %v5239, %v5247
      %v5250 = vshrl.u32 %v4901, 16
      %v5252 = vrot.slane %v5250, 2
      %v5253 = vshll.u32 %v4901, 16
      %v5255 = vrot.slane %v5253, 3
      %v5256 = vor.u32 %v5252, %v5255
      %v5257 = vsel %vm5231, %v5247, %v5256
      %v5259 = vshrl.u32 %v4902, 16
      %v5261 = vrot.slane %v5259, 2
      %v5262 = vshll.u32 %v4902, 16
      %v5264 = vrot.slane %v5262, 3
      %v5265 = vor.u32 %v5261, %v5264
      %v5266 = vsel %vm5231, %v5256, %v5265
      %v5268 = vshrl.u32 %v4903, 16
      %v5270 = vrot.slane %v5268, 2
      %v5271 = vshll.u32 %v4903, 16
      %v5273 = vrot.slane %v5271, 3
      %v5274 = vor.u32 %v5270, %v5273
      %v5275 = vsel %vm5231, %v5265, %v5274
      %v5277 = vshrl.u32 %v4904, 16
      %v5279 = vrot.slane %v5277, 2
      %v5280 = vshll.u32 %v4904, 16
      %v5282 = vrot.slane %v5280, 3
      %v5283 = vor.u32 %v5279, %v5282
      %v5284 = vsel %vm5231, %v5274, %v5283
      %v5286 = vshrl.u32 %v4905, 16
      %v5288 = vrot.slane %v5286, 2
      %v5289 = vshll.u32 %v4905, 16
      %v5291 = vrot.slane %v5289, 3
      %v5292 = vor.u32 %v5288, %v5291
      %v5293 = vsel %vm5231, %v5283, %v5292
      %v5295 = vshrl.u32 %v4906, 16
      %v5297 = vrot.slane %v5295, 2
      %v5298 = vshll.u32 %v4906, 16
      %v5300 = vrot.slane %v5298, 3
      %v5301 = vor.u32 %v5297, %v5300
      %v5302 = vsel %vm5231, %v5292, %v5301
      %v5304 = vshrl.u32 %v4907, 16
      %v5306 = vrot.slane %v5304, 2
      %v5307 = vshll.u32 %v4907, 16
      %v5309 = vrot.slane %v5307, 3
      %v5310 = vor.u32 %v5306, %v5309
      %v5311 = vsel %vm5231, %v5301, %v5310
      %v5313 = vshrl.u32 %v4908, 16
      %v5315 = vrot.slane %v5313, 2
      %v5316 = vshll.u32 %v4908, 16
      %v5318 = vrot.slane %v5316, 3
      %v5319 = vor.u32 %v5315, %v5318
      %v5320 = vsel %vm5231, %v5310, %v5319
      %v5322 = vshrl.u32 %v4909, 16
      %v5324 = vrot.slane %v5322, 2
      %v5325 = vshll.u32 %v4909, 16
      %v5327 = vrot.slane %v5325, 3
      %v5328 = vor.u32 %v5324, %v5327
      %v5329 = vsel %vm5231, %v5319, %v5328
      %v5331 = vshrl.u32 %v4910, 16
      %v5333 = vrot.slane %v5331, 2
      %v5334 = vshll.u32 %v4910, 16
      %v5336 = vrot.slane %v5334, 3
      %v5337 = vor.u32 %v5333, %v5336
      %v5338 = vsel %vm5231, %v5328, %v5337
      %v5340 = vshrl.u32 %v4911, 16
      %v5342 = vrot.slane %v5340, 2
      %v5343 = vshll.u32 %v4911, 16
      %v5345 = vrot.slane %v5343, 3
      %v5346 = vor.u32 %v5342, %v5345
      %v5347 = vsel %vm5231, %v5337, %v5346
      %v5349 = vshrl.u32 %v4912, 16
      %v5351 = vrot.slane %v5349, 2
      %v5352 = vshll.u32 %v4912, 16
      %v5354 = vrot.slane %v5352, 3
      %v5355 = vor.u32 %v5351, %v5354
      %v5356 = vsel %vm5231, %v5346, %v5355
      %v5358 = vshrl.u32 %v4913, 16
      %v5360 = vrot.slane %v5358, 2
      %v5361 = vshll.u32 %v4913, 16
      %v5363 = vrot.slane %v5361, 3
      %v5364 = vor.u32 %v5360, %v5363
      %v5365 = vsel %vm5231, %v5355, %v5364
      %v5367 = vshrl.u32 %v4914, 16
      %v5369 = vrot.slane %v5367, 2
      %v5370 = vshll.u32 %v4914, 16
      %v5372 = vrot.slane %v5370, 3
      %v5373 = vor.u32 %v5369, %v5372
      %v5374 = vsel %vm5231, %v5364, %v5373
      %v5376 = vshrl.u32 %v4915, 16
      %v5378 = vrot.slane %v5376, 2
      %v5379 = vshll.u32 %v4915, 16
      %v5381 = vrot.slane %v5379, 3
      %v5382 = vor.u32 %v5378, %v5381
      %v5383 = vsel %vm5231, %v5373, %v5382
      %v5385 = vshrl.u32 %v4916, 16
      %v5387 = vrot.slane %v5385, 2
      %v5388 = vshll.u32 %v4916, 16
      %v5390 = vrot.slane %v5388, 3
      %v5391 = vor.u32 %v5387, %v5390
      %v5392 = vsel %vm5231, %v5382, %v5391
      %v5394 = vshrl.u32 %v5230, 16
      %v5396 = vrot.slane %v5394, 2
      %v5397 = vshll.u32 %v5230, 16
      %v5399 = vrot.slane %v5397, 3
      %v5400 = vor.u32 %v5396, %v5399
      %v5401 = vsel %vm5231, %v5391, %v5400
      %v5403 = vsel %vm2820, %v5248, 0
      %v5406 = vsel %vm2820, %v5257, 0
      %v5409 = vsel %vm2820, %v5266, 0
      %v5412 = vsel %vm2820, %v5275, 0
      %v5415 = vsel %vm2820, %v5284, 0
      %v5418 = vsel %vm2820, %v5293, 0
      %v5421 = vsel %vm2820, %v5302, 0
      %v5424 = vsel %vm2820, %v5311, 0
      %v5427 = vsel %vm2820, %v5320, 0
      %v5430 = vsel %vm2820, %v5329, 0
      %v5433 = vsel %vm2820, %v5338, 0
      %v5436 = vsel %vm2820, %v5347, 0
      %v5439 = vsel %vm2820, %v5356, 0
      %v5442 = vsel %vm2820, %v5365, 0
      %v5445 = vsel %vm2820, %v5374, 0
      %v5448 = vsel %vm2820, %v5383, 0
      %v5451 = vsel %vm2820, %v5392, 0
      %v5454 = vsel %vm2820, %v5401, 0
      %v5457 = vsel %vm2875, %v5227, 0
      %5459 = vmatprep.subr.bf16.mxu0 0
      %5460 = vmatpush1.bf16.msra.mxu0 0
      %5461 = vmatprep.subr.bf16.mxu0 0
      %5462 = vmatpush1.bf16.msra.mxu0 0
      %5463 = vmatprep.subr.bf16.mxu0 0
      %5464 = vmatpush1.bf16.msra.mxu0 0
      %5465 = vmatprep.subr.bf16.mxu0 0
      %5466 = vmatpush1.bf16.msra.mxu0 0
      %5467 = vmatprep.subr.bf16.mxu0 0
      %5468 = vmatpush1.bf16.msra.mxu0 0
      %5469 = vmatprep.subr.bf16.mxu0 0
      %5470 = vmatpush1.bf16.msra.mxu0 0
      %5471 = vmatprep.subr.bf16.mxu0 0
      %5472 = vmatpush1.bf16.msra.mxu0 0
      %5473 = vmatprep.subr.bf16.mxu0 0
      %5474 = vmatpush1.bf16.msra.mxu0 %v5457
      %5475 = vmatprep.subr.bf16.mxu0 0
      %5476 = vmatpush2.bf16.msra.mxu0 0
      %5477 = vmatprep.subr.bf16.mxu0 0
      %5478 = vmatpush2.bf16.msra.mxu0 0
      %5479 = vmatprep.subr.bf16.mxu0 0
      %5480 = vmatpush2.bf16.msra.mxu0 0
      %5481 = vmatprep.subr.bf16.mxu0 0
      %5482 = vmatpush2.bf16.msra.mxu0 0
      %5483 = vmatprep.subr.bf16.mxu0 0
      %5484 = vmatpush2.bf16.msra.mxu0 0
      %5485 = vmatprep.subr.bf16.mxu0 0
      %5486 = vmatpush2.bf16.msra.mxu0 0
      %5487 = vmatprep.subr.bf16.mxu0 0
      %5488 = vmatpush2.bf16.msra.mxu0 0
      %5489 = vmatprep.subr.bf16.mxu0 0
      %5490 = vmatpush2.bf16.msra.mxu0 0
      %5491 = vmatprep.mubr.bf16.mxu0 0
      %5492 = vmatmul.mubr.bf16.gmra.mxu0 %v5403
      %v5493 = vpop.f32.mrf.mxu0
      %v5494 = vadd.f32 0.0, %v5493
      %v5495 = vpop.f32.mrf.mxu0
      %v5496 = vpop.f32.mrf.mxu0
      %v5497 = vadd.f32 0.0, %v5496
      %v5498 = vpop.f32.mrf.mxu0
      %5499 = vmatprep.mubr.bf16.mxu0 0
      %5500 = vmatmul.mubr.bf16.gmra.mxu0 %v5406
      %v5501 = vpop.f32.mrf.mxu0
      %v5502 = vadd.f32 0.0, %v5501
      %v5503 = vpop.f32.mrf.mxu0
      %v5504 = vpop.f32.mrf.mxu0
      %v5505 = vadd.f32 0.0, %v5504
      %v5506 = vpop.f32.mrf.mxu0
      %5507 = vmatprep.mubr.bf16.mxu0 0
      %5508 = vmatmul.mubr.bf16.gmra.mxu0 %v5409
      %v5509 = vpop.f32.mrf.mxu0
      %v5510 = vadd.f32 0.0, %v5509
      %v5511 = vpop.f32.mrf.mxu0
      %v5512 = vpop.f32.mrf.mxu0
      %v5513 = vadd.f32 0.0, %v5512
      %v5514 = vpop.f32.mrf.mxu0
      %5515 = vmatprep.mubr.bf16.mxu0 0
      %5516 = vmatmul.mubr.bf16.gmra.mxu0 %v5412
      %v5517 = vpop.f32.mrf.mxu0
      %v5518 = vadd.f32 0.0, %v5517
      %v5519 = vpop.f32.mrf.mxu0
      %v5520 = vpop.f32.mrf.mxu0
      %v5521 = vadd.f32 0.0, %v5520
      %v5522 = vpop.f32.mrf.mxu0
      %5523 = vmatprep.mubr.bf16.mxu0 0
      %5524 = vmatmul.mubr.bf16.gmra.mxu0 %v5415
      %v5525 = vpop.f32.mrf.mxu0
      %v5526 = vadd.f32 0.0, %v5525
      %v5527 = vpop.f32.mrf.mxu0
      %v5528 = vpop.f32.mrf.mxu0
      %v5529 = vadd.f32 0.0, %v5528
      %v5530 = vpop.f32.mrf.mxu0
      %5531 = vmatprep.mubr.bf16.mxu0 0
      %5532 = vmatmul.mubr.bf16.gmra.mxu0 %v5418
      %v5533 = vpop.f32.mrf.mxu0
      %v5534 = vadd.f32 0.0, %v5533
      %v5535 = vpop.f32.mrf.mxu0
      %v5536 = vpop.f32.mrf.mxu0
      %v5537 = vadd.f32 0.0, %v5536
      %v5538 = vpop.f32.mrf.mxu0
      %5539 = vmatprep.mubr.bf16.mxu0 0
      %5540 = vmatmul.mubr.bf16.gmra.mxu0 %v5421
      %v5541 = vpop.f32.mrf.mxu0
      %v5542 = vadd.f32 0.0, %v5541
      %v5543 = vpop.f32.mrf.mxu0
      %v5544 = vpop.f32.mrf.mxu0
      %v5545 = vadd.f32 0.0, %v5544
      %v5546 = vpop.f32.mrf.mxu0
      %5547 = vmatprep.mubr.bf16.mxu0 0
      %5548 = vmatmul.mubr.bf16.gmra.mxu0 %v5424
      %v5549 = vpop.f32.mrf.mxu0
      %v5550 = vadd.f32 0.0, %v5549
      %v5551 = vpop.f32.mrf.mxu0
      %v5552 = vpop.f32.mrf.mxu0
      %v5553 = vadd.f32 0.0, %v5552
      %v5554 = vpop.f32.mrf.mxu0
      %5555 = vmatprep.mubr.bf16.mxu0 0
      %5556 = vmatmul.mubr.bf16.gmra.mxu0 %v5427
      %v5557 = vpop.f32.mrf.mxu0
      %v5558 = vadd.f32 0.0, %v5557
      %v5559 = vpop.f32.mrf.mxu0
      %v5560 = vpop.f32.mrf.mxu0
      %v5561 = vadd.f32 0.0, %v5560
      %v5562 = vpop.f32.mrf.mxu0
      %5563 = vmatprep.mubr.bf16.mxu0 0
      %5564 = vmatmul.mubr.bf16.gmra.mxu0 %v5430
      %v5565 = vpop.f32.mrf.mxu0
      %v5566 = vadd.f32 0.0, %v5565
      %v5567 = vpop.f32.mrf.mxu0
      %v5568 = vpop.f32.mrf.mxu0
      %v5569 = vadd.f32 0.0, %v5568
      %v5570 = vpop.f32.mrf.mxu0
      %5571 = vmatprep.mubr.bf16.mxu0 0
      %5572 = vmatmul.mubr.bf16.gmra.mxu0 %v5433
      %v5573 = vpop.f32.mrf.mxu0
      %v5574 = vadd.f32 0.0, %v5573
      %v5575 = vpop.f32.mrf.mxu0
      %v5576 = vpop.f32.mrf.mxu0
      %v5577 = vadd.f32 0.0, %v5576
      %v5578 = vpop.f32.mrf.mxu0
      %5579 = vmatprep.mubr.bf16.mxu0 0
      %5580 = vmatmul.mubr.bf16.gmra.mxu0 %v5436
      %v5581 = vpop.f32.mrf.mxu0
      %v5582 = vadd.f32 0.0, %v5581
      %v5583 = vpop.f32.mrf.mxu0
      %v5584 = vpop.f32.mrf.mxu0
      %v5585 = vadd.f32 0.0, %v5584
      %v5586 = vpop.f32.mrf.mxu0
      %5587 = vmatprep.mubr.bf16.mxu0 0
      %5588 = vmatmul.mubr.bf16.gmra.mxu0 %v5439
      %v5589 = vpop.f32.mrf.mxu0
      %v5590 = vadd.f32 0.0, %v5589
      %v5591 = vpop.f32.mrf.mxu0
      %v5592 = vpop.f32.mrf.mxu0
      %v5593 = vadd.f32 0.0, %v5592
      %v5594 = vpop.f32.mrf.mxu0
      %5595 = vmatprep.mubr.bf16.mxu0 0
      %5596 = vmatmul.mubr.bf16.gmra.mxu0 %v5442
      %v5597 = vpop.f32.mrf.mxu0
      %v5598 = vadd.f32 0.0, %v5597
      %v5599 = vpop.f32.mrf.mxu0
      %v5600 = vpop.f32.mrf.mxu0
      %v5601 = vadd.f32 0.0, %v5600
      %v5602 = vpop.f32.mrf.mxu0
      %5603 = vmatprep.mubr.bf16.mxu0 0
      %5604 = vmatmul.mubr.bf16.gmra.mxu0 %v5445
      %v5605 = vpop.f32.mrf.mxu0
      %v5606 = vadd.f32 0.0, %v5605
      %v5607 = vpop.f32.mrf.mxu0
      %v5608 = vpop.f32.mrf.mxu0
      %v5609 = vadd.f32 0.0, %v5608
      %v5610 = vpop.f32.mrf.mxu0
      %5611 = vmatprep.mubr.bf16.mxu0 0
      %5612 = vmatmul.mubr.bf16.gmra.mxu0 %v5448
      %v5613 = vpop.f32.mrf.mxu0
      %v5614 = vadd.f32 0.0, %v5613
      %v5615 = vpop.f32.mrf.mxu0
      %v5616 = vpop.f32.mrf.mxu0
      %v5617 = vadd.f32 0.0, %v5616
      %v5618 = vpop.f32.mrf.mxu0
      %5619 = vmatprep.mubr.bf16.mxu0 0
      %5620 = vmatmul.mubr.bf16.gmra.mxu0 %v5451
      %v5621 = vpop.f32.mrf.mxu0
      %v5622 = vadd.f32 0.0, %v5621
      %v5623 = vpop.f32.mrf.mxu0
      %v5624 = vpop.f32.mrf.mxu0
      %v5625 = vadd.f32 0.0, %v5624
      %v5626 = vpop.f32.mrf.mxu0
      %5627 = vmatprep.mubr.bf16.mxu0 0
      %5628 = vmatmul.mubr.bf16.gmra.mxu0 %v5454
      %v5629 = vpop.f32.mrf.mxu0
      %v5630 = vadd.f32 0.0, %v5629
      %v5631 = vpop.f32.mrf.mxu0
      %v5632 = vpop.f32.mrf.mxu0
      %v5633 = vadd.f32 0.0, %v5632
      %v5634 = vpop.f32.mrf.mxu0
      %5635 = vdwg.mxu0
      %v5636 = vadd.f32 %v5189, %v5494
      %v5637 = vadd.f32 %v5190, %v5497
      %v5638 = vadd.f32 %v5191, %v5502
      %v5639 = vadd.f32 %v5192, %v5505
      %v5640 = vadd.f32 %v5193, %v5510
      %v5641 = vadd.f32 %v5194, %v5513
      %v5642 = vadd.f32 %v5195, %v5518
      %v5643 = vadd.f32 %v5196, %v5521
      %v5644 = vadd.f32 %v5197, %v5526
      %v5645 = vadd.f32 %v5198, %v5529
      %v5646 = vadd.f32 %v5199, %v5534
      %v5647 = vadd.f32 %v5200, %v5537
      %v5648 = vadd.f32 %v5201, %v5542
      %v5649 = vadd.f32 %v5202, %v5545
      %v5650 = vadd.f32 %v5203, %v5550
      %v5651 = vadd.f32 %v5204, %v5553
      %v5652 = vadd.f32 %v5205, %v5558
      %v5653 = vadd.f32 %v5206, %v5561
      %v5654 = vadd.f32 %v5207, %v5566
      %v5655 = vadd.f32 %v5208, %v5569
      %v5656 = vadd.f32 %v5209, %v5574
      %v5657 = vadd.f32 %v5210, %v5577
      %v5658 = vadd.f32 %v5211, %v5582
      %v5659 = vadd.f32 %v5212, %v5585
      %v5660 = vadd.f32 %v5213, %v5590
      %v5661 = vadd.f32 %v5214, %v5593
      %v5662 = vadd.f32 %v5215, %v5598
      %v5663 = vadd.f32 %v5216, %v5601
      %v5664 = vadd.f32 %v5217, %v5606
      %v5665 = vadd.f32 %v5218, %v5609
      %v5666 = vadd.f32 %v5219, %v5614
      %v5667 = vadd.f32 %v5220, %v5617
      %v5668 = vadd.f32 %v5221, %v5622
      %v5669 = vadd.f32 %v5222, %v5625
      %v5670 = vadd.f32 %v5223, %v5630
      %v5671 = vadd.f32 %v5224, %v5633
      %v5672 = vld [vmem:[#allocation2 + $0x10] sm:$0x8]
      %s5673 = scalar_lea.vmem %s1, 16
      %v5674 = vld [vmem:[%s5673] sm:$0x3]
      %v5676 = vunpack.c.l.b16 %v5672
      %v5677 = vpack.c.b16 %v4863, %v5676
      %vm5678 = vcmask 1044480
      %v5679 = vrot.slane %v5677, 3
      %v5680 = vrot.slane %v4900, 3
      %v5681 = vsel %vm5678, %v5679, %v5680
      %v5682 = vrot.slane %v4901, 3
      %v5683 = vsel %vm5678, %v5680, %v5682
      %v5684 = vrot.slane %v4902, 3
      %v5685 = vsel %vm5678, %v5682, %v5684
      %v5686 = vrot.slane %v4903, 3
      %v5687 = vsel %vm5678, %v5684, %v5686
      %v5688 = vrot.slane %v4904, 3
      %v5689 = vsel %vm5678, %v5686, %v5688
      %v5690 = vrot.slane %v4905, 3
      %v5691 = vsel %vm5678, %v5688, %v5690
      %v5692 = vrot.slane %v4906, 3
      %v5693 = vsel %vm5678, %v5690, %v5692
      %v5694 = vrot.slane %v4907, 3
      %v5695 = vsel %vm5678, %v5692, %v5694
      %v5696 = vrot.slane %v4908, 3
      %v5697 = vsel %vm5678, %v5694, %v5696
      %v5698 = vrot.slane %v4909, 3
      %v5699 = vsel %vm5678, %v5696, %v5698
      %v5700 = vrot.slane %v4910, 3
      %v5701 = vsel %vm5678, %v5698, %v5700
      %v5702 = vrot.slane %v4911, 3
      %v5703 = vsel %vm5678, %v5700, %v5702
      %v5704 = vrot.slane %v4912, 3
      %v5705 = vsel %vm5678, %v5702, %v5704
      %v5706 = vrot.slane %v4913, 3
      %v5707 = vsel %vm5678, %v5704, %v5706
      %v5708 = vrot.slane %v4914, 3
      %v5709 = vsel %vm5678, %v5706, %v5708
      %v5710 = vrot.slane %v4915, 3
      %v5711 = vsel %vm5678, %v5708, %v5710
      %v5712 = vrot.slane %v4916, 3
      %v5713 = vsel %vm5678, %v5710, %v5712
      %v5714 = vrot.slane %v5230, 3
      %v5715 = vsel %vm5678, %v5712, %v5714
      %v5717 = vsel %vm2820, %v5681, 0
      %v5720 = vsel %vm2820, %v5683, 0
      %v5723 = vsel %vm2820, %v5685, 0
      %v5726 = vsel %vm2820, %v5687, 0
      %v5729 = vsel %vm2820, %v5689, 0
      %v5732 = vsel %vm2820, %v5691, 0
      %v5735 = vsel %vm2820, %v5693, 0
      %v5738 = vsel %vm2820, %v5695, 0
      %v5741 = vsel %vm2820, %v5697, 0
      %v5744 = vsel %vm2820, %v5699, 0
      %v5747 = vsel %vm2820, %v5701, 0
      %v5750 = vsel %vm2820, %v5703, 0
      %v5753 = vsel %vm2820, %v5705, 0
      %v5756 = vsel %vm2820, %v5707, 0
      %v5759 = vsel %vm2820, %v5709, 0
      %v5762 = vsel %vm2820, %v5711, 0
      %v5765 = vsel %vm2820, %v5713, 0
      %v5768 = vsel %vm2820, %v5715, 0
      %v5771 = vsel %vm2875, %v5674, 0
      %5773 = vmatprep.subr.bf16.mxu0 0
      %5774 = vmatpush1.bf16.msra.mxu0 0
      %5775 = vmatprep.subr.bf16.mxu0 0
      %5776 = vmatpush1.bf16.msra.mxu0 0
      %5777 = vmatprep.subr.bf16.mxu0 0
      %5778 = vmatpush1.bf16.msra.mxu0 0
      %5779 = vmatprep.subr.bf16.mxu0 0
      %5780 = vmatpush1.bf16.msra.mxu0 0
      %5781 = vmatprep.subr.bf16.mxu0 0
      %5782 = vmatpush1.bf16.msra.mxu0 0
      %5783 = vmatprep.subr.bf16.mxu0 0
      %5784 = vmatpush1.bf16.msra.mxu0 0
      %5785 = vmatprep.subr.bf16.mxu0 0
      %5786 = vmatpush1.bf16.msra.mxu0 0
      %5787 = vmatprep.subr.bf16.mxu0 0
      %5788 = vmatpush1.bf16.msra.mxu0 %v5771
      %5789 = vmatprep.subr.bf16.mxu0 0
      %5790 = vmatpush2.bf16.msra.mxu0 0
      %5791 = vmatprep.subr.bf16.mxu0 0
      %5792 = vmatpush2.bf16.msra.mxu0 0
      %5793 = vmatprep.subr.bf16.mxu0 0
      %5794 = vmatpush2.bf16.msra.mxu0 0
      %5795 = vmatprep.subr.bf16.mxu0 0
      %5796 = vmatpush2.bf16.msra.mxu0 0
      %5797 = vmatprep.subr.bf16.mxu0 0
      %5798 = vmatpush2.bf16.msra.mxu0 0
      %5799 = vmatprep.subr.bf16.mxu0 0
      %5800 = vmatpush2.bf16.msra.mxu0 0
      %5801 = vmatprep.subr.bf16.mxu0 0
      %5802 = vmatpush2.bf16.msra.mxu0 0
      %5803 = vmatprep.subr.bf16.mxu0 0
      %5804 = vmatpush2.bf16.msra.mxu0 0
      %5805 = vmatprep.mubr.bf16.mxu0 0
      %5806 = vmatmul.mubr.bf16.gmra.mxu0 %v5717
      %v5807 = vpop.f32.mrf.mxu0
      %v5808 = vadd.f32 0.0, %v5807
      %v5809 = vpop.f32.mrf.mxu0
      %v5810 = vpop.f32.mrf.mxu0
      %v5811 = vadd.f32 0.0, %v5810
      %v5812 = vpop.f32.mrf.mxu0
      %5813 = vmatprep.mubr.bf16.mxu0 0
      %5814 = vmatmul.mubr.bf16.gmra.mxu0 %v5720
      %v5815 = vpop.f32.mrf.mxu0
      %v5816 = vadd.f32 0.0, %v5815
      %v5817 = vpop.f32.mrf.mxu0
      %v5818 = vpop.f32.mrf.mxu0
      %v5819 = vadd.f32 0.0, %v5818
      %v5820 = vpop.f32.mrf.mxu0
      %5821 = vmatprep.mubr.bf16.mxu0 0
      %5822 = vmatmul.mubr.bf16.gmra.mxu0 %v5723
      %v5823 = vpop.f32.mrf.mxu0
      %v5824 = vadd.f32 0.0, %v5823
      %v5825 = vpop.f32.mrf.mxu0
      %v5826 = vpop.f32.mrf.mxu0
      %v5827 = vadd.f32 0.0, %v5826
      %v5828 = vpop.f32.mrf.mxu0
      %5829 = vmatprep.mubr.bf16.mxu0 0
      %5830 = vmatmul.mubr.bf16.gmra.mxu0 %v5726
      %v5831 = vpop.f32.mrf.mxu0
      %v5832 = vadd.f32 0.0, %v5831
      %v5833 = vpop.f32.mrf.mxu0
      %v5834 = vpop.f32.mrf.mxu0
      %v5835 = vadd.f32 0.0, %v5834
      %v5836 = vpop.f32.mrf.mxu0
      %5837 = vmatprep.mubr.bf16.mxu0 0
      %5838 = vmatmul.mubr.bf16.gmra.mxu0 %v5729
      %v5839 = vpop.f32.mrf.mxu0
      %v5840 = vadd.f32 0.0, %v5839
      %v5841 = vpop.f32.mrf.mxu0
      %v5842 = vpop.f32.mrf.mxu0
      %v5843 = vadd.f32 0.0, %v5842
      %v5844 = vpop.f32.mrf.mxu0
      %5845 = vmatprep.mubr.bf16.mxu0 0
      %5846 = vmatmul.mubr.bf16.gmra.mxu0 %v5732
      %v5847 = vpop.f32.mrf.mxu0
      %v5848 = vadd.f32 0.0, %v5847
      %v5849 = vpop.f32.mrf.mxu0
      %v5850 = vpop.f32.mrf.mxu0
      %v5851 = vadd.f32 0.0, %v5850
      %v5852 = vpop.f32.mrf.mxu0
      %5853 = vmatprep.mubr.bf16.mxu0 0
      %5854 = vmatmul.mubr.bf16.gmra.mxu0 %v5735
      %v5855 = vpop.f32.mrf.mxu0
      %v5856 = vadd.f32 0.0, %v5855
      %v5857 = vpop.f32.mrf.mxu0
      %v5858 = vpop.f32.mrf.mxu0
      %v5859 = vadd.f32 0.0, %v5858
      %v5860 = vpop.f32.mrf.mxu0
      %5861 = vmatprep.mubr.bf16.mxu0 0
      %5862 = vmatmul.mubr.bf16.gmra.mxu0 %v5738
      %v5863 = vpop.f32.mrf.mxu0
      %v5864 = vadd.f32 0.0, %v5863
      %v5865 = vpop.f32.mrf.mxu0
      %v5866 = vpop.f32.mrf.mxu0
      %v5867 = vadd.f32 0.0, %v5866
      %v5868 = vpop.f32.mrf.mxu0
      %5869 = vmatprep.mubr.bf16.mxu0 0
      %5870 = vmatmul.mubr.bf16.gmra.mxu0 %v5741
      %v5871 = vpop.f32.mrf.mxu0
      %v5872 = vadd.f32 0.0, %v5871
      %v5873 = vpop.f32.mrf.mxu0
      %v5874 = vpop.f32.mrf.mxu0
      %v5875 = vadd.f32 0.0, %v5874
      %v5876 = vpop.f32.mrf.mxu0
      %5877 = vmatprep.mubr.bf16.mxu0 0
      %5878 = vmatmul.mubr.bf16.gmra.mxu0 %v5744
      %v5879 = vpop.f32.mrf.mxu0
      %v5880 = vadd.f32 0.0, %v5879
      %v5881 = vpop.f32.mrf.mxu0
      %v5882 = vpop.f32.mrf.mxu0
      %v5883 = vadd.f32 0.0, %v5882
      %v5884 = vpop.f32.mrf.mxu0
      %5885 = vmatprep.mubr.bf16.mxu0 0
      %5886 = vmatmul.mubr.bf16.gmra.mxu0 %v5747
      %v5887 = vpop.f32.mrf.mxu0
      %v5888 = vadd.f32 0.0, %v5887
      %v5889 = vpop.f32.mrf.mxu0
      %v5890 = vpop.f32.mrf.mxu0
      %v5891 = vadd.f32 0.0, %v5890
      %v5892 = vpop.f32.mrf.mxu0
      %5893 = vmatprep.mubr.bf16.mxu0 0
      %5894 = vmatmul.mubr.bf16.gmra.mxu0 %v5750
      %v5895 = vpop.f32.mrf.mxu0
      %v5896 = vadd.f32 0.0, %v5895
      %v5897 = vpop.f32.mrf.mxu0
      %v5898 = vpop.f32.mrf.mxu0
      %v5899 = vadd.f32 0.0, %v5898
      %v5900 = vpop.f32.mrf.mxu0
      %5901 = vmatprep.mubr.bf16.mxu0 0
      %5902 = vmatmul.mubr.bf16.gmra.mxu0 %v5753
      %v5903 = vpop.f32.mrf.mxu0
      %v5904 = vadd.f32 0.0, %v5903
      %v5905 = vpop.f32.mrf.mxu0
      %v5906 = vpop.f32.mrf.mxu0
      %v5907 = vadd.f32 0.0, %v5906
      %v5908 = vpop.f32.mrf.mxu0
      %5909 = vmatprep.mubr.bf16.mxu0 0
      %5910 = vmatmul.mubr.bf16.gmra.mxu0 %v5756
      %v5911 = vpop.f32.mrf.mxu0
      %v5912 = vadd.f32 0.0, %v5911
      %v5913 = vpop.f32.mrf.mxu0
      %v5914 = vpop.f32.mrf.mxu0
      %v5915 = vadd.f32 0.0, %v5914
      %v5916 = vpop.f32.mrf.mxu0
      %5917 = vmatprep.mubr.bf16.mxu0 0
      %5918 = vmatmul.mubr.bf16.gmra.mxu0 %v5759
      %v5919 = vpop.f32.mrf.mxu0
      %v5920 = vadd.f32 0.0, %v5919
      %v5921 = vpop.f32.mrf.mxu0
      %v5922 = vpop.f32.mrf.mxu0
      %v5923 = vadd.f32 0.0, %v5922
      %v5924 = vpop.f32.mrf.mxu0
      %5925 = vmatprep.mubr.bf16.mxu0 0
      %5926 = vmatmul.mubr.bf16.gmra.mxu0 %v5762
      %v5927 = vpop.f32.mrf.mxu0
      %v5928 = vadd.f32 0.0, %v5927
      %v5929 = vpop.f32.mrf.mxu0
      %v5930 = vpop.f32.mrf.mxu0
      %v5931 = vadd.f32 0.0, %v5930
      %v5932 = vpop.f32.mrf.mxu0
      %5933 = vmatprep.mubr.bf16.mxu0 0
      %5934 = vmatmul.mubr.bf16.gmra.mxu0 %v5765
      %v5935 = vpop.f32.mrf.mxu0
      %v5936 = vadd.f32 0.0, %v5935
      %v5937 = vpop.f32.mrf.mxu0
      %v5938 = vpop.f32.mrf.mxu0
      %v5939 = vadd.f32 0.0, %v5938
      %v5940 = vpop.f32.mrf.mxu0
      %5941 = vmatprep.mubr.bf16.mxu0 0
      %5942 = vmatmul.mubr.bf16.gmra.mxu0 %v5768
      %v5943 = vpop.f32.mrf.mxu0
      %v5944 = vadd.f32 0.0, %v5943
      %v5945 = vpop.f32.mrf.mxu0
      %v5946 = vpop.f32.mrf.mxu0
      %v5947 = vadd.f32 0.0, %v5946
      %v5948 = vpop.f32.mrf.mxu0
      %5949 = vdwg.mxu0
      %v5950 = vadd.f32 %v5636, %v5808
      %v5951 = vadd.f32 %v5637, %v5811
      %v5952 = vadd.f32 %v5638, %v5816
      %v5953 = vadd.f32 %v5639, %v5819
      %v5954 = vadd.f32 %v5640, %v5824
      %v5955 = vadd.f32 %v5641, %v5827
      %v5956 = vadd.f32 %v5642, %v5832
      %v5957 = vadd.f32 %v5643, %v5835
      %v5958 = vadd.f32 %v5644, %v5840
      %v5959 = vadd.f32 %v5645, %v5843
      %v5960 = vadd.f32 %v5646, %v5848
      %v5961 = vadd.f32 %v5647, %v5851
      %v5962 = vadd.f32 %v5648, %v5856
      %v5963 = vadd.f32 %v5649, %v5859
      %v5964 = vadd.f32 %v5650, %v5864
      %v5965 = vadd.f32 %v5651, %v5867
      %v5966 = vadd.f32 %v5652, %v5872
      %v5967 = vadd.f32 %v5653, %v5875
      %v5968 = vadd.f32 %v5654, %v5880
      %v5969 = vadd.f32 %v5655, %v5883
      %v5970 = vadd.f32 %v5656, %v5888
      %v5971 = vadd.f32 %v5657, %v5891
      %v5972 = vadd.f32 %v5658, %v5896
      %v5973 = vadd.f32 %v5659, %v5899
      %v5974 = vadd.f32 %v5660, %v5904
      %v5975 = vadd.f32 %v5661, %v5907
      %v5976 = vadd.f32 %v5662, %v5912
      %v5977 = vadd.f32 %v5663, %v5915
      %v5978 = vadd.f32 %v5664, %v5920
      %v5979 = vadd.f32 %v5665, %v5923
      %v5980 = vadd.f32 %v5666, %v5928
      %v5981 = vadd.f32 %v5667, %v5931
      %v5982 = vadd.f32 %v5668, %v5936
      %v5983 = vadd.f32 %v5669, %v5939
      %v5984 = vadd.f32 %v5670, %v5944
      %v5985 = vadd.f32 %v5671, %v5947
      %v5986 = vld [vmem:[%s2] sm:$0x1]
      %v5988 = vlaneseq
      %v5989 = vshrl.u32 %v5988, 7
      %v5990 = vsub.s32 0, %v5989
      %v5991 = vrot.slane %v5986, %v5990
      %v5993 = vadd.f32 %v5950, %v5991
      %v5994 = vadd.f32 %v5951, %v5991
      %v5995 = vadd.f32 %v5952, %v5991
      %v5996 = vadd.f32 %v5953, %v5991
      %v5997 = vadd.f32 %v5954, %v5991
      %v5998 = vadd.f32 %v5955, %v5991
      %v5999 = vadd.f32 %v5956, %v5991
      %v6000 = vadd.f32 %v5957, %v5991
      %v6001 = vadd.f32 %v5958, %v5991
      %v6002 = vadd.f32 %v5959, %v5991
      %v6003 = vadd.f32 %v5960, %v5991
      %v6004 = vadd.f32 %v5961, %v5991
      %v6005 = vadd.f32 %v5962, %v5991
      %v6006 = vadd.f32 %v5963, %v5991
      %v6007 = vadd.f32 %v5964, %v5991
      %v6008 = vadd.f32 %v5965, %v5991
      %v6009 = vadd.f32 %v5966, %v5991
      %v6010 = vadd.f32 %v5967, %v5991
      %v6011 = vadd.f32 %v5968, %v5991
      %v6012 = vadd.f32 %v5969, %v5991
      %v6013 = vadd.f32 %v5970, %v5991
      %v6014 = vadd.f32 %v5971, %v5991
      %v6015 = vadd.f32 %v5972, %v5991
      %v6016 = vadd.f32 %v5973, %v5991
      %v6017 = vadd.f32 %v5974, %v5991
      %v6018 = vadd.f32 %v5975, %v5991
      %v6019 = vadd.f32 %v5976, %v5991
      %v6020 = vadd.f32 %v5977, %v5991
      %v6021 = vadd.f32 %v5978, %v5991
      %v6022 = vadd.f32 %v5979, %v5991
      %v6023 = vadd.f32 %v5980, %v5991
      %v6024 = vadd.f32 %v5981, %v5991
      %v6025 = vadd.f32 %v5982, %v5991
      %v6026 = vadd.f32 %v5983, %v5991
      %v6027 = vadd.f32 %v5984, %v5991
      %v6028 = vadd.f32 %v5985, %v5991
      %v6029 = vcombine.low %v248, %v255
      %v6030 = vcombine.low %v262, %v269
      %v6032 = vunpack.c.l.s4 1983009808
      %v6033 = vunpack.c.0.s8 %v6032
      %v6034 = vlaneseq
      %v6035 = vshrl.u32 %v6034, 7
      %v6036 = vsub.s32 %v6033, %v6035
      %v6037 = vrot.slane %v6029, %v6036
      %v6039 = vunpack.c.l.s4 1983009808
      %v6040 = vunpack.c.0.s8 %v6039
      %v6041 = vlaneseq
      %v6042 = vshrl.u32 %v6041, 7
      %v6043 = vsub.s32 %v6040, %v6042
      %v6044 = vrot.slane %v6030, %v6043
      %v6045 = vcombine.low %v6037, %v6044
      %v6046 = vcombine.low %v276, %v283
      %v6047 = vcombine.low %v290, %v297
      %v6049 = vunpack.c.l.s4 1983009808
      %v6050 = vunpack.c.0.s8 %v6049
      %v6051 = vlaneseq
      %v6052 = vshrl.u32 %v6051, 7
      %v6053 = vsub.s32 %v6050, %v6052
      %v6054 = vrot.slane %v6046, %v6053
      %v6056 = vunpack.c.l.s4 1983009808
      %v6057 = vunpack.c.0.s8 %v6056
      %v6058 = vlaneseq
      %v6059 = vshrl.u32 %v6058, 7
      %v6060 = vsub.s32 %v6057, %v6059
      %v6061 = vrot.slane %v6047, %v6060
      %v6062 = vcombine.low %v6054, %v6061
      %v6063 = vcombine.low %v304, %v248
      %v6064 = vcombine.low %v255, %v262
      %v6066 = vunpack.c.l.s4 1983009808
      %v6067 = vunpack.c.0.s8 %v6066
      %v6068 = vlaneseq
      %v6069 = vshrl.u32 %v6068, 7
      %v6070 = vsub.s32 %v6067, %v6069
      %v6071 = vrot.slane %v6063, %v6070
      %v6073 = vunpack.c.l.s4 1983009808
      %v6074 = vunpack.c.0.s8 %v6073
      %v6075 = vlaneseq
      %v6076 = vshrl.u32 %v6075, 7
      %v6077 = vsub.s32 %v6074, %v6076
      %v6078 = vrot.slane %v6064, %v6077
      %v6079 = vcombine.low %v6071, %v6078
      %v6080 = vcombine.low %v269, %v276
      %v6081 = vcombine.low %v283, %v290
      %v6083 = vunpack.c.l.s4 1983009808
      %v6084 = vunpack.c.0.s8 %v6083
      %v6085 = vlaneseq
      %v6086 = vshrl.u32 %v6085, 7
      %v6087 = vsub.s32 %v6084, %v6086
      %v6088 = vrot.slane %v6080, %v6087
      %v6090 = vunpack.c.l.s4 1983009808
      %v6091 = vunpack.c.0.s8 %v6090
      %v6092 = vlaneseq
      %v6093 = vshrl.u32 %v6092, 7
      %v6094 = vsub.s32 %v6091, %v6093
      %v6095 = vrot.slane %v6081, %v6094
      %v6096 = vcombine.low %v6088, %v6095
      %v6097 = vcombine.low %v297, %v304
      %v6099 = vunpack.c.l.s4 1983009808
      %v6100 = vunpack.c.0.s8 %v6099
      %v6101 = vlaneseq
      %v6102 = vshrl.u32 %v6101, 7
      %v6103 = vsub.s32 %v6100, %v6102
      %v6104 = vrot.slane %v6097, %v6103
      %v6105 = vcombine.low %v6104, %v6037
      %v6106 = vcombine.low %v6044, %v6054
      %v6107 = vcombine.low %v6061, %v6071
      %v6108 = vcombine.low %v6078, %v6088
      %v6109 = vcombine.low %v6095, %v6104
      %v6119 = vmul.f32 %v5993, %v6045
      %v6120 = vmul.f32 %v5994, %v6062
      %v6121 = vmul.f32 %v5995, %v6079
      %v6122 = vmul.f32 %v5996, %v6096
      %v6123 = vmul.f32 %v5997, %v6105
      %v6124 = vmul.f32 %v5998, %v6106
      %v6125 = vmul.f32 %v5999, %v6107
      %v6126 = vmul.f32 %v6000, %v6108
      %v6127 = vmul.f32 %v6001, %v6109
      %v6128 = vmul.f32 %v6002, %v6045
      %v6129 = vmul.f32 %v6003, %v6062
      %v6130 = vmul.f32 %v6004, %v6079
      %v6131 = vmul.f32 %v6005, %v6096
      %v6132 = vmul.f32 %v6006, %v6105
      %v6133 = vmul.f32 %v6007, %v6106
      %v6134 = vmul.f32 %v6008, %v6107
      %v6135 = vmul.f32 %v6009, %v6108
      %v6136 = vmul.f32 %v6010, %v6109
      %v6137 = vmul.f32 %v6011, %v6045
      %v6138 = vmul.f32 %v6012, %v6062
      %v6139 = vmul.f32 %v6013, %v6079
      %v6140 = vmul.f32 %v6014, %v6096
      %v6141 = vmul.f32 %v6015, %v6105
      %v6142 = vmul.f32 %v6016, %v6106
      %v6143 = vmul.f32 %v6017, %v6107
      %v6144 = vmul.f32 %v6018, %v6108
      %v6145 = vmul.f32 %v6019, %v6109
      %v6146 = vmul.f32 %v6020, %v6045
      %v6147 = vmul.f32 %v6021, %v6062
      %v6148 = vmul.f32 %v6022, %v6079
      %v6149 = vmul.f32 %v6023, %v6096
      %v6150 = vmul.f32 %v6024, %v6105
      %v6151 = vmul.f32 %v6025, %v6106
      %v6152 = vmul.f32 %v6026, %v6107
      %v6153 = vmul.f32 %v6027, %v6108
      %v6154 = vmul.f32 %v6028, %v6109
      %v6155 = vsel %vm2820, %v6119, 0.0
      %v6156 = vsel %vm2820, %v6120, 0.0
      %v6157 = vadd.f32 %v6155, %v6156
      %v6158 = vsel %vm2820, %v6121, 0.0
      %v6159 = vadd.f32 %v6157, %v6158
      %v6160 = vsel %vm2820, %v6122, 0.0
      %v6161 = vadd.f32 %v6159, %v6160
      %v6162 = vsel %vm2820, %v6123, 0.0
      %v6163 = vadd.f32 %v6161, %v6162
      %v6164 = vsel %vm2820, %v6124, 0.0
      %v6165 = vadd.f32 %v6163, %v6164
      %v6166 = vsel %vm2820, %v6125, 0.0
      %v6167 = vadd.f32 %v6165, %v6166
      %v6168 = vsel %vm2820, %v6126, 0.0
      %v6169 = vadd.f32 %v6167, %v6168
      %v6170 = vsel %vm2820, %v6127, 0.0
      %v6171 = vadd.f32 %v6169, %v6170
      %v6172 = vsel %vm2820, %v6128, 0.0
      %v6173 = vadd.f32 %v6171, %v6172
      %v6174 = vsel %vm2820, %v6129, 0.0
      %v6175 = vadd.f32 %v6173, %v6174
      %v6176 = vsel %vm2820, %v6130, 0.0
      %v6177 = vadd.f32 %v6175, %v6176
      %v6178 = vsel %vm2820, %v6131, 0.0
      %v6179 = vadd.f32 %v6177, %v6178
      %v6180 = vsel %vm2820, %v6132, 0.0
      %v6181 = vadd.f32 %v6179, %v6180
      %v6182 = vsel %vm2820, %v6133, 0.0
      %v6183 = vadd.f32 %v6181, %v6182
      %v6184 = vsel %vm2820, %v6134, 0.0
      %v6185 = vadd.f32 %v6183, %v6184
      %v6186 = vsel %vm2820, %v6135, 0.0
      %v6187 = vadd.f32 %v6185, %v6186
      %v6188 = vsel %vm2820, %v6136, 0.0
      %v6189 = vadd.f32 %v6187, %v6188
      %v6190 = vsel %vm2820, %v6137, 0.0
      %v6191 = vadd.f32 %v6189, %v6190
      %v6192 = vsel %vm2820, %v6138, 0.0
      %v6193 = vadd.f32 %v6191, %v6192
      %v6194 = vsel %vm2820, %v6139, 0.0
      %v6195 = vadd.f32 %v6193, %v6194
      %v6196 = vsel %vm2820, %v6140, 0.0
      %v6197 = vadd.f32 %v6195, %v6196
      %v6198 = vsel %vm2820, %v6141, 0.0
      %v6199 = vadd.f32 %v6197, %v6198
      %v6200 = vsel %vm2820, %v6142, 0.0
      %v6201 = vadd.f32 %v6199, %v6200
      %v6202 = vsel %vm2820, %v6143, 0.0
      %v6203 = vadd.f32 %v6201, %v6202
      %v6204 = vsel %vm2820, %v6144, 0.0
      %v6205 = vadd.f32 %v6203, %v6204
      %v6206 = vsel %vm2820, %v6145, 0.0
      %v6207 = vadd.f32 %v6205, %v6206
      %v6208 = vsel %vm2820, %v6146, 0.0
      %v6209 = vadd.f32 %v6207, %v6208
      %v6210 = vsel %vm2820, %v6147, 0.0
      %v6211 = vadd.f32 %v6209, %v6210
      %v6212 = vsel %vm2820, %v6148, 0.0
      %v6213 = vadd.f32 %v6211, %v6212
      %v6214 = vsel %vm2820, %v6149, 0.0
      %v6215 = vadd.f32 %v6213, %v6214
      %v6216 = vsel %vm2820, %v6150, 0.0
      %v6217 = vadd.f32 %v6215, %v6216
      %v6218 = vsel %vm2820, %v6151, 0.0
      %v6219 = vadd.f32 %v6217, %v6218
      %v6220 = vsel %vm2820, %v6152, 0.0
      %v6221 = vadd.f32 %v6219, %v6220
      %v6222 = vsel %vm2820, %v6153, 0.0
      %v6223 = vadd.f32 %v6221, %v6222
      %v6224 = vsel %vm2820, %v6154, 0.0
      %v6225 = vadd.f32 %v6223, %v6224
      %v6226 = vrot.slane %v6225, 4
      %v6227 = vadd.f32 %v6225, %v6226
      %v6228 = vrot.slane %v6227, 2
      %v6229 = vadd.f32 %v6227, %v6228
      %v6230 = vrot.slane %v6229, 1
      %v6231 = vadd.f32 %v6229, %v6230
      %v6232 = vmul.f32 %v6119, %v6119
      %v6233 = vmul.f32 %v6120, %v6120
      %v6234 = vmul.f32 %v6121, %v6121
      %v6235 = vmul.f32 %v6122, %v6122
      %v6236 = vmul.f32 %v6123, %v6123
      %v6237 = vmul.f32 %v6124, %v6124
      %v6238 = vmul.f32 %v6125, %v6125
      %v6239 = vmul.f32 %v6126, %v6126
      %v6240 = vmul.f32 %v6127, %v6127
      %v6241 = vmul.f32 %v6128, %v6128
      %v6242 = vmul.f32 %v6129, %v6129
      %v6243 = vmul.f32 %v6130, %v6130
      %v6244 = vmul.f32 %v6131, %v6131
      %v6245 = vmul.f32 %v6132, %v6132
      %v6246 = vmul.f32 %v6133, %v6133
      %v6247 = vmul.f32 %v6134, %v6134
      %v6248 = vmul.f32 %v6135, %v6135
      %v6249 = vmul.f32 %v6136, %v6136
      %v6250 = vmul.f32 %v6137, %v6137
      %v6251 = vmul.f32 %v6138, %v6138
      %v6252 = vmul.f32 %v6139, %v6139
      %v6253 = vmul.f32 %v6140, %v6140
      %v6254 = vmul.f32 %v6141, %v6141
      %v6255 = vmul.f32 %v6142, %v6142
      %v6256 = vmul.f32 %v6143, %v6143
      %v6257 = vmul.f32 %v6144, %v6144
      %v6258 = vmul.f32 %v6145, %v6145
      %v6259 = vmul.f32 %v6146, %v6146
      %v6260 = vmul.f32 %v6147, %v6147
      %v6261 = vmul.f32 %v6148, %v6148
      %v6262 = vmul.f32 %v6149, %v6149
      %v6263 = vmul.f32 %v6150, %v6150
      %v6264 = vmul.f32 %v6151, %v6151
      %v6265 = vmul.f32 %v6152, %v6152
      %v6266 = vmul.f32 %v6153, %v6153
      %v6267 = vmul.f32 %v6154, %v6154
      %v6268 = vsel %vm2820, %v6232, 0.0
      %v6269 = vsel %vm2820, %v6233, 0.0
      %v6270 = vadd.f32 %v6268, %v6269
      %v6271 = vsel %vm2820, %v6234, 0.0
      %v6272 = vadd.f32 %v6270, %v6271
      %v6273 = vsel %vm2820, %v6235, 0.0
      %v6274 = vadd.f32 %v6272, %v6273
      %v6275 = vsel %vm2820, %v6236, 0.0
      %v6276 = vadd.f32 %v6274, %v6275
      %v6277 = vsel %vm2820, %v6237, 0.0
      %v6278 = vadd.f32 %v6276, %v6277
      %v6279 = vsel %vm2820, %v6238, 0.0
      %v6280 = vadd.f32 %v6278, %v6279
      %v6281 = vsel %vm2820, %v6239, 0.0
      %v6282 = vadd.f32 %v6280, %v6281
      %v6283 = vsel %vm2820, %v6240, 0.0
      %v6284 = vadd.f32 %v6282, %v6283
      %v6285 = vsel %vm2820, %v6241, 0.0
      %v6286 = vadd.f32 %v6284, %v6285
      %v6287 = vsel %vm2820, %v6242, 0.0
      %v6288 = vadd.f32 %v6286, %v6287
      %v6289 = vsel %vm2820, %v6243, 0.0
      %v6290 = vadd.f32 %v6288, %v6289
      %v6291 = vsel %vm2820, %v6244, 0.0
      %v6292 = vadd.f32 %v6290, %v6291
      %v6293 = vsel %vm2820, %v6245, 0.0
      %v6294 = vadd.f32 %v6292, %v6293
      %v6295 = vsel %vm2820, %v6246, 0.0
      %v6296 = vadd.f32 %v6294, %v6295
      %v6297 = vsel %vm2820, %v6247, 0.0
      %v6298 = vadd.f32 %v6296, %v6297
      %v6299 = vsel %vm2820, %v6248, 0.0
      %v6300 = vadd.f32 %v6298, %v6299
      %v6301 = vsel %vm2820, %v6249, 0.0
      %v6302 = vadd.f32 %v6300, %v6301
      %v6303 = vsel %vm2820, %v6250, 0.0
      %v6304 = vadd.f32 %v6302, %v6303
      %v6305 = vsel %vm2820, %v6251, 0.0
      %v6306 = vadd.f32 %v6304, %v6305
      %v6307 = vsel %vm2820, %v6252, 0.0
      %v6308 = vadd.f32 %v6306, %v6307
      %v6309 = vsel %vm2820, %v6253, 0.0
      %v6310 = vadd.f32 %v6308, %v6309
      %v6311 = vsel %vm2820, %v6254, 0.0
      %v6312 = vadd.f32 %v6310, %v6311
      %v6313 = vsel %vm2820, %v6255, 0.0
      %v6314 = vadd.f32 %v6312, %v6313
      %v6315 = vsel %vm2820, %v6256, 0.0
      %v6316 = vadd.f32 %v6314, %v6315
      %v6317 = vsel %vm2820, %v6257, 0.0
      %v6318 = vadd.f32 %v6316, %v6317
      %v6319 = vsel %vm2820, %v6258, 0.0
      %v6320 = vadd.f32 %v6318, %v6319
      %v6321 = vsel %vm2820, %v6259, 0.0
      %v6322 = vadd.f32 %v6320, %v6321
      %v6323 = vsel %vm2820, %v6260, 0.0
      %v6324 = vadd.f32 %v6322, %v6323
      %v6325 = vsel %vm2820, %v6261, 0.0
      %v6326 = vadd.f32 %v6324, %v6325
      %v6327 = vsel %vm2820, %v6262, 0.0
      %v6328 = vadd.f32 %v6326, %v6327
      %v6329 = vsel %vm2820, %v6263, 0.0
      %v6330 = vadd.f32 %v6328, %v6329
      %v6331 = vsel %vm2820, %v6264, 0.0
      %v6332 = vadd.f32 %v6330, %v6331
      %v6333 = vsel %vm2820, %v6265, 0.0
      %v6334 = vadd.f32 %v6332, %v6333
      %v6335 = vsel %vm2820, %v6266, 0.0
      %v6336 = vadd.f32 %v6334, %v6335
      %v6337 = vsel %vm2820, %v6267, 0.0
      %v6338 = vadd.f32 %v6336, %v6337
      %v6339 = vrot.slane %v6338, 4
      %v6340 = vadd.f32 %v6338, %v6339
      %v6341 = vrot.slane %v6340, 2
      %v6342 = vadd.f32 %v6340, %v6341
      %v6343 = vrot.slane %v6342, 1
      %v6344 = vadd.f32 %v6342, %v6343
      %v6345 = vmul.f32 %v6231, 0.00390625
      %v6346 = vmul.f32 %v6344, 0.00390625
      %v6347 = vmul.f32 %v6345, %v6345
      %v6348 = vsub.f32 %v6346, %v6347
      %v6349 = vsub.f32 %v5993, %v6345
      %v6350 = vsub.f32 %v5994, %v6345
      %v6351 = vsub.f32 %v5995, %v6345
      %v6352 = vsub.f32 %v5996, %v6345
      %v6353 = vsub.f32 %v5997, %v6345
      %v6354 = vsub.f32 %v5998, %v6345
      %v6355 = vsub.f32 %v5999, %v6345
      %v6356 = vsub.f32 %v6000, %v6345
      %v6357 = vsub.f32 %v6001, %v6345
      %v6358 = vsub.f32 %v6002, %v6345
      %v6359 = vsub.f32 %v6003, %v6345
      %v6360 = vsub.f32 %v6004, %v6345
      %v6361 = vsub.f32 %v6005, %v6345
      %v6362 = vsub.f32 %v6006, %v6345
      %v6363 = vsub.f32 %v6007, %v6345
      %v6364 = vsub.f32 %v6008, %v6345
      %v6365 = vsub.f32 %v6009, %v6345
      %v6366 = vsub.f32 %v6010, %v6345
      %v6367 = vsub.f32 %v6011, %v6345
      %v6368 = vsub.f32 %v6012, %v6345
      %v6369 = vsub.f32 %v6013, %v6345
      %v6370 = vsub.f32 %v6014, %v6345
      %v6371 = vsub.f32 %v6015, %v6345
      %v6372 = vsub.f32 %v6016, %v6345
      %v6373 = vsub.f32 %v6017, %v6345
      %v6374 = vsub.f32 %v6018, %v6345
      %v6375 = vsub.f32 %v6019, %v6345
      %v6376 = vsub.f32 %v6020, %v6345
      %v6377 = vsub.f32 %v6021, %v6345
      %v6378 = vsub.f32 %v6022, %v6345
      %v6379 = vsub.f32 %v6023, %v6345
      %v6380 = vsub.f32 %v6024, %v6345
      %v6381 = vsub.f32 %v6025, %v6345
      %v6382 = vsub.f32 %v6026, %v6345
      %v6383 = vsub.f32 %v6027, %v6345
      %v6384 = vsub.f32 %v6028, %v6345
      %v6385 = vadd.f32 %v6348, 1e-05
      %v6386 = vrsqrt.pop %v6385
      %v6387 = vmul.f32 %v6349, %v6386
      %v6388 = vmul.f32 %v6350, %v6386
      %v6389 = vmul.f32 %v6351, %v6386
      %v6390 = vmul.f32 %v6352, %v6386
      %v6391 = vmul.f32 %v6353, %v6386
      %v6392 = vmul.f32 %v6354, %v6386
      %v6393 = vmul.f32 %v6355, %v6386
      %v6394 = vmul.f32 %v6356, %v6386
      %v6395 = vmul.f32 %v6357, %v6386
      %v6396 = vmul.f32 %v6358, %v6386
      %v6397 = vmul.f32 %v6359, %v6386
      %v6398 = vmul.f32 %v6360, %v6386
      %v6399 = vmul.f32 %v6361, %v6386
      %v6400 = vmul.f32 %v6362, %v6386
      %v6401 = vmul.f32 %v6363, %v6386
      %v6402 = vmul.f32 %v6364, %v6386
      %v6403 = vmul.f32 %v6365, %v6386
      %v6404 = vmul.f32 %v6366, %v6386
      %v6405 = vmul.f32 %v6367, %v6386
      %v6406 = vmul.f32 %v6368, %v6386
      %v6407 = vmul.f32 %v6369, %v6386
      %v6408 = vmul.f32 %v6370, %v6386
      %v6409 = vmul.f32 %v6371, %v6386
      %v6410 = vmul.f32 %v6372, %v6386
      %v6411 = vmul.f32 %v6373, %v6386
      %v6412 = vmul.f32 %v6374, %v6386
      %v6413 = vmul.f32 %v6375, %v6386
      %v6414 = vmul.f32 %v6376, %v6386
      %v6415 = vmul.f32 %v6377, %v6386
      %v6416 = vmul.f32 %v6378, %v6386
      %v6417 = vmul.f32 %v6379, %v6386
      %v6418 = vmul.f32 %v6380, %v6386
      %v6419 = vmul.f32 %v6381, %v6386
      %v6420 = vmul.f32 %v6382, %v6386
      %v6421 = vmul.f32 %v6383, %v6386
      %v6422 = vmul.f32 %v6384, %v6386
      %v6423 = vmax.f32 %v6387, 0.0
      %v6424 = vmax.f32 %v6388, 0.0
      %v6425 = vmax.f32 %v6389, 0.0
      %v6426 = vmax.f32 %v6390, 0.0
      %v6427 = vmax.f32 %v6391, 0.0
      %v6428 = vmax.f32 %v6392, 0.0
      %v6429 = vmax.f32 %v6393, 0.0
      %v6430 = vmax.f32 %v6394, 0.0
      %v6431 = vmax.f32 %v6395, 0.0
      %v6432 = vmax.f32 %v6396, 0.0
      %v6433 = vmax.f32 %v6397, 0.0
      %v6434 = vmax.f32 %v6398, 0.0
      %v6435 = vmax.f32 %v6399, 0.0
      %v6436 = vmax.f32 %v6400, 0.0
      %v6437 = vmax.f32 %v6401, 0.0
      %v6438 = vmax.f32 %v6402, 0.0
      %v6439 = vmax.f32 %v6403, 0.0
      %v6440 = vmax.f32 %v6404, 0.0
      %v6441 = vmax.f32 %v6405, 0.0
      %v6442 = vmax.f32 %v6406, 0.0
      %v6443 = vmax.f32 %v6407, 0.0
      %v6444 = vmax.f32 %v6408, 0.0
      %v6445 = vmax.f32 %v6409, 0.0
      %v6446 = vmax.f32 %v6410, 0.0
      %v6447 = vmax.f32 %v6411, 0.0
      %v6448 = vmax.f32 %v6412, 0.0
      %v6449 = vmax.f32 %v6413, 0.0
      %v6450 = vmax.f32 %v6414, 0.0
      %v6451 = vmax.f32 %v6415, 0.0
      %v6452 = vmax.f32 %v6416, 0.0
      %v6453 = vmax.f32 %v6417, 0.0
      %v6454 = vmax.f32 %v6418, 0.0
      %v6455 = vmax.f32 %v6419, 0.0
      %v6456 = vmax.f32 %v6420, 0.0
      %v6457 = vmax.f32 %v6421, 0.0
      %v6458 = vmax.f32 %v6422, 0.0
      %v6459 = vmul.f32 %v6423, %v6045
      %v6460 = vmul.f32 %v6424, %v6062
      %v6461 = vmul.f32 %v6425, %v6079
      %v6462 = vmul.f32 %v6426, %v6096
      %v6463 = vmul.f32 %v6427, %v6105
      %v6464 = vmul.f32 %v6428, %v6106
      %v6465 = vmul.f32 %v6429, %v6107
      %v6466 = vmul.f32 %v6430, %v6108
      %v6467 = vmul.f32 %v6431, %v6109
      %v6468 = vmul.f32 %v6432, %v6045
      %v6469 = vmul.f32 %v6433, %v6062
      %v6470 = vmul.f32 %v6434, %v6079
      %v6471 = vmul.f32 %v6435, %v6096
      %v6472 = vmul.f32 %v6436, %v6105
      %v6473 = vmul.f32 %v6437, %v6106
      %v6474 = vmul.f32 %v6438, %v6107
      %v6475 = vmul.f32 %v6439, %v6108
      %v6476 = vmul.f32 %v6440, %v6109
      %v6477 = vmul.f32 %v6441, %v6045
      %v6478 = vmul.f32 %v6442, %v6062
      %v6479 = vmul.f32 %v6443, %v6079
      %v6480 = vmul.f32 %v6444, %v6096
      %v6481 = vmul.f32 %v6445, %v6105
      %v6482 = vmul.f32 %v6446, %v6106
      %v6483 = vmul.f32 %v6447, %v6107
      %v6484 = vmul.f32 %v6448, %v6108
      %v6485 = vmul.f32 %v6449, %v6109
      %v6486 = vmul.f32 %v6450, %v6045
      %v6487 = vmul.f32 %v6451, %v6062
      %v6488 = vmul.f32 %v6452, %v6079
      %v6489 = vmul.f32 %v6453, %v6096
      %v6490 = vmul.f32 %v6454, %v6105
      %v6491 = vmul.f32 %v6455, %v6106
      %v6492 = vmul.f32 %v6456, %v6107
      %v6493 = vmul.f32 %v6457, %v6108
      %v6494 = vmul.f32 %v6458, %v6109
      %v6495 = vpack.c.bf16 %v6460, %v6459
      %v6496 = vpack.c.bf16 %v6462, %v6461
      %v6497 = vpack.c.bf16 %v6464, %v6463
      %v6498 = vpack.c.bf16 %v6466, %v6465
      %v6499 = vpack.c.bf16 %v6468, %v6467
      %v6500 = vpack.c.bf16 %v6470, %v6469
      %v6501 = vpack.c.bf16 %v6472, %v6471
      %v6502 = vpack.c.bf16 %v6474, %v6473
      %v6503 = vpack.c.bf16 %v6476, %v6475
      %v6504 = vpack.c.bf16 %v6478, %v6477
      %v6505 = vpack.c.bf16 %v6480, %v6479
      %v6506 = vpack.c.bf16 %v6482, %v6481
      %v6507 = vpack.c.bf16 %v6484, %v6483
      %v6508 = vpack.c.bf16 %v6486, %v6485
      %v6509 = vpack.c.bf16 %v6488, %v6487
      %v6510 = vpack.c.bf16 %v6490, %v6489
      %v6511 = vpack.c.bf16 %v6492, %v6491
      %v6512 = vpack.c.bf16 %v6494, %v6493
      %v6531 = vunpack.c.l.b16 %v6495
      %v6532 = vunpack.c.h.b16 %v6495
      %v6533 = vunpack.c.l.b16 %v6496
      %v6534 = vunpack.c.h.b16 %v6496
      %v6535 = vunpack.c.l.b16 %v6497
      %v6536 = vunpack.c.h.b16 %v6497
      %v6537 = vunpack.c.l.b16 %v6498
      %v6538 = vunpack.c.h.b16 %v6498
      %v6539 = vunpack.c.l.b16 %v6499
      %v6540 = vunpack.c.h.b16 %v6499
      %v6541 = vunpack.c.l.b16 %v6500
      %v6542 = vunpack.c.h.b16 %v6500
      %v6543 = vunpack.c.l.b16 %v6501
      %v6544 = vunpack.c.h.b16 %v6501
      %v6545 = vunpack.c.l.b16 %v6502
      %v6546 = vunpack.c.h.b16 %v6502
      %v6547 = vunpack.c.l.b16 %v6503
      %v6548 = vunpack.c.h.b16 %v6503
      %v6549 = vunpack.c.l.b16 %v6504
      %v6550 = vunpack.c.h.b16 %v6504
      %v6551 = vunpack.c.l.b16 %v6505
      %v6552 = vunpack.c.h.b16 %v6505
      %v6553 = vunpack.c.l.b16 %v6506
      %v6554 = vunpack.c.h.b16 %v6506
      %v6555 = vunpack.c.l.b16 %v6507
      %v6556 = vunpack.c.h.b16 %v6507
      %v6557 = vunpack.c.l.b16 %v6508
      %v6558 = vunpack.c.h.b16 %v6508
      %v6559 = vunpack.c.l.b16 %v6509
      %v6560 = vunpack.c.h.b16 %v6509
      %v6561 = vunpack.c.l.b16 %v6510
      %v6562 = vunpack.c.h.b16 %v6510
      %v6563 = vunpack.c.l.b16 %v6511
      %v6564 = vunpack.c.h.b16 %v6511
      %v6565 = vunpack.c.l.b16 %v6512
      %v6566 = vunpack.c.h.b16 %v6512
      %v6567 = vpack.c.b16 %v6531, %v6531
      %v6568 = vpack.c.b16 %v6532, %v6532
      %v6569 = vpack.c.b16 %v6533, %v6533
      %v6570 = vpack.c.b16 %v6534, %v6534
      %v6571 = vpack.c.b16 %v6535, %v6535
      %v6572 = vpack.c.b16 %v6536, %v6536
      %v6573 = vpack.c.b16 %v6537, %v6537
      %v6574 = vpack.c.b16 %v6538, %v6538
      %v6575 = vpack.c.b16 %v6539, %v6539
      %v6576 = vpack.c.b16 %v6540, %v6540
      %v6577 = vpack.c.b16 %v6541, %v6541
      %v6578 = vpack.c.b16 %v6542, %v6542
      %v6579 = vpack.c.b16 %v6543, %v6543
      %v6580 = vpack.c.b16 %v6544, %v6544
      %v6581 = vpack.c.b16 %v6545, %v6545
      %v6582 = vpack.c.b16 %v6546, %v6546
      %v6583 = vpack.c.b16 %v6547, %v6547
      %v6584 = vpack.c.b16 %v6548, %v6548
      %v6585 = vpack.c.b16 %v6549, %v6549
      %v6586 = vpack.c.b16 %v6550, %v6550
      %v6587 = vpack.c.b16 %v6551, %v6551
      %v6588 = vpack.c.b16 %v6552, %v6552
      %v6589 = vpack.c.b16 %v6553, %v6553
      %v6590 = vpack.c.b16 %v6554, %v6554
      %v6591 = vpack.c.b16 %v6555, %v6555
      %v6592 = vpack.c.b16 %v6556, %v6556
      %v6593 = vpack.c.b16 %v6557, %v6557
      %v6594 = vpack.c.b16 %v6558, %v6558
      %v6595 = vpack.c.b16 %v6559, %v6559
      %v6596 = vpack.c.b16 %v6560, %v6560
      %v6597 = vpack.c.b16 %v6561, %v6561
      %v6598 = vpack.c.b16 %v6562, %v6562
      %v6599 = vpack.c.b16 %v6563, %v6563
      %v6600 = vpack.c.b16 %v6564, %v6564
      %v6601 = vpack.c.b16 %v6565, %v6565
      %v6602 = vpack.c.b16 %v6566, %v6566
      %v6604 = vshrl.u32 %v6567, 16
      %v6606 = vrot.slane %v6604, 6
      %v6607 = vshll.u32 %v6567, 16
      %v6609 = vrot.slane %v6607, 7
      %v6610 = vor.u32 %v6606, %v6609
      %v6611 = vrot.slane %v6610, 4
      %v6613 = vshrl.u32 %v6568, 16
      %v6615 = vrot.slane %v6613, 6
      %v6616 = vshll.u32 %v6568, 16
      %v6618 = vrot.slane %v6616, 7
      %v6619 = vor.u32 %v6615, %v6618
      %v6620 = vsel %vm2100, %v6611, %v6619
      %v6621 = vrot.slane %v6619, 4
      %v6623 = vshrl.u32 %v6569, 16
      %v6625 = vrot.slane %v6623, 6
      %v6626 = vshll.u32 %v6569, 16
      %v6628 = vrot.slane %v6626, 7
      %v6629 = vor.u32 %v6625, %v6628
      %v6630 = vsel %vm2100, %v6621, %v6629
      %v6631 = vrot.slane %v6629, 4
      %v6633 = vshrl.u32 %v6570, 16
      %v6635 = vrot.slane %v6633, 6
      %v6636 = vshll.u32 %v6570, 16
      %v6638 = vrot.slane %v6636, 7
      %v6639 = vor.u32 %v6635, %v6638
      %v6640 = vsel %vm2100, %v6631, %v6639
      %v6641 = vrot.slane %v6639, 4
      %v6643 = vshrl.u32 %v6571, 16
      %v6645 = vrot.slane %v6643, 6
      %v6646 = vshll.u32 %v6571, 16
      %v6648 = vrot.slane %v6646, 7
      %v6649 = vor.u32 %v6645, %v6648
      %v6650 = vsel %vm2100, %v6641, %v6649
      %v6651 = vrot.slane %v6649, 4
      %v6653 = vshrl.u32 %v6572, 16
      %v6655 = vrot.slane %v6653, 6
      %v6656 = vshll.u32 %v6572, 16
      %v6658 = vrot.slane %v6656, 7
      %v6659 = vor.u32 %v6655, %v6658
      %v6660 = vsel %vm2100, %v6651, %v6659
      %v6661 = vrot.slane %v6659, 4
      %v6663 = vshrl.u32 %v6573, 16
      %v6665 = vrot.slane %v6663, 6
      %v6666 = vshll.u32 %v6573, 16
      %v6668 = vrot.slane %v6666, 7
      %v6669 = vor.u32 %v6665, %v6668
      %v6670 = vsel %vm2100, %v6661, %v6669
      %v6671 = vrot.slane %v6669, 4
      %v6673 = vshrl.u32 %v6574, 16
      %v6675 = vrot.slane %v6673, 6
      %v6676 = vshll.u32 %v6574, 16
      %v6678 = vrot.slane %v6676, 7
      %v6679 = vor.u32 %v6675, %v6678
      %v6680 = vsel %vm2100, %v6671, %v6679
      %v6681 = vrot.slane %v6679, 4
      %v6683 = vshrl.u32 %v6575, 16
      %v6685 = vrot.slane %v6683, 6
      %v6686 = vshll.u32 %v6575, 16
      %v6688 = vrot.slane %v6686, 7
      %v6689 = vor.u32 %v6685, %v6688
      %v6690 = vsel %vm2100, %v6681, %v6689
      %v6691 = vrot.slane %v6689, 4
      %v6693 = vshrl.u32 %v6576, 16
      %v6695 = vrot.slane %v6693, 6
      %v6696 = vshll.u32 %v6576, 16
      %v6698 = vrot.slane %v6696, 7
      %v6699 = vor.u32 %v6695, %v6698
      %v6700 = vsel %vm2100, %v6691, %v6699
      %v6701 = vrot.slane %v6699, 4
      %v6703 = vshrl.u32 %v6577, 16
      %v6705 = vrot.slane %v6703, 6
      %v6706 = vshll.u32 %v6577, 16
      %v6708 = vrot.slane %v6706, 7
      %v6709 = vor.u32 %v6705, %v6708
      %v6710 = vsel %vm2100, %v6701, %v6709
      %v6711 = vrot.slane %v6709, 4
      %v6713 = vshrl.u32 %v6578, 16
      %v6715 = vrot.slane %v6713, 6
      %v6716 = vshll.u32 %v6578, 16
      %v6718 = vrot.slane %v6716, 7
      %v6719 = vor.u32 %v6715, %v6718
      %v6720 = vsel %vm2100, %v6711, %v6719
      %v6721 = vrot.slane %v6719, 4
      %v6723 = vshrl.u32 %v6579, 16
      %v6725 = vrot.slane %v6723, 6
      %v6726 = vshll.u32 %v6579, 16
      %v6728 = vrot.slane %v6726, 7
      %v6729 = vor.u32 %v6725, %v6728
      %v6730 = vsel %vm2100, %v6721, %v6729
      %v6731 = vrot.slane %v6729, 4
      %v6733 = vshrl.u32 %v6580, 16
      %v6735 = vrot.slane %v6733, 6
      %v6736 = vshll.u32 %v6580, 16
      %v6738 = vrot.slane %v6736, 7
      %v6739 = vor.u32 %v6735, %v6738
      %v6740 = vsel %vm2100, %v6731, %v6739
      %v6741 = vrot.slane %v6739, 4
      %v6743 = vshrl.u32 %v6581, 16
      %v6745 = vrot.slane %v6743, 6
      %v6746 = vshll.u32 %v6581, 16
      %v6748 = vrot.slane %v6746, 7
      %v6749 = vor.u32 %v6745, %v6748
      %v6750 = vsel %vm2100, %v6741, %v6749
      %v6751 = vrot.slane %v6749, 4
      %v6753 = vshrl.u32 %v6582, 16
      %v6755 = vrot.slane %v6753, 6
      %v6756 = vshll.u32 %v6582, 16
      %v6758 = vrot.slane %v6756, 7
      %v6759 = vor.u32 %v6755, %v6758
      %v6760 = vsel %vm2100, %v6751, %v6759
      %v6761 = vrot.slane %v6759, 4
      %v6763 = vshrl.u32 %v6583, 16
      %v6765 = vrot.slane %v6763, 6
      %v6766 = vshll.u32 %v6583, 16
      %v6768 = vrot.slane %v6766, 7
      %v6769 = vor.u32 %v6765, %v6768
      %v6770 = vsel %vm2100, %v6761, %v6769
      %v6771 = vrot.slane %v6769, 4
      %v6773 = vshrl.u32 %v6584, 16
      %v6775 = vrot.slane %v6773, 6
      %v6776 = vshll.u32 %v6584, 16
      %v6778 = vrot.slane %v6776, 7
      %v6779 = vor.u32 %v6775, %v6778
      %v6780 = vsel %vm2100, %v6771, %v6779
      %v6781 = vrot.slane %v6779, 4
      %v6783 = vshrl.u32 %v6585, 16
      %v6785 = vrot.slane %v6783, 6
      %v6786 = vshll.u32 %v6585, 16
      %v6788 = vrot.slane %v6786, 7
      %v6789 = vor.u32 %v6785, %v6788
      %v6790 = vsel %vm2100, %v6781, %v6789
      %v6791 = vrot.slane %v6789, 4
      %v6793 = vshrl.u32 %v6586, 16
      %v6795 = vrot.slane %v6793, 6
      %v6796 = vshll.u32 %v6586, 16
      %v6798 = vrot.slane %v6796, 7
      %v6799 = vor.u32 %v6795, %v6798
      %v6800 = vsel %vm2100, %v6791, %v6799
      %v6801 = vrot.slane %v6799, 4
      %v6803 = vshrl.u32 %v6587, 16
      %v6805 = vrot.slane %v6803, 6
      %v6806 = vshll.u32 %v6587, 16
      %v6808 = vrot.slane %v6806, 7
      %v6809 = vor.u32 %v6805, %v6808
      %v6810 = vsel %vm2100, %v6801, %v6809
      %v6811 = vrot.slane %v6809, 4
      %v6813 = vshrl.u32 %v6588, 16
      %v6815 = vrot.slane %v6813, 6
      %v6816 = vshll.u32 %v6588, 16
      %v6818 = vrot.slane %v6816, 7
      %v6819 = vor.u32 %v6815, %v6818
      %v6820 = vsel %vm2100, %v6811, %v6819
      %v6821 = vrot.slane %v6819, 4
      %v6823 = vshrl.u32 %v6589, 16
      %v6825 = vrot.slane %v6823, 6
      %v6826 = vshll.u32 %v6589, 16
      %v6828 = vrot.slane %v6826, 7
      %v6829 = vor.u32 %v6825, %v6828
      %v6830 = vsel %vm2100, %v6821, %v6829
      %v6831 = vrot.slane %v6829, 4
      %v6833 = vshrl.u32 %v6590, 16
      %v6835 = vrot.slane %v6833, 6
      %v6836 = vshll.u32 %v6590, 16
      %v6838 = vrot.slane %v6836, 7
      %v6839 = vor.u32 %v6835, %v6838
      %v6840 = vsel %vm2100, %v6831, %v6839
      %v6841 = vrot.slane %v6839, 4
      %v6843 = vshrl.u32 %v6591, 16
      %v6845 = vrot.slane %v6843, 6
      %v6846 = vshll.u32 %v6591, 16
      %v6848 = vrot.slane %v6846, 7
      %v6849 = vor.u32 %v6845, %v6848
      %v6850 = vsel %vm2100, %v6841, %v6849
      %v6851 = vrot.slane %v6849, 4
      %v6853 = vshrl.u32 %v6592, 16
      %v6855 = vrot.slane %v6853, 6
      %v6856 = vshll.u32 %v6592, 16
      %v6858 = vrot.slane %v6856, 7
      %v6859 = vor.u32 %v6855, %v6858
      %v6860 = vsel %vm2100, %v6851, %v6859
      %v6861 = vrot.slane %v6859, 4
      %v6863 = vshrl.u32 %v6593, 16
      %v6865 = vrot.slane %v6863, 6
      %v6866 = vshll.u32 %v6593, 16
      %v6868 = vrot.slane %v6866, 7
      %v6869 = vor.u32 %v6865, %v6868
      %v6870 = vsel %vm2100, %v6861, %v6869
      %v6871 = vrot.slane %v6869, 4
      %v6873 = vshrl.u32 %v6594, 16
      %v6875 = vrot.slane %v6873, 6
      %v6876 = vshll.u32 %v6594, 16
      %v6878 = vrot.slane %v6876, 7
      %v6879 = vor.u32 %v6875, %v6878
      %v6880 = vsel %vm2100, %v6871, %v6879
      %v6881 = vrot.slane %v6879, 4
      %v6883 = vshrl.u32 %v6595, 16
      %v6885 = vrot.slane %v6883, 6
      %v6886 = vshll.u32 %v6595, 16
      %v6888 = vrot.slane %v6886, 7
      %v6889 = vor.u32 %v6885, %v6888
      %v6890 = vsel %vm2100, %v6881, %v6889
      %v6891 = vrot.slane %v6889, 4
      %v6893 = vshrl.u32 %v6596, 16
      %v6895 = vrot.slane %v6893, 6
      %v6896 = vshll.u32 %v6596, 16
      %v6898 = vrot.slane %v6896, 7
      %v6899 = vor.u32 %v6895, %v6898
      %v6900 = vsel %vm2100, %v6891, %v6899
      %v6901 = vrot.slane %v6899, 4
      %v6903 = vshrl.u32 %v6597, 16
      %v6905 = vrot.slane %v6903, 6
      %v6906 = vshll.u32 %v6597, 16
      %v6908 = vrot.slane %v6906, 7
      %v6909 = vor.u32 %v6905, %v6908
      %v6910 = vsel %vm2100, %v6901, %v6909
      %v6911 = vrot.slane %v6909, 4
      %v6913 = vshrl.u32 %v6598, 16
      %v6915 = vrot.slane %v6913, 6
      %v6916 = vshll.u32 %v6598, 16
      %v6918 = vrot.slane %v6916, 7
      %v6919 = vor.u32 %v6915, %v6918
      %v6920 = vsel %vm2100, %v6911, %v6919
      %v6921 = vrot.slane %v6919, 4
      %v6923 = vshrl.u32 %v6599, 16
      %v6925 = vrot.slane %v6923, 6
      %v6926 = vshll.u32 %v6599, 16
      %v6928 = vrot.slane %v6926, 7
      %v6929 = vor.u32 %v6925, %v6928
      %v6930 = vsel %vm2100, %v6921, %v6929
      %v6931 = vrot.slane %v6929, 4
      %v6933 = vshrl.u32 %v6600, 16
      %v6935 = vrot.slane %v6933, 6
      %v6936 = vshll.u32 %v6600, 16
      %v6938 = vrot.slane %v6936, 7
      %v6939 = vor.u32 %v6935, %v6938
      %v6940 = vsel %vm2100, %v6931, %v6939
      %v6941 = vrot.slane %v6939, 4
      %v6943 = vshrl.u32 %v6601, 16
      %v6945 = vrot.slane %v6943, 6
      %v6946 = vshll.u32 %v6601, 16
      %v6948 = vrot.slane %v6946, 7
      %v6949 = vor.u32 %v6945, %v6948
      %v6950 = vsel %vm2100, %v6941, %v6949
      %v6951 = vrot.slane %v6949, 4
      %v6953 = vshrl.u32 %v6602, 16
      %v6955 = vrot.slane %v6953, 6
      %v6956 = vshll.u32 %v6602, 16
      %v6958 = vrot.slane %v6956, 7
      %v6959 = vor.u32 %v6955, %v6958
      %v6960 = vsel %vm2100, %v6951, %v6959
      %v6961 = vrot.slane %v6959, 4
      %v6999 = vld [vmem:[#allocation2 + $0x8] sm:$0xe]
      %v7000 = vsel %vm316, %v6610, %v6999
      %7001 = vst [vmem:[#allocation2 + $0x8] sm:$0xe] %v7000
      %7002 = vst.msk [vmem:[#allocation2 + $0xc] sm:$0xf] %vm305, %v6620
      %7003 = vst.msk [vmem:[#allocation2 + $0x10] sm:$0xf] %vm305, %v6630
      %7004 = vst.msk [vmem:[#allocation2 + $0x14] sm:$0xf] %vm305, %v6640
      %7005 = vst.msk [vmem:[#allocation2 + $0x18] sm:$0xf] %vm305, %v6650
      %7006 = vst.msk [vmem:[#allocation2 + $0x1c] sm:$0xf] %vm305, %v6660
      %7007 = vst.msk [vmem:[#allocation2 + $0x20] sm:$0xf] %vm305, %v6670
      %7008 = vst.msk [vmem:[#allocation2 + $0x24] sm:$0xf] %vm305, %v6680
      %7009 = vst.msk [vmem:[#allocation2 + $0x28] sm:$0xf] %vm305, %v6690
      %7010 = vst.msk [vmem:[#allocation2 + $0x2c] sm:$0xf] %vm305, %v6700
      %7011 = vst.msk [vmem:[#allocation2 + $0x30] sm:$0xf] %vm305, %v6710
      %7012 = vst.msk [vmem:[#allocation2 + $0x34] sm:$0xf] %vm305, %v6720
      %7013 = vst.msk [vmem:[#allocation2 + $0x38] sm:$0xf] %vm305, %v6730
      %7014 = vst.msk [vmem:[#allocation2 + $0x3c] sm:$0xf] %vm305, %v6740
      %7015 = vst.msk [vmem:[#allocation2 + $0x40] sm:$0xf] %vm305, %v6750
      %7016 = vst.msk [vmem:[#allocation2 + $0x44] sm:$0xf] %vm305, %v6760
      %7017 = vst.msk [vmem:[#allocation2 + $0x48] sm:$0xf] %vm305, %v6770
      %7018 = vst.msk [vmem:[#allocation2 + $0x4c] sm:$0xf] %vm305, %v6780
      %7019 = vst.msk [vmem:[#allocation2 + $0x50] sm:$0xf] %vm305, %v6790
      %7020 = vst.msk [vmem:[#allocation2 + $0x54] sm:$0xf] %vm305, %v6800
      %7021 = vst.msk [vmem:[#allocation2 + $0x58] sm:$0xf] %vm305, %v6810
      %7022 = vst.msk [vmem:[#allocation2 + $0x5c] sm:$0xf] %vm305, %v6820
      %7023 = vst.msk [vmem:[#allocation2 + $0x60] sm:$0xf] %vm305, %v6830
      %7024 = vst.msk [vmem:[#allocation2 + $0x64] sm:$0xf] %vm305, %v6840
      %7025 = vst.msk [vmem:[#allocation2 + $0x68] sm:$0xf] %vm305, %v6850
      %7026 = vst.msk [vmem:[#allocation2 + $0x6c] sm:$0xf] %vm305, %v6860
      %7027 = vst.msk [vmem:[#allocation2 + $0x70] sm:$0xf] %vm305, %v6870
      %7028 = vst.msk [vmem:[#allocation2 + $0x74] sm:$0xf] %vm305, %v6880
      %7029 = vst.msk [vmem:[#allocation2 + $0x78] sm:$0xf] %vm305, %v6890
      %7030 = vst.msk [vmem:[#allocation2 + $0x7c] sm:$0xf] %vm305, %v6900
      %7031 = vst.msk [vmem:[#allocation2 + $0x80] sm:$0xf] %vm305, %v6910
      %7032 = vst.msk [vmem:[#allocation2 + $0x84] sm:$0xf] %vm305, %v6920
      %7033 = vst.msk [vmem:[#allocation2 + $0x88] sm:$0xf] %vm305, %v6930
      %7034 = vst.msk [vmem:[#allocation2 + $0x8c] sm:$0xf] %vm305, %v6940
      %7035 = vst.msk [vmem:[#allocation2 + $0x90] sm:$0xf] %vm305, %v6950
      %7036 = vst.msk [vmem:[#allocation2 + $0x94] sm:$0xf] %vm305, %v6960
      %v7037 = vld [vmem:[#allocation2 + $0x98] sm:$0x3]
      %v7038 = vsel %vm310, %v6961, %v7037
      %7039 = vst [vmem:[#allocation2 + $0x98] sm:$0x3] %v7038
      %v7040 = vld [vmem:[#allocation2] sm:$0xf]
      %v7041 = vld [vmem:[#allocation2 + $0x4] sm:$0xf]
      %v7042 = vld [vmem:[#allocation2 + $0x8] sm:$0xf]
      %v7043 = vld [vmem:[#allocation2 + $0xc] sm:$0xf]
      %v7044 = vld [vmem:[#allocation2 + $0x10] sm:$0xf]
      %v7045 = vld [vmem:[#allocation2 + $0x14] sm:$0xf]
      %v7046 = vld [vmem:[#allocation2 + $0x18] sm:$0xf]
      %v7047 = vld [vmem:[#allocation2 + $0x1c] sm:$0xf]
      %v7048 = vld [vmem:[#allocation2 + $0x20] sm:$0xf]
      %v7049 = vld [vmem:[#allocation2 + $0x24] sm:$0xf]
      %v7050 = vld [vmem:[#allocation2 + $0x28] sm:$0xf]
      %v7051 = vld [vmem:[#allocation2 + $0x2c] sm:$0xf]
      %v7052 = vld [vmem:[#allocation2 + $0x30] sm:$0xf]
      %v7053 = vld [vmem:[#allocation2 + $0x34] sm:$0xf]
      %v7054 = vld [vmem:[#allocation2 + $0x38] sm:$0xf]
      %v7055 = vld [vmem:[#allocation2 + $0x3c] sm:$0xf]
      %v7056 = vld [vmem:[#allocation2 + $0x40] sm:$0xf]
      %v7057 = vld [vmem:[#allocation2 + $0x44] sm:$0xf]
      %v7058 = vld [vmem:[#allocation2 + $0x48] sm:$0xf]
      %v7059 = vld [vmem:[#allocation2 + $0x4c] sm:$0xf]
      %v7060 = vld [vmem:[#allocation2 + $0x50] sm:$0xf]
      %v7061 = vld [vmem:[#allocation2 + $0x54] sm:$0xf]
      %v7062 = vld [vmem:[#allocation2 + $0x58] sm:$0xf]
      %v7063 = vld [vmem:[#allocation2 + $0x5c] sm:$0xf]
      %v7064 = vld [vmem:[#allocation2 + $0x60] sm:$0xf]
      %v7065 = vld [vmem:[#allocation2 + $0x64] sm:$0xf]
      %v7066 = vld [vmem:[#allocation2 + $0x68] sm:$0xf]
      %v7067 = vld [vmem:[#allocation2 + $0x6c] sm:$0xf]
      %v7068 = vld [vmem:[#allocation2 + $0x70] sm:$0xf]
      %v7069 = vld [vmem:[#allocation2 + $0x74] sm:$0xf]
      %v7070 = vld [vmem:[#allocation2 + $0x78] sm:$0xf]
      %v7071 = vld [vmem:[#allocation2 + $0x7c] sm:$0xf]
      %v7072 = vld [vmem:[#allocation2 + $0x80] sm:$0xf]
      %v7073 = vld [vmem:[#allocation2 + $0x84] sm:$0xf]
      %v7074 = vld [vmem:[#allocation2 + $0x88] sm:$0xf]
      %v7075 = vld [vmem:[#allocation2 + $0x8c] sm:$0xf]
      %v7076 = vld [vmem:[%s3] sm:$0x3]
      %v7077 = vld [vmem:[#allocation2 + $0x90] sm:$0x1]
      %s7078 = scalar_lea.vmem %s3, 2
      %v7079 = vld [vmem:[%s7078] sm:$0x3]
      %v7117 = vunpack.c.l.b16 %v7040
      %v7118 = vunpack.c.l.b16 %v7041
      %v7119 = vunpack.c.l.b16 %v7042
      %v7120 = vunpack.c.l.b16 %v7043
      %v7121 = vunpack.c.l.b16 %v7044
      %v7122 = vunpack.c.l.b16 %v7045
      %v7123 = vunpack.c.l.b16 %v7046
      %v7124 = vunpack.c.l.b16 %v7047
      %v7125 = vunpack.c.l.b16 %v7048
      %v7126 = vunpack.c.l.b16 %v7049
      %v7127 = vunpack.c.l.b16 %v7050
      %v7128 = vunpack.c.l.b16 %v7051
      %v7129 = vunpack.c.l.b16 %v7052
      %v7130 = vunpack.c.l.b16 %v7053
      %v7131 = vunpack.c.l.b16 %v7054
      %v7132 = vunpack.c.l.b16 %v7055
      %v7133 = vunpack.c.l.b16 %v7056
      %v7134 = vunpack.c.l.b16 %v7057
      %v7135 = vunpack.c.l.b16 %v7058
      %v7136 = vunpack.c.l.b16 %v7059
      %v7137 = vunpack.c.l.b16 %v7060
      %v7138 = vunpack.c.l.b16 %v7061
      %v7139 = vunpack.c.l.b16 %v7062
      %v7140 = vunpack.c.l.b16 %v7063
      %v7141 = vunpack.c.l.b16 %v7064
      %v7142 = vunpack.c.l.b16 %v7065
      %v7143 = vunpack.c.l.b16 %v7066
      %v7144 = vunpack.c.l.b16 %v7067
      %v7145 = vunpack.c.l.b16 %v7068
      %v7146 = vunpack.c.l.b16 %v7069
      %v7147 = vunpack.c.l.b16 %v7070
      %v7148 = vunpack.c.l.b16 %v7071
      %v7149 = vunpack.c.l.b16 %v7072
      %v7150 = vunpack.c.l.b16 %v7073
      %v7151 = vunpack.c.l.b16 %v7074
      %v7152 = vunpack.c.l.b16 %v7075
      %v7153 = vunpack.c.l.b16 %v7077
      %v7154 = vpack.c.b16 %v7118, %v7117
      %v7155 = vpack.c.b16 %v7120, %v7119
      %v7156 = vpack.c.b16 %v7122, %v7121
      %v7157 = vpack.c.b16 %v7124, %v7123
      %v7158 = vpack.c.b16 %v7126, %v7125
      %v7159 = vpack.c.b16 %v7128, %v7127
      %v7160 = vpack.c.b16 %v7130, %v7129
      %v7161 = vpack.c.b16 %v7132, %v7131
      %v7162 = vpack.c.b16 %v7134, %v7133
      %v7163 = vpack.c.b16 %v7136, %v7135
      %v7164 = vpack.c.b16 %v7138, %v7137
      %v7165 = vpack.c.b16 %v7140, %v7139
      %v7166 = vpack.c.b16 %v7142, %v7141
      %v7167 = vpack.c.b16 %v7144, %v7143
      %v7168 = vpack.c.b16 %v7146, %v7145
      %v7169 = vpack.c.b16 %v7148, %v7147
      %v7170 = vpack.c.b16 %v7150, %v7149
      %v7171 = vpack.c.b16 %v7152, %v7151
      %v7172 = vpack.c.b16 %v7153, %v7153
      %v7174 = vshrl.u32 %v7154, 16
      %v7176 = vshll.u32 %v7154, 16
      %v7178 = vrot.slane %v7176, 1
      %v7179 = vor.u32 %v7174, %v7178
      %v7181 = vshll.u32 %v7155, 16
      %v7183 = vrot.slane %v7181, 1
      %v7184 = vsel %vm2671, %v7179, %v7183
      %v7185 = vshrl.u32 %v7155, 16
      %v7187 = vor.u32 %v7185, %v7183
      %v7189 = vshll.u32 %v7156, 16
      %v7191 = vrot.slane %v7189, 1
      %v7192 = vsel %vm2671, %v7187, %v7191
      %v7193 = vshrl.u32 %v7156, 16
      %v7195 = vor.u32 %v7193, %v7191
      %v7197 = vshll.u32 %v7157, 16
      %v7199 = vrot.slane %v7197, 1
      %v7200 = vsel %vm2671, %v7195, %v7199
      %v7201 = vshrl.u32 %v7157, 16
      %v7203 = vor.u32 %v7201, %v7199
      %v7205 = vshll.u32 %v7158, 16
      %v7207 = vrot.slane %v7205, 1
      %v7208 = vsel %vm2671, %v7203, %v7207
      %v7209 = vshrl.u32 %v7158, 16
      %v7211 = vor.u32 %v7209, %v7207
      %v7213 = vshll.u32 %v7159, 16
      %v7215 = vrot.slane %v7213, 1
      %v7216 = vsel %vm2671, %v7211, %v7215
      %v7217 = vshrl.u32 %v7159, 16
      %v7219 = vor.u32 %v7217, %v7215
      %v7221 = vshll.u32 %v7160, 16
      %v7223 = vrot.slane %v7221, 1
      %v7224 = vsel %vm2671, %v7219, %v7223
      %v7225 = vshrl.u32 %v7160, 16
      %v7227 = vor.u32 %v7225, %v7223
      %v7229 = vshll.u32 %v7161, 16
      %v7231 = vrot.slane %v7229, 1
      %v7232 = vsel %vm2671, %v7227, %v7231
      %v7233 = vshrl.u32 %v7161, 16
      %v7235 = vor.u32 %v7233, %v7231
      %v7237 = vshll.u32 %v7162, 16
      %v7239 = vrot.slane %v7237, 1
      %v7240 = vsel %vm2671, %v7235, %v7239
      %v7241 = vshrl.u32 %v7162, 16
      %v7243 = vor.u32 %v7241, %v7239
      %v7245 = vshll.u32 %v7163, 16
      %v7247 = vrot.slane %v7245, 1
      %v7248 = vsel %vm2671, %v7243, %v7247
      %v7249 = vshrl.u32 %v7163, 16
      %v7251 = vor.u32 %v7249, %v7247
      %v7253 = vshll.u32 %v7164, 16
      %v7255 = vrot.slane %v7253, 1
      %v7256 = vsel %vm2671, %v7251, %v7255
      %v7257 = vshrl.u32 %v7164, 16
      %v7259 = vor.u32 %v7257, %v7255
      %v7261 = vshll.u32 %v7165, 16
      %v7263 = vrot.slane %v7261, 1
      %v7264 = vsel %vm2671, %v7259, %v7263
      %v7265 = vshrl.u32 %v7165, 16
      %v7267 = vor.u32 %v7265, %v7263
      %v7269 = vshll.u32 %v7166, 16
      %v7271 = vrot.slane %v7269, 1
      %v7272 = vsel %vm2671, %v7267, %v7271
      %v7273 = vshrl.u32 %v7166, 16
      %v7275 = vor.u32 %v7273, %v7271
      %v7277 = vshll.u32 %v7167, 16
      %v7279 = vrot.slane %v7277, 1
      %v7280 = vsel %vm2671, %v7275, %v7279
      %v7281 = vshrl.u32 %v7167, 16
      %v7283 = vor.u32 %v7281, %v7279
      %v7285 = vshll.u32 %v7168, 16
      %v7287 = vrot.slane %v7285, 1
      %v7288 = vsel %vm2671, %v7283, %v7287
      %v7289 = vshrl.u32 %v7168, 16
      %v7291 = vor.u32 %v7289, %v7287
      %v7293 = vshll.u32 %v7169, 16
      %v7295 = vrot.slane %v7293, 1
      %v7296 = vsel %vm2671, %v7291, %v7295
      %v7297 = vshrl.u32 %v7169, 16
      %v7299 = vor.u32 %v7297, %v7295
      %v7301 = vshll.u32 %v7170, 16
      %v7303 = vrot.slane %v7301, 1
      %v7304 = vsel %vm2671, %v7299, %v7303
      %v7305 = vshrl.u32 %v7170, 16
      %v7307 = vor.u32 %v7305, %v7303
      %v7309 = vshll.u32 %v7171, 16
      %v7311 = vrot.slane %v7309, 1
      %v7312 = vsel %vm2671, %v7307, %v7311
      %v7313 = vshrl.u32 %v7171, 16
      %v7315 = vor.u32 %v7313, %v7311
      %v7317 = vshll.u32 %v7172, 16
      %v7319 = vrot.slane %v7317, 1
      %v7320 = vsel %vm2671, %v7315, %v7319
      %v7322 = vsel %vm2820, %v7184, 0
      %v7325 = vsel %vm2820, %v7192, 0
      %v7328 = vsel %vm2820, %v7200, 0
      %v7331 = vsel %vm2820, %v7208, 0
      %v7334 = vsel %vm2820, %v7216, 0
      %v7337 = vsel %vm2820, %v7224, 0
      %v7340 = vsel %vm2820, %v7232, 0
      %v7343 = vsel %vm2820, %v7240, 0
      %v7346 = vsel %vm2820, %v7248, 0
      %v7349 = vsel %vm2820, %v7256, 0
      %v7352 = vsel %vm2820, %v7264, 0
      %v7355 = vsel %vm2820, %v7272, 0
      %v7358 = vsel %vm2820, %v7280, 0
      %v7361 = vsel %vm2820, %v7288, 0
      %v7364 = vsel %vm2820, %v7296, 0
      %v7367 = vsel %vm2820, %v7304, 0
      %v7370 = vsel %vm2820, %v7312, 0
      %v7373 = vsel %vm2820, %v7320, 0
      %v7376 = vsel %vm2875, %v7079, 0
      %7378 = vmatprep.subr.bf16.mxu0 0
      %7379 = vmatpush1.bf16.msra.mxu0 0
      %7380 = vmatprep.subr.bf16.mxu0 0
      %7381 = vmatpush1.bf16.msra.mxu0 0
      %7382 = vmatprep.subr.bf16.mxu0 0
      %7383 = vmatpush1.bf16.msra.mxu0 0
      %7384 = vmatprep.subr.bf16.mxu0 0
      %7385 = vmatpush1.bf16.msra.mxu0 0
      %7386 = vmatprep.subr.bf16.mxu0 0
      %7387 = vmatpush1.bf16.msra.mxu0 0
      %7388 = vmatprep.subr.bf16.mxu0 0
      %7389 = vmatpush1.bf16.msra.mxu0 0
      %7390 = vmatprep.subr.bf16.mxu0 0
      %7391 = vmatpush1.bf16.msra.mxu0 0
      %7392 = vmatprep.subr.bf16.mxu0 0
      %7393 = vmatpush1.bf16.msra.mxu0 %v7376
      %7394 = vmatprep.subr.bf16.mxu0 0
      %7395 = vmatpush2.bf16.msra.mxu0 0
      %7396 = vmatprep.subr.bf16.mxu0 0
      %7397 = vmatpush2.bf16.msra.mxu0 0
      %7398 = vmatprep.subr.bf16.mxu0 0
      %7399 = vmatpush2.bf16.msra.mxu0 0
      %7400 = vmatprep.subr.bf16.mxu0 0
      %7401 = vmatpush2.bf16.msra.mxu0 0
      %7402 = vmatprep.subr.bf16.mxu0 0
      %7403 = vmatpush2.bf16.msra.mxu0 0
      %7404 = vmatprep.subr.bf16.mxu0 0
      %7405 = vmatpush2.bf16.msra.mxu0 0
      %7406 = vmatprep.subr.bf16.mxu0 0
      %7407 = vmatpush2.bf16.msra.mxu0 0
      %7408 = vmatprep.subr.bf16.mxu0 0
      %7409 = vmatpush2.bf16.msra.mxu0 0
      %7410 = vmatprep.mubr.bf16.mxu0 0
      %7411 = vmatmul.mubr.bf16.gmra.mxu0 %v7322
      %v7412 = vpop.f32.mrf.mxu0
      %v7413 = vadd.f32 0.0, %v7412
      %v7414 = vpop.f32.mrf.mxu0
      %v7415 = vpop.f32.mrf.mxu0
      %v7416 = vadd.f32 0.0, %v7415
      %v7417 = vpop.f32.mrf.mxu0
      %7418 = vmatprep.mubr.bf16.mxu0 0
      %7419 = vmatmul.mubr.bf16.gmra.mxu0 %v7325
      %v7420 = vpop.f32.mrf.mxu0
      %v7421 = vadd.f32 0.0, %v7420
      %v7422 = vpop.f32.mrf.mxu0
      %v7423 = vpop.f32.mrf.mxu0
      %v7424 = vadd.f32 0.0, %v7423
      %v7425 = vpop.f32.mrf.mxu0
      %7426 = vmatprep.mubr.bf16.mxu0 0
      %7427 = vmatmul.mubr.bf16.gmra.mxu0 %v7328
      %v7428 = vpop.f32.mrf.mxu0
      %v7429 = vadd.f32 0.0, %v7428
      %v7430 = vpop.f32.mrf.mxu0
      %v7431 = vpop.f32.mrf.mxu0
      %v7432 = vadd.f32 0.0, %v7431
      %v7433 = vpop.f32.mrf.mxu0
      %7434 = vmatprep.mubr.bf16.mxu0 0
      %7435 = vmatmul.mubr.bf16.gmra.mxu0 %v7331
      %v7436 = vpop.f32.mrf.mxu0
      %v7437 = vadd.f32 0.0, %v7436
      %v7438 = vpop.f32.mrf.mxu0
      %v7439 = vpop.f32.mrf.mxu0
      %v7440 = vadd.f32 0.0, %v7439
      %v7441 = vpop.f32.mrf.mxu0
      %7442 = vmatprep.mubr.bf16.mxu0 0
      %7443 = vmatmul.mubr.bf16.gmra.mxu0 %v7334
      %v7444 = vpop.f32.mrf.mxu0
      %v7445 = vadd.f32 0.0, %v7444
      %v7446 = vpop.f32.mrf.mxu0
      %v7447 = vpop.f32.mrf.mxu0
      %v7448 = vadd.f32 0.0, %v7447
      %v7449 = vpop.f32.mrf.mxu0
      %7450 = vmatprep.mubr.bf16.mxu0 0
      %7451 = vmatmul.mubr.bf16.gmra.mxu0 %v7337
      %v7452 = vpop.f32.mrf.mxu0
      %v7453 = vadd.f32 0.0, %v7452
      %v7454 = vpop.f32.mrf.mxu0
      %v7455 = vpop.f32.mrf.mxu0
      %v7456 = vadd.f32 0.0, %v7455
      %v7457 = vpop.f32.mrf.mxu0
      %7458 = vmatprep.mubr.bf16.mxu0 0
      %7459 = vmatmul.mubr.bf16.gmra.mxu0 %v7340
      %v7460 = vpop.f32.mrf.mxu0
      %v7461 = vadd.f32 0.0, %v7460
      %v7462 = vpop.f32.mrf.mxu0
      %v7463 = vpop.f32.mrf.mxu0
      %v7464 = vadd.f32 0.0, %v7463
      %v7465 = vpop.f32.mrf.mxu0
      %7466 = vmatprep.mubr.bf16.mxu0 0
      %7467 = vmatmul.mubr.bf16.gmra.mxu0 %v7343
      %v7468 = vpop.f32.mrf.mxu0
      %v7469 = vadd.f32 0.0, %v7468
      %v7470 = vpop.f32.mrf.mxu0
      %v7471 = vpop.f32.mrf.mxu0
      %v7472 = vadd.f32 0.0, %v7471
      %v7473 = vpop.f32.mrf.mxu0
      %7474 = vmatprep.mubr.bf16.mxu0 0
      %7475 = vmatmul.mubr.bf16.gmra.mxu0 %v7346
      %v7476 = vpop.f32.mrf.mxu0
      %v7477 = vadd.f32 0.0, %v7476
      %v7478 = vpop.f32.mrf.mxu0
      %v7479 = vpop.f32.mrf.mxu0
      %v7480 = vadd.f32 0.0, %v7479
      %v7481 = vpop.f32.mrf.mxu0
      %7482 = vmatprep.mubr.bf16.mxu0 0
      %7483 = vmatmul.mubr.bf16.gmra.mxu0 %v7349
      %v7484 = vpop.f32.mrf.mxu0
      %v7485 = vadd.f32 0.0, %v7484
      %v7486 = vpop.f32.mrf.mxu0
      %v7487 = vpop.f32.mrf.mxu0
      %v7488 = vadd.f32 0.0, %v7487
      %v7489 = vpop.f32.mrf.mxu0
      %7490 = vmatprep.mubr.bf16.mxu0 0
      %7491 = vmatmul.mubr.bf16.gmra.mxu0 %v7352
      %v7492 = vpop.f32.mrf.mxu0
      %v7493 = vadd.f32 0.0, %v7492
      %v7494 = vpop.f32.mrf.mxu0
      %v7495 = vpop.f32.mrf.mxu0
      %v7496 = vadd.f32 0.0, %v7495
      %v7497 = vpop.f32.mrf.mxu0
      %7498 = vmatprep.mubr.bf16.mxu0 0
      %7499 = vmatmul.mubr.bf16.gmra.mxu0 %v7355
      %v7500 = vpop.f32.mrf.mxu0
      %v7501 = vadd.f32 0.0, %v7500
      %v7502 = vpop.f32.mrf.mxu0
      %v7503 = vpop.f32.mrf.mxu0
      %v7504 = vadd.f32 0.0, %v7503
      %v7505 = vpop.f32.mrf.mxu0
      %7506 = vmatprep.mubr.bf16.mxu0 0
      %7507 = vmatmul.mubr.bf16.gmra.mxu0 %v7358
      %v7508 = vpop.f32.mrf.mxu0
      %v7509 = vadd.f32 0.0, %v7508
      %v7510 = vpop.f32.mrf.mxu0
      %v7511 = vpop.f32.mrf.mxu0
      %v7512 = vadd.f32 0.0, %v7511
      %v7513 = vpop.f32.mrf.mxu0
      %7514 = vmatprep.mubr.bf16.mxu0 0
      %7515 = vmatmul.mubr.bf16.gmra.mxu0 %v7361
      %v7516 = vpop.f32.mrf.mxu0
      %v7517 = vadd.f32 0.0, %v7516
      %v7518 = vpop.f32.mrf.mxu0
      %v7519 = vpop.f32.mrf.mxu0
      %v7520 = vadd.f32 0.0, %v7519
      %v7521 = vpop.f32.mrf.mxu0
      %7522 = vmatprep.mubr.bf16.mxu0 0
      %7523 = vmatmul.mubr.bf16.gmra.mxu0 %v7364
      %v7524 = vpop.f32.mrf.mxu0
      %v7525 = vadd.f32 0.0, %v7524
      %v7526 = vpop.f32.mrf.mxu0
      %v7527 = vpop.f32.mrf.mxu0
      %v7528 = vadd.f32 0.0, %v7527
      %v7529 = vpop.f32.mrf.mxu0
      %7530 = vmatprep.mubr.bf16.mxu0 0
      %7531 = vmatmul.mubr.bf16.gmra.mxu0 %v7367
      %v7532 = vpop.f32.mrf.mxu0
      %v7533 = vadd.f32 0.0, %v7532
      %v7534 = vpop.f32.mrf.mxu0
      %v7535 = vpop.f32.mrf.mxu0
      %v7536 = vadd.f32 0.0, %v7535
      %v7537 = vpop.f32.mrf.mxu0
      %7538 = vmatprep.mubr.bf16.mxu0 0
      %7539 = vmatmul.mubr.bf16.gmra.mxu0 %v7370
      %v7540 = vpop.f32.mrf.mxu0
      %v7541 = vadd.f32 0.0, %v7540
      %v7542 = vpop.f32.mrf.mxu0
      %v7543 = vpop.f32.mrf.mxu0
      %v7544 = vadd.f32 0.0, %v7543
      %v7545 = vpop.f32.mrf.mxu0
      %7546 = vmatprep.mubr.bf16.mxu0 0
      %7547 = vmatmul.mubr.bf16.gmra.mxu0 %v7373
      %v7548 = vpop.f32.mrf.mxu0
      %v7549 = vadd.f32 0.0, %v7548
      %v7550 = vpop.f32.mrf.mxu0
      %v7551 = vpop.f32.mrf.mxu0
      %v7552 = vadd.f32 0.0, %v7551
      %v7553 = vpop.f32.mrf.mxu0
      %7554 = vdwg.mxu0
      %v7555 = vsel %vm2820, %v7154, 0
      %v7557 = vsel %vm2820, %v7155, 0
      %v7559 = vsel %vm2820, %v7156, 0
      %v7561 = vsel %vm2820, %v7157, 0
      %v7563 = vsel %vm2820, %v7158, 0
      %v7565 = vsel %vm2820, %v7159, 0
      %v7567 = vsel %vm2820, %v7160, 0
      %v7569 = vsel %vm2820, %v7161, 0
      %v7571 = vsel %vm2820, %v7162, 0
      %v7573 = vsel %vm2820, %v7163, 0
      %v7575 = vsel %vm2820, %v7164, 0
      %v7577 = vsel %vm2820, %v7165, 0
      %v7579 = vsel %vm2820, %v7166, 0
      %v7581 = vsel %vm2820, %v7167, 0
      %v7583 = vsel %vm2820, %v7168, 0
      %v7585 = vsel %vm2820, %v7169, 0
      %v7587 = vsel %vm2820, %v7170, 0
      %v7589 = vsel %vm2820, %v7171, 0
      %v7592 = vsel %vm2875, %v7076, 0
      %7594 = vmatprep.subr.bf16.mxu0 0
      %7595 = vmatpush1.bf16.msra.mxu0 0
      %7596 = vmatprep.subr.bf16.mxu0 0
      %7597 = vmatpush1.bf16.msra.mxu0 0
      %7598 = vmatprep.subr.bf16.mxu0 0
      %7599 = vmatpush1.bf16.msra.mxu0 0
      %7600 = vmatprep.subr.bf16.mxu0 0
      %7601 = vmatpush1.bf16.msra.mxu0 0
      %7602 = vmatprep.subr.bf16.mxu0 0
      %7603 = vmatpush1.bf16.msra.mxu0 0
      %7604 = vmatprep.subr.bf16.mxu0 0
      %7605 = vmatpush1.bf16.msra.mxu0 0
      %7606 = vmatprep.subr.bf16.mxu0 0
      %7607 = vmatpush1.bf16.msra.mxu0 0
      %7608 = vmatprep.subr.bf16.mxu0 0
      %7609 = vmatpush1.bf16.msra.mxu0 %v7592
      %7610 = vmatprep.subr.bf16.mxu0 0
      %7611 = vmatpush2.bf16.msra.mxu0 0
      %7612 = vmatprep.subr.bf16.mxu0 0
      %7613 = vmatpush2.bf16.msra.mxu0 0
      %7614 = vmatprep.subr.bf16.mxu0 0
      %7615 = vmatpush2.bf16.msra.mxu0 0
      %7616 = vmatprep.subr.bf16.mxu0 0
      %7617 = vmatpush2.bf16.msra.mxu0 0
      %7618 = vmatprep.subr.bf16.mxu0 0
      %7619 = vmatpush2.bf16.msra.mxu0 0
      %7620 = vmatprep.subr.bf16.mxu0 0
      %7621 = vmatpush2.bf16.msra.mxu0 0
      %7622 = vmatprep.subr.bf16.mxu0 0
      %7623 = vmatpush2.bf16.msra.mxu0 0
      %7624 = vmatprep.subr.bf16.mxu0 0
      %7625 = vmatpush2.bf16.msra.mxu0 0
      %7626 = vmatprep.mubr.bf16.mxu0 0
      %7627 = vmatmul.mubr.bf16.gmra.mxu0 %v7555
      %v7628 = vpop.f32.mrf.mxu0
      %v7629 = vadd.f32 %v7413, %v7628
      %v7630 = vpop.f32.mrf.mxu0
      %v7631 = vpop.f32.mrf.mxu0
      %v7632 = vadd.f32 %v7416, %v7631
      %v7633 = vpop.f32.mrf.mxu0
      %7634 = vmatprep.mubr.bf16.mxu0 0
      %7635 = vmatmul.mubr.bf16.gmra.mxu0 %v7557
      %v7636 = vpop.f32.mrf.mxu0
      %v7637 = vadd.f32 %v7421, %v7636
      %v7638 = vpop.f32.mrf.mxu0
      %v7639 = vpop.f32.mrf.mxu0
      %v7640 = vadd.f32 %v7424, %v7639
      %v7641 = vpop.f32.mrf.mxu0
      %7642 = vmatprep.mubr.bf16.mxu0 0
      %7643 = vmatmul.mubr.bf16.gmra.mxu0 %v7559
      %v7644 = vpop.f32.mrf.mxu0
      %v7645 = vadd.f32 %v7429, %v7644
      %v7646 = vpop.f32.mrf.mxu0
      %v7647 = vpop.f32.mrf.mxu0
      %v7648 = vadd.f32 %v7432, %v7647
      %v7649 = vpop.f32.mrf.mxu0
      %7650 = vmatprep.mubr.bf16.mxu0 0
      %7651 = vmatmul.mubr.bf16.gmra.mxu0 %v7561
      %v7652 = vpop.f32.mrf.mxu0
      %v7653 = vadd.f32 %v7437, %v7652
      %v7654 = vpop.f32.mrf.mxu0
      %v7655 = vpop.f32.mrf.mxu0
      %v7656 = vadd.f32 %v7440, %v7655
      %v7657 = vpop.f32.mrf.mxu0
      %7658 = vmatprep.mubr.bf16.mxu0 0
      %7659 = vmatmul.mubr.bf16.gmra.mxu0 %v7563
      %v7660 = vpop.f32.mrf.mxu0
      %v7661 = vadd.f32 %v7445, %v7660
      %v7662 = vpop.f32.mrf.mxu0
      %v7663 = vpop.f32.mrf.mxu0
      %v7664 = vadd.f32 %v7448, %v7663
      %v7665 = vpop.f32.mrf.mxu0
      %7666 = vmatprep.mubr.bf16.mxu0 0
      %7667 = vmatmul.mubr.bf16.gmra.mxu0 %v7565
      %v7668 = vpop.f32.mrf.mxu0
      %v7669 = vadd.f32 %v7453, %v7668
      %v7670 = vpop.f32.mrf.mxu0
      %v7671 = vpop.f32.mrf.mxu0
      %v7672 = vadd.f32 %v7456, %v7671
      %v7673 = vpop.f32.mrf.mxu0
      %7674 = vmatprep.mubr.bf16.mxu0 0
      %7675 = vmatmul.mubr.bf16.gmra.mxu0 %v7567
      %v7676 = vpop.f32.mrf.mxu0
      %v7677 = vadd.f32 %v7461, %v7676
      %v7678 = vpop.f32.mrf.mxu0
      %v7679 = vpop.f32.mrf.mxu0
      %v7680 = vadd.f32 %v7464, %v7679
      %v7681 = vpop.f32.mrf.mxu0
      %7682 = vmatprep.mubr.bf16.mxu0 0
      %7683 = vmatmul.mubr.bf16.gmra.mxu0 %v7569
      %v7684 = vpop.f32.mrf.mxu0
      %v7685 = vadd.f32 %v7469, %v7684
      %v7686 = vpop.f32.mrf.mxu0
      %v7687 = vpop.f32.mrf.mxu0
      %v7688 = vadd.f32 %v7472, %v7687
      %v7689 = vpop.f32.mrf.mxu0
      %7690 = vmatprep.mubr.bf16.mxu0 0
      %7691 = vmatmul.mubr.bf16.gmra.mxu0 %v7571
      %v7692 = vpop.f32.mrf.mxu0
      %v7693 = vadd.f32 %v7477, %v7692
      %v7694 = vpop.f32.mrf.mxu0
      %v7695 = vpop.f32.mrf.mxu0
      %v7696 = vadd.f32 %v7480, %v7695
      %v7697 = vpop.f32.mrf.mxu0
      %7698 = vmatprep.mubr.bf16.mxu0 0
      %7699 = vmatmul.mubr.bf16.gmra.mxu0 %v7573
      %v7700 = vpop.f32.mrf.mxu0
      %v7701 = vadd.f32 %v7485, %v7700
      %v7702 = vpop.f32.mrf.mxu0
      %v7703 = vpop.f32.mrf.mxu0
      %v7704 = vadd.f32 %v7488, %v7703
      %v7705 = vpop.f32.mrf.mxu0
      %7706 = vmatprep.mubr.bf16.mxu0 0
      %7707 = vmatmul.mubr.bf16.gmra.mxu0 %v7575
      %v7708 = vpop.f32.mrf.mxu0
      %v7709 = vadd.f32 %v7493, %v7708
      %v7710 = vpop.f32.mrf.mxu0
      %v7711 = vpop.f32.mrf.mxu0
      %v7712 = vadd.f32 %v7496, %v7711
      %v7713 = vpop.f32.mrf.mxu0
      %7714 = vmatprep.mubr.bf16.mxu0 0
      %7715 = vmatmul.mubr.bf16.gmra.mxu0 %v7577
      %v7716 = vpop.f32.mrf.mxu0
      %v7717 = vadd.f32 %v7501, %v7716
      %v7718 = vpop.f32.mrf.mxu0
      %v7719 = vpop.f32.mrf.mxu0
      %v7720 = vadd.f32 %v7504, %v7719
      %v7721 = vpop.f32.mrf.mxu0
      %7722 = vmatprep.mubr.bf16.mxu0 0
      %7723 = vmatmul.mubr.bf16.gmra.mxu0 %v7579
      %v7724 = vpop.f32.mrf.mxu0
      %v7725 = vadd.f32 %v7509, %v7724
      %v7726 = vpop.f32.mrf.mxu0
      %v7727 = vpop.f32.mrf.mxu0
      %v7728 = vadd.f32 %v7512, %v7727
      %v7729 = vpop.f32.mrf.mxu0
      %7730 = vmatprep.mubr.bf16.mxu0 0
      %7731 = vmatmul.mubr.bf16.gmra.mxu0 %v7581
      %v7732 = vpop.f32.mrf.mxu0
      %v7733 = vadd.f32 %v7517, %v7732
      %v7734 = vpop.f32.mrf.mxu0
      %v7735 = vpop.f32.mrf.mxu0
      %v7736 = vadd.f32 %v7520, %v7735
      %v7737 = vpop.f32.mrf.mxu0
      %7738 = vmatprep.mubr.bf16.mxu0 0
      %7739 = vmatmul.mubr.bf16.gmra.mxu0 %v7583
      %v7740 = vpop.f32.mrf.mxu0
      %v7741 = vadd.f32 %v7525, %v7740
      %v7742 = vpop.f32.mrf.mxu0
      %v7743 = vpop.f32.mrf.mxu0
      %v7744 = vadd.f32 %v7528, %v7743
      %v7745 = vpop.f32.mrf.mxu0
      %7746 = vmatprep.mubr.bf16.mxu0 0
      %7747 = vmatmul.mubr.bf16.gmra.mxu0 %v7585
      %v7748 = vpop.f32.mrf.mxu0
      %v7749 = vadd.f32 %v7533, %v7748
      %v7750 = vpop.f32.mrf.mxu0
      %v7751 = vpop.f32.mrf.mxu0
      %v7752 = vadd.f32 %v7536, %v7751
      %v7753 = vpop.f32.mrf.mxu0
      %7754 = vmatprep.mubr.bf16.mxu0 0
      %7755 = vmatmul.mubr.bf16.gmra.mxu0 %v7587
      %v7756 = vpop.f32.mrf.mxu0
      %v7757 = vadd.f32 %v7541, %v7756
      %v7758 = vpop.f32.mrf.mxu0
      %v7759 = vpop.f32.mrf.mxu0
      %v7760 = vadd.f32 %v7544, %v7759
      %v7761 = vpop.f32.mrf.mxu0
      %7762 = vmatprep.mubr.bf16.mxu0 0
      %7763 = vmatmul.mubr.bf16.gmra.mxu0 %v7589
      %v7764 = vpop.f32.mrf.mxu0
      %v7765 = vadd.f32 %v7549, %v7764
      %v7766 = vpop.f32.mrf.mxu0
      %v7767 = vpop.f32.mrf.mxu0
      %v7768 = vadd.f32 %v7552, %v7767
      %v7769 = vpop.f32.mrf.mxu0
      %7770 = vdwg.mxu0
      %v7771 = vld [vmem:[#allocation2] sm:$0xe]
      %s7772 = scalar_lea.vmem %s3, 4
      %v7773 = vld [vmem:[%s7772] sm:$0x3]
      %v7775 = vunpack.c.l.b16 %v7771
      %v7776 = vpack.c.b16 %v7118, %v7775
      %v7777 = vrot.slane %v7776, 1
      %v7778 = vrot.slane %v7155, 1
      %v7779 = vsel %vm3278, %v7777, %v7778
      %v7780 = vrot.slane %v7156, 1
      %v7781 = vsel %vm3278, %v7778, %v7780
      %v7782 = vrot.slane %v7157, 1
      %v7783 = vsel %vm3278, %v7780, %v7782
      %v7784 = vrot.slane %v7158, 1
      %v7785 = vsel %vm3278, %v7782, %v7784
      %v7786 = vrot.slane %v7159, 1
      %v7787 = vsel %vm3278, %v7784, %v7786
      %v7788 = vrot.slane %v7160, 1
      %v7789 = vsel %vm3278, %v7786, %v7788
      %v7790 = vrot.slane %v7161, 1
      %v7791 = vsel %vm3278, %v7788, %v7790
      %v7792 = vrot.slane %v7162, 1
      %v7793 = vsel %vm3278, %v7790, %v7792
      %v7794 = vrot.slane %v7163, 1
      %v7795 = vsel %vm3278, %v7792, %v7794
      %v7796 = vrot.slane %v7164, 1
      %v7797 = vsel %vm3278, %v7794, %v7796
      %v7798 = vrot.slane %v7165, 1
      %v7799 = vsel %vm3278, %v7796, %v7798
      %v7800 = vrot.slane %v7166, 1
      %v7801 = vsel %vm3278, %v7798, %v7800
      %v7802 = vrot.slane %v7167, 1
      %v7803 = vsel %vm3278, %v7800, %v7802
      %v7804 = vrot.slane %v7168, 1
      %v7805 = vsel %vm3278, %v7802, %v7804
      %v7806 = vrot.slane %v7169, 1
      %v7807 = vsel %vm3278, %v7804, %v7806
      %v7808 = vrot.slane %v7170, 1
      %v7809 = vsel %vm3278, %v7806, %v7808
      %v7810 = vrot.slane %v7171, 1
      %v7811 = vsel %vm3278, %v7808, %v7810
      %v7812 = vrot.slane %v7172, 1
      %v7813 = vsel %vm3278, %v7810, %v7812
      %v7815 = vsel %vm2820, %v7779, 0
      %v7818 = vsel %vm2820, %v7781, 0
      %v7821 = vsel %vm2820, %v7783, 0
      %v7824 = vsel %vm2820, %v7785, 0
      %v7827 = vsel %vm2820, %v7787, 0
      %v7830 = vsel %vm2820, %v7789, 0
      %v7833 = vsel %vm2820, %v7791, 0
      %v7836 = vsel %vm2820, %v7793, 0
      %v7839 = vsel %vm2820, %v7795, 0
      %v7842 = vsel %vm2820, %v7797, 0
      %v7845 = vsel %vm2820, %v7799, 0
      %v7848 = vsel %vm2820, %v7801, 0
      %v7851 = vsel %vm2820, %v7803, 0
      %v7854 = vsel %vm2820, %v7805, 0
      %v7857 = vsel %vm2820, %v7807, 0
      %v7860 = vsel %vm2820, %v7809, 0
      %v7863 = vsel %vm2820, %v7811, 0
      %v7866 = vsel %vm2820, %v7813, 0
      %v7869 = vsel %vm2875, %v7773, 0
      %7871 = vmatprep.subr.bf16.mxu0 0
      %7872 = vmatpush1.bf16.msra.mxu0 0
      %7873 = vmatprep.subr.bf16.mxu0 0
      %7874 = vmatpush1.bf16.msra.mxu0 0
      %7875 = vmatprep.subr.bf16.mxu0 0
      %7876 = vmatpush1.bf16.msra.mxu0 0
      %7877 = vmatprep.subr.bf16.mxu0 0
      %7878 = vmatpush1.bf16.msra.mxu0 0
      %7879 = vmatprep.subr.bf16.mxu0 0
      %7880 = vmatpush1.bf16.msra.mxu0 0
      %7881 = vmatprep.subr.bf16.mxu0 0
      %7882 = vmatpush1.bf16.msra.mxu0 0
      %7883 = vmatprep.subr.bf16.mxu0 0
      %7884 = vmatpush1.bf16.msra.mxu0 0
      %7885 = vmatprep.subr.bf16.mxu0 0
      %7886 = vmatpush1.bf16.msra.mxu0 %v7869
      %7887 = vmatprep.subr.bf16.mxu0 0
      %7888 = vmatpush2.bf16.msra.mxu0 0
      %7889 = vmatprep.subr.bf16.mxu0 0
      %7890 = vmatpush2.bf16.msra.mxu0 0
      %7891 = vmatprep.subr.bf16.mxu0 0
      %7892 = vmatpush2.bf16.msra.mxu0 0
      %7893 = vmatprep.subr.bf16.mxu0 0
      %7894 = vmatpush2.bf16.msra.mxu0 0
      %7895 = vmatprep.subr.bf16.mxu0 0
      %7896 = vmatpush2.bf16.msra.mxu0 0
      %7897 = vmatprep.subr.bf16.mxu0 0
      %7898 = vmatpush2.bf16.msra.mxu0 0
      %7899 = vmatprep.subr.bf16.mxu0 0
      %7900 = vmatpush2.bf16.msra.mxu0 0
      %7901 = vmatprep.subr.bf16.mxu0 0
      %7902 = vmatpush2.bf16.msra.mxu0 0
      %7903 = vmatprep.mubr.bf16.mxu0 0
      %7904 = vmatmul.mubr.bf16.gmra.mxu0 %v7815
      %v7905 = vpop.f32.mrf.mxu0
      %v7906 = vadd.f32 0.0, %v7905
      %v7907 = vpop.f32.mrf.mxu0
      %v7908 = vpop.f32.mrf.mxu0
      %v7909 = vadd.f32 0.0, %v7908
      %v7910 = vpop.f32.mrf.mxu0
      %7911 = vmatprep.mubr.bf16.mxu0 0
      %7912 = vmatmul.mubr.bf16.gmra.mxu0 %v7818
      %v7913 = vpop.f32.mrf.mxu0
      %v7914 = vadd.f32 0.0, %v7913
      %v7915 = vpop.f32.mrf.mxu0
      %v7916 = vpop.f32.mrf.mxu0
      %v7917 = vadd.f32 0.0, %v7916
      %v7918 = vpop.f32.mrf.mxu0
      %7919 = vmatprep.mubr.bf16.mxu0 0
      %7920 = vmatmul.mubr.bf16.gmra.mxu0 %v7821
      %v7921 = vpop.f32.mrf.mxu0
      %v7922 = vadd.f32 0.0, %v7921
      %v7923 = vpop.f32.mrf.mxu0
      %v7924 = vpop.f32.mrf.mxu0
      %v7925 = vadd.f32 0.0, %v7924
      %v7926 = vpop.f32.mrf.mxu0
      %7927 = vmatprep.mubr.bf16.mxu0 0
      %7928 = vmatmul.mubr.bf16.gmra.mxu0 %v7824
      %v7929 = vpop.f32.mrf.mxu0
      %v7930 = vadd.f32 0.0, %v7929
      %v7931 = vpop.f32.mrf.mxu0
      %v7932 = vpop.f32.mrf.mxu0
      %v7933 = vadd.f32 0.0, %v7932
      %v7934 = vpop.f32.mrf.mxu0
      %7935 = vmatprep.mubr.bf16.mxu0 0
      %7936 = vmatmul.mubr.bf16.gmra.mxu0 %v7827
      %v7937 = vpop.f32.mrf.mxu0
      %v7938 = vadd.f32 0.0, %v7937
      %v7939 = vpop.f32.mrf.mxu0
      %v7940 = vpop.f32.mrf.mxu0
      %v7941 = vadd.f32 0.0, %v7940
      %v7942 = vpop.f32.mrf.mxu0
      %7943 = vmatprep.mubr.bf16.mxu0 0
      %7944 = vmatmul.mubr.bf16.gmra.mxu0 %v7830
      %v7945 = vpop.f32.mrf.mxu0
      %v7946 = vadd.f32 0.0, %v7945
      %v7947 = vpop.f32.mrf.mxu0
      %v7948 = vpop.f32.mrf.mxu0
      %v7949 = vadd.f32 0.0, %v7948
      %v7950 = vpop.f32.mrf.mxu0
      %7951 = vmatprep.mubr.bf16.mxu0 0
      %7952 = vmatmul.mubr.bf16.gmra.mxu0 %v7833
      %v7953 = vpop.f32.mrf.mxu0
      %v7954 = vadd.f32 0.0, %v7953
      %v7955 = vpop.f32.mrf.mxu0
      %v7956 = vpop.f32.mrf.mxu0
      %v7957 = vadd.f32 0.0, %v7956
      %v7958 = vpop.f32.mrf.mxu0
      %7959 = vmatprep.mubr.bf16.mxu0 0
      %7960 = vmatmul.mubr.bf16.gmra.mxu0 %v7836
      %v7961 = vpop.f32.mrf.mxu0
      %v7962 = vadd.f32 0.0, %v7961
      %v7963 = vpop.f32.mrf.mxu0
      %v7964 = vpop.f32.mrf.mxu0
      %v7965 = vadd.f32 0.0, %v7964
      %v7966 = vpop.f32.mrf.mxu0
      %7967 = vmatprep.mubr.bf16.mxu0 0
      %7968 = vmatmul.mubr.bf16.gmra.mxu0 %v7839
      %v7969 = vpop.f32.mrf.mxu0
      %v7970 = vadd.f32 0.0, %v7969
      %v7971 = vpop.f32.mrf.mxu0
      %v7972 = vpop.f32.mrf.mxu0
      %v7973 = vadd.f32 0.0, %v7972
      %v7974 = vpop.f32.mrf.mxu0
      %7975 = vmatprep.mubr.bf16.mxu0 0
      %7976 = vmatmul.mubr.bf16.gmra.mxu0 %v7842
      %v7977 = vpop.f32.mrf.mxu0
      %v7978 = vadd.f32 0.0, %v7977
      %v7979 = vpop.f32.mrf.mxu0
      %v7980 = vpop.f32.mrf.mxu0
      %v7981 = vadd.f32 0.0, %v7980
      %v7982 = vpop.f32.mrf.mxu0
      %7983 = vmatprep.mubr.bf16.mxu0 0
      %7984 = vmatmul.mubr.bf16.gmra.mxu0 %v7845
      %v7985 = vpop.f32.mrf.mxu0
      %v7986 = vadd.f32 0.0, %v7985
      %v7987 = vpop.f32.mrf.mxu0
      %v7988 = vpop.f32.mrf.mxu0
      %v7989 = vadd.f32 0.0, %v7988
      %v7990 = vpop.f32.mrf.mxu0
      %7991 = vmatprep.mubr.bf16.mxu0 0
      %7992 = vmatmul.mubr.bf16.gmra.mxu0 %v7848
      %v7993 = vpop.f32.mrf.mxu0
      %v7994 = vadd.f32 0.0, %v7993
      %v7995 = vpop.f32.mrf.mxu0
      %v7996 = vpop.f32.mrf.mxu0
      %v7997 = vadd.f32 0.0, %v7996
      %v7998 = vpop.f32.mrf.mxu0
      %7999 = vmatprep.mubr.bf16.mxu0 0
      %8000 = vmatmul.mubr.bf16.gmra.mxu0 %v7851
      %v8001 = vpop.f32.mrf.mxu0
      %v8002 = vadd.f32 0.0, %v8001
      %v8003 = vpop.f32.mrf.mxu0
      %v8004 = vpop.f32.mrf.mxu0
      %v8005 = vadd.f32 0.0, %v8004
      %v8006 = vpop.f32.mrf.mxu0
      %8007 = vmatprep.mubr.bf16.mxu0 0
      %8008 = vmatmul.mubr.bf16.gmra.mxu0 %v7854
      %v8009 = vpop.f32.mrf.mxu0
      %v8010 = vadd.f32 0.0, %v8009
      %v8011 = vpop.f32.mrf.mxu0
      %v8012 = vpop.f32.mrf.mxu0
      %v8013 = vadd.f32 0.0, %v8012
      %v8014 = vpop.f32.mrf.mxu0
      %8015 = vmatprep.mubr.bf16.mxu0 0
      %8016 = vmatmul.mubr.bf16.gmra.mxu0 %v7857
      %v8017 = vpop.f32.mrf.mxu0
      %v8018 = vadd.f32 0.0, %v8017
      %v8019 = vpop.f32.mrf.mxu0
      %v8020 = vpop.f32.mrf.mxu0
      %v8021 = vadd.f32 0.0, %v8020
      %v8022 = vpop.f32.mrf.mxu0
      %8023 = vmatprep.mubr.bf16.mxu0 0
      %8024 = vmatmul.mubr.bf16.gmra.mxu0 %v7860
      %v8025 = vpop.f32.mrf.mxu0
      %v8026 = vadd.f32 0.0, %v8025
      %v8027 = vpop.f32.mrf.mxu0
      %v8028 = vpop.f32.mrf.mxu0
      %v8029 = vadd.f32 0.0, %v8028
      %v8030 = vpop.f32.mrf.mxu0
      %8031 = vmatprep.mubr.bf16.mxu0 0
      %8032 = vmatmul.mubr.bf16.gmra.mxu0 %v7863
      %v8033 = vpop.f32.mrf.mxu0
      %v8034 = vadd.f32 0.0, %v8033
      %v8035 = vpop.f32.mrf.mxu0
      %v8036 = vpop.f32.mrf.mxu0
      %v8037 = vadd.f32 0.0, %v8036
      %v8038 = vpop.f32.mrf.mxu0
      %8039 = vmatprep.mubr.bf16.mxu0 0
      %8040 = vmatmul.mubr.bf16.gmra.mxu0 %v7866
      %v8041 = vpop.f32.mrf.mxu0
      %v8042 = vadd.f32 0.0, %v8041
      %v8043 = vpop.f32.mrf.mxu0
      %v8044 = vpop.f32.mrf.mxu0
      %v8045 = vadd.f32 0.0, %v8044
      %v8046 = vpop.f32.mrf.mxu0
      %8047 = vdwg.mxu0
      %v8048 = vadd.f32 %v7629, %v7906
      %v8049 = vadd.f32 %v7632, %v7909
      %v8050 = vadd.f32 %v7637, %v7914
      %v8051 = vadd.f32 %v7640, %v7917
      %v8052 = vadd.f32 %v7645, %v7922
      %v8053 = vadd.f32 %v7648, %v7925
      %v8054 = vadd.f32 %v7653, %v7930
      %v8055 = vadd.f32 %v7656, %v7933
      %v8056 = vadd.f32 %v7661, %v7938
      %v8057 = vadd.f32 %v7664, %v7941
      %v8058 = vadd.f32 %v7669, %v7946
      %v8059 = vadd.f32 %v7672, %v7949
      %v8060 = vadd.f32 %v7677, %v7954
      %v8061 = vadd.f32 %v7680, %v7957
      %v8062 = vadd.f32 %v7685, %v7962
      %v8063 = vadd.f32 %v7688, %v7965
      %v8064 = vadd.f32 %v7693, %v7970
      %v8065 = vadd.f32 %v7696, %v7973
      %v8066 = vadd.f32 %v7701, %v7978
      %v8067 = vadd.f32 %v7704, %v7981
      %v8068 = vadd.f32 %v7709, %v7986
      %v8069 = vadd.f32 %v7712, %v7989
      %v8070 = vadd.f32 %v7717, %v7994
      %v8071 = vadd.f32 %v7720, %v7997
      %v8072 = vadd.f32 %v7725, %v8002
      %v8073 = vadd.f32 %v7728, %v8005
      %v8074 = vadd.f32 %v7733, %v8010
      %v8075 = vadd.f32 %v7736, %v8013
      %v8076 = vadd.f32 %v7741, %v8018
      %v8077 = vadd.f32 %v7744, %v8021
      %v8078 = vadd.f32 %v7749, %v8026
      %v8079 = vadd.f32 %v7752, %v8029
      %v8080 = vadd.f32 %v7757, %v8034
      %v8081 = vadd.f32 %v7760, %v8037
      %v8082 = vadd.f32 %v7765, %v8042
      %v8083 = vadd.f32 %v7768, %v8045
      %v8084 = vld [vmem:[#allocation2 + $0x8] sm:$0xe]
      %v8085 = vld [vmem:[#allocation2 + $0xc] sm:$0xf]
      %v8086 = vld [vmem:[#allocation2 + $0x10] sm:$0xf]
      %v8087 = vld [vmem:[#allocation2 + $0x14] sm:$0xf]
      %v8088 = vld [vmem:[#allocation2 + $0x18] sm:$0xf]
      %v8089 = vld [vmem:[#allocation2 + $0x1c] sm:$0xf]
      %v8090 = vld [vmem:[#allocation2 + $0x20] sm:$0xf]
      %v8091 = vld [vmem:[#allocation2 + $0x24] sm:$0xf]
      %v8092 = vld [vmem:[#allocation2 + $0x28] sm:$0xf]
      %v8093 = vld [vmem:[#allocation2 + $0x2c] sm:$0xf]
      %v8094 = vld [vmem:[#allocation2 + $0x30] sm:$0xf]
      %v8095 = vld [vmem:[#allocation2 + $0x34] sm:$0xf]
      %v8096 = vld [vmem:[#allocation2 + $0x38] sm:$0xf]
      %v8097 = vld [vmem:[#allocation2 + $0x3c] sm:$0xf]
      %v8098 = vld [vmem:[#allocation2 + $0x40] sm:$0xf]
      %v8099 = vld [vmem:[#allocation2 + $0x44] sm:$0xf]
      %v8100 = vld [vmem:[#allocation2 + $0x48] sm:$0xf]
      %v8101 = vld [vmem:[#allocation2 + $0x4c] sm:$0xf]
      %v8102 = vld [vmem:[#allocation2 + $0x50] sm:$0xf]
      %v8103 = vld [vmem:[#allocation2 + $0x54] sm:$0xf]
      %v8104 = vld [vmem:[#allocation2 + $0x58] sm:$0xf]
      %v8105 = vld [vmem:[#allocation2 + $0x5c] sm:$0xf]
      %v8106 = vld [vmem:[#allocation2 + $0x60] sm:$0xf]
      %v8107 = vld [vmem:[#allocation2 + $0x64] sm:$0xf]
      %v8108 = vld [vmem:[#allocation2 + $0x68] sm:$0xf]
      %v8109 = vld [vmem:[#allocation2 + $0x6c] sm:$0xf]
      %v8110 = vld [vmem:[#allocation2 + $0x70] sm:$0xf]
      %v8111 = vld [vmem:[#allocation2 + $0x74] sm:$0xf]
      %v8112 = vld [vmem:[#allocation2 + $0x78] sm:$0xf]
      %v8113 = vld [vmem:[#allocation2 + $0x7c] sm:$0xf]
      %v8114 = vld [vmem:[#allocation2 + $0x80] sm:$0xf]
      %v8115 = vld [vmem:[#allocation2 + $0x84] sm:$0xf]
      %v8116 = vld [vmem:[#allocation2 + $0x88] sm:$0xf]
      %v8117 = vld [vmem:[#allocation2 + $0x8c] sm:$0xf]
      %v8118 = vld [vmem:[#allocation2 + $0x90] sm:$0xf]
      %v8119 = vld [vmem:[#allocation2 + $0x94] sm:$0xf]
      %v8120 = vld [vmem:[#allocation2 + $0x98] sm:$0x1]
      %s8121 = scalar_lea.vmem %s3, 6
      %v8122 = vld [vmem:[%s8121] sm:$0x3]
      %v8160 = vunpack.c.l.b16 %v8084
      %v8161 = vunpack.c.l.b16 %v8085
      %v8162 = vunpack.c.l.b16 %v8086
      %v8163 = vunpack.c.l.b16 %v8087
      %v8164 = vunpack.c.l.b16 %v8088
      %v8165 = vunpack.c.l.b16 %v8089
      %v8166 = vunpack.c.l.b16 %v8090
      %v8167 = vunpack.c.l.b16 %v8091
      %v8168 = vunpack.c.l.b16 %v8092
      %v8169 = vunpack.c.l.b16 %v8093
      %v8170 = vunpack.c.l.b16 %v8094
      %v8171 = vunpack.c.l.b16 %v8095
      %v8172 = vunpack.c.l.b16 %v8096
      %v8173 = vunpack.c.l.b16 %v8097
      %v8174 = vunpack.c.l.b16 %v8098
      %v8175 = vunpack.c.l.b16 %v8099
      %v8176 = vunpack.c.l.b16 %v8100
      %v8177 = vunpack.c.l.b16 %v8101
      %v8178 = vunpack.c.l.b16 %v8102
      %v8179 = vunpack.c.l.b16 %v8103
      %v8180 = vunpack.c.l.b16 %v8104
      %v8181 = vunpack.c.l.b16 %v8105
      %v8182 = vunpack.c.l.b16 %v8106
      %v8183 = vunpack.c.l.b16 %v8107
      %v8184 = vunpack.c.l.b16 %v8108
      %v8185 = vunpack.c.l.b16 %v8109
      %v8186 = vunpack.c.l.b16 %v8110
      %v8187 = vunpack.c.l.b16 %v8111
      %v8188 = vunpack.c.l.b16 %v8112
      %v8189 = vunpack.c.l.b16 %v8113
      %v8190 = vunpack.c.l.b16 %v8114
      %v8191 = vunpack.c.l.b16 %v8115
      %v8192 = vunpack.c.l.b16 %v8116
      %v8193 = vunpack.c.l.b16 %v8117
      %v8194 = vunpack.c.l.b16 %v8118
      %v8195 = vunpack.c.l.b16 %v8119
      %v8196 = vunpack.c.l.b16 %v8120
      %v8197 = vpack.c.b16 %v8161, %v8160
      %v8198 = vpack.c.b16 %v8163, %v8162
      %v8199 = vpack.c.b16 %v8165, %v8164
      %v8200 = vpack.c.b16 %v8167, %v8166
      %v8201 = vpack.c.b16 %v8169, %v8168
      %v8202 = vpack.c.b16 %v8171, %v8170
      %v8203 = vpack.c.b16 %v8173, %v8172
      %v8204 = vpack.c.b16 %v8175, %v8174
      %v8205 = vpack.c.b16 %v8177, %v8176
      %v8206 = vpack.c.b16 %v8179, %v8178
      %v8207 = vpack.c.b16 %v8181, %v8180
      %v8208 = vpack.c.b16 %v8183, %v8182
      %v8209 = vpack.c.b16 %v8185, %v8184
      %v8210 = vpack.c.b16 %v8187, %v8186
      %v8211 = vpack.c.b16 %v8189, %v8188
      %v8212 = vpack.c.b16 %v8191, %v8190
      %v8213 = vpack.c.b16 %v8193, %v8192
      %v8214 = vpack.c.b16 %v8195, %v8194
      %v8215 = vpack.c.b16 %v8196, %v8196
      %v8216 = vrot.slane %v8197, 1
      %v8217 = vrot.slane %v8198, 1
      %v8218 = vsel %vm3278, %v8216, %v8217
      %v8219 = vrot.slane %v8199, 1
      %v8220 = vsel %vm3278, %v8217, %v8219
      %v8221 = vrot.slane %v8200, 1
      %v8222 = vsel %vm3278, %v8219, %v8221
      %v8223 = vrot.slane %v8201, 1
      %v8224 = vsel %vm3278, %v8221, %v8223
      %v8225 = vrot.slane %v8202, 1
      %v8226 = vsel %vm3278, %v8223, %v8225
      %v8227 = vrot.slane %v8203, 1
      %v8228 = vsel %vm3278, %v8225, %v8227
      %v8229 = vrot.slane %v8204, 1
      %v8230 = vsel %vm3278, %v8227, %v8229
      %v8231 = vrot.slane %v8205, 1
      %v8232 = vsel %vm3278, %v8229, %v8231
      %v8233 = vrot.slane %v8206, 1
      %v8234 = vsel %vm3278, %v8231, %v8233
      %v8235 = vrot.slane %v8207, 1
      %v8236 = vsel %vm3278, %v8233, %v8235
      %v8237 = vrot.slane %v8208, 1
      %v8238 = vsel %vm3278, %v8235, %v8237
      %v8239 = vrot.slane %v8209, 1
      %v8240 = vsel %vm3278, %v8237, %v8239
      %v8241 = vrot.slane %v8210, 1
      %v8242 = vsel %vm3278, %v8239, %v8241
      %v8243 = vrot.slane %v8211, 1
      %v8244 = vsel %vm3278, %v8241, %v8243
      %v8245 = vrot.slane %v8212, 1
      %v8246 = vsel %vm3278, %v8243, %v8245
      %v8247 = vrot.slane %v8213, 1
      %v8248 = vsel %vm3278, %v8245, %v8247
      %v8249 = vrot.slane %v8214, 1
      %v8250 = vsel %vm3278, %v8247, %v8249
      %v8251 = vrot.slane %v8215, 1
      %v8252 = vsel %vm3278, %v8249, %v8251
      %v8254 = vsel %vm2820, %v8218, 0
      %v8257 = vsel %vm2820, %v8220, 0
      %v8260 = vsel %vm2820, %v8222, 0
      %v8263 = vsel %vm2820, %v8224, 0
      %v8266 = vsel %vm2820, %v8226, 0
      %v8269 = vsel %vm2820, %v8228, 0
      %v8272 = vsel %vm2820, %v8230, 0
      %v8275 = vsel %vm2820, %v8232, 0
      %v8278 = vsel %vm2820, %v8234, 0
      %v8281 = vsel %vm2820, %v8236, 0
      %v8284 = vsel %vm2820, %v8238, 0
      %v8287 = vsel %vm2820, %v8240, 0
      %v8290 = vsel %vm2820, %v8242, 0
      %v8293 = vsel %vm2820, %v8244, 0
      %v8296 = vsel %vm2820, %v8246, 0
      %v8299 = vsel %vm2820, %v8248, 0
      %v8302 = vsel %vm2820, %v8250, 0
      %v8305 = vsel %vm2820, %v8252, 0
      %v8308 = vsel %vm2875, %v8122, 0
      %8310 = vmatprep.subr.bf16.mxu0 0
      %8311 = vmatpush1.bf16.msra.mxu0 0
      %8312 = vmatprep.subr.bf16.mxu0 0
      %8313 = vmatpush1.bf16.msra.mxu0 0
      %8314 = vmatprep.subr.bf16.mxu0 0
      %8315 = vmatpush1.bf16.msra.mxu0 0
      %8316 = vmatprep.subr.bf16.mxu0 0
      %8317 = vmatpush1.bf16.msra.mxu0 0
      %8318 = vmatprep.subr.bf16.mxu0 0
      %8319 = vmatpush1.bf16.msra.mxu0 0
      %8320 = vmatprep.subr.bf16.mxu0 0
      %8321 = vmatpush1.bf16.msra.mxu0 0
      %8322 = vmatprep.subr.bf16.mxu0 0
      %8323 = vmatpush1.bf16.msra.mxu0 0
      %8324 = vmatprep.subr.bf16.mxu0 0
      %8325 = vmatpush1.bf16.msra.mxu0 %v8308
      %8326 = vmatprep.subr.bf16.mxu0 0
      %8327 = vmatpush2.bf16.msra.mxu0 0
      %8328 = vmatprep.subr.bf16.mxu0 0
      %8329 = vmatpush2.bf16.msra.mxu0 0
      %8330 = vmatprep.subr.bf16.mxu0 0
      %8331 = vmatpush2.bf16.msra.mxu0 0
      %8332 = vmatprep.subr.bf16.mxu0 0
      %8333 = vmatpush2.bf16.msra.mxu0 0
      %8334 = vmatprep.subr.bf16.mxu0 0
      %8335 = vmatpush2.bf16.msra.mxu0 0
      %8336 = vmatprep.subr.bf16.mxu0 0
      %8337 = vmatpush2.bf16.msra.mxu0 0
      %8338 = vmatprep.subr.bf16.mxu0 0
      %8339 = vmatpush2.bf16.msra.mxu0 0
      %8340 = vmatprep.subr.bf16.mxu0 0
      %8341 = vmatpush2.bf16.msra.mxu0 0
      %8342 = vmatprep.mubr.bf16.mxu0 0
      %8343 = vmatmul.mubr.bf16.gmra.mxu0 %v8254
      %v8344 = vpop.f32.mrf.mxu0
      %v8345 = vadd.f32 0.0, %v8344
      %v8346 = vpop.f32.mrf.mxu0
      %v8347 = vpop.f32.mrf.mxu0
      %v8348 = vadd.f32 0.0, %v8347
      %v8349 = vpop.f32.mrf.mxu0
      %8350 = vmatprep.mubr.bf16.mxu0 0
      %8351 = vmatmul.mubr.bf16.gmra.mxu0 %v8257
      %v8352 = vpop.f32.mrf.mxu0
      %v8353 = vadd.f32 0.0, %v8352
      %v8354 = vpop.f32.mrf.mxu0
      %v8355 = vpop.f32.mrf.mxu0
      %v8356 = vadd.f32 0.0, %v8355
      %v8357 = vpop.f32.mrf.mxu0
      %8358 = vmatprep.mubr.bf16.mxu0 0
      %8359 = vmatmul.mubr.bf16.gmra.mxu0 %v8260
      %v8360 = vpop.f32.mrf.mxu0
      %v8361 = vadd.f32 0.0, %v8360
      %v8362 = vpop.f32.mrf.mxu0
      %v8363 = vpop.f32.mrf.mxu0
      %v8364 = vadd.f32 0.0, %v8363
      %v8365 = vpop.f32.mrf.mxu0
      %8366 = vmatprep.mubr.bf16.mxu0 0
      %8367 = vmatmul.mubr.bf16.gmra.mxu0 %v8263
      %v8368 = vpop.f32.mrf.mxu0
      %v8369 = vadd.f32 0.0, %v8368
      %v8370 = vpop.f32.mrf.mxu0
      %v8371 = vpop.f32.mrf.mxu0
      %v8372 = vadd.f32 0.0, %v8371
      %v8373 = vpop.f32.mrf.mxu0
      %8374 = vmatprep.mubr.bf16.mxu0 0
      %8375 = vmatmul.mubr.bf16.gmra.mxu0 %v8266
      %v8376 = vpop.f32.mrf.mxu0
      %v8377 = vadd.f32 0.0, %v8376
      %v8378 = vpop.f32.mrf.mxu0
      %v8379 = vpop.f32.mrf.mxu0
      %v8380 = vadd.f32 0.0, %v8379
      %v8381 = vpop.f32.mrf.mxu0
      %8382 = vmatprep.mubr.bf16.mxu0 0
      %8383 = vmatmul.mubr.bf16.gmra.mxu0 %v8269
      %v8384 = vpop.f32.mrf.mxu0
      %v8385 = vadd.f32 0.0, %v8384
      %v8386 = vpop.f32.mrf.mxu0
      %v8387 = vpop.f32.mrf.mxu0
      %v8388 = vadd.f32 0.0, %v8387
      %v8389 = vpop.f32.mrf.mxu0
      %8390 = vmatprep.mubr.bf16.mxu0 0
      %8391 = vmatmul.mubr.bf16.gmra.mxu0 %v8272
      %v8392 = vpop.f32.mrf.mxu0
      %v8393 = vadd.f32 0.0, %v8392
      %v8394 = vpop.f32.mrf.mxu0
      %v8395 = vpop.f32.mrf.mxu0
      %v8396 = vadd.f32 0.0, %v8395
      %v8397 = vpop.f32.mrf.mxu0
      %8398 = vmatprep.mubr.bf16.mxu0 0
      %8399 = vmatmul.mubr.bf16.gmra.mxu0 %v8275
      %v8400 = vpop.f32.mrf.mxu0
      %v8401 = vadd.f32 0.0, %v8400
      %v8402 = vpop.f32.mrf.mxu0
      %v8403 = vpop.f32.mrf.mxu0
      %v8404 = vadd.f32 0.0, %v8403
      %v8405 = vpop.f32.mrf.mxu0
      %8406 = vmatprep.mubr.bf16.mxu0 0
      %8407 = vmatmul.mubr.bf16.gmra.mxu0 %v8278
      %v8408 = vpop.f32.mrf.mxu0
      %v8409 = vadd.f32 0.0, %v8408
      %v8410 = vpop.f32.mrf.mxu0
      %v8411 = vpop.f32.mrf.mxu0
      %v8412 = vadd.f32 0.0, %v8411
      %v8413 = vpop.f32.mrf.mxu0
      %8414 = vmatprep.mubr.bf16.mxu0 0
      %8415 = vmatmul.mubr.bf16.gmra.mxu0 %v8281
      %v8416 = vpop.f32.mrf.mxu0
      %v8417 = vadd.f32 0.0, %v8416
      %v8418 = vpop.f32.mrf.mxu0
      %v8419 = vpop.f32.mrf.mxu0
      %v8420 = vadd.f32 0.0, %v8419
      %v8421 = vpop.f32.mrf.mxu0
      %8422 = vmatprep.mubr.bf16.mxu0 0
      %8423 = vmatmul.mubr.bf16.gmra.mxu0 %v8284
      %v8424 = vpop.f32.mrf.mxu0
      %v8425 = vadd.f32 0.0, %v8424
      %v8426 = vpop.f32.mrf.mxu0
      %v8427 = vpop.f32.mrf.mxu0
      %v8428 = vadd.f32 0.0, %v8427
      %v8429 = vpop.f32.mrf.mxu0
      %8430 = vmatprep.mubr.bf16.mxu0 0
      %8431 = vmatmul.mubr.bf16.gmra.mxu0 %v8287
      %v8432 = vpop.f32.mrf.mxu0
      %v8433 = vadd.f32 0.0, %v8432
      %v8434 = vpop.f32.mrf.mxu0
      %v8435 = vpop.f32.mrf.mxu0
      %v8436 = vadd.f32 0.0, %v8435
      %v8437 = vpop.f32.mrf.mxu0
      %8438 = vmatprep.mubr.bf16.mxu0 0
      %8439 = vmatmul.mubr.bf16.gmra.mxu0 %v8290
      %v8440 = vpop.f32.mrf.mxu0
      %v8441 = vadd.f32 0.0, %v8440
      %v8442 = vpop.f32.mrf.mxu0
      %v8443 = vpop.f32.mrf.mxu0
      %v8444 = vadd.f32 0.0, %v8443
      %v8445 = vpop.f32.mrf.mxu0
      %8446 = vmatprep.mubr.bf16.mxu0 0
      %8447 = vmatmul.mubr.bf16.gmra.mxu0 %v8293
      %v8448 = vpop.f32.mrf.mxu0
      %v8449 = vadd.f32 0.0, %v8448
      %v8450 = vpop.f32.mrf.mxu0
      %v8451 = vpop.f32.mrf.mxu0
      %v8452 = vadd.f32 0.0, %v8451
      %v8453 = vpop.f32.mrf.mxu0
      %8454 = vmatprep.mubr.bf16.mxu0 0
      %8455 = vmatmul.mubr.bf16.gmra.mxu0 %v8296
      %v8456 = vpop.f32.mrf.mxu0
      %v8457 = vadd.f32 0.0, %v8456
      %v8458 = vpop.f32.mrf.mxu0
      %v8459 = vpop.f32.mrf.mxu0
      %v8460 = vadd.f32 0.0, %v8459
      %v8461 = vpop.f32.mrf.mxu0
      %8462 = vmatprep.mubr.bf16.mxu0 0
      %8463 = vmatmul.mubr.bf16.gmra.mxu0 %v8299
      %v8464 = vpop.f32.mrf.mxu0
      %v8465 = vadd.f32 0.0, %v8464
      %v8466 = vpop.f32.mrf.mxu0
      %v8467 = vpop.f32.mrf.mxu0
      %v8468 = vadd.f32 0.0, %v8467
      %v8469 = vpop.f32.mrf.mxu0
      %8470 = vmatprep.mubr.bf16.mxu0 0
      %8471 = vmatmul.mubr.bf16.gmra.mxu0 %v8302
      %v8472 = vpop.f32.mrf.mxu0
      %v8473 = vadd.f32 0.0, %v8472
      %v8474 = vpop.f32.mrf.mxu0
      %v8475 = vpop.f32.mrf.mxu0
      %v8476 = vadd.f32 0.0, %v8475
      %v8477 = vpop.f32.mrf.mxu0
      %8478 = vmatprep.mubr.bf16.mxu0 0
      %8479 = vmatmul.mubr.bf16.gmra.mxu0 %v8305
      %v8480 = vpop.f32.mrf.mxu0
      %v8481 = vadd.f32 0.0, %v8480
      %v8482 = vpop.f32.mrf.mxu0
      %v8483 = vpop.f32.mrf.mxu0
      %v8484 = vadd.f32 0.0, %v8483
      %v8485 = vpop.f32.mrf.mxu0
      %8486 = vdwg.mxu0
      %v8487 = vadd.f32 %v8048, %v8345
      %v8488 = vadd.f32 %v8049, %v8348
      %v8489 = vadd.f32 %v8050, %v8353
      %v8490 = vadd.f32 %v8051, %v8356
      %v8491 = vadd.f32 %v8052, %v8361
      %v8492 = vadd.f32 %v8053, %v8364
      %v8493 = vadd.f32 %v8054, %v8369
      %v8494 = vadd.f32 %v8055, %v8372
      %v8495 = vadd.f32 %v8056, %v8377
      %v8496 = vadd.f32 %v8057, %v8380
      %v8497 = vadd.f32 %v8058, %v8385
      %v8498 = vadd.f32 %v8059, %v8388
      %v8499 = vadd.f32 %v8060, %v8393
      %v8500 = vadd.f32 %v8061, %v8396
      %v8501 = vadd.f32 %v8062, %v8401
      %v8502 = vadd.f32 %v8063, %v8404
      %v8503 = vadd.f32 %v8064, %v8409
      %v8504 = vadd.f32 %v8065, %v8412
      %v8505 = vadd.f32 %v8066, %v8417
      %v8506 = vadd.f32 %v8067, %v8420
      %v8507 = vadd.f32 %v8068, %v8425
      %v8508 = vadd.f32 %v8069, %v8428
      %v8509 = vadd.f32 %v8070, %v8433
      %v8510 = vadd.f32 %v8071, %v8436
      %v8511 = vadd.f32 %v8072, %v8441
      %v8512 = vadd.f32 %v8073, %v8444
      %v8513 = vadd.f32 %v8074, %v8449
      %v8514 = vadd.f32 %v8075, %v8452
      %v8515 = vadd.f32 %v8076, %v8457
      %v8516 = vadd.f32 %v8077, %v8460
      %v8517 = vadd.f32 %v8078, %v8465
      %v8518 = vadd.f32 %v8079, %v8468
      %v8519 = vadd.f32 %v8080, %v8473
      %v8520 = vadd.f32 %v8081, %v8476
      %v8521 = vadd.f32 %v8082, %v8481
      %v8522 = vadd.f32 %v8083, %v8484
      %v8523 = vld [vmem:[#allocation2 + $0x98] sm:$0x3]
      %s8524 = scalar_lea.vmem %s3, 8
      %v8525 = vld [vmem:[%s8524] sm:$0x3]
      %v8527 = vunpack.c.l.b16 %v8523
      %v8528 = vpack.c.b16 %v8527, %v8527
      %v8530 = vshrl.u32 %v8197, 16
      %v8532 = vrot.slane %v8530, 1
      %v8533 = vshll.u32 %v8197, 16
      %v8535 = vrot.slane %v8533, 2
      %v8536 = vor.u32 %v8532, %v8535
      %v8538 = vshrl.u32 %v8198, 16
      %v8540 = vrot.slane %v8538, 1
      %v8541 = vshll.u32 %v8198, 16
      %v8543 = vrot.slane %v8541, 2
      %v8544 = vor.u32 %v8540, %v8543
      %v8545 = vsel %vm4031, %v8536, %v8544
      %v8547 = vshrl.u32 %v8199, 16
      %v8549 = vrot.slane %v8547, 1
      %v8550 = vshll.u32 %v8199, 16
      %v8552 = vrot.slane %v8550, 2
      %v8553 = vor.u32 %v8549, %v8552
      %v8554 = vsel %vm4031, %v8544, %v8553
      %v8556 = vshrl.u32 %v8200, 16
      %v8558 = vrot.slane %v8556, 1
      %v8559 = vshll.u32 %v8200, 16
      %v8561 = vrot.slane %v8559, 2
      %v8562 = vor.u32 %v8558, %v8561
      %v8563 = vsel %vm4031, %v8553, %v8562
      %v8565 = vshrl.u32 %v8201, 16
      %v8567 = vrot.slane %v8565, 1
      %v8568 = vshll.u32 %v8201, 16
      %v8570 = vrot.slane %v8568, 2
      %v8571 = vor.u32 %v8567, %v8570
      %v8572 = vsel %vm4031, %v8562, %v8571
      %v8574 = vshrl.u32 %v8202, 16
      %v8576 = vrot.slane %v8574, 1
      %v8577 = vshll.u32 %v8202, 16
      %v8579 = vrot.slane %v8577, 2
      %v8580 = vor.u32 %v8576, %v8579
      %v8581 = vsel %vm4031, %v8571, %v8580
      %v8583 = vshrl.u32 %v8203, 16
      %v8585 = vrot.slane %v8583, 1
      %v8586 = vshll.u32 %v8203, 16
      %v8588 = vrot.slane %v8586, 2
      %v8589 = vor.u32 %v8585, %v8588
      %v8590 = vsel %vm4031, %v8580, %v8589
      %v8592 = vshrl.u32 %v8204, 16
      %v8594 = vrot.slane %v8592, 1
      %v8595 = vshll.u32 %v8204, 16
      %v8597 = vrot.slane %v8595, 2
      %v8598 = vor.u32 %v8594, %v8597
      %v8599 = vsel %vm4031, %v8589, %v8598
      %v8601 = vshrl.u32 %v8205, 16
      %v8603 = vrot.slane %v8601, 1
      %v8604 = vshll.u32 %v8205, 16
      %v8606 = vrot.slane %v8604, 2
      %v8607 = vor.u32 %v8603, %v8606
      %v8608 = vsel %vm4031, %v8598, %v8607
      %v8610 = vshrl.u32 %v8206, 16
      %v8612 = vrot.slane %v8610, 1
      %v8613 = vshll.u32 %v8206, 16
      %v8615 = vrot.slane %v8613, 2
      %v8616 = vor.u32 %v8612, %v8615
      %v8617 = vsel %vm4031, %v8607, %v8616
      %v8619 = vshrl.u32 %v8207, 16
      %v8621 = vrot.slane %v8619, 1
      %v8622 = vshll.u32 %v8207, 16
      %v8624 = vrot.slane %v8622, 2
      %v8625 = vor.u32 %v8621, %v8624
      %v8626 = vsel %vm4031, %v8616, %v8625
      %v8628 = vshrl.u32 %v8208, 16
      %v8630 = vrot.slane %v8628, 1
      %v8631 = vshll.u32 %v8208, 16
      %v8633 = vrot.slane %v8631, 2
      %v8634 = vor.u32 %v8630, %v8633
      %v8635 = vsel %vm4031, %v8625, %v8634
      %v8637 = vshrl.u32 %v8209, 16
      %v8639 = vrot.slane %v8637, 1
      %v8640 = vshll.u32 %v8209, 16
      %v8642 = vrot.slane %v8640, 2
      %v8643 = vor.u32 %v8639, %v8642
      %v8644 = vsel %vm4031, %v8634, %v8643
      %v8646 = vshrl.u32 %v8210, 16
      %v8648 = vrot.slane %v8646, 1
      %v8649 = vshll.u32 %v8210, 16
      %v8651 = vrot.slane %v8649, 2
      %v8652 = vor.u32 %v8648, %v8651
      %v8653 = vsel %vm4031, %v8643, %v8652
      %v8655 = vshrl.u32 %v8211, 16
      %v8657 = vrot.slane %v8655, 1
      %v8658 = vshll.u32 %v8211, 16
      %v8660 = vrot.slane %v8658, 2
      %v8661 = vor.u32 %v8657, %v8660
      %v8662 = vsel %vm4031, %v8652, %v8661
      %v8664 = vshrl.u32 %v8212, 16
      %v8666 = vrot.slane %v8664, 1
      %v8667 = vshll.u32 %v8212, 16
      %v8669 = vrot.slane %v8667, 2
      %v8670 = vor.u32 %v8666, %v8669
      %v8671 = vsel %vm4031, %v8661, %v8670
      %v8673 = vshrl.u32 %v8213, 16
      %v8675 = vrot.slane %v8673, 1
      %v8676 = vshll.u32 %v8213, 16
      %v8678 = vrot.slane %v8676, 2
      %v8679 = vor.u32 %v8675, %v8678
      %v8680 = vsel %vm4031, %v8670, %v8679
      %v8682 = vshrl.u32 %v8214, 16
      %v8684 = vrot.slane %v8682, 1
      %v8685 = vshll.u32 %v8214, 16
      %v8687 = vrot.slane %v8685, 2
      %v8688 = vor.u32 %v8684, %v8687
      %v8689 = vsel %vm4031, %v8679, %v8688
      %v8691 = vshrl.u32 %v8528, 16
      %v8693 = vrot.slane %v8691, 1
      %v8694 = vshll.u32 %v8528, 16
      %v8696 = vrot.slane %v8694, 2
      %v8697 = vor.u32 %v8693, %v8696
      %v8698 = vsel %vm4031, %v8688, %v8697
      %v8700 = vsel %vm2820, %v8545, 0
      %v8703 = vsel %vm2820, %v8554, 0
      %v8706 = vsel %vm2820, %v8563, 0
      %v8709 = vsel %vm2820, %v8572, 0
      %v8712 = vsel %vm2820, %v8581, 0
      %v8715 = vsel %vm2820, %v8590, 0
      %v8718 = vsel %vm2820, %v8599, 0
      %v8721 = vsel %vm2820, %v8608, 0
      %v8724 = vsel %vm2820, %v8617, 0
      %v8727 = vsel %vm2820, %v8626, 0
      %v8730 = vsel %vm2820, %v8635, 0
      %v8733 = vsel %vm2820, %v8644, 0
      %v8736 = vsel %vm2820, %v8653, 0
      %v8739 = vsel %vm2820, %v8662, 0
      %v8742 = vsel %vm2820, %v8671, 0
      %v8745 = vsel %vm2820, %v8680, 0
      %v8748 = vsel %vm2820, %v8689, 0
      %v8751 = vsel %vm2820, %v8698, 0
      %v8754 = vsel %vm2875, %v8525, 0
      %8756 = vmatprep.subr.bf16.mxu0 0
      %8757 = vmatpush1.bf16.msra.mxu0 0
      %8758 = vmatprep.subr.bf16.mxu0 0
      %8759 = vmatpush1.bf16.msra.mxu0 0
      %8760 = vmatprep.subr.bf16.mxu0 0
      %8761 = vmatpush1.bf16.msra.mxu0 0
      %8762 = vmatprep.subr.bf16.mxu0 0
      %8763 = vmatpush1.bf16.msra.mxu0 0
      %8764 = vmatprep.subr.bf16.mxu0 0
      %8765 = vmatpush1.bf16.msra.mxu0 0
      %8766 = vmatprep.subr.bf16.mxu0 0
      %8767 = vmatpush1.bf16.msra.mxu0 0
      %8768 = vmatprep.subr.bf16.mxu0 0
      %8769 = vmatpush1.bf16.msra.mxu0 0
      %8770 = vmatprep.subr.bf16.mxu0 0
      %8771 = vmatpush1.bf16.msra.mxu0 %v8754
      %8772 = vmatprep.subr.bf16.mxu0 0
      %8773 = vmatpush2.bf16.msra.mxu0 0
      %8774 = vmatprep.subr.bf16.mxu0 0
      %8775 = vmatpush2.bf16.msra.mxu0 0
      %8776 = vmatprep.subr.bf16.mxu0 0
      %8777 = vmatpush2.bf16.msra.mxu0 0
      %8778 = vmatprep.subr.bf16.mxu0 0
      %8779 = vmatpush2.bf16.msra.mxu0 0
      %8780 = vmatprep.subr.bf16.mxu0 0
      %8781 = vmatpush2.bf16.msra.mxu0 0
      %8782 = vmatprep.subr.bf16.mxu0 0
      %8783 = vmatpush2.bf16.msra.mxu0 0
      %8784 = vmatprep.subr.bf16.mxu0 0
      %8785 = vmatpush2.bf16.msra.mxu0 0
      %8786 = vmatprep.subr.bf16.mxu0 0
      %8787 = vmatpush2.bf16.msra.mxu0 0
      %8788 = vmatprep.mubr.bf16.mxu0 0
      %8789 = vmatmul.mubr.bf16.gmra.mxu0 %v8700
      %v8790 = vpop.f32.mrf.mxu0
      %v8791 = vadd.f32 0.0, %v8790
      %v8792 = vpop.f32.mrf.mxu0
      %v8793 = vpop.f32.mrf.mxu0
      %v8794 = vadd.f32 0.0, %v8793
      %v8795 = vpop.f32.mrf.mxu0
      %8796 = vmatprep.mubr.bf16.mxu0 0
      %8797 = vmatmul.mubr.bf16.gmra.mxu0 %v8703
      %v8798 = vpop.f32.mrf.mxu0
      %v8799 = vadd.f32 0.0, %v8798
      %v8800 = vpop.f32.mrf.mxu0
      %v8801 = vpop.f32.mrf.mxu0
      %v8802 = vadd.f32 0.0, %v8801
      %v8803 = vpop.f32.mrf.mxu0
      %8804 = vmatprep.mubr.bf16.mxu0 0
      %8805 = vmatmul.mubr.bf16.gmra.mxu0 %v8706
      %v8806 = vpop.f32.mrf.mxu0
      %v8807 = vadd.f32 0.0, %v8806
      %v8808 = vpop.f32.mrf.mxu0
      %v8809 = vpop.f32.mrf.mxu0
      %v8810 = vadd.f32 0.0, %v8809
      %v8811 = vpop.f32.mrf.mxu0
      %8812 = vmatprep.mubr.bf16.mxu0 0
      %8813 = vmatmul.mubr.bf16.gmra.mxu0 %v8709
      %v8814 = vpop.f32.mrf.mxu0
      %v8815 = vadd.f32 0.0, %v8814
      %v8816 = vpop.f32.mrf.mxu0
      %v8817 = vpop.f32.mrf.mxu0
      %v8818 = vadd.f32 0.0, %v8817
      %v8819 = vpop.f32.mrf.mxu0
      %8820 = vmatprep.mubr.bf16.mxu0 0
      %8821 = vmatmul.mubr.bf16.gmra.mxu0 %v8712
      %v8822 = vpop.f32.mrf.mxu0
      %v8823 = vadd.f32 0.0, %v8822
      %v8824 = vpop.f32.mrf.mxu0
      %v8825 = vpop.f32.mrf.mxu0
      %v8826 = vadd.f32 0.0, %v8825
      %v8827 = vpop.f32.mrf.mxu0
      %8828 = vmatprep.mubr.bf16.mxu0 0
      %8829 = vmatmul.mubr.bf16.gmra.mxu0 %v8715
      %v8830 = vpop.f32.mrf.mxu0
      %v8831 = vadd.f32 0.0, %v8830
      %v8832 = vpop.f32.mrf.mxu0
      %v8833 = vpop.f32.mrf.mxu0
      %v8834 = vadd.f32 0.0, %v8833
      %v8835 = vpop.f32.mrf.mxu0
      %8836 = vmatprep.mubr.bf16.mxu0 0
      %8837 = vmatmul.mubr.bf16.gmra.mxu0 %v8718
      %v8838 = vpop.f32.mrf.mxu0
      %v8839 = vadd.f32 0.0, %v8838
      %v8840 = vpop.f32.mrf.mxu0
      %v8841 = vpop.f32.mrf.mxu0
      %v8842 = vadd.f32 0.0, %v8841
      %v8843 = vpop.f32.mrf.mxu0
      %8844 = vmatprep.mubr.bf16.mxu0 0
      %8845 = vmatmul.mubr.bf16.gmra.mxu0 %v8721
      %v8846 = vpop.f32.mrf.mxu0
      %v8847 = vadd.f32 0.0, %v8846
      %v8848 = vpop.f32.mrf.mxu0
      %v8849 = vpop.f32.mrf.mxu0
      %v8850 = vadd.f32 0.0, %v8849
      %v8851 = vpop.f32.mrf.mxu0
      %8852 = vmatprep.mubr.bf16.mxu0 0
      %8853 = vmatmul.mubr.bf16.gmra.mxu0 %v8724
      %v8854 = vpop.f32.mrf.mxu0
      %v8855 = vadd.f32 0.0, %v8854
      %v8856 = vpop.f32.mrf.mxu0
      %v8857 = vpop.f32.mrf.mxu0
      %v8858 = vadd.f32 0.0, %v8857
      %v8859 = vpop.f32.mrf.mxu0
      %8860 = vmatprep.mubr.bf16.mxu0 0
      %8861 = vmatmul.mubr.bf16.gmra.mxu0 %v8727
      %v8862 = vpop.f32.mrf.mxu0
      %v8863 = vadd.f32 0.0, %v8862
      %v8864 = vpop.f32.mrf.mxu0
      %v8865 = vpop.f32.mrf.mxu0
      %v8866 = vadd.f32 0.0, %v8865
      %v8867 = vpop.f32.mrf.mxu0
      %8868 = vmatprep.mubr.bf16.mxu0 0
      %8869 = vmatmul.mubr.bf16.gmra.mxu0 %v8730
      %v8870 = vpop.f32.mrf.mxu0
      %v8871 = vadd.f32 0.0, %v8870
      %v8872 = vpop.f32.mrf.mxu0
      %v8873 = vpop.f32.mrf.mxu0
      %v8874 = vadd.f32 0.0, %v8873
      %v8875 = vpop.f32.mrf.mxu0
      %8876 = vmatprep.mubr.bf16.mxu0 0
      %8877 = vmatmul.mubr.bf16.gmra.mxu0 %v8733
      %v8878 = vpop.f32.mrf.mxu0
      %v8879 = vadd.f32 0.0, %v8878
      %v8880 = vpop.f32.mrf.mxu0
      %v8881 = vpop.f32.mrf.mxu0
      %v8882 = vadd.f32 0.0, %v8881
      %v8883 = vpop.f32.mrf.mxu0
      %8884 = vmatprep.mubr.bf16.mxu0 0
      %8885 = vmatmul.mubr.bf16.gmra.mxu0 %v8736
      %v8886 = vpop.f32.mrf.mxu0
      %v8887 = vadd.f32 0.0, %v8886
      %v8888 = vpop.f32.mrf.mxu0
      %v8889 = vpop.f32.mrf.mxu0
      %v8890 = vadd.f32 0.0, %v8889
      %v8891 = vpop.f32.mrf.mxu0
      %8892 = vmatprep.mubr.bf16.mxu0 0
      %8893 = vmatmul.mubr.bf16.gmra.mxu0 %v8739
      %v8894 = vpop.f32.mrf.mxu0
      %v8895 = vadd.f32 0.0, %v8894
      %v8896 = vpop.f32.mrf.mxu0
      %v8897 = vpop.f32.mrf.mxu0
      %v8898 = vadd.f32 0.0, %v8897
      %v8899 = vpop.f32.mrf.mxu0
      %8900 = vmatprep.mubr.bf16.mxu0 0
      %8901 = vmatmul.mubr.bf16.gmra.mxu0 %v8742
      %v8902 = vpop.f32.mrf.mxu0
      %v8903 = vadd.f32 0.0, %v8902
      %v8904 = vpop.f32.mrf.mxu0
      %v8905 = vpop.f32.mrf.mxu0
      %v8906 = vadd.f32 0.0, %v8905
      %v8907 = vpop.f32.mrf.mxu0
      %8908 = vmatprep.mubr.bf16.mxu0 0
      %8909 = vmatmul.mubr.bf16.gmra.mxu0 %v8745
      %v8910 = vpop.f32.mrf.mxu0
      %v8911 = vadd.f32 0.0, %v8910
      %v8912 = vpop.f32.mrf.mxu0
      %v8913 = vpop.f32.mrf.mxu0
      %v8914 = vadd.f32 0.0, %v8913
      %v8915 = vpop.f32.mrf.mxu0
      %8916 = vmatprep.mubr.bf16.mxu0 0
      %8917 = vmatmul.mubr.bf16.gmra.mxu0 %v8748
      %v8918 = vpop.f32.mrf.mxu0
      %v8919 = vadd.f32 0.0, %v8918
      %v8920 = vpop.f32.mrf.mxu0
      %v8921 = vpop.f32.mrf.mxu0
      %v8922 = vadd.f32 0.0, %v8921
      %v8923 = vpop.f32.mrf.mxu0
      %8924 = vmatprep.mubr.bf16.mxu0 0
      %8925 = vmatmul.mubr.bf16.gmra.mxu0 %v8751
      %v8926 = vpop.f32.mrf.mxu0
      %v8927 = vadd.f32 0.0, %v8926
      %v8928 = vpop.f32.mrf.mxu0
      %v8929 = vpop.f32.mrf.mxu0
      %v8930 = vadd.f32 0.0, %v8929
      %v8931 = vpop.f32.mrf.mxu0
      %8932 = vdwg.mxu0
      %v8933 = vadd.f32 %v8487, %v8791
      %v8934 = vadd.f32 %v8488, %v8794
      %v8935 = vadd.f32 %v8489, %v8799
      %v8936 = vadd.f32 %v8490, %v8802
      %v8937 = vadd.f32 %v8491, %v8807
      %v8938 = vadd.f32 %v8492, %v8810
      %v8939 = vadd.f32 %v8493, %v8815
      %v8940 = vadd.f32 %v8494, %v8818
      %v8941 = vadd.f32 %v8495, %v8823
      %v8942 = vadd.f32 %v8496, %v8826
      %v8943 = vadd.f32 %v8497, %v8831
      %v8944 = vadd.f32 %v8498, %v8834
      %v8945 = vadd.f32 %v8499, %v8839
      %v8946 = vadd.f32 %v8500, %v8842
      %v8947 = vadd.f32 %v8501, %v8847
      %v8948 = vadd.f32 %v8502, %v8850
      %v8949 = vadd.f32 %v8503, %v8855
      %v8950 = vadd.f32 %v8504, %v8858
      %v8951 = vadd.f32 %v8505, %v8863
      %v8952 = vadd.f32 %v8506, %v8866
      %v8953 = vadd.f32 %v8507, %v8871
      %v8954 = vadd.f32 %v8508, %v8874
      %v8955 = vadd.f32 %v8509, %v8879
      %v8956 = vadd.f32 %v8510, %v8882
      %v8957 = vadd.f32 %v8511, %v8887
      %v8958 = vadd.f32 %v8512, %v8890
      %v8959 = vadd.f32 %v8513, %v8895
      %v8960 = vadd.f32 %v8514, %v8898
      %v8961 = vadd.f32 %v8515, %v8903
      %v8962 = vadd.f32 %v8516, %v8906
      %v8963 = vadd.f32 %v8517, %v8911
      %v8964 = vadd.f32 %v8518, %v8914
      %v8965 = vadd.f32 %v8519, %v8919
      %v8966 = vadd.f32 %v8520, %v8922
      %v8967 = vadd.f32 %v8521, %v8927
      %v8968 = vadd.f32 %v8522, %v8930
      %v8969 = vld [vmem:[#allocation2 + $0x8] sm:$0xc]
      %s8970 = scalar_lea.vmem %s3, 10
      %v8971 = vld [vmem:[%s8970] sm:$0x3]
      %v8973 = vunpack.c.l.b16 %v8969
      %v8974 = vpack.c.b16 %v8161, %v8973
      %v8975 = vrot.slane %v8974, 2
      %v8976 = vrot.slane %v8198, 2
      %v8977 = vsel %vm4478, %v8975, %v8976
      %v8978 = vrot.slane %v8199, 2
      %v8979 = vsel %vm4478, %v8976, %v8978
      %v8980 = vrot.slane %v8200, 2
      %v8981 = vsel %vm4478, %v8978, %v8980
      %v8982 = vrot.slane %v8201, 2
      %v8983 = vsel %vm4478, %v8980, %v8982
      %v8984 = vrot.slane %v8202, 2
      %v8985 = vsel %vm4478, %v8982, %v8984
      %v8986 = vrot.slane %v8203, 2
      %v8987 = vsel %vm4478, %v8984, %v8986
      %v8988 = vrot.slane %v8204, 2
      %v8989 = vsel %vm4478, %v8986, %v8988
      %v8990 = vrot.slane %v8205, 2
      %v8991 = vsel %vm4478, %v8988, %v8990
      %v8992 = vrot.slane %v8206, 2
      %v8993 = vsel %vm4478, %v8990, %v8992
      %v8994 = vrot.slane %v8207, 2
      %v8995 = vsel %vm4478, %v8992, %v8994
      %v8996 = vrot.slane %v8208, 2
      %v8997 = vsel %vm4478, %v8994, %v8996
      %v8998 = vrot.slane %v8209, 2
      %v8999 = vsel %vm4478, %v8996, %v8998
      %v9000 = vrot.slane %v8210, 2
      %v9001 = vsel %vm4478, %v8998, %v9000
      %v9002 = vrot.slane %v8211, 2
      %v9003 = vsel %vm4478, %v9000, %v9002
      %v9004 = vrot.slane %v8212, 2
      %v9005 = vsel %vm4478, %v9002, %v9004
      %v9006 = vrot.slane %v8213, 2
      %v9007 = vsel %vm4478, %v9004, %v9006
      %v9008 = vrot.slane %v8214, 2
      %v9009 = vsel %vm4478, %v9006, %v9008
      %v9010 = vrot.slane %v8528, 2
      %v9011 = vsel %vm4478, %v9008, %v9010
      %v9013 = vsel %vm2820, %v8977, 0
      %v9016 = vsel %vm2820, %v8979, 0
      %v9019 = vsel %vm2820, %v8981, 0
      %v9022 = vsel %vm2820, %v8983, 0
      %v9025 = vsel %vm2820, %v8985, 0
      %v9028 = vsel %vm2820, %v8987, 0
      %v9031 = vsel %vm2820, %v8989, 0
      %v9034 = vsel %vm2820, %v8991, 0
      %v9037 = vsel %vm2820, %v8993, 0
      %v9040 = vsel %vm2820, %v8995, 0
      %v9043 = vsel %vm2820, %v8997, 0
      %v9046 = vsel %vm2820, %v8999, 0
      %v9049 = vsel %vm2820, %v9001, 0
      %v9052 = vsel %vm2820, %v9003, 0
      %v9055 = vsel %vm2820, %v9005, 0
      %v9058 = vsel %vm2820, %v9007, 0
      %v9061 = vsel %vm2820, %v9009, 0
      %v9064 = vsel %vm2820, %v9011, 0
      %v9067 = vsel %vm2875, %v8971, 0
      %9069 = vmatprep.subr.bf16.mxu0 0
      %9070 = vmatpush1.bf16.msra.mxu0 0
      %9071 = vmatprep.subr.bf16.mxu0 0
      %9072 = vmatpush1.bf16.msra.mxu0 0
      %9073 = vmatprep.subr.bf16.mxu0 0
      %9074 = vmatpush1.bf16.msra.mxu0 0
      %9075 = vmatprep.subr.bf16.mxu0 0
      %9076 = vmatpush1.bf16.msra.mxu0 0
      %9077 = vmatprep.subr.bf16.mxu0 0
      %9078 = vmatpush1.bf16.msra.mxu0 0
      %9079 = vmatprep.subr.bf16.mxu0 0
      %9080 = vmatpush1.bf16.msra.mxu0 0
      %9081 = vmatprep.subr.bf16.mxu0 0
      %9082 = vmatpush1.bf16.msra.mxu0 0
      %9083 = vmatprep.subr.bf16.mxu0 0
      %9084 = vmatpush1.bf16.msra.mxu0 %v9067
      %9085 = vmatprep.subr.bf16.mxu0 0
      %9086 = vmatpush2.bf16.msra.mxu0 0
      %9087 = vmatprep.subr.bf16.mxu0 0
      %9088 = vmatpush2.bf16.msra.mxu0 0
      %9089 = vmatprep.subr.bf16.mxu0 0
      %9090 = vmatpush2.bf16.msra.mxu0 0
      %9091 = vmatprep.subr.bf16.mxu0 0
      %9092 = vmatpush2.bf16.msra.mxu0 0
      %9093 = vmatprep.subr.bf16.mxu0 0
      %9094 = vmatpush2.bf16.msra.mxu0 0
      %9095 = vmatprep.subr.bf16.mxu0 0
      %9096 = vmatpush2.bf16.msra.mxu0 0
      %9097 = vmatprep.subr.bf16.mxu0 0
      %9098 = vmatpush2.bf16.msra.mxu0 0
      %9099 = vmatprep.subr.bf16.mxu0 0
      %9100 = vmatpush2.bf16.msra.mxu0 0
      %9101 = vmatprep.mubr.bf16.mxu0 0
      %9102 = vmatmul.mubr.bf16.gmra.mxu0 %v9013
      %v9103 = vpop.f32.mrf.mxu0
      %v9104 = vadd.f32 0.0, %v9103
      %v9105 = vpop.f32.mrf.mxu0
      %v9106 = vpop.f32.mrf.mxu0
      %v9107 = vadd.f32 0.0, %v9106
      %v9108 = vpop.f32.mrf.mxu0
      %9109 = vmatprep.mubr.bf16.mxu0 0
      %9110 = vmatmul.mubr.bf16.gmra.mxu0 %v9016
      %v9111 = vpop.f32.mrf.mxu0
      %v9112 = vadd.f32 0.0, %v9111
      %v9113 = vpop.f32.mrf.mxu0
      %v9114 = vpop.f32.mrf.mxu0
      %v9115 = vadd.f32 0.0, %v9114
      %v9116 = vpop.f32.mrf.mxu0
      %9117 = vmatprep.mubr.bf16.mxu0 0
      %9118 = vmatmul.mubr.bf16.gmra.mxu0 %v9019
      %v9119 = vpop.f32.mrf.mxu0
      %v9120 = vadd.f32 0.0, %v9119
      %v9121 = vpop.f32.mrf.mxu0
      %v9122 = vpop.f32.mrf.mxu0
      %v9123 = vadd.f32 0.0, %v9122
      %v9124 = vpop.f32.mrf.mxu0
      %9125 = vmatprep.mubr.bf16.mxu0 0
      %9126 = vmatmul.mubr.bf16.gmra.mxu0 %v9022
      %v9127 = vpop.f32.mrf.mxu0
      %v9128 = vadd.f32 0.0, %v9127
      %v9129 = vpop.f32.mrf.mxu0
      %v9130 = vpop.f32.mrf.mxu0
      %v9131 = vadd.f32 0.0, %v9130
      %v9132 = vpop.f32.mrf.mxu0
      %9133 = vmatprep.mubr.bf16.mxu0 0
      %9134 = vmatmul.mubr.bf16.gmra.mxu0 %v9025
      %v9135 = vpop.f32.mrf.mxu0
      %v9136 = vadd.f32 0.0, %v9135
      %v9137 = vpop.f32.mrf.mxu0
      %v9138 = vpop.f32.mrf.mxu0
      %v9139 = vadd.f32 0.0, %v9138
      %v9140 = vpop.f32.mrf.mxu0
      %9141 = vmatprep.mubr.bf16.mxu0 0
      %9142 = vmatmul.mubr.bf16.gmra.mxu0 %v9028
      %v9143 = vpop.f32.mrf.mxu0
      %v9144 = vadd.f32 0.0, %v9143
      %v9145 = vpop.f32.mrf.mxu0
      %v9146 = vpop.f32.mrf.mxu0
      %v9147 = vadd.f32 0.0, %v9146
      %v9148 = vpop.f32.mrf.mxu0
      %9149 = vmatprep.mubr.bf16.mxu0 0
      %9150 = vmatmul.mubr.bf16.gmra.mxu0 %v9031
      %v9151 = vpop.f32.mrf.mxu0
      %v9152 = vadd.f32 0.0, %v9151
      %v9153 = vpop.f32.mrf.mxu0
      %v9154 = vpop.f32.mrf.mxu0
      %v9155 = vadd.f32 0.0, %v9154
      %v9156 = vpop.f32.mrf.mxu0
      %9157 = vmatprep.mubr.bf16.mxu0 0
      %9158 = vmatmul.mubr.bf16.gmra.mxu0 %v9034
      %v9159 = vpop.f32.mrf.mxu0
      %v9160 = vadd.f32 0.0, %v9159
      %v9161 = vpop.f32.mrf.mxu0
      %v9162 = vpop.f32.mrf.mxu0
      %v9163 = vadd.f32 0.0, %v9162
      %v9164 = vpop.f32.mrf.mxu0
      %9165 = vmatprep.mubr.bf16.mxu0 0
      %9166 = vmatmul.mubr.bf16.gmra.mxu0 %v9037
      %v9167 = vpop.f32.mrf.mxu0
      %v9168 = vadd.f32 0.0, %v9167
      %v9169 = vpop.f32.mrf.mxu0
      %v9170 = vpop.f32.mrf.mxu0
      %v9171 = vadd.f32 0.0, %v9170
      %v9172 = vpop.f32.mrf.mxu0
      %9173 = vmatprep.mubr.bf16.mxu0 0
      %9174 = vmatmul.mubr.bf16.gmra.mxu0 %v9040
      %v9175 = vpop.f32.mrf.mxu0
      %v9176 = vadd.f32 0.0, %v9175
      %v9177 = vpop.f32.mrf.mxu0
      %v9178 = vpop.f32.mrf.mxu0
      %v9179 = vadd.f32 0.0, %v9178
      %v9180 = vpop.f32.mrf.mxu0
      %9181 = vmatprep.mubr.bf16.mxu0 0
      %9182 = vmatmul.mubr.bf16.gmra.mxu0 %v9043
      %v9183 = vpop.f32.mrf.mxu0
      %v9184 = vadd.f32 0.0, %v9183
      %v9185 = vpop.f32.mrf.mxu0
      %v9186 = vpop.f32.mrf.mxu0
      %v9187 = vadd.f32 0.0, %v9186
      %v9188 = vpop.f32.mrf.mxu0
      %9189 = vmatprep.mubr.bf16.mxu0 0
      %9190 = vmatmul.mubr.bf16.gmra.mxu0 %v9046
      %v9191 = vpop.f32.mrf.mxu0
      %v9192 = vadd.f32 0.0, %v9191
      %v9193 = vpop.f32.mrf.mxu0
      %v9194 = vpop.f32.mrf.mxu0
      %v9195 = vadd.f32 0.0, %v9194
      %v9196 = vpop.f32.mrf.mxu0
      %9197 = vmatprep.mubr.bf16.mxu0 0
      %9198 = vmatmul.mubr.bf16.gmra.mxu0 %v9049
      %v9199 = vpop.f32.mrf.mxu0
      %v9200 = vadd.f32 0.0, %v9199
      %v9201 = vpop.f32.mrf.mxu0
      %v9202 = vpop.f32.mrf.mxu0
      %v9203 = vadd.f32 0.0, %v9202
      %v9204 = vpop.f32.mrf.mxu0
      %9205 = vmatprep.mubr.bf16.mxu0 0
      %9206 = vmatmul.mubr.bf16.gmra.mxu0 %v9052
      %v9207 = vpop.f32.mrf.mxu0
      %v9208 = vadd.f32 0.0, %v9207
      %v9209 = vpop.f32.mrf.mxu0
      %v9210 = vpop.f32.mrf.mxu0
      %v9211 = vadd.f32 0.0, %v9210
      %v9212 = vpop.f32.mrf.mxu0
      %9213 = vmatprep.mubr.bf16.mxu0 0
      %9214 = vmatmul.mubr.bf16.gmra.mxu0 %v9055
      %v9215 = vpop.f32.mrf.mxu0
      %v9216 = vadd.f32 0.0, %v9215
      %v9217 = vpop.f32.mrf.mxu0
      %v9218 = vpop.f32.mrf.mxu0
      %v9219 = vadd.f32 0.0, %v9218
      %v9220 = vpop.f32.mrf.mxu0
      %9221 = vmatprep.mubr.bf16.mxu0 0
      %9222 = vmatmul.mubr.bf16.gmra.mxu0 %v9058
      %v9223 = vpop.f32.mrf.mxu0
      %v9224 = vadd.f32 0.0, %v9223
      %v9225 = vpop.f32.mrf.mxu0
      %v9226 = vpop.f32.mrf.mxu0
      %v9227 = vadd.f32 0.0, %v9226
      %v9228 = vpop.f32.mrf.mxu0
      %9229 = vmatprep.mubr.bf16.mxu0 0
      %9230 = vmatmul.mubr.bf16.gmra.mxu0 %v9061
      %v9231 = vpop.f32.mrf.mxu0
      %v9232 = vadd.f32 0.0, %v9231
      %v9233 = vpop.f32.mrf.mxu0
      %v9234 = vpop.f32.mrf.mxu0
      %v9235 = vadd.f32 0.0, %v9234
      %v9236 = vpop.f32.mrf.mxu0
      %9237 = vmatprep.mubr.bf16.mxu0 0
      %9238 = vmatmul.mubr.bf16.gmra.mxu0 %v9064
      %v9239 = vpop.f32.mrf.mxu0
      %v9240 = vadd.f32 0.0, %v9239
      %v9241 = vpop.f32.mrf.mxu0
      %v9242 = vpop.f32.mrf.mxu0
      %v9243 = vadd.f32 0.0, %v9242
      %v9244 = vpop.f32.mrf.mxu0
      %9245 = vdwg.mxu0
      %v9246 = vadd.f32 %v8933, %v9104
      %v9247 = vadd.f32 %v8934, %v9107
      %v9248 = vadd.f32 %v8935, %v9112
      %v9249 = vadd.f32 %v8936, %v9115
      %v9250 = vadd.f32 %v8937, %v9120
      %v9251 = vadd.f32 %v8938, %v9123
      %v9252 = vadd.f32 %v8939, %v9128
      %v9253 = vadd.f32 %v8940, %v9131
      %v9254 = vadd.f32 %v8941, %v9136
      %v9255 = vadd.f32 %v8942, %v9139
      %v9256 = vadd.f32 %v8943, %v9144
      %v9257 = vadd.f32 %v8944, %v9147
      %v9258 = vadd.f32 %v8945, %v9152
      %v9259 = vadd.f32 %v8946, %v9155
      %v9260 = vadd.f32 %v8947, %v9160
      %v9261 = vadd.f32 %v8948, %v9163
      %v9262 = vadd.f32 %v8949, %v9168
      %v9263 = vadd.f32 %v8950, %v9171
      %v9264 = vadd.f32 %v8951, %v9176
      %v9265 = vadd.f32 %v8952, %v9179
      %v9266 = vadd.f32 %v8953, %v9184
      %v9267 = vadd.f32 %v8954, %v9187
      %v9268 = vadd.f32 %v8955, %v9192
      %v9269 = vadd.f32 %v8956, %v9195
      %v9270 = vadd.f32 %v8957, %v9200
      %v9271 = vadd.f32 %v8958, %v9203
      %v9272 = vadd.f32 %v8959, %v9208
      %v9273 = vadd.f32 %v8960, %v9211
      %v9274 = vadd.f32 %v8961, %v9216
      %v9275 = vadd.f32 %v8962, %v9219
      %v9276 = vadd.f32 %v8963, %v9224
      %v9277 = vadd.f32 %v8964, %v9227
      %v9278 = vadd.f32 %v8965, %v9232
      %v9279 = vadd.f32 %v8966, %v9235
      %v9280 = vadd.f32 %v8967, %v9240
      %v9281 = vadd.f32 %v8968, %v9243
      %v9282 = vld [vmem:[#allocation2 + $0x10] sm:$0xc]
      %v9283 = vld [vmem:[#allocation2 + $0x14] sm:$0xf]
      %v9284 = vld [vmem:[#allocation2 + $0x18] sm:$0xf]
      %v9285 = vld [vmem:[#allocation2 + $0x1c] sm:$0xf]
      %v9286 = vld [vmem:[#allocation2 + $0x20] sm:$0xf]
      %v9287 = vld [vmem:[#allocation2 + $0x24] sm:$0xf]
      %v9288 = vld [vmem:[#allocation2 + $0x28] sm:$0xf]
      %v9289 = vld [vmem:[#allocation2 + $0x2c] sm:$0xf]
      %v9290 = vld [vmem:[#allocation2 + $0x30] sm:$0xf]
      %v9291 = vld [vmem:[#allocation2 + $0x34] sm:$0xf]
      %v9292 = vld [vmem:[#allocation2 + $0x38] sm:$0xf]
      %v9293 = vld [vmem:[#allocation2 + $0x3c] sm:$0xf]
      %v9294 = vld [vmem:[#allocation2 + $0x40] sm:$0xf]
      %v9295 = vld [vmem:[#allocation2 + $0x44] sm:$0xf]
      %v9296 = vld [vmem:[#allocation2 + $0x48] sm:$0xf]
      %v9297 = vld [vmem:[#allocation2 + $0x4c] sm:$0xf]
      %v9298 = vld [vmem:[#allocation2 + $0x50] sm:$0xf]
      %v9299 = vld [vmem:[#allocation2 + $0x54] sm:$0xf]
      %v9300 = vld [vmem:[#allocation2 + $0x58] sm:$0xf]
      %v9301 = vld [vmem:[#allocation2 + $0x5c] sm:$0xf]
      %v9302 = vld [vmem:[#allocation2 + $0x60] sm:$0xf]
      %v9303 = vld [vmem:[#allocation2 + $0x64] sm:$0xf]
      %v9304 = vld [vmem:[#allocation2 + $0x68] sm:$0xf]
      %v9305 = vld [vmem:[#allocation2 + $0x6c] sm:$0xf]
      %v9306 = vld [vmem:[#allocation2 + $0x70] sm:$0xf]
      %v9307 = vld [vmem:[#allocation2 + $0x74] sm:$0xf]
      %v9308 = vld [vmem:[#allocation2 + $0x78] sm:$0xf]
      %v9309 = vld [vmem:[#allocation2 + $0x7c] sm:$0xf]
      %v9310 = vld [vmem:[#allocation2 + $0x80] sm:$0xf]
      %v9311 = vld [vmem:[#allocation2 + $0x84] sm:$0xf]
      %v9312 = vld [vmem:[#allocation2 + $0x88] sm:$0xf]
      %v9313 = vld [vmem:[#allocation2 + $0x8c] sm:$0xf]
      %v9314 = vld [vmem:[#allocation2 + $0x90] sm:$0xf]
      %v9315 = vld [vmem:[#allocation2 + $0x94] sm:$0xf]
      %v9316 = vld [vmem:[#allocation2 + $0x98] sm:$0xf]
      %v9317 = vld [vmem:[#allocation2 + $0x9c] sm:$0xf]
      %v9318 = vld [vmem:[#allocation2 + $0xa0] sm:$0x3]
      %s9319 = scalar_lea.vmem %s3, 12
      %v9320 = vld [vmem:[%s9319] sm:$0x3]
      %v9358 = vunpack.c.l.b16 %v9282
      %v9359 = vunpack.c.l.b16 %v9283
      %v9360 = vunpack.c.l.b16 %v9284
      %v9361 = vunpack.c.l.b16 %v9285
      %v9362 = vunpack.c.l.b16 %v9286
      %v9363 = vunpack.c.l.b16 %v9287
      %v9364 = vunpack.c.l.b16 %v9288
      %v9365 = vunpack.c.l.b16 %v9289
      %v9366 = vunpack.c.l.b16 %v9290
      %v9367 = vunpack.c.l.b16 %v9291
      %v9368 = vunpack.c.l.b16 %v9292
      %v9369 = vunpack.c.l.b16 %v9293
      %v9370 = vunpack.c.l.b16 %v9294
      %v9371 = vunpack.c.l.b16 %v9295
      %v9372 = vunpack.c.l.b16 %v9296
      %v9373 = vunpack.c.l.b16 %v9297
      %v9374 = vunpack.c.l.b16 %v9298
      %v9375 = vunpack.c.l.b16 %v9299
      %v9376 = vunpack.c.l.b16 %v9300
      %v9377 = vunpack.c.l.b16 %v9301
      %v9378 = vunpack.c.l.b16 %v9302
      %v9379 = vunpack.c.l.b16 %v9303
      %v9380 = vunpack.c.l.b16 %v9304
      %v9381 = vunpack.c.l.b16 %v9305
      %v9382 = vunpack.c.l.b16 %v9306
      %v9383 = vunpack.c.l.b16 %v9307
      %v9384 = vunpack.c.l.b16 %v9308
      %v9385 = vunpack.c.l.b16 %v9309
      %v9386 = vunpack.c.l.b16 %v9310
      %v9387 = vunpack.c.l.b16 %v9311
      %v9388 = vunpack.c.l.b16 %v9312
      %v9389 = vunpack.c.l.b16 %v9313
      %v9390 = vunpack.c.l.b16 %v9314
      %v9391 = vunpack.c.l.b16 %v9315
      %v9392 = vunpack.c.l.b16 %v9316
      %v9393 = vunpack.c.l.b16 %v9317
      %v9394 = vunpack.c.l.b16 %v9318
      %v9395 = vpack.c.b16 %v9359, %v9358
      %v9396 = vpack.c.b16 %v9361, %v9360
      %v9397 = vpack.c.b16 %v9363, %v9362
      %v9398 = vpack.c.b16 %v9365, %v9364
      %v9399 = vpack.c.b16 %v9367, %v9366
      %v9400 = vpack.c.b16 %v9369, %v9368
      %v9401 = vpack.c.b16 %v9371, %v9370
      %v9402 = vpack.c.b16 %v9373, %v9372
      %v9403 = vpack.c.b16 %v9375, %v9374
      %v9404 = vpack.c.b16 %v9377, %v9376
      %v9405 = vpack.c.b16 %v9379, %v9378
      %v9406 = vpack.c.b16 %v9381, %v9380
      %v9407 = vpack.c.b16 %v9383, %v9382
      %v9408 = vpack.c.b16 %v9385, %v9384
      %v9409 = vpack.c.b16 %v9387, %v9386
      %v9410 = vpack.c.b16 %v9389, %v9388
      %v9411 = vpack.c.b16 %v9391, %v9390
      %v9412 = vpack.c.b16 %v9393, %v9392
      %v9413 = vpack.c.b16 %v9394, %v9394
      %v9414 = vrot.slane %v9395, 2
      %v9415 = vrot.slane %v9396, 2
      %v9416 = vsel %vm4478, %v9414, %v9415
      %v9417 = vrot.slane %v9397, 2
      %v9418 = vsel %vm4478, %v9415, %v9417
      %v9419 = vrot.slane %v9398, 2
      %v9420 = vsel %vm4478, %v9417, %v9419
      %v9421 = vrot.slane %v9399, 2
      %v9422 = vsel %vm4478, %v9419, %v9421
      %v9423 = vrot.slane %v9400, 2
      %v9424 = vsel %vm4478, %v9421, %v9423
      %v9425 = vrot.slane %v9401, 2
      %v9426 = vsel %vm4478, %v9423, %v9425
      %v9427 = vrot.slane %v9402, 2
      %v9428 = vsel %vm4478, %v9425, %v9427
      %v9429 = vrot.slane %v9403, 2
      %v9430 = vsel %vm4478, %v9427, %v9429
      %v9431 = vrot.slane %v9404, 2
      %v9432 = vsel %vm4478, %v9429, %v9431
      %v9433 = vrot.slane %v9405, 2
      %v9434 = vsel %vm4478, %v9431, %v9433
      %v9435 = vrot.slane %v9406, 2
      %v9436 = vsel %vm4478, %v9433, %v9435
      %v9437 = vrot.slane %v9407, 2
      %v9438 = vsel %vm4478, %v9435, %v9437
      %v9439 = vrot.slane %v9408, 2
      %v9440 = vsel %vm4478, %v9437, %v9439
      %v9441 = vrot.slane %v9409, 2
      %v9442 = vsel %vm4478, %v9439, %v9441
      %v9443 = vrot.slane %v9410, 2
      %v9444 = vsel %vm4478, %v9441, %v9443
      %v9445 = vrot.slane %v9411, 2
      %v9446 = vsel %vm4478, %v9443, %v9445
      %v9447 = vrot.slane %v9412, 2
      %v9448 = vsel %vm4478, %v9445, %v9447
      %v9449 = vrot.slane %v9413, 2
      %v9450 = vsel %vm4478, %v9447, %v9449
      %v9452 = vsel %vm2820, %v9416, 0
      %v9455 = vsel %vm2820, %v9418, 0
      %v9458 = vsel %vm2820, %v9420, 0
      %v9461 = vsel %vm2820, %v9422, 0
      %v9464 = vsel %vm2820, %v9424, 0
      %v9467 = vsel %vm2820, %v9426, 0
      %v9470 = vsel %vm2820, %v9428, 0
      %v9473 = vsel %vm2820, %v9430, 0
      %v9476 = vsel %vm2820, %v9432, 0
      %v9479 = vsel %vm2820, %v9434, 0
      %v9482 = vsel %vm2820, %v9436, 0
      %v9485 = vsel %vm2820, %v9438, 0
      %v9488 = vsel %vm2820, %v9440, 0
      %v9491 = vsel %vm2820, %v9442, 0
      %v9494 = vsel %vm2820, %v9444, 0
      %v9497 = vsel %vm2820, %v9446, 0
      %v9500 = vsel %vm2820, %v9448, 0
      %v9503 = vsel %vm2820, %v9450, 0
      %v9506 = vsel %vm2875, %v9320, 0
      %9508 = vmatprep.subr.bf16.mxu0 0
      %9509 = vmatpush1.bf16.msra.mxu0 0
      %9510 = vmatprep.subr.bf16.mxu0 0
      %9511 = vmatpush1.bf16.msra.mxu0 0
      %9512 = vmatprep.subr.bf16.mxu0 0
      %9513 = vmatpush1.bf16.msra.mxu0 0
      %9514 = vmatprep.subr.bf16.mxu0 0
      %9515 = vmatpush1.bf16.msra.mxu0 0
      %9516 = vmatprep.subr.bf16.mxu0 0
      %9517 = vmatpush1.bf16.msra.mxu0 0
      %9518 = vmatprep.subr.bf16.mxu0 0
      %9519 = vmatpush1.bf16.msra.mxu0 0
      %9520 = vmatprep.subr.bf16.mxu0 0
      %9521 = vmatpush1.bf16.msra.mxu0 0
      %9522 = vmatprep.subr.bf16.mxu0 0
      %9523 = vmatpush1.bf16.msra.mxu0 %v9506
      %9524 = vmatprep.subr.bf16.mxu0 0
      %9525 = vmatpush2.bf16.msra.mxu0 0
      %9526 = vmatprep.subr.bf16.mxu0 0
      %9527 = vmatpush2.bf16.msra.mxu0 0
      %9528 = vmatprep.subr.bf16.mxu0 0
      %9529 = vmatpush2.bf16.msra.mxu0 0
      %9530 = vmatprep.subr.bf16.mxu0 0
      %9531 = vmatpush2.bf16.msra.mxu0 0
      %9532 = vmatprep.subr.bf16.mxu0 0
      %9533 = vmatpush2.bf16.msra.mxu0 0
      %9534 = vmatprep.subr.bf16.mxu0 0
      %9535 = vmatpush2.bf16.msra.mxu0 0
      %9536 = vmatprep.subr.bf16.mxu0 0
      %9537 = vmatpush2.bf16.msra.mxu0 0
      %9538 = vmatprep.subr.bf16.mxu0 0
      %9539 = vmatpush2.bf16.msra.mxu0 0
      %9540 = vmatprep.mubr.bf16.mxu0 0
      %9541 = vmatmul.mubr.bf16.gmra.mxu0 %v9452
      %v9542 = vpop.f32.mrf.mxu0
      %v9543 = vadd.f32 0.0, %v9542
      %v9544 = vpop.f32.mrf.mxu0
      %v9545 = vpop.f32.mrf.mxu0
      %v9546 = vadd.f32 0.0, %v9545
      %v9547 = vpop.f32.mrf.mxu0
      %9548 = vmatprep.mubr.bf16.mxu0 0
      %9549 = vmatmul.mubr.bf16.gmra.mxu0 %v9455
      %v9550 = vpop.f32.mrf.mxu0
      %v9551 = vadd.f32 0.0, %v9550
      %v9552 = vpop.f32.mrf.mxu0
      %v9553 = vpop.f32.mrf.mxu0
      %v9554 = vadd.f32 0.0, %v9553
      %v9555 = vpop.f32.mrf.mxu0
      %9556 = vmatprep.mubr.bf16.mxu0 0
      %9557 = vmatmul.mubr.bf16.gmra.mxu0 %v9458
      %v9558 = vpop.f32.mrf.mxu0
      %v9559 = vadd.f32 0.0, %v9558
      %v9560 = vpop.f32.mrf.mxu0
      %v9561 = vpop.f32.mrf.mxu0
      %v9562 = vadd.f32 0.0, %v9561
      %v9563 = vpop.f32.mrf.mxu0
      %9564 = vmatprep.mubr.bf16.mxu0 0
      %9565 = vmatmul.mubr.bf16.gmra.mxu0 %v9461
      %v9566 = vpop.f32.mrf.mxu0
      %v9567 = vadd.f32 0.0, %v9566
      %v9568 = vpop.f32.mrf.mxu0
      %v9569 = vpop.f32.mrf.mxu0
      %v9570 = vadd.f32 0.0, %v9569
      %v9571 = vpop.f32.mrf.mxu0
      %9572 = vmatprep.mubr.bf16.mxu0 0
      %9573 = vmatmul.mubr.bf16.gmra.mxu0 %v9464
      %v9574 = vpop.f32.mrf.mxu0
      %v9575 = vadd.f32 0.0, %v9574
      %v9576 = vpop.f32.mrf.mxu0
      %v9577 = vpop.f32.mrf.mxu0
      %v9578 = vadd.f32 0.0, %v9577
      %v9579 = vpop.f32.mrf.mxu0
      %9580 = vmatprep.mubr.bf16.mxu0 0
      %9581 = vmatmul.mubr.bf16.gmra.mxu0 %v9467
      %v9582 = vpop.f32.mrf.mxu0
      %v9583 = vadd.f32 0.0, %v9582
      %v9584 = vpop.f32.mrf.mxu0
      %v9585 = vpop.f32.mrf.mxu0
      %v9586 = vadd.f32 0.0, %v9585
      %v9587 = vpop.f32.mrf.mxu0
      %9588 = vmatprep.mubr.bf16.mxu0 0
      %9589 = vmatmul.mubr.bf16.gmra.mxu0 %v9470
      %v9590 = vpop.f32.mrf.mxu0
      %v9591 = vadd.f32 0.0, %v9590
      %v9592 = vpop.f32.mrf.mxu0
      %v9593 = vpop.f32.mrf.mxu0
      %v9594 = vadd.f32 0.0, %v9593
      %v9595 = vpop.f32.mrf.mxu0
      %9596 = vmatprep.mubr.bf16.mxu0 0
      %9597 = vmatmul.mubr.bf16.gmra.mxu0 %v9473
      %v9598 = vpop.f32.mrf.mxu0
      %v9599 = vadd.f32 0.0, %v9598
      %v9600 = vpop.f32.mrf.mxu0
      %v9601 = vpop.f32.mrf.mxu0
      %v9602 = vadd.f32 0.0, %v9601
      %v9603 = vpop.f32.mrf.mxu0
      %9604 = vmatprep.mubr.bf16.mxu0 0
      %9605 = vmatmul.mubr.bf16.gmra.mxu0 %v9476
      %v9606 = vpop.f32.mrf.mxu0
      %v9607 = vadd.f32 0.0, %v9606
      %v9608 = vpop.f32.mrf.mxu0
      %v9609 = vpop.f32.mrf.mxu0
      %v9610 = vadd.f32 0.0, %v9609
      %v9611 = vpop.f32.mrf.mxu0
      %9612 = vmatprep.mubr.bf16.mxu0 0
      %9613 = vmatmul.mubr.bf16.gmra.mxu0 %v9479
      %v9614 = vpop.f32.mrf.mxu0
      %v9615 = vadd.f32 0.0, %v9614
      %v9616 = vpop.f32.mrf.mxu0
      %v9617 = vpop.f32.mrf.mxu0
      %v9618 = vadd.f32 0.0, %v9617
      %v9619 = vpop.f32.mrf.mxu0
      %9620 = vmatprep.mubr.bf16.mxu0 0
      %9621 = vmatmul.mubr.bf16.gmra.mxu0 %v9482
      %v9622 = vpop.f32.mrf.mxu0
      %v9623 = vadd.f32 0.0, %v9622
      %v9624 = vpop.f32.mrf.mxu0
      %v9625 = vpop.f32.mrf.mxu0
      %v9626 = vadd.f32 0.0, %v9625
      %v9627 = vpop.f32.mrf.mxu0
      %9628 = vmatprep.mubr.bf16.mxu0 0
      %9629 = vmatmul.mubr.bf16.gmra.mxu0 %v9485
      %v9630 = vpop.f32.mrf.mxu0
      %v9631 = vadd.f32 0.0, %v9630
      %v9632 = vpop.f32.mrf.mxu0
      %v9633 = vpop.f32.mrf.mxu0
      %v9634 = vadd.f32 0.0, %v9633
      %v9635 = vpop.f32.mrf.mxu0
      %9636 = vmatprep.mubr.bf16.mxu0 0
      %9637 = vmatmul.mubr.bf16.gmra.mxu0 %v9488
      %v9638 = vpop.f32.mrf.mxu0
      %v9639 = vadd.f32 0.0, %v9638
      %v9640 = vpop.f32.mrf.mxu0
      %v9641 = vpop.f32.mrf.mxu0
      %v9642 = vadd.f32 0.0, %v9641
      %v9643 = vpop.f32.mrf.mxu0
      %9644 = vmatprep.mubr.bf16.mxu0 0
      %9645 = vmatmul.mubr.bf16.gmra.mxu0 %v9491
      %v9646 = vpop.f32.mrf.mxu0
      %v9647 = vadd.f32 0.0, %v9646
      %v9648 = vpop.f32.mrf.mxu0
      %v9649 = vpop.f32.mrf.mxu0
      %v9650 = vadd.f32 0.0, %v9649
      %v9651 = vpop.f32.mrf.mxu0
      %9652 = vmatprep.mubr.bf16.mxu0 0
      %9653 = vmatmul.mubr.bf16.gmra.mxu0 %v9494
      %v9654 = vpop.f32.mrf.mxu0
      %v9655 = vadd.f32 0.0, %v9654
      %v9656 = vpop.f32.mrf.mxu0
      %v9657 = vpop.f32.mrf.mxu0
      %v9658 = vadd.f32 0.0, %v9657
      %v9659 = vpop.f32.mrf.mxu0
      %9660 = vmatprep.mubr.bf16.mxu0 0
      %9661 = vmatmul.mubr.bf16.gmra.mxu0 %v9497
      %v9662 = vpop.f32.mrf.mxu0
      %v9663 = vadd.f32 0.0, %v9662
      %v9664 = vpop.f32.mrf.mxu0
      %v9665 = vpop.f32.mrf.mxu0
      %v9666 = vadd.f32 0.0, %v9665
      %v9667 = vpop.f32.mrf.mxu0
      %9668 = vmatprep.mubr.bf16.mxu0 0
      %9669 = vmatmul.mubr.bf16.gmra.mxu0 %v9500
      %v9670 = vpop.f32.mrf.mxu0
      %v9671 = vadd.f32 0.0, %v9670
      %v9672 = vpop.f32.mrf.mxu0
      %v9673 = vpop.f32.mrf.mxu0
      %v9674 = vadd.f32 0.0, %v9673
      %v9675 = vpop.f32.mrf.mxu0
      %9676 = vmatprep.mubr.bf16.mxu0 0
      %9677 = vmatmul.mubr.bf16.gmra.mxu0 %v9503
      %v9678 = vpop.f32.mrf.mxu0
      %v9679 = vadd.f32 0.0, %v9678
      %v9680 = vpop.f32.mrf.mxu0
      %v9681 = vpop.f32.mrf.mxu0
      %v9682 = vadd.f32 0.0, %v9681
      %v9683 = vpop.f32.mrf.mxu0
      %9684 = vdwg.mxu0
      %v9685 = vadd.f32 %v9246, %v9543
      %v9686 = vadd.f32 %v9247, %v9546
      %v9687 = vadd.f32 %v9248, %v9551
      %v9688 = vadd.f32 %v9249, %v9554
      %v9689 = vadd.f32 %v9250, %v9559
      %v9690 = vadd.f32 %v9251, %v9562
      %v9691 = vadd.f32 %v9252, %v9567
      %v9692 = vadd.f32 %v9253, %v9570
      %v9693 = vadd.f32 %v9254, %v9575
      %v9694 = vadd.f32 %v9255, %v9578
      %v9695 = vadd.f32 %v9256, %v9583
      %v9696 = vadd.f32 %v9257, %v9586
      %v9697 = vadd.f32 %v9258, %v9591
      %v9698 = vadd.f32 %v9259, %v9594
      %v9699 = vadd.f32 %v9260, %v9599
      %v9700 = vadd.f32 %v9261, %v9602
      %v9701 = vadd.f32 %v9262, %v9607
      %v9702 = vadd.f32 %v9263, %v9610
      %v9703 = vadd.f32 %v9264, %v9615
      %v9704 = vadd.f32 %v9265, %v9618
      %v9705 = vadd.f32 %v9266, %v9623
      %v9706 = vadd.f32 %v9267, %v9626
      %v9707 = vadd.f32 %v9268, %v9631
      %v9708 = vadd.f32 %v9269, %v9634
      %v9709 = vadd.f32 %v9270, %v9639
      %v9710 = vadd.f32 %v9271, %v9642
      %v9711 = vadd.f32 %v9272, %v9647
      %v9712 = vadd.f32 %v9273, %v9650
      %v9713 = vadd.f32 %v9274, %v9655
      %v9714 = vadd.f32 %v9275, %v9658
      %v9715 = vadd.f32 %v9276, %v9663
      %v9716 = vadd.f32 %v9277, %v9666
      %v9717 = vadd.f32 %v9278, %v9671
      %v9718 = vadd.f32 %v9279, %v9674
      %v9719 = vadd.f32 %v9280, %v9679
      %v9720 = vadd.f32 %v9281, %v9682
      %v9721 = vld [vmem:[#allocation2 + $0xa0] sm:$0x7]
      %s9722 = scalar_lea.vmem %s3, 14
      %v9723 = vld [vmem:[%s9722] sm:$0x3]
      %v9725 = vunpack.c.l.b16 %v9721
      %v9726 = vpack.c.b16 %v9725, %v9725
      %v9728 = vshrl.u32 %v9395, 16
      %v9730 = vrot.slane %v9728, 2
      %v9731 = vshll.u32 %v9395, 16
      %v9733 = vrot.slane %v9731, 3
      %v9734 = vor.u32 %v9730, %v9733
      %v9736 = vshrl.u32 %v9396, 16
      %v9738 = vrot.slane %v9736, 2
      %v9739 = vshll.u32 %v9396, 16
      %v9741 = vrot.slane %v9739, 3
      %v9742 = vor.u32 %v9738, %v9741
      %v9743 = vsel %vm5231, %v9734, %v9742
      %v9745 = vshrl.u32 %v9397, 16
      %v9747 = vrot.slane %v9745, 2
      %v9748 = vshll.u32 %v9397, 16
      %v9750 = vrot.slane %v9748, 3
      %v9751 = vor.u32 %v9747, %v9750
      %v9752 = vsel %vm5231, %v9742, %v9751
      %v9754 = vshrl.u32 %v9398, 16
      %v9756 = vrot.slane %v9754, 2
      %v9757 = vshll.u32 %v9398, 16
      %v9759 = vrot.slane %v9757, 3
      %v9760 = vor.u32 %v9756, %v9759
      %v9761 = vsel %vm5231, %v9751, %v9760
      %v9763 = vshrl.u32 %v9399, 16
      %v9765 = vrot.slane %v9763, 2
      %v9766 = vshll.u32 %v9399, 16
      %v9768 = vrot.slane %v9766, 3
      %v9769 = vor.u32 %v9765, %v9768
      %v9770 = vsel %vm5231, %v9760, %v9769
      %v9772 = vshrl.u32 %v9400, 16
      %v9774 = vrot.slane %v9772, 2
      %v9775 = vshll.u32 %v9400, 16
      %v9777 = vrot.slane %v9775, 3
      %v9778 = vor.u32 %v9774, %v9777
      %v9779 = vsel %vm5231, %v9769, %v9778
      %v9781 = vshrl.u32 %v9401, 16
      %v9783 = vrot.slane %v9781, 2
      %v9784 = vshll.u32 %v9401, 16
      %v9786 = vrot.slane %v9784, 3
      %v9787 = vor.u32 %v9783, %v9786
      %v9788 = vsel %vm5231, %v9778, %v9787
      %v9790 = vshrl.u32 %v9402, 16
      %v9792 = vrot.slane %v9790, 2
      %v9793 = vshll.u32 %v9402, 16
      %v9795 = vrot.slane %v9793, 3
      %v9796 = vor.u32 %v9792, %v9795
      %v9797 = vsel %vm5231, %v9787, %v9796
      %v9799 = vshrl.u32 %v9403, 16
      %v9801 = vrot.slane %v9799, 2
      %v9802 = vshll.u32 %v9403, 16
      %v9804 = vrot.slane %v9802, 3
      %v9805 = vor.u32 %v9801, %v9804
      %v9806 = vsel %vm5231, %v9796, %v9805
      %v9808 = vshrl.u32 %v9404, 16
      %v9810 = vrot.slane %v9808, 2
      %v9811 = vshll.u32 %v9404, 16
      %v9813 = vrot.slane %v9811, 3
      %v9814 = vor.u32 %v9810, %v9813
      %v9815 = vsel %vm5231, %v9805, %v9814
      %v9817 = vshrl.u32 %v9405, 16
      %v9819 = vrot.slane %v9817, 2
      %v9820 = vshll.u32 %v9405, 16
      %v9822 = vrot.slane %v9820, 3
      %v9823 = vor.u32 %v9819, %v9822
      %v9824 = vsel %vm5231, %v9814, %v9823
      %v9826 = vshrl.u32 %v9406, 16
      %v9828 = vrot.slane %v9826, 2
      %v9829 = vshll.u32 %v9406, 16
      %v9831 = vrot.slane %v9829, 3
      %v9832 = vor.u32 %v9828, %v9831
      %v9833 = vsel %vm5231, %v9823, %v9832
      %v9835 = vshrl.u32 %v9407, 16
      %v9837 = vrot.slane %v9835, 2
      %v9838 = vshll.u32 %v9407, 16
      %v9840 = vrot.slane %v9838, 3
      %v9841 = vor.u32 %v9837, %v9840
      %v9842 = vsel %vm5231, %v9832, %v9841
      %v9844 = vshrl.u32 %v9408, 16
      %v9846 = vrot.slane %v9844, 2
      %v9847 = vshll.u32 %v9408, 16
      %v9849 = vrot.slane %v9847, 3
      %v9850 = vor.u32 %v9846, %v9849
      %v9851 = vsel %vm5231, %v9841, %v9850
      %v9853 = vshrl.u32 %v9409, 16
      %v9855 = vrot.slane %v9853, 2
      %v9856 = vshll.u32 %v9409, 16
      %v9858 = vrot.slane %v9856, 3
      %v9859 = vor.u32 %v9855, %v9858
      %v9860 = vsel %vm5231, %v9850, %v9859
      %v9862 = vshrl.u32 %v9410, 16
      %v9864 = vrot.slane %v9862, 2
      %v9865 = vshll.u32 %v9410, 16
      %v9867 = vrot.slane %v9865, 3
      %v9868 = vor.u32 %v9864, %v9867
      %v9869 = vsel %vm5231, %v9859, %v9868
      %v9871 = vshrl.u32 %v9411, 16
      %v9873 = vrot.slane %v9871, 2
      %v9874 = vshll.u32 %v9411, 16
      %v9876 = vrot.slane %v9874, 3
      %v9877 = vor.u32 %v9873, %v9876
      %v9878 = vsel %vm5231, %v9868, %v9877
      %v9880 = vshrl.u32 %v9412, 16
      %v9882 = vrot.slane %v9880, 2
      %v9883 = vshll.u32 %v9412, 16
      %v9885 = vrot.slane %v9883, 3
      %v9886 = vor.u32 %v9882, %v9885
      %v9887 = vsel %vm5231, %v9877, %v9886
      %v9889 = vshrl.u32 %v9726, 16
      %v9891 = vrot.slane %v9889, 2
      %v9892 = vshll.u32 %v9726, 16
      %v9894 = vrot.slane %v9892, 3
      %v9895 = vor.u32 %v9891, %v9894
      %v9896 = vsel %vm5231, %v9886, %v9895
      %v9898 = vsel %vm2820, %v9743, 0
      %v9901 = vsel %vm2820, %v9752, 0
      %v9904 = vsel %vm2820, %v9761, 0
      %v9907 = vsel %vm2820, %v9770, 0
      %v9910 = vsel %vm2820, %v9779, 0
      %v9913 = vsel %vm2820, %v9788, 0
      %v9916 = vsel %vm2820, %v9797, 0
      %v9919 = vsel %vm2820, %v9806, 0
      %v9922 = vsel %vm2820, %v9815, 0
      %v9925 = vsel %vm2820, %v9824, 0
      %v9928 = vsel %vm2820, %v9833, 0
      %v9931 = vsel %vm2820, %v9842, 0
      %v9934 = vsel %vm2820, %v9851, 0
      %v9937 = vsel %vm2820, %v9860, 0
      %v9940 = vsel %vm2820, %v9869, 0
      %v9943 = vsel %vm2820, %v9878, 0
      %v9946 = vsel %vm2820, %v9887, 0
      %v9949 = vsel %vm2820, %v9896, 0
      %v9952 = vsel %vm2875, %v9723, 0
      %9954 = vmatprep.subr.bf16.mxu0 0
      %9955 = vmatpush1.bf16.msra.mxu0 0
      %9956 = vmatprep.subr.bf16.mxu0 0
      %9957 = vmatpush1.bf16.msra.mxu0 0
      %9958 = vmatprep.subr.bf16.mxu0 0
      %9959 = vmatpush1.bf16.msra.mxu0 0
      %9960 = vmatprep.subr.bf16.mxu0 0
      %9961 = vmatpush1.bf16.msra.mxu0 0
      %9962 = vmatprep.subr.bf16.mxu0 0
      %9963 = vmatpush1.bf16.msra.mxu0 0
      %9964 = vmatprep.subr.bf16.mxu0 0
      %9965 = vmatpush1.bf16.msra.mxu0 0
      %9966 = vmatprep.subr.bf16.mxu0 0
      %9967 = vmatpush1.bf16.msra.mxu0 0
      %9968 = vmatprep.subr.bf16.mxu0 0
      %9969 = vmatpush1.bf16.msra.mxu0 %v9952
      %9970 = vmatprep.subr.bf16.mxu0 0
      %9971 = vmatpush2.bf16.msra.mxu0 0
      %9972 = vmatprep.subr.bf16.mxu0 0
      %9973 = vmatpush2.bf16.msra.mxu0 0
      %9974 = vmatprep.subr.bf16.mxu0 0
      %9975 = vmatpush2.bf16.msra.mxu0 0
      %9976 = vmatprep.subr.bf16.mxu0 0
      %9977 = vmatpush2.bf16.msra.mxu0 0
      %9978 = vmatprep.subr.bf16.mxu0 0
      %9979 = vmatpush2.bf16.msra.mxu0 0
      %9980 = vmatprep.subr.bf16.mxu0 0
      %9981 = vmatpush2.bf16.msra.mxu0 0
      %9982 = vmatprep.subr.bf16.mxu0 0
      %9983 = vmatpush2.bf16.msra.mxu0 0
      %9984 = vmatprep.subr.bf16.mxu0 0
      %9985 = vmatpush2.bf16.msra.mxu0 0
      %9986 = vmatprep.mubr.bf16.mxu0 0
      %9987 = vmatmul.mubr.bf16.gmra.mxu0 %v9898
      %v9988 = vpop.f32.mrf.mxu0
      %v9989 = vadd.f32 0.0, %v9988
      %v9990 = vpop.f32.mrf.mxu0
      %v9991 = vpop.f32.mrf.mxu0
      %v9992 = vadd.f32 0.0, %v9991
      %v9993 = vpop.f32.mrf.mxu0
      %9994 = vmatprep.mubr.bf16.mxu0 0
      %9995 = vmatmul.mubr.bf16.gmra.mxu0 %v9901
      %v9996 = vpop.f32.mrf.mxu0
      %v9997 = vadd.f32 0.0, %v9996
      %v9998 = vpop.f32.mrf.mxu0
      %v9999 = vpop.f32.mrf.mxu0
      %v10000 = vadd.f32 0.0, %v9999
      %v10001 = vpop.f32.mrf.mxu0
      %10002 = vmatprep.mubr.bf16.mxu0 0
      %10003 = vmatmul.mubr.bf16.gmra.mxu0 %v9904
      %v10004 = vpop.f32.mrf.mxu0
      %v10005 = vadd.f32 0.0, %v10004
      %v10006 = vpop.f32.mrf.mxu0
      %v10007 = vpop.f32.mrf.mxu0
      %v10008 = vadd.f32 0.0, %v10007
      %v10009 = vpop.f32.mrf.mxu0
      %10010 = vmatprep.mubr.bf16.mxu0 0
      %10011 = vmatmul.mubr.bf16.gmra.mxu0 %v9907
      %v10012 = vpop.f32.mrf.mxu0
      %v10013 = vadd.f32 0.0, %v10012
      %v10014 = vpop.f32.mrf.mxu0
      %v10015 = vpop.f32.mrf.mxu0
      %v10016 = vadd.f32 0.0, %v10015
      %v10017 = vpop.f32.mrf.mxu0
      %10018 = vmatprep.mubr.bf16.mxu0 0
      %10019 = vmatmul.mubr.bf16.gmra.mxu0 %v9910
      %v10020 = vpop.f32.mrf.mxu0
      %v10021 = vadd.f32 0.0, %v10020
      %v10022 = vpop.f32.mrf.mxu0
      %v10023 = vpop.f32.mrf.mxu0
      %v10024 = vadd.f32 0.0, %v10023
      %v10025 = vpop.f32.mrf.mxu0
      %10026 = vmatprep.mubr.bf16.mxu0 0
      %10027 = vmatmul.mubr.bf16.gmra.mxu0 %v9913
      %v10028 = vpop.f32.mrf.mxu0
      %v10029 = vadd.f32 0.0, %v10028
      %v10030 = vpop.f32.mrf.mxu0
      %v10031 = vpop.f32.mrf.mxu0
      %v10032 = vadd.f32 0.0, %v10031
      %v10033 = vpop.f32.mrf.mxu0
      %10034 = vmatprep.mubr.bf16.mxu0 0
      %10035 = vmatmul.mubr.bf16.gmra.mxu0 %v9916
      %v10036 = vpop.f32.mrf.mxu0
      %v10037 = vadd.f32 0.0, %v10036
      %v10038 = vpop.f32.mrf.mxu0
      %v10039 = vpop.f32.mrf.mxu0
      %v10040 = vadd.f32 0.0, %v10039
      %v10041 = vpop.f32.mrf.mxu0
      %10042 = vmatprep.mubr.bf16.mxu0 0
      %10043 = vmatmul.mubr.bf16.gmra.mxu0 %v9919
      %v10044 = vpop.f32.mrf.mxu0
      %v10045 = vadd.f32 0.0, %v10044
      %v10046 = vpop.f32.mrf.mxu0
      %v10047 = vpop.f32.mrf.mxu0
      %v10048 = vadd.f32 0.0, %v10047
      %v10049 = vpop.f32.mrf.mxu0
      %10050 = vmatprep.mubr.bf16.mxu0 0
      %10051 = vmatmul.mubr.bf16.gmra.mxu0 %v9922
      %v10052 = vpop.f32.mrf.mxu0
      %v10053 = vadd.f32 0.0, %v10052
      %v10054 = vpop.f32.mrf.mxu0
      %v10055 = vpop.f32.mrf.mxu0
      %v10056 = vadd.f32 0.0, %v10055
      %v10057 = vpop.f32.mrf.mxu0
      %10058 = vmatprep.mubr.bf16.mxu0 0
      %10059 = vmatmul.mubr.bf16.gmra.mxu0 %v9925
      %v10060 = vpop.f32.mrf.mxu0
      %v10061 = vadd.f32 0.0, %v10060
      %v10062 = vpop.f32.mrf.mxu0
      %v10063 = vpop.f32.mrf.mxu0
      %v10064 = vadd.f32 0.0, %v10063
      %v10065 = vpop.f32.mrf.mxu0
      %10066 = vmatprep.mubr.bf16.mxu0 0
      %10067 = vmatmul.mubr.bf16.gmra.mxu0 %v9928
      %v10068 = vpop.f32.mrf.mxu0
      %v10069 = vadd.f32 0.0, %v10068
      %v10070 = vpop.f32.mrf.mxu0
      %v10071 = vpop.f32.mrf.mxu0
      %v10072 = vadd.f32 0.0, %v10071
      %v10073 = vpop.f32.mrf.mxu0
      %10074 = vmatprep.mubr.bf16.mxu0 0
      %10075 = vmatmul.mubr.bf16.gmra.mxu0 %v9931
      %v10076 = vpop.f32.mrf.mxu0
      %v10077 = vadd.f32 0.0, %v10076
      %v10078 = vpop.f32.mrf.mxu0
      %v10079 = vpop.f32.mrf.mxu0
      %v10080 = vadd.f32 0.0, %v10079
      %v10081 = vpop.f32.mrf.mxu0
      %10082 = vmatprep.mubr.bf16.mxu0 0
      %10083 = vmatmul.mubr.bf16.gmra.mxu0 %v9934
      %v10084 = vpop.f32.mrf.mxu0
      %v10085 = vadd.f32 0.0, %v10084
      %v10086 = vpop.f32.mrf.mxu0
      %v10087 = vpop.f32.mrf.mxu0
      %v10088 = vadd.f32 0.0, %v10087
      %v10089 = vpop.f32.mrf.mxu0
      %10090 = vmatprep.mubr.bf16.mxu0 0
      %10091 = vmatmul.mubr.bf16.gmra.mxu0 %v9937
      %v10092 = vpop.f32.mrf.mxu0
      %v10093 = vadd.f32 0.0, %v10092
      %v10094 = vpop.f32.mrf.mxu0
      %v10095 = vpop.f32.mrf.mxu0
      %v10096 = vadd.f32 0.0, %v10095
      %v10097 = vpop.f32.mrf.mxu0
      %10098 = vmatprep.mubr.bf16.mxu0 0
      %10099 = vmatmul.mubr.bf16.gmra.mxu0 %v9940
      %v10100 = vpop.f32.mrf.mxu0
      %v10101 = vadd.f32 0.0, %v10100
      %v10102 = vpop.f32.mrf.mxu0
      %v10103 = vpop.f32.mrf.mxu0
      %v10104 = vadd.f32 0.0, %v10103
      %v10105 = vpop.f32.mrf.mxu0
      %10106 = vmatprep.mubr.bf16.mxu0 0
      %10107 = vmatmul.mubr.bf16.gmra.mxu0 %v9943
      %v10108 = vpop.f32.mrf.mxu0
      %v10109 = vadd.f32 0.0, %v10108
      %v10110 = vpop.f32.mrf.mxu0
      %v10111 = vpop.f32.mrf.mxu0
      %v10112 = vadd.f32 0.0, %v10111
      %v10113 = vpop.f32.mrf.mxu0
      %10114 = vmatprep.mubr.bf16.mxu0 0
      %10115 = vmatmul.mubr.bf16.gmra.mxu0 %v9946
      %v10116 = vpop.f32.mrf.mxu0
      %v10117 = vadd.f32 0.0, %v10116
      %v10118 = vpop.f32.mrf.mxu0
      %v10119 = vpop.f32.mrf.mxu0
      %v10120 = vadd.f32 0.0, %v10119
      %v10121 = vpop.f32.mrf.mxu0
      %10122 = vmatprep.mubr.bf16.mxu0 0
      %10123 = vmatmul.mubr.bf16.gmra.mxu0 %v9949
      %v10124 = vpop.f32.mrf.mxu0
      %v10125 = vadd.f32 0.0, %v10124
      %v10126 = vpop.f32.mrf.mxu0
      %v10127 = vpop.f32.mrf.mxu0
      %v10128 = vadd.f32 0.0, %v10127
      %v10129 = vpop.f32.mrf.mxu0
      %10130 = vdwg.mxu0
      %v10131 = vadd.f32 %v9685, %v9989
      %v10132 = vadd.f32 %v9686, %v9992
      %v10133 = vadd.f32 %v9687, %v9997
      %v10134 = vadd.f32 %v9688, %v10000
      %v10135 = vadd.f32 %v9689, %v10005
      %v10136 = vadd.f32 %v9690, %v10008
      %v10137 = vadd.f32 %v9691, %v10013
      %v10138 = vadd.f32 %v9692, %v10016
      %v10139 = vadd.f32 %v9693, %v10021
      %v10140 = vadd.f32 %v9694, %v10024
      %v10141 = vadd.f32 %v9695, %v10029
      %v10142 = vadd.f32 %v9696, %v10032
      %v10143 = vadd.f32 %v9697, %v10037
      %v10144 = vadd.f32 %v9698, %v10040
      %v10145 = vadd.f32 %v9699, %v10045
      %v10146 = vadd.f32 %v9700, %v10048
      %v10147 = vadd.f32 %v9701, %v10053
      %v10148 = vadd.f32 %v9702, %v10056
      %v10149 = vadd.f32 %v9703, %v10061
      %v10150 = vadd.f32 %v9704, %v10064
      %v10151 = vadd.f32 %v9705, %v10069
      %v10152 = vadd.f32 %v9706, %v10072
      %v10153 = vadd.f32 %v9707, %v10077
      %v10154 = vadd.f32 %v9708, %v10080
      %v10155 = vadd.f32 %v9709, %v10085
      %v10156 = vadd.f32 %v9710, %v10088
      %v10157 = vadd.f32 %v9711, %v10093
      %v10158 = vadd.f32 %v9712, %v10096
      %v10159 = vadd.f32 %v9713, %v10101
      %v10160 = vadd.f32 %v9714, %v10104
      %v10161 = vadd.f32 %v9715, %v10109
      %v10162 = vadd.f32 %v9716, %v10112
      %v10163 = vadd.f32 %v9717, %v10117
      %v10164 = vadd.f32 %v9718, %v10120
      %v10165 = vadd.f32 %v9719, %v10125
      %v10166 = vadd.f32 %v9720, %v10128
      %v10167 = vld [vmem:[#allocation2 + $0x10] sm:$0x8]
      %s10168 = scalar_lea.vmem %s3, 16
      %v10169 = vld [vmem:[%s10168] sm:$0x3]
      %v10171 = vunpack.c.l.b16 %v10167
      %v10172 = vpack.c.b16 %v9359, %v10171
      %v10173 = vrot.slane %v10172, 3
      %v10174 = vrot.slane %v9396, 3
      %v10175 = vsel %vm5678, %v10173, %v10174
      %v10176 = vrot.slane %v9397, 3
      %v10177 = vsel %vm5678, %v10174, %v10176
      %v10178 = vrot.slane %v9398, 3
      %v10179 = vsel %vm5678, %v10176, %v10178
      %v10180 = vrot.slane %v9399, 3
      %v10181 = vsel %vm5678, %v10178, %v10180
      %v10182 = vrot.slane %v9400, 3
      %v10183 = vsel %vm5678, %v10180, %v10182
      %v10184 = vrot.slane %v9401, 3
      %v10185 = vsel %vm5678, %v10182, %v10184
      %v10186 = vrot.slane %v9402, 3
      %v10187 = vsel %vm5678, %v10184, %v10186
      %v10188 = vrot.slane %v9403, 3
      %v10189 = vsel %vm5678, %v10186, %v10188
      %v10190 = vrot.slane %v9404, 3
      %v10191 = vsel %vm5678, %v10188, %v10190
      %v10192 = vrot.slane %v9405, 3
      %v10193 = vsel %vm5678, %v10190, %v10192
      %v10194 = vrot.slane %v9406, 3
      %v10195 = vsel %vm5678, %v10192, %v10194
      %v10196 = vrot.slane %v9407, 3
      %v10197 = vsel %vm5678, %v10194, %v10196
      %v10198 = vrot.slane %v9408, 3
      %v10199 = vsel %vm5678, %v10196, %v10198
      %v10200 = vrot.slane %v9409, 3
      %v10201 = vsel %vm5678, %v10198, %v10200
      %v10202 = vrot.slane %v9410, 3
      %v10203 = vsel %vm5678, %v10200, %v10202
      %v10204 = vrot.slane %v9411, 3
      %v10205 = vsel %vm5678, %v10202, %v10204
      %v10206 = vrot.slane %v9412, 3
      %v10207 = vsel %vm5678, %v10204, %v10206
      %v10208 = vrot.slane %v9726, 3
      %v10209 = vsel %vm5678, %v10206, %v10208
      %v10211 = vsel %vm2820, %v10175, 0
      %v10214 = vsel %vm2820, %v10177, 0
      %v10217 = vsel %vm2820, %v10179, 0
      %v10220 = vsel %vm2820, %v10181, 0
      %v10223 = vsel %vm2820, %v10183, 0
      %v10226 = vsel %vm2820, %v10185, 0
      %v10229 = vsel %vm2820, %v10187, 0
      %v10232 = vsel %vm2820, %v10189, 0
      %v10235 = vsel %vm2820, %v10191, 0
      %v10238 = vsel %vm2820, %v10193, 0
      %v10241 = vsel %vm2820, %v10195, 0
      %v10244 = vsel %vm2820, %v10197, 0
      %v10247 = vsel %vm2820, %v10199, 0
      %v10250 = vsel %vm2820, %v10201, 0
      %v10253 = vsel %vm2820, %v10203, 0
      %v10256 = vsel %vm2820, %v10205, 0
      %v10259 = vsel %vm2820, %v10207, 0
      %v10262 = vsel %vm2820, %v10209, 0
      %v10265 = vsel %vm2875, %v10169, 0
      %10267 = vmatprep.subr.bf16.mxu0 0
      %10268 = vmatpush1.bf16.msra.mxu0 0
      %10269 = vmatprep.subr.bf16.mxu0 0
      %10270 = vmatpush1.bf16.msra.mxu0 0
      %10271 = vmatprep.subr.bf16.mxu0 0
      %10272 = vmatpush1.bf16.msra.mxu0 0
      %10273 = vmatprep.subr.bf16.mxu0 0
      %10274 = vmatpush1.bf16.msra.mxu0 0
      %10275 = vmatprep.subr.bf16.mxu0 0
      %10276 = vmatpush1.bf16.msra.mxu0 0
      %10277 = vmatprep.subr.bf16.mxu0 0
      %10278 = vmatpush1.bf16.msra.mxu0 0
      %10279 = vmatprep.subr.bf16.mxu0 0
      %10280 = vmatpush1.bf16.msra.mxu0 0
      %10281 = vmatprep.subr.bf16.mxu0 0
      %10282 = vmatpush1.bf16.msra.mxu0 %v10265
      %10283 = vmatprep.subr.bf16.mxu0 0
      %10284 = vmatpush2.bf16.msra.mxu0 0
      %10285 = vmatprep.subr.bf16.mxu0 0
      %10286 = vmatpush2.bf16.msra.mxu0 0
      %10287 = vmatprep.subr.bf16.mxu0 0
      %10288 = vmatpush2.bf16.msra.mxu0 0
      %10289 = vmatprep.subr.bf16.mxu0 0
      %10290 = vmatpush2.bf16.msra.mxu0 0
      %10291 = vmatprep.subr.bf16.mxu0 0
      %10292 = vmatpush2.bf16.msra.mxu0 0
      %10293 = vmatprep.subr.bf16.mxu0 0
      %10294 = vmatpush2.bf16.msra.mxu0 0
      %10295 = vmatprep.subr.bf16.mxu0 0
      %10296 = vmatpush2.bf16.msra.mxu0 0
      %10297 = vmatprep.subr.bf16.mxu0 0
      %10298 = vmatpush2.bf16.msra.mxu0 0
      %10299 = vmatprep.mubr.bf16.mxu0 0
      %10300 = vmatmul.mubr.bf16.gmra.mxu0 %v10211
      %v10301 = vpop.f32.mrf.mxu0
      %v10302 = vadd.f32 0.0, %v10301
      %v10303 = vpop.f32.mrf.mxu0
      %v10304 = vpop.f32.mrf.mxu0
      %v10305 = vadd.f32 0.0, %v10304
      %v10306 = vpop.f32.mrf.mxu0
      %10307 = vmatprep.mubr.bf16.mxu0 0
      %10308 = vmatmul.mubr.bf16.gmra.mxu0 %v10214
      %v10309 = vpop.f32.mrf.mxu0
      %v10310 = vadd.f32 0.0, %v10309
      %v10311 = vpop.f32.mrf.mxu0
      %v10312 = vpop.f32.mrf.mxu0
      %v10313 = vadd.f32 0.0, %v10312
      %v10314 = vpop.f32.mrf.mxu0
      %10315 = vmatprep.mubr.bf16.mxu0 0
      %10316 = vmatmul.mubr.bf16.gmra.mxu0 %v10217
      %v10317 = vpop.f32.mrf.mxu0
      %v10318 = vadd.f32 0.0, %v10317
      %v10319 = vpop.f32.mrf.mxu0
      %v10320 = vpop.f32.mrf.mxu0
      %v10321 = vadd.f32 0.0, %v10320
      %v10322 = vpop.f32.mrf.mxu0
      %10323 = vmatprep.mubr.bf16.mxu0 0
      %10324 = vmatmul.mubr.bf16.gmra.mxu0 %v10220
      %v10325 = vpop.f32.mrf.mxu0
      %v10326 = vadd.f32 0.0, %v10325
      %v10327 = vpop.f32.mrf.mxu0
      %v10328 = vpop.f32.mrf.mxu0
      %v10329 = vadd.f32 0.0, %v10328
      %v10330 = vpop.f32.mrf.mxu0
      %10331 = vmatprep.mubr.bf16.mxu0 0
      %10332 = vmatmul.mubr.bf16.gmra.mxu0 %v10223
      %v10333 = vpop.f32.mrf.mxu0
      %v10334 = vadd.f32 0.0, %v10333
      %v10335 = vpop.f32.mrf.mxu0
      %v10336 = vpop.f32.mrf.mxu0
      %v10337 = vadd.f32 0.0, %v10336
      %v10338 = vpop.f32.mrf.mxu0
      %10339 = vmatprep.mubr.bf16.mxu0 0
      %10340 = vmatmul.mubr.bf16.gmra.mxu0 %v10226
      %v10341 = vpop.f32.mrf.mxu0
      %v10342 = vadd.f32 0.0, %v10341
      %v10343 = vpop.f32.mrf.mxu0
      %v10344 = vpop.f32.mrf.mxu0
      %v10345 = vadd.f32 0.0, %v10344
      %v10346 = vpop.f32.mrf.mxu0
      %10347 = vmatprep.mubr.bf16.mxu0 0
      %10348 = vmatmul.mubr.bf16.gmra.mxu0 %v10229
      %v10349 = vpop.f32.mrf.mxu0
      %v10350 = vadd.f32 0.0, %v10349
      %v10351 = vpop.f32.mrf.mxu0
      %v10352 = vpop.f32.mrf.mxu0
      %v10353 = vadd.f32 0.0, %v10352
      %v10354 = vpop.f32.mrf.mxu0
      %10355 = vmatprep.mubr.bf16.mxu0 0
      %10356 = vmatmul.mubr.bf16.gmra.mxu0 %v10232
      %v10357 = vpop.f32.mrf.mxu0
      %v10358 = vadd.f32 0.0, %v10357
      %v10359 = vpop.f32.mrf.mxu0
      %v10360 = vpop.f32.mrf.mxu0
      %v10361 = vadd.f32 0.0, %v10360
      %v10362 = vpop.f32.mrf.mxu0
      %10363 = vmatprep.mubr.bf16.mxu0 0
      %10364 = vmatmul.mubr.bf16.gmra.mxu0 %v10235
      %v10365 = vpop.f32.mrf.mxu0
      %v10366 = vadd.f32 0.0, %v10365
      %v10367 = vpop.f32.mrf.mxu0
      %v10368 = vpop.f32.mrf.mxu0
      %v10369 = vadd.f32 0.0, %v10368
      %v10370 = vpop.f32.mrf.mxu0
      %10371 = vmatprep.mubr.bf16.mxu0 0
      %10372 = vmatmul.mubr.bf16.gmra.mxu0 %v10238
      %v10373 = vpop.f32.mrf.mxu0
      %v10374 = vadd.f32 0.0, %v10373
      %v10375 = vpop.f32.mrf.mxu0
      %v10376 = vpop.f32.mrf.mxu0
      %v10377 = vadd.f32 0.0, %v10376
      %v10378 = vpop.f32.mrf.mxu0
      %10379 = vmatprep.mubr.bf16.mxu0 0
      %10380 = vmatmul.mubr.bf16.gmra.mxu0 %v10241
      %v10381 = vpop.f32.mrf.mxu0
      %v10382 = vadd.f32 0.0, %v10381
      %v10383 = vpop.f32.mrf.mxu0
      %v10384 = vpop.f32.mrf.mxu0
      %v10385 = vadd.f32 0.0, %v10384
      %v10386 = vpop.f32.mrf.mxu0
      %10387 = vmatprep.mubr.bf16.mxu0 0
      %10388 = vmatmul.mubr.bf16.gmra.mxu0 %v10244
      %v10389 = vpop.f32.mrf.mxu0
      %v10390 = vadd.f32 0.0, %v10389
      %v10391 = vpop.f32.mrf.mxu0
      %v10392 = vpop.f32.mrf.mxu0
      %v10393 = vadd.f32 0.0, %v10392
      %v10394 = vpop.f32.mrf.mxu0
      %10395 = vmatprep.mubr.bf16.mxu0 0
      %10396 = vmatmul.mubr.bf16.gmra.mxu0 %v10247
      %v10397 = vpop.f32.mrf.mxu0
      %v10398 = vadd.f32 0.0, %v10397
      %v10399 = vpop.f32.mrf.mxu0
      %v10400 = vpop.f32.mrf.mxu0
      %v10401 = vadd.f32 0.0, %v10400
      %v10402 = vpop.f32.mrf.mxu0
      %10403 = vmatprep.mubr.bf16.mxu0 0
      %10404 = vmatmul.mubr.bf16.gmra.mxu0 %v10250
      %v10405 = vpop.f32.mrf.mxu0
      %v10406 = vadd.f32 0.0, %v10405
      %v10407 = vpop.f32.mrf.mxu0
      %v10408 = vpop.f32.mrf.mxu0
      %v10409 = vadd.f32 0.0, %v10408
      %v10410 = vpop.f32.mrf.mxu0
      %10411 = vmatprep.mubr.bf16.mxu0 0
      %10412 = vmatmul.mubr.bf16.gmra.mxu0 %v10253
      %v10413 = vpop.f32.mrf.mxu0
      %v10414 = vadd.f32 0.0, %v10413
      %v10415 = vpop.f32.mrf.mxu0
      %v10416 = vpop.f32.mrf.mxu0
      %v10417 = vadd.f32 0.0, %v10416
      %v10418 = vpop.f32.mrf.mxu0
      %10419 = vmatprep.mubr.bf16.mxu0 0
      %10420 = vmatmul.mubr.bf16.gmra.mxu0 %v10256
      %v10421 = vpop.f32.mrf.mxu0
      %v10422 = vadd.f32 0.0, %v10421
      %v10423 = vpop.f32.mrf.mxu0
      %v10424 = vpop.f32.mrf.mxu0
      %v10425 = vadd.f32 0.0, %v10424
      %v10426 = vpop.f32.mrf.mxu0
      %10427 = vmatprep.mubr.bf16.mxu0 0
      %10428 = vmatmul.mubr.bf16.gmra.mxu0 %v10259
      %v10429 = vpop.f32.mrf.mxu0
      %v10430 = vadd.f32 0.0, %v10429
      %v10431 = vpop.f32.mrf.mxu0
      %v10432 = vpop.f32.mrf.mxu0
      %v10433 = vadd.f32 0.0, %v10432
      %v10434 = vpop.f32.mrf.mxu0
      %10435 = vmatprep.mubr.bf16.mxu0 0
      %10436 = vmatmul.mubr.bf16.gmra.mxu0 %v10262
      %v10437 = vpop.f32.mrf.mxu0
      %v10438 = vadd.f32 0.0, %v10437
      %v10439 = vpop.f32.mrf.mxu0
      %v10440 = vpop.f32.mrf.mxu0
      %v10441 = vadd.f32 0.0, %v10440
      %v10442 = vpop.f32.mrf.mxu0
      %10443 = vdwg.mxu0
      %v10444 = vadd.f32 %v10131, %v10302
      %v10445 = vadd.f32 %v10132, %v10305
      %v10446 = vadd.f32 %v10133, %v10310
      %v10447 = vadd.f32 %v10134, %v10313
      %v10448 = vadd.f32 %v10135, %v10318
      %v10449 = vadd.f32 %v10136, %v10321
      %v10450 = vadd.f32 %v10137, %v10326
      %v10451 = vadd.f32 %v10138, %v10329
      %v10452 = vadd.f32 %v10139, %v10334
      %v10453 = vadd.f32 %v10140, %v10337
      %v10454 = vadd.f32 %v10141, %v10342
      %v10455 = vadd.f32 %v10142, %v10345
      %v10456 = vadd.f32 %v10143, %v10350
      %v10457 = vadd.f32 %v10144, %v10353
      %v10458 = vadd.f32 %v10145, %v10358
      %v10459 = vadd.f32 %v10146, %v10361
      %v10460 = vadd.f32 %v10147, %v10366
      %v10461 = vadd.f32 %v10148, %v10369
      %v10462 = vadd.f32 %v10149, %v10374
      %v10463 = vadd.f32 %v10150, %v10377
      %v10464 = vadd.f32 %v10151, %v10382
      %v10465 = vadd.f32 %v10152, %v10385
      %v10466 = vadd.f32 %v10153, %v10390
      %v10467 = vadd.f32 %v10154, %v10393
      %v10468 = vadd.f32 %v10155, %v10398
      %v10469 = vadd.f32 %v10156, %v10401
      %v10470 = vadd.f32 %v10157, %v10406
      %v10471 = vadd.f32 %v10158, %v10409
      %v10472 = vadd.f32 %v10159, %v10414
      %v10473 = vadd.f32 %v10160, %v10417
      %v10474 = vadd.f32 %v10161, %v10422
      %v10475 = vadd.f32 %v10162, %v10425
      %v10476 = vadd.f32 %v10163, %v10430
      %v10477 = vadd.f32 %v10164, %v10433
      %v10478 = vadd.f32 %v10165, %v10438
      %v10479 = vadd.f32 %v10166, %v10441
      %v10480 = vld [vmem:[%s4] sm:$0x1]
      %v10482 = vlaneseq
      %v10483 = vshrl.u32 %v10482, 7
      %v10484 = vsub.s32 0, %v10483
      %v10485 = vrot.slane %v10480, %v10484
      %v10487 = vadd.f32 %v10444, %v10485
      %v10488 = vadd.f32 %v10445, %v10485
      %v10489 = vadd.f32 %v10446, %v10485
      %v10490 = vadd.f32 %v10447, %v10485
      %v10491 = vadd.f32 %v10448, %v10485
      %v10492 = vadd.f32 %v10449, %v10485
      %v10493 = vadd.f32 %v10450, %v10485
      %v10494 = vadd.f32 %v10451, %v10485
      %v10495 = vadd.f32 %v10452, %v10485
      %v10496 = vadd.f32 %v10453, %v10485
      %v10497 = vadd.f32 %v10454, %v10485
      %v10498 = vadd.f32 %v10455, %v10485
      %v10499 = vadd.f32 %v10456, %v10485
      %v10500 = vadd.f32 %v10457, %v10485
      %v10501 = vadd.f32 %v10458, %v10485
      %v10502 = vadd.f32 %v10459, %v10485
      %v10503 = vadd.f32 %v10460, %v10485
      %v10504 = vadd.f32 %v10461, %v10485
      %v10505 = vadd.f32 %v10462, %v10485
      %v10506 = vadd.f32 %v10463, %v10485
      %v10507 = vadd.f32 %v10464, %v10485
      %v10508 = vadd.f32 %v10465, %v10485
      %v10509 = vadd.f32 %v10466, %v10485
      %v10510 = vadd.f32 %v10467, %v10485
      %v10511 = vadd.f32 %v10468, %v10485
      %v10512 = vadd.f32 %v10469, %v10485
      %v10513 = vadd.f32 %v10470, %v10485
      %v10514 = vadd.f32 %v10471, %v10485
      %v10515 = vadd.f32 %v10472, %v10485
      %v10516 = vadd.f32 %v10473, %v10485
      %v10517 = vadd.f32 %v10474, %v10485
      %v10518 = vadd.f32 %v10475, %v10485
      %v10519 = vadd.f32 %v10476, %v10485
      %v10520 = vadd.f32 %v10477, %v10485
      %v10521 = vadd.f32 %v10478, %v10485
      %v10522 = vadd.f32 %v10479, %v10485
      %v10523 = vmul.f32 %v10487, %v6045
      %v10524 = vmul.f32 %v10488, %v6062
      %v10525 = vmul.f32 %v10489, %v6079
      %v10526 = vmul.f32 %v10490, %v6096
      %v10527 = vmul.f32 %v10491, %v6105
      %v10528 = vmul.f32 %v10492, %v6106
      %v10529 = vmul.f32 %v10493, %v6107
      %v10530 = vmul.f32 %v10494, %v6108
      %v10531 = vmul.f32 %v10495, %v6109
      %v10532 = vmul.f32 %v10496, %v6045
      %v10533 = vmul.f32 %v10497, %v6062
      %v10534 = vmul.f32 %v10498, %v6079
      %v10535 = vmul.f32 %v10499, %v6096
      %v10536 = vmul.f32 %v10500, %v6105
      %v10537 = vmul.f32 %v10501, %v6106
      %v10538 = vmul.f32 %v10502, %v6107
      %v10539 = vmul.f32 %v10503, %v6108
      %v10540 = vmul.f32 %v10504, %v6109
      %v10541 = vmul.f32 %v10505, %v6045
      %v10542 = vmul.f32 %v10506, %v6062
      %v10543 = vmul.f32 %v10507, %v6079
      %v10544 = vmul.f32 %v10508, %v6096
      %v10545 = vmul.f32 %v10509, %v6105
      %v10546 = vmul.f32 %v10510, %v6106
      %v10547 = vmul.f32 %v10511, %v6107
      %v10548 = vmul.f32 %v10512, %v6108
      %v10549 = vmul.f32 %v10513, %v6109
      %v10550 = vmul.f32 %v10514, %v6045
      %v10551 = vmul.f32 %v10515, %v6062
      %v10552 = vmul.f32 %v10516, %v6079
      %v10553 = vmul.f32 %v10517, %v6096
      %v10554 = vmul.f32 %v10518, %v6105
      %v10555 = vmul.f32 %v10519, %v6106
      %v10556 = vmul.f32 %v10520, %v6107
      %v10557 = vmul.f32 %v10521, %v6108
      %v10558 = vmul.f32 %v10522, %v6109
      %v10559 = vsel %vm2820, %v10523, 0.0
      %v10560 = vsel %vm2820, %v10524, 0.0
      %v10561 = vadd.f32 %v10559, %v10560
      %v10562 = vsel %vm2820, %v10525, 0.0
      %v10563 = vadd.f32 %v10561, %v10562
      %v10564 = vsel %vm2820, %v10526, 0.0
      %v10565 = vadd.f32 %v10563, %v10564
      %v10566 = vsel %vm2820, %v10527, 0.0
      %v10567 = vadd.f32 %v10565, %v10566
      %v10568 = vsel %vm2820, %v10528, 0.0
      %v10569 = vadd.f32 %v10567, %v10568
      %v10570 = vsel %vm2820, %v10529, 0.0
      %v10571 = vadd.f32 %v10569, %v10570
      %v10572 = vsel %vm2820, %v10530, 0.0
      %v10573 = vadd.f32 %v10571, %v10572
      %v10574 = vsel %vm2820, %v10531, 0.0
      %v10575 = vadd.f32 %v10573, %v10574
      %v10576 = vsel %vm2820, %v10532, 0.0
      %v10577 = vadd.f32 %v10575, %v10576
      %v10578 = vsel %vm2820, %v10533, 0.0
      %v10579 = vadd.f32 %v10577, %v10578
      %v10580 = vsel %vm2820, %v10534, 0.0
      %v10581 = vadd.f32 %v10579, %v10580
      %v10582 = vsel %vm2820, %v10535, 0.0
      %v10583 = vadd.f32 %v10581, %v10582
      %v10584 = vsel %vm2820, %v10536, 0.0
      %v10585 = vadd.f32 %v10583, %v10584
      %v10586 = vsel %vm2820, %v10537, 0.0
      %v10587 = vadd.f32 %v10585, %v10586
      %v10588 = vsel %vm2820, %v10538, 0.0
      %v10589 = vadd.f32 %v10587, %v10588
      %v10590 = vsel %vm2820, %v10539, 0.0
      %v10591 = vadd.f32 %v10589, %v10590
      %v10592 = vsel %vm2820, %v10540, 0.0
      %v10593 = vadd.f32 %v10591, %v10592
      %v10594 = vsel %vm2820, %v10541, 0.0
      %v10595 = vadd.f32 %v10593, %v10594
      %v10596 = vsel %vm2820, %v10542, 0.0
      %v10597 = vadd.f32 %v10595, %v10596
      %v10598 = vsel %vm2820, %v10543, 0.0
      %v10599 = vadd.f32 %v10597, %v10598
      %v10600 = vsel %vm2820, %v10544, 0.0
      %v10601 = vadd.f32 %v10599, %v10600
      %v10602 = vsel %vm2820, %v10545, 0.0
      %v10603 = vadd.f32 %v10601, %v10602
      %v10604 = vsel %vm2820, %v10546, 0.0
      %v10605 = vadd.f32 %v10603, %v10604
      %v10606 = vsel %vm2820, %v10547, 0.0
      %v10607 = vadd.f32 %v10605, %v10606
      %v10608 = vsel %vm2820, %v10548, 0.0
      %v10609 = vadd.f32 %v10607, %v10608
      %v10610 = vsel %vm2820, %v10549, 0.0
      %v10611 = vadd.f32 %v10609, %v10610
      %v10612 = vsel %vm2820, %v10550, 0.0
      %v10613 = vadd.f32 %v10611, %v10612
      %v10614 = vsel %vm2820, %v10551, 0.0
      %v10615 = vadd.f32 %v10613, %v10614
      %v10616 = vsel %vm2820, %v10552, 0.0
      %v10617 = vadd.f32 %v10615, %v10616
      %v10618 = vsel %vm2820, %v10553, 0.0
      %v10619 = vadd.f32 %v10617, %v10618
      %v10620 = vsel %vm2820, %v10554, 0.0
      %v10621 = vadd.f32 %v10619, %v10620
      %v10622 = vsel %vm2820, %v10555, 0.0
      %v10623 = vadd.f32 %v10621, %v10622
      %v10624 = vsel %vm2820, %v10556, 0.0
      %v10625 = vadd.f32 %v10623, %v10624
      %v10626 = vsel %vm2820, %v10557, 0.0
      %v10627 = vadd.f32 %v10625, %v10626
      %v10628 = vsel %vm2820, %v10558, 0.0
      %v10629 = vadd.f32 %v10627, %v10628
      %v10630 = vrot.slane %v10629, 4
      %v10631 = vadd.f32 %v10629, %v10630
      %v10632 = vrot.slane %v10631, 2
      %v10633 = vadd.f32 %v10631, %v10632
      %v10634 = vrot.slane %v10633, 1
      %v10635 = vadd.f32 %v10633, %v10634
      %v10636 = vmul.f32 %v10523, %v10523
      %v10637 = vmul.f32 %v10524, %v10524
      %v10638 = vmul.f32 %v10525, %v10525
      %v10639 = vmul.f32 %v10526, %v10526
      %v10640 = vmul.f32 %v10527, %v10527
      %v10641 = vmul.f32 %v10528, %v10528
      %v10642 = vmul.f32 %v10529, %v10529
      %v10643 = vmul.f32 %v10530, %v10530
      %v10644 = vmul.f32 %v10531, %v10531
      %v10645 = vmul.f32 %v10532, %v10532
      %v10646 = vmul.f32 %v10533, %v10533
      %v10647 = vmul.f32 %v10534, %v10534
      %v10648 = vmul.f32 %v10535, %v10535
      %v10649 = vmul.f32 %v10536, %v10536
      %v10650 = vmul.f32 %v10537, %v10537
      %v10651 = vmul.f32 %v10538, %v10538
      %v10652 = vmul.f32 %v10539, %v10539
      %v10653 = vmul.f32 %v10540, %v10540
      %v10654 = vmul.f32 %v10541, %v10541
      %v10655 = vmul.f32 %v10542, %v10542
      %v10656 = vmul.f32 %v10543, %v10543
      %v10657 = vmul.f32 %v10544, %v10544
      %v10658 = vmul.f32 %v10545, %v10545
      %v10659 = vmul.f32 %v10546, %v10546
      %v10660 = vmul.f32 %v10547, %v10547
      %v10661 = vmul.f32 %v10548, %v10548
      %v10662 = vmul.f32 %v10549, %v10549
      %v10663 = vmul.f32 %v10550, %v10550
      %v10664 = vmul.f32 %v10551, %v10551
      %v10665 = vmul.f32 %v10552, %v10552
      %v10666 = vmul.f32 %v10553, %v10553
      %v10667 = vmul.f32 %v10554, %v10554
      %v10668 = vmul.f32 %v10555, %v10555
      %v10669 = vmul.f32 %v10556, %v10556
      %v10670 = vmul.f32 %v10557, %v10557
      %v10671 = vmul.f32 %v10558, %v10558
      %v10672 = vsel %vm2820, %v10636, 0.0
      %v10673 = vsel %vm2820, %v10637, 0.0
      %v10674 = vadd.f32 %v10672, %v10673
      %v10675 = vsel %vm2820, %v10638, 0.0
      %v10676 = vadd.f32 %v10674, %v10675
      %v10677 = vsel %vm2820, %v10639, 0.0
      %v10678 = vadd.f32 %v10676, %v10677
      %v10679 = vsel %vm2820, %v10640, 0.0
      %v10680 = vadd.f32 %v10678, %v10679
      %v10681 = vsel %vm2820, %v10641, 0.0
      %v10682 = vadd.f32 %v10680, %v10681
      %v10683 = vsel %vm2820, %v10642, 0.0
      %v10684 = vadd.f32 %v10682, %v10683
      %v10685 = vsel %vm2820, %v10643, 0.0
      %v10686 = vadd.f32 %v10684, %v10685
      %v10687 = vsel %vm2820, %v10644, 0.0
      %v10688 = vadd.f32 %v10686, %v10687
      %v10689 = vsel %vm2820, %v10645, 0.0
      %v10690 = vadd.f32 %v10688, %v10689
      %v10691 = vsel %vm2820, %v10646, 0.0
      %v10692 = vadd.f32 %v10690, %v10691
      %v10693 = vsel %vm2820, %v10647, 0.0
      %v10694 = vadd.f32 %v10692, %v10693
      %v10695 = vsel %vm2820, %v10648, 0.0
      %v10696 = vadd.f32 %v10694, %v10695
      %v10697 = vsel %vm2820, %v10649, 0.0
      %v10698 = vadd.f32 %v10696, %v10697
      %v10699 = vsel %vm2820, %v10650, 0.0
      %v10700 = vadd.f32 %v10698, %v10699
      %v10701 = vsel %vm2820, %v10651, 0.0
      %v10702 = vadd.f32 %v10700, %v10701
      %v10703 = vsel %vm2820, %v10652, 0.0
      %v10704 = vadd.f32 %v10702, %v10703
      %v10705 = vsel %vm2820, %v10653, 0.0
      %v10706 = vadd.f32 %v10704, %v10705
      %v10707 = vsel %vm2820, %v10654, 0.0
      %v10708 = vadd.f32 %v10706, %v10707
      %v10709 = vsel %vm2820, %v10655, 0.0
      %v10710 = vadd.f32 %v10708, %v10709
      %v10711 = vsel %vm2820, %v10656, 0.0
      %v10712 = vadd.f32 %v10710, %v10711
      %v10713 = vsel %vm2820, %v10657, 0.0
      %v10714 = vadd.f32 %v10712, %v10713
      %v10715 = vsel %vm2820, %v10658, 0.0
      %v10716 = vadd.f32 %v10714, %v10715
      %v10717 = vsel %vm2820, %v10659, 0.0
      %v10718 = vadd.f32 %v10716, %v10717
      %v10719 = vsel %vm2820, %v10660, 0.0
      %v10720 = vadd.f32 %v10718, %v10719
      %v10721 = vsel %vm2820, %v10661, 0.0
      %v10722 = vadd.f32 %v10720, %v10721
      %v10723 = vsel %vm2820, %v10662, 0.0
      %v10724 = vadd.f32 %v10722, %v10723
      %v10725 = vsel %vm2820, %v10663, 0.0
      %v10726 = vadd.f32 %v10724, %v10725
      %v10727 = vsel %vm2820, %v10664, 0.0
      %v10728 = vadd.f32 %v10726, %v10727
      %v10729 = vsel %vm2820, %v10665, 0.0
      %v10730 = vadd.f32 %v10728, %v10729
      %v10731 = vsel %vm2820, %v10666, 0.0
      %v10732 = vadd.f32 %v10730, %v10731
      %v10733 = vsel %vm2820, %v10667, 0.0
      %v10734 = vadd.f32 %v10732, %v10733
      %v10735 = vsel %vm2820, %v10668, 0.0
      %v10736 = vadd.f32 %v10734, %v10735
      %v10737 = vsel %vm2820, %v10669, 0.0
      %v10738 = vadd.f32 %v10736, %v10737
      %v10739 = vsel %vm2820, %v10670, 0.0
      %v10740 = vadd.f32 %v10738, %v10739
      %v10741 = vsel %vm2820, %v10671, 0.0
      %v10742 = vadd.f32 %v10740, %v10741
      %v10743 = vrot.slane %v10742, 4
      %v10744 = vadd.f32 %v10742, %v10743
      %v10745 = vrot.slane %v10744, 2
      %v10746 = vadd.f32 %v10744, %v10745
      %v10747 = vrot.slane %v10746, 1
      %v10748 = vadd.f32 %v10746, %v10747
      %v10749 = vmul.f32 %v10635, 0.00390625
      %v10750 = vmul.f32 %v10748, 0.00390625
      %v10751 = vmul.f32 %v10749, %v10749
      %v10752 = vsub.f32 %v10750, %v10751
      %v10753 = vsub.f32 %v10487, %v10749
      %v10754 = vsub.f32 %v10488, %v10749
      %v10755 = vsub.f32 %v10489, %v10749
      %v10756 = vsub.f32 %v10490, %v10749
      %v10757 = vsub.f32 %v10491, %v10749
      %v10758 = vsub.f32 %v10492, %v10749
      %v10759 = vsub.f32 %v10493, %v10749
      %v10760 = vsub.f32 %v10494, %v10749
      %v10761 = vsub.f32 %v10495, %v10749
      %v10762 = vsub.f32 %v10496, %v10749
      %v10763 = vsub.f32 %v10497, %v10749
      %v10764 = vsub.f32 %v10498, %v10749
      %v10765 = vsub.f32 %v10499, %v10749
      %v10766 = vsub.f32 %v10500, %v10749
      %v10767 = vsub.f32 %v10501, %v10749
      %v10768 = vsub.f32 %v10502, %v10749
      %v10769 = vsub.f32 %v10503, %v10749
      %v10770 = vsub.f32 %v10504, %v10749
      %v10771 = vsub.f32 %v10505, %v10749
      %v10772 = vsub.f32 %v10506, %v10749
      %v10773 = vsub.f32 %v10507, %v10749
      %v10774 = vsub.f32 %v10508, %v10749
      %v10775 = vsub.f32 %v10509, %v10749
      %v10776 = vsub.f32 %v10510, %v10749
      %v10777 = vsub.f32 %v10511, %v10749
      %v10778 = vsub.f32 %v10512, %v10749
      %v10779 = vsub.f32 %v10513, %v10749
      %v10780 = vsub.f32 %v10514, %v10749
      %v10781 = vsub.f32 %v10515, %v10749
      %v10782 = vsub.f32 %v10516, %v10749
      %v10783 = vsub.f32 %v10517, %v10749
      %v10784 = vsub.f32 %v10518, %v10749
      %v10785 = vsub.f32 %v10519, %v10749
      %v10786 = vsub.f32 %v10520, %v10749
      %v10787 = vsub.f32 %v10521, %v10749
      %v10788 = vsub.f32 %v10522, %v10749
      %v10789 = vadd.f32 %v10752, 1e-05
      %v10790 = vrsqrt.pop %v10789
      %v10791 = vmul.f32 %v10753, %v10790
      %v10792 = vmul.f32 %v10754, %v10790
      %v10793 = vmul.f32 %v10755, %v10790
      %v10794 = vmul.f32 %v10756, %v10790
      %v10795 = vmul.f32 %v10757, %v10790
      %v10796 = vmul.f32 %v10758, %v10790
      %v10797 = vmul.f32 %v10759, %v10790
      %v10798 = vmul.f32 %v10760, %v10790
      %v10799 = vmul.f32 %v10761, %v10790
      %v10800 = vmul.f32 %v10762, %v10790
      %v10801 = vmul.f32 %v10763, %v10790
      %v10802 = vmul.f32 %v10764, %v10790
      %v10803 = vmul.f32 %v10765, %v10790
      %v10804 = vmul.f32 %v10766, %v10790
      %v10805 = vmul.f32 %v10767, %v10790
      %v10806 = vmul.f32 %v10768, %v10790
      %v10807 = vmul.f32 %v10769, %v10790
      %v10808 = vmul.f32 %v10770, %v10790
      %v10809 = vmul.f32 %v10771, %v10790
      %v10810 = vmul.f32 %v10772, %v10790
      %v10811 = vmul.f32 %v10773, %v10790
      %v10812 = vmul.f32 %v10774, %v10790
      %v10813 = vmul.f32 %v10775, %v10790
      %v10814 = vmul.f32 %v10776, %v10790
      %v10815 = vmul.f32 %v10777, %v10790
      %v10816 = vmul.f32 %v10778, %v10790
      %v10817 = vmul.f32 %v10779, %v10790
      %v10818 = vmul.f32 %v10780, %v10790
      %v10819 = vmul.f32 %v10781, %v10790
      %v10820 = vmul.f32 %v10782, %v10790
      %v10821 = vmul.f32 %v10783, %v10790
      %v10822 = vmul.f32 %v10784, %v10790
      %v10823 = vmul.f32 %v10785, %v10790
      %v10824 = vmul.f32 %v10786, %v10790
      %v10825 = vmul.f32 %v10787, %v10790
      %v10826 = vmul.f32 %v10788, %v10790
      %v10827 = vld [vmem:[%s219] sm:$0xf]
      %v10828 = vld [vmem:[%s219 + $0x4] sm:$0xf]
      %v10829 = vld [vmem:[%s219 + $0x8] sm:$0xf]
      %v10830 = vld [vmem:[%s219 + $0xc] sm:$0xf]
      %v10831 = vld [vmem:[%s219 + $0x10] sm:$0xf]
      %v10832 = vld [vmem:[%s219 + $0x14] sm:$0xf]
      %v10833 = vld [vmem:[%s219 + $0x18] sm:$0xf]
      %v10834 = vld [vmem:[%s219 + $0x1c] sm:$0xf]
      %v10835 = vld [vmem:[%s219 + $0x20] sm:$0xf]
      %v10836 = vld [vmem:[%s219 + $0x24] sm:$0xf]
      %v10837 = vld [vmem:[%s219 + $0x28] sm:$0xf]
      %v10838 = vld [vmem:[%s219 + $0x2c] sm:$0xf]
      %v10839 = vld [vmem:[%s219 + $0x30] sm:$0xf]
      %v10840 = vld [vmem:[%s219 + $0x34] sm:$0xf]
      %v10841 = vld [vmem:[%s219 + $0x38] sm:$0xf]
      %v10842 = vld [vmem:[%s219 + $0x3c] sm:$0xf]
      %v10843 = vld [vmem:[%s219 + $0x40] sm:$0xf]
      %v10844 = vld [vmem:[%s219 + $0x44] sm:$0xf]
      %v10845 = vld [vmem:[%s219 + $0x48] sm:$0xf]
      %v10846 = vld [vmem:[%s219 + $0x4c] sm:$0xf]
      %v10847 = vld [vmem:[%s219 + $0x50] sm:$0xf]
      %v10848 = vld [vmem:[%s219 + $0x54] sm:$0xf]
      %v10849 = vld [vmem:[%s219 + $0x58] sm:$0xf]
      %v10850 = vld [vmem:[%s219 + $0x5c] sm:$0xf]
      %v10851 = vld [vmem:[%s219 + $0x60] sm:$0xf]
      %v10852 = vld [vmem:[%s219 + $0x64] sm:$0xf]
      %v10853 = vld [vmem:[%s219 + $0x68] sm:$0xf]
      %v10854 = vld [vmem:[%s219 + $0x6c] sm:$0xf]
      %v10855 = vld [vmem:[%s219 + $0x70] sm:$0xf]
      %v10856 = vld [vmem:[%s219 + $0x74] sm:$0xf]
      %v10857 = vld [vmem:[%s219 + $0x78] sm:$0xf]
      %v10858 = vld [vmem:[%s219 + $0x7c] sm:$0xf]
      %v10859 = vunpack.c.l.bf16 %v10827
      %v10860 = vunpack.c.l.bf16 %v10828
      %v10861 = vunpack.c.l.bf16 %v10829
      %v10862 = vunpack.c.l.bf16 %v10830
      %v10863 = vunpack.c.l.bf16 %v10831
      %v10864 = vunpack.c.l.bf16 %v10832
      %v10865 = vunpack.c.l.bf16 %v10833
      %v10866 = vunpack.c.l.bf16 %v10834
      %v10867 = vunpack.c.l.bf16 %v10835
      %v10868 = vunpack.c.l.bf16 %v10836
      %v10869 = vunpack.c.l.bf16 %v10837
      %v10870 = vunpack.c.l.bf16 %v10838
      %v10871 = vunpack.c.l.bf16 %v10839
      %v10872 = vunpack.c.l.bf16 %v10840
      %v10873 = vunpack.c.l.bf16 %v10841
      %v10874 = vunpack.c.l.bf16 %v10842
      %v10875 = vunpack.c.l.bf16 %v10843
      %v10876 = vunpack.c.l.bf16 %v10844
      %v10877 = vunpack.c.l.bf16 %v10845
      %v10878 = vunpack.c.l.bf16 %v10846
      %v10879 = vunpack.c.l.bf16 %v10847
      %v10880 = vunpack.c.l.bf16 %v10848
      %v10881 = vunpack.c.l.bf16 %v10849
      %v10882 = vunpack.c.l.bf16 %v10850
      %v10883 = vunpack.c.l.bf16 %v10851
      %v10884 = vunpack.c.l.bf16 %v10852
      %v10885 = vunpack.c.l.bf16 %v10853
      %v10886 = vunpack.c.l.bf16 %v10854
      %v10887 = vunpack.c.l.bf16 %v10855
      %v10888 = vunpack.c.l.bf16 %v10856
      %v10889 = vunpack.c.l.bf16 %v10857
      %v10890 = vunpack.c.l.bf16 %v10858
      %v10927 = vcombine.high %v10791, %v10791
      %v10929 = vunpack.c.l.s4 1983009808
      %v10930 = vunpack.c.0.s8 %v10929
      %v10931 = vlaneseq
      %v10932 = vshrl.u32 %v10931, 7
      %v10933 = vsub.s32 %v10930, %v10932
      %v10934 = vrot.slane %v10791, %v10933
      %v10936 = vunpack.c.l.s4 1983009808
      %v10937 = vunpack.c.0.s8 %v10936
      %v10938 = vlaneseq
      %v10939 = vshrl.u32 %v10938, 7
      %v10940 = vsub.s32 %v10937, %v10939
      %v10941 = vrot.slane %v10927, %v10940
      %v10942 = vcombine.high %v10934, %v10934
      %v10943 = vcombine.high %v10941, %v10941
      %v10944 = vcombine.high %v10792, %v10792
      %v10946 = vunpack.c.l.s4 1983009808
      %v10947 = vunpack.c.0.s8 %v10946
      %v10948 = vlaneseq
      %v10949 = vshrl.u32 %v10948, 7
      %v10950 = vsub.s32 %v10947, %v10949
      %v10951 = vrot.slane %v10792, %v10950
      %v10953 = vunpack.c.l.s4 1983009808
      %v10954 = vunpack.c.0.s8 %v10953
      %v10955 = vlaneseq
      %v10956 = vshrl.u32 %v10955, 7
      %v10957 = vsub.s32 %v10954, %v10956
      %v10958 = vrot.slane %v10944, %v10957
      %v10959 = vcombine.high %v10951, %v10951
      %v10960 = vcombine.high %v10958, %v10958
      %v10961 = vcombine.high %v10793, %v10793
      %v10963 = vunpack.c.l.s4 1983009808
      %v10964 = vunpack.c.0.s8 %v10963
      %v10965 = vlaneseq
      %v10966 = vshrl.u32 %v10965, 7
      %v10967 = vsub.s32 %v10964, %v10966
      %v10968 = vrot.slane %v10793, %v10967
      %v10970 = vunpack.c.l.s4 1983009808
      %v10971 = vunpack.c.0.s8 %v10970
      %v10972 = vlaneseq
      %v10973 = vshrl.u32 %v10972, 7
      %v10974 = vsub.s32 %v10971, %v10973
      %v10975 = vrot.slane %v10961, %v10974
      %v10976 = vcombine.high %v10968, %v10968
      %v10977 = vcombine.high %v10975, %v10975
      %v10978 = vcombine.high %v10794, %v10794
      %v10980 = vunpack.c.l.s4 1983009808
      %v10981 = vunpack.c.0.s8 %v10980
      %v10982 = vlaneseq
      %v10983 = vshrl.u32 %v10982, 7
      %v10984 = vsub.s32 %v10981, %v10983
      %v10985 = vrot.slane %v10794, %v10984
      %v10987 = vunpack.c.l.s4 1983009808
      %v10988 = vunpack.c.0.s8 %v10987
      %v10989 = vlaneseq
      %v10990 = vshrl.u32 %v10989, 7
      %v10991 = vsub.s32 %v10988, %v10990
      %v10992 = vrot.slane %v10978, %v10991
      %v10993 = vcombine.high %v10985, %v10985
      %v10994 = vcombine.high %v10992, %v10992
      %v10995 = vcombine.high %v10795, %v10795
      %v10997 = vunpack.c.l.s4 1983009808
      %v10998 = vunpack.c.0.s8 %v10997
      %v10999 = vlaneseq
      %v11000 = vshrl.u32 %v10999, 7
      %v11001 = vsub.s32 %v10998, %v11000
      %v11002 = vrot.slane %v10795, %v11001
      %v11004 = vunpack.c.l.s4 1983009808
      %v11005 = vunpack.c.0.s8 %v11004
      %v11006 = vlaneseq
      %v11007 = vshrl.u32 %v11006, 7
      %v11008 = vsub.s32 %v11005, %v11007
      %v11009 = vrot.slane %v10995, %v11008
      %v11010 = vcombine.high %v11009, %v11009
      %v11011 = vcombine.high %v10796, %v10796
      %v11013 = vunpack.c.l.s4 1983009808
      %v11014 = vunpack.c.0.s8 %v11013
      %v11015 = vlaneseq
      %v11016 = vshrl.u32 %v11015, 7
      %v11017 = vsub.s32 %v11014, %v11016
      %v11018 = vrot.slane %v10796, %v11017
      %v11020 = vunpack.c.l.s4 1983009808
      %v11021 = vunpack.c.0.s8 %v11020
      %v11022 = vlaneseq
      %v11023 = vshrl.u32 %v11022, 7
      %v11024 = vsub.s32 %v11021, %v11023
      %v11025 = vrot.slane %v11011, %v11024
      %v11026 = vcombine.high %v11018, %v11018
      %v11027 = vcombine.high %v11025, %v11025
      %v11028 = vcombine.high %v10797, %v10797
      %v11030 = vunpack.c.l.s4 1983009808
      %v11031 = vunpack.c.0.s8 %v11030
      %v11032 = vlaneseq
      %v11033 = vshrl.u32 %v11032, 7
      %v11034 = vsub.s32 %v11031, %v11033
      %v11035 = vrot.slane %v10797, %v11034
      %v11037 = vunpack.c.l.s4 1983009808
      %v11038 = vunpack.c.0.s8 %v11037
      %v11039 = vlaneseq
      %v11040 = vshrl.u32 %v11039, 7
      %v11041 = vsub.s32 %v11038, %v11040
      %v11042 = vrot.slane %v11028, %v11041
      %v11043 = vcombine.high %v11035, %v11035
      %v11044 = vcombine.high %v11042, %v11042
      %v11045 = vcombine.high %v10798, %v10798
      %v11047 = vunpack.c.l.s4 1983009808
      %v11048 = vunpack.c.0.s8 %v11047
      %v11049 = vlaneseq
      %v11050 = vshrl.u32 %v11049, 7
      %v11051 = vsub.s32 %v11048, %v11050
      %v11052 = vrot.slane %v10798, %v11051
      %v11054 = vunpack.c.l.s4 1983009808
      %v11055 = vunpack.c.0.s8 %v11054
      %v11056 = vlaneseq
      %v11057 = vshrl.u32 %v11056, 7
      %v11058 = vsub.s32 %v11055, %v11057
      %v11059 = vrot.slane %v11045, %v11058
      %v11060 = vcombine.high %v11052, %v11052
      %v11061 = vcombine.high %v11059, %v11059
      %v11062 = vcombine.high %v10799, %v10799
      %v11064 = vunpack.c.l.s4 1983009808
      %v11065 = vunpack.c.0.s8 %v11064
      %v11066 = vlaneseq
      %v11067 = vshrl.u32 %v11066, 7
      %v11068 = vsub.s32 %v11065, %v11067
      %v11069 = vrot.slane %v10799, %v11068
      %v11071 = vunpack.c.l.s4 1983009808
      %v11072 = vunpack.c.0.s8 %v11071
      %v11073 = vlaneseq
      %v11074 = vshrl.u32 %v11073, 7
      %v11075 = vsub.s32 %v11072, %v11074
      %v11076 = vrot.slane %v11062, %v11075
      %v11077 = vcombine.high %v11069, %v11069
      %v11078 = vcombine.high %v10800, %v10800
      %v11080 = vunpack.c.l.s4 1983009808
      %v11081 = vunpack.c.0.s8 %v11080
      %v11082 = vlaneseq
      %v11083 = vshrl.u32 %v11082, 7
      %v11084 = vsub.s32 %v11081, %v11083
      %v11085 = vrot.slane %v10800, %v11084
      %v11087 = vunpack.c.l.s4 1983009808
      %v11088 = vunpack.c.0.s8 %v11087
      %v11089 = vlaneseq
      %v11090 = vshrl.u32 %v11089, 7
      %v11091 = vsub.s32 %v11088, %v11090
      %v11092 = vrot.slane %v11078, %v11091
      %v11093 = vcombine.high %v11085, %v11085
      %v11094 = vcombine.high %v11092, %v11092
      %v11095 = vcombine.high %v10801, %v10801
      %v11097 = vunpack.c.l.s4 1983009808
      %v11098 = vunpack.c.0.s8 %v11097
      %v11099 = vlaneseq
      %v11100 = vshrl.u32 %v11099, 7
      %v11101 = vsub.s32 %v11098, %v11100
      %v11102 = vrot.slane %v10801, %v11101
      %v11104 = vunpack.c.l.s4 1983009808
      %v11105 = vunpack.c.0.s8 %v11104
      %v11106 = vlaneseq
      %v11107 = vshrl.u32 %v11106, 7
      %v11108 = vsub.s32 %v11105, %v11107
      %v11109 = vrot.slane %v11095, %v11108
      %v11110 = vcombine.high %v11102, %v11102
      %v11111 = vcombine.high %v11109, %v11109
      %v11112 = vcombine.high %v10802, %v10802
      %v11114 = vunpack.c.l.s4 1983009808
      %v11115 = vunpack.c.0.s8 %v11114
      %v11116 = vlaneseq
      %v11117 = vshrl.u32 %v11116, 7
      %v11118 = vsub.s32 %v11115, %v11117
      %v11119 = vrot.slane %v10802, %v11118
      %v11121 = vunpack.c.l.s4 1983009808
      %v11122 = vunpack.c.0.s8 %v11121
      %v11123 = vlaneseq
      %v11124 = vshrl.u32 %v11123, 7
      %v11125 = vsub.s32 %v11122, %v11124
      %v11126 = vrot.slane %v11112, %v11125
      %v11127 = vcombine.high %v11119, %v11119
      %v11128 = vcombine.high %v11126, %v11126
      %v11129 = vcombine.high %v10803, %v10803
      %v11131 = vunpack.c.l.s4 1983009808
      %v11132 = vunpack.c.0.s8 %v11131
      %v11133 = vlaneseq
      %v11134 = vshrl.u32 %v11133, 7
      %v11135 = vsub.s32 %v11132, %v11134
      %v11136 = vrot.slane %v10803, %v11135
      %v11138 = vunpack.c.l.s4 1983009808
      %v11139 = vunpack.c.0.s8 %v11138
      %v11140 = vlaneseq
      %v11141 = vshrl.u32 %v11140, 7
      %v11142 = vsub.s32 %v11139, %v11141
      %v11143 = vrot.slane %v11129, %v11142
      %v11144 = vcombine.high %v11136, %v11136
      %v11145 = vcombine.high %v11143, %v11143
      %v11146 = vcombine.high %v10804, %v10804
      %v11148 = vunpack.c.l.s4 1983009808
      %v11149 = vunpack.c.0.s8 %v11148
      %v11150 = vlaneseq
      %v11151 = vshrl.u32 %v11150, 7
      %v11152 = vsub.s32 %v11149, %v11151
      %v11153 = vrot.slane %v10804, %v11152
      %v11155 = vunpack.c.l.s4 1983009808
      %v11156 = vunpack.c.0.s8 %v11155
      %v11157 = vlaneseq
      %v11158 = vshrl.u32 %v11157, 7
      %v11159 = vsub.s32 %v11156, %v11158
      %v11160 = vrot.slane %v11146, %v11159
      %v11161 = vcombine.high %v11160, %v11160
      %v11162 = vcombine.high %v10805, %v10805
      %v11164 = vunpack.c.l.s4 1983009808
      %v11165 = vunpack.c.0.s8 %v11164
      %v11166 = vlaneseq
      %v11167 = vshrl.u32 %v11166, 7
      %v11168 = vsub.s32 %v11165, %v11167
      %v11169 = vrot.slane %v10805, %v11168
      %v11171 = vunpack.c.l.s4 1983009808
      %v11172 = vunpack.c.0.s8 %v11171
      %v11173 = vlaneseq
      %v11174 = vshrl.u32 %v11173, 7
      %v11175 = vsub.s32 %v11172, %v11174
      %v11176 = vrot.slane %v11162, %v11175
      %v11177 = vcombine.high %v11169, %v11169
      %v11178 = vcombine.high %v11176, %v11176
      %v11179 = vcombine.high %v10806, %v10806
      %v11181 = vunpack.c.l.s4 1983009808
      %v11182 = vunpack.c.0.s8 %v11181
      %v11183 = vlaneseq
      %v11184 = vshrl.u32 %v11183, 7
      %v11185 = vsub.s32 %v11182, %v11184
      %v11186 = vrot.slane %v10806, %v11185
      %v11188 = vunpack.c.l.s4 1983009808
      %v11189 = vunpack.c.0.s8 %v11188
      %v11190 = vlaneseq
      %v11191 = vshrl.u32 %v11190, 7
      %v11192 = vsub.s32 %v11189, %v11191
      %v11193 = vrot.slane %v11179, %v11192
      %v11194 = vcombine.high %v11186, %v11186
      %v11195 = vcombine.high %v11193, %v11193
      %v11196 = vcombine.high %v10807, %v10807
      %v11198 = vunpack.c.l.s4 1983009808
      %v11199 = vunpack.c.0.s8 %v11198
      %v11200 = vlaneseq
      %v11201 = vshrl.u32 %v11200, 7
      %v11202 = vsub.s32 %v11199, %v11201
      %v11203 = vrot.slane %v10807, %v11202
      %v11205 = vunpack.c.l.s4 1983009808
      %v11206 = vunpack.c.0.s8 %v11205
      %v11207 = vlaneseq
      %v11208 = vshrl.u32 %v11207, 7
      %v11209 = vsub.s32 %v11206, %v11208
      %v11210 = vrot.slane %v11196, %v11209
      %v11211 = vcombine.high %v11203, %v11203
      %v11212 = vcombine.high %v11210, %v11210
      %v11213 = vcombine.high %v10808, %v10808
      %v11215 = vunpack.c.l.s4 1983009808
      %v11216 = vunpack.c.0.s8 %v11215
      %v11217 = vlaneseq
      %v11218 = vshrl.u32 %v11217, 7
      %v11219 = vsub.s32 %v11216, %v11218
      %v11220 = vrot.slane %v10808, %v11219
      %v11222 = vunpack.c.l.s4 1983009808
      %v11223 = vunpack.c.0.s8 %v11222
      %v11224 = vlaneseq
      %v11225 = vshrl.u32 %v11224, 7
      %v11226 = vsub.s32 %v11223, %v11225
      %v11227 = vrot.slane %v11213, %v11226
      %v11228 = vcombine.high %v11220, %v11220
      %v11229 = vcombine.high %v10809, %v10809
      %v11231 = vunpack.c.l.s4 1983009808
      %v11232 = vunpack.c.0.s8 %v11231
      %v11233 = vlaneseq
      %v11234 = vshrl.u32 %v11233, 7
      %v11235 = vsub.s32 %v11232, %v11234
      %v11236 = vrot.slane %v10809, %v11235
      %v11238 = vunpack.c.l.s4 1983009808
      %v11239 = vunpack.c.0.s8 %v11238
      %v11240 = vlaneseq
      %v11241 = vshrl.u32 %v11240, 7
      %v11242 = vsub.s32 %v11239, %v11241
      %v11243 = vrot.slane %v11229, %v11242
      %v11244 = vcombine.high %v11236, %v11236
      %v11245 = vcombine.high %v11243, %v11243
      %v11246 = vcombine.high %v10810, %v10810
      %v11248 = vunpack.c.l.s4 1983009808
      %v11249 = vunpack.c.0.s8 %v11248
      %v11250 = vlaneseq
      %v11251 = vshrl.u32 %v11250, 7
      %v11252 = vsub.s32 %v11249, %v11251
      %v11253 = vrot.slane %v10810, %v11252
      %v11255 = vunpack.c.l.s4 1983009808
      %v11256 = vunpack.c.0.s8 %v11255
      %v11257 = vlaneseq
      %v11258 = vshrl.u32 %v11257, 7
      %v11259 = vsub.s32 %v11256, %v11258
      %v11260 = vrot.slane %v11246, %v11259
      %v11261 = vcombine.high %v11253, %v11253
      %v11262 = vcombine.high %v11260, %v11260
      %v11263 = vcombine.high %v10811, %v10811
      %v11265 = vunpack.c.l.s4 1983009808
      %v11266 = vunpack.c.0.s8 %v11265
      %v11267 = vlaneseq
      %v11268 = vshrl.u32 %v11267, 7
      %v11269 = vsub.s32 %v11266, %v11268
      %v11270 = vrot.slane %v10811, %v11269
      %v11272 = vunpack.c.l.s4 1983009808
      %v11273 = vunpack.c.0.s8 %v11272
      %v11274 = vlaneseq
      %v11275 = vshrl.u32 %v11274, 7
      %v11276 = vsub.s32 %v11273, %v11275
      %v11277 = vrot.slane %v11263, %v11276
      %v11278 = vcombine.high %v11270, %v11270
      %v11279 = vcombine.high %v11277, %v11277
      %v11280 = vcombine.high %v10812, %v10812
      %v11282 = vunpack.c.l.s4 1983009808
      %v11283 = vunpack.c.0.s8 %v11282
      %v11284 = vlaneseq
      %v11285 = vshrl.u32 %v11284, 7
      %v11286 = vsub.s32 %v11283, %v11285
      %v11287 = vrot.slane %v10812, %v11286
      %v11289 = vunpack.c.l.s4 1983009808
      %v11290 = vunpack.c.0.s8 %v11289
      %v11291 = vlaneseq
      %v11292 = vshrl.u32 %v11291, 7
      %v11293 = vsub.s32 %v11290, %v11292
      %v11294 = vrot.slane %v11280, %v11293
      %v11295 = vcombine.high %v11287, %v11287
      %v11296 = vcombine.high %v11294, %v11294
      %v11297 = vcombine.high %v10813, %v10813
      %v11299 = vunpack.c.l.s4 1983009808
      %v11300 = vunpack.c.0.s8 %v11299
      %v11301 = vlaneseq
      %v11302 = vshrl.u32 %v11301, 7
      %v11303 = vsub.s32 %v11300, %v11302
      %v11304 = vrot.slane %v10813, %v11303
      %v11306 = vunpack.c.l.s4 1983009808
      %v11307 = vunpack.c.0.s8 %v11306
      %v11308 = vlaneseq
      %v11309 = vshrl.u32 %v11308, 7
      %v11310 = vsub.s32 %v11307, %v11309
      %v11311 = vrot.slane %v11297, %v11310
      %v11312 = vcombine.high %v11311, %v11311
      %v11313 = vcombine.high %v10814, %v10814
      %v11315 = vunpack.c.l.s4 1983009808
      %v11316 = vunpack.c.0.s8 %v11315
      %v11317 = vlaneseq
      %v11318 = vshrl.u32 %v11317, 7
      %v11319 = vsub.s32 %v11316, %v11318
      %v11320 = vrot.slane %v10814, %v11319
      %v11322 = vunpack.c.l.s4 1983009808
      %v11323 = vunpack.c.0.s8 %v11322
      %v11324 = vlaneseq
      %v11325 = vshrl.u32 %v11324, 7
      %v11326 = vsub.s32 %v11323, %v11325
      %v11327 = vrot.slane %v11313, %v11326
      %v11328 = vcombine.high %v11320, %v11320
      %v11329 = vcombine.high %v11327, %v11327
      %v11330 = vcombine.high %v10815, %v10815
      %v11332 = vunpack.c.l.s4 1983009808
      %v11333 = vunpack.c.0.s8 %v11332
      %v11334 = vlaneseq
      %v11335 = vshrl.u32 %v11334, 7
      %v11336 = vsub.s32 %v11333, %v11335
      %v11337 = vrot.slane %v10815, %v11336
      %v11339 = vunpack.c.l.s4 1983009808
      %v11340 = vunpack.c.0.s8 %v11339
      %v11341 = vlaneseq
      %v11342 = vshrl.u32 %v11341, 7
      %v11343 = vsub.s32 %v11340, %v11342
      %v11344 = vrot.slane %v11330, %v11343
      %v11345 = vcombine.high %v11337, %v11337
      %v11346 = vcombine.high %v11344, %v11344
      %v11347 = vcombine.high %v10816, %v10816
      %v11349 = vunpack.c.l.s4 1983009808
      %v11350 = vunpack.c.0.s8 %v11349
      %v11351 = vlaneseq
      %v11352 = vshrl.u32 %v11351, 7
      %v11353 = vsub.s32 %v11350, %v11352
      %v11354 = vrot.slane %v10816, %v11353
      %v11356 = vunpack.c.l.s4 1983009808
      %v11357 = vunpack.c.0.s8 %v11356
      %v11358 = vlaneseq
      %v11359 = vshrl.u32 %v11358, 7
      %v11360 = vsub.s32 %v11357, %v11359
      %v11361 = vrot.slane %v11347, %v11360
      %v11362 = vcombine.high %v11354, %v11354
      %v11363 = vcombine.high %v11361, %v11361
      %v11364 = vcombine.high %v10817, %v10817
      %v11366 = vunpack.c.l.s4 1983009808
      %v11367 = vunpack.c.0.s8 %v11366
      %v11368 = vlaneseq
      %v11369 = vshrl.u32 %v11368, 7
      %v11370 = vsub.s32 %v11367, %v11369
      %v11371 = vrot.slane %v10817, %v11370
      %v11373 = vunpack.c.l.s4 1983009808
      %v11374 = vunpack.c.0.s8 %v11373
      %v11375 = vlaneseq
      %v11376 = vshrl.u32 %v11375, 7
      %v11377 = vsub.s32 %v11374, %v11376
      %v11378 = vrot.slane %v11364, %v11377
      %v11379 = vcombine.high %v11371, %v11371
      %v11380 = vcombine.high %v10818, %v10818
      %v11382 = vunpack.c.l.s4 1983009808
      %v11383 = vunpack.c.0.s8 %v11382
      %v11384 = vlaneseq
      %v11385 = vshrl.u32 %v11384, 7
      %v11386 = vsub.s32 %v11383, %v11385
      %v11387 = vrot.slane %v10818, %v11386
      %v11389 = vunpack.c.l.s4 1983009808
      %v11390 = vunpack.c.0.s8 %v11389
      %v11391 = vlaneseq
      %v11392 = vshrl.u32 %v11391, 7
      %v11393 = vsub.s32 %v11390, %v11392
      %v11394 = vrot.slane %v11380, %v11393
      %v11395 = vcombine.high %v11387, %v11387
      %v11396 = vcombine.high %v11394, %v11394
      %v11397 = vcombine.high %v10819, %v10819
      %v11399 = vunpack.c.l.s4 1983009808
      %v11400 = vunpack.c.0.s8 %v11399
      %v11401 = vlaneseq
      %v11402 = vshrl.u32 %v11401, 7
      %v11403 = vsub.s32 %v11400, %v11402
      %v11404 = vrot.slane %v10819, %v11403
      %v11406 = vunpack.c.l.s4 1983009808
      %v11407 = vunpack.c.0.s8 %v11406
      %v11408 = vlaneseq
      %v11409 = vshrl.u32 %v11408, 7
      %v11410 = vsub.s32 %v11407, %v11409
      %v11411 = vrot.slane %v11397, %v11410
      %v11412 = vcombine.high %v11404, %v11404
      %v11413 = vcombine.high %v11411, %v11411
      %v11414 = vcombine.high %v10820, %v10820
      %v11416 = vunpack.c.l.s4 1983009808
      %v11417 = vunpack.c.0.s8 %v11416
      %v11418 = vlaneseq
      %v11419 = vshrl.u32 %v11418, 7
      %v11420 = vsub.s32 %v11417, %v11419
      %v11421 = vrot.slane %v10820, %v11420
      %v11423 = vunpack.c.l.s4 1983009808
      %v11424 = vunpack.c.0.s8 %v11423
      %v11425 = vlaneseq
      %v11426 = vshrl.u32 %v11425, 7
      %v11427 = vsub.s32 %v11424, %v11426
      %v11428 = vrot.slane %v11414, %v11427
      %v11429 = vcombine.high %v11421, %v11421
      %v11430 = vcombine.high %v11428, %v11428
      %v11431 = vcombine.high %v10821, %v10821
      %v11433 = vunpack.c.l.s4 1983009808
      %v11434 = vunpack.c.0.s8 %v11433
      %v11435 = vlaneseq
      %v11436 = vshrl.u32 %v11435, 7
      %v11437 = vsub.s32 %v11434, %v11436
      %v11438 = vrot.slane %v10821, %v11437
      %v11440 = vunpack.c.l.s4 1983009808
      %v11441 = vunpack.c.0.s8 %v11440
      %v11442 = vlaneseq
      %v11443 = vshrl.u32 %v11442, 7
      %v11444 = vsub.s32 %v11441, %v11443
      %v11445 = vrot.slane %v11431, %v11444
      %v11446 = vcombine.high %v11438, %v11438
      %v11447 = vcombine.high %v11445, %v11445
      %v11448 = vcombine.high %v10822, %v10822
      %v11450 = vunpack.c.l.s4 1983009808
      %v11451 = vunpack.c.0.s8 %v11450
      %v11452 = vlaneseq
      %v11453 = vshrl.u32 %v11452, 7
      %v11454 = vsub.s32 %v11451, %v11453
      %v11455 = vrot.slane %v10822, %v11454
      %v11457 = vunpack.c.l.s4 1983009808
      %v11458 = vunpack.c.0.s8 %v11457
      %v11459 = vlaneseq
      %v11460 = vshrl.u32 %v11459, 7
      %v11461 = vsub.s32 %v11458, %v11460
      %v11462 = vrot.slane %v11448, %v11461
      %v11463 = vcombine.high %v11462, %v11462
      %v11464 = vcombine.high %v10823, %v10823
      %v11466 = vunpack.c.l.s4 1983009808
      %v11467 = vunpack.c.0.s8 %v11466
      %v11468 = vlaneseq
      %v11469 = vshrl.u32 %v11468, 7
      %v11470 = vsub.s32 %v11467, %v11469
      %v11471 = vrot.slane %v10823, %v11470
      %v11473 = vunpack.c.l.s4 1983009808
      %v11474 = vunpack.c.0.s8 %v11473
      %v11475 = vlaneseq
      %v11476 = vshrl.u32 %v11475, 7
      %v11477 = vsub.s32 %v11474, %v11476
      %v11478 = vrot.slane %v11464, %v11477
      %v11479 = vcombine.high %v11471, %v11471
      %v11480 = vcombine.high %v11478, %v11478
      %v11481 = vcombine.high %v10824, %v10824
      %v11483 = vunpack.c.l.s4 1983009808
      %v11484 = vunpack.c.0.s8 %v11483
      %v11485 = vlaneseq
      %v11486 = vshrl.u32 %v11485, 7
      %v11487 = vsub.s32 %v11484, %v11486
      %v11488 = vrot.slane %v10824, %v11487
      %v11490 = vunpack.c.l.s4 1983009808
      %v11491 = vunpack.c.0.s8 %v11490
      %v11492 = vlaneseq
      %v11493 = vshrl.u32 %v11492, 7
      %v11494 = vsub.s32 %v11491, %v11493
      %v11495 = vrot.slane %v11481, %v11494
      %v11496 = vcombine.high %v11488, %v11488
      %v11497 = vcombine.high %v11495, %v11495
      %v11498 = vcombine.high %v10825, %v10825
      %v11500 = vunpack.c.l.s4 1983009808
      %v11501 = vunpack.c.0.s8 %v11500
      %v11502 = vlaneseq
      %v11503 = vshrl.u32 %v11502, 7
      %v11504 = vsub.s32 %v11501, %v11503
      %v11505 = vrot.slane %v10825, %v11504
      %v11507 = vunpack.c.l.s4 1983009808
      %v11508 = vunpack.c.0.s8 %v11507
      %v11509 = vlaneseq
      %v11510 = vshrl.u32 %v11509, 7
      %v11511 = vsub.s32 %v11508, %v11510
      %v11512 = vrot.slane %v11498, %v11511
      %v11513 = vcombine.high %v11505, %v11505
      %v11514 = vcombine.high %v11512, %v11512
      %v11515 = vcombine.high %v10826, %v10826
      %v11517 = vunpack.c.l.s4 1983009808
      %v11518 = vunpack.c.0.s8 %v11517
      %v11519 = vlaneseq
      %v11520 = vshrl.u32 %v11519, 7
      %v11521 = vsub.s32 %v11518, %v11520
      %v11522 = vrot.slane %v10826, %v11521
      %v11524 = vunpack.c.l.s4 1983009808
      %v11525 = vunpack.c.0.s8 %v11524
      %v11526 = vlaneseq
      %v11527 = vshrl.u32 %v11526, 7
      %v11528 = vsub.s32 %v11525, %v11527
      %v11529 = vrot.slane %v11515, %v11528
      %v11530 = vcombine.high %v11522, %v11522
      %v11531 = vcombine.low %v10934, %v10942
      %v11532 = vcombine.low %v10941, %v10943
      %v11534 = vunpack.c.l.s4 1983009808
      %v11535 = vunpack.c.0.s8 %v11534
      %v11536 = vlaneseq
      %v11537 = vshrl.u32 %v11536, 7
      %v11538 = vsub.s32 %v11535, %v11537
      %v11539 = vrot.slane %v11531, %v11538
      %v11541 = vunpack.c.l.s4 1983009808
      %v11542 = vunpack.c.0.s8 %v11541
      %v11543 = vlaneseq
      %v11544 = vshrl.u32 %v11543, 7
      %v11545 = vsub.s32 %v11542, %v11544
      %v11546 = vrot.slane %v11532, %v11545
      %v11547 = vcombine.low %v11539, %v11546
      %v11548 = vcombine.low %v10951, %v10959
      %v11549 = vcombine.low %v10958, %v10960
      %v11551 = vunpack.c.l.s4 1983009808
      %v11552 = vunpack.c.0.s8 %v11551
      %v11553 = vlaneseq
      %v11554 = vshrl.u32 %v11553, 7
      %v11555 = vsub.s32 %v11552, %v11554
      %v11556 = vrot.slane %v11548, %v11555
      %v11558 = vunpack.c.l.s4 1983009808
      %v11559 = vunpack.c.0.s8 %v11558
      %v11560 = vlaneseq
      %v11561 = vshrl.u32 %v11560, 7
      %v11562 = vsub.s32 %v11559, %v11561
      %v11563 = vrot.slane %v11549, %v11562
      %v11564 = vcombine.low %v11556, %v11563
      %v11565 = vcombine.low %v10976, %v10975
      %v11566 = vcombine.low %v10977, %v10985
      %v11568 = vunpack.c.l.s4 1983009808
      %v11569 = vunpack.c.0.s8 %v11568
      %v11570 = vlaneseq
      %v11571 = vshrl.u32 %v11570, 7
      %v11572 = vsub.s32 %v11569, %v11571
      %v11573 = vrot.slane %v11565, %v11572
      %v11575 = vunpack.c.l.s4 1983009808
      %v11576 = vunpack.c.0.s8 %v11575
      %v11577 = vlaneseq
      %v11578 = vshrl.u32 %v11577, 7
      %v11579 = vsub.s32 %v11576, %v11578
      %v11580 = vrot.slane %v11566, %v11579
      %v11581 = vcombine.low %v11573, %v11580
      %v11582 = vcombine.low %v10993, %v10992
      %v11583 = vcombine.low %v10994, %v11002
      %v11585 = vunpack.c.l.s4 1983009808
      %v11586 = vunpack.c.0.s8 %v11585
      %v11587 = vlaneseq
      %v11588 = vshrl.u32 %v11587, 7
      %v11589 = vsub.s32 %v11586, %v11588
      %v11590 = vrot.slane %v11582, %v11589
      %v11592 = vunpack.c.l.s4 1983009808
      %v11593 = vunpack.c.0.s8 %v11592
      %v11594 = vlaneseq
      %v11595 = vshrl.u32 %v11594, 7
      %v11596 = vsub.s32 %v11593, %v11595
      %v11597 = vrot.slane %v11583, %v11596
      %v11598 = vcombine.low %v11590, %v11597
      %v11599 = vcombine.low %v11009, %v11010
      %v11600 = vcombine.low %v11018, %v11026
      %v11602 = vunpack.c.l.s4 1983009808
      %v11603 = vunpack.c.0.s8 %v11602
      %v11604 = vlaneseq
      %v11605 = vshrl.u32 %v11604, 7
      %v11606 = vsub.s32 %v11603, %v11605
      %v11607 = vrot.slane %v11599, %v11606
      %v11609 = vunpack.c.l.s4 1983009808
      %v11610 = vunpack.c.0.s8 %v11609
      %v11611 = vlaneseq
      %v11612 = vshrl.u32 %v11611, 7
      %v11613 = vsub.s32 %v11610, %v11612
      %v11614 = vrot.slane %v11600, %v11613
      %v11615 = vcombine.low %v11607, %v11614
      %v11616 = vcombine.low %v11025, %v11027
      %v11617 = vcombine.low %v11035, %v11043
      %v11619 = vunpack.c.l.s4 1983009808
      %v11620 = vunpack.c.0.s8 %v11619
      %v11621 = vlaneseq
      %v11622 = vshrl.u32 %v11621, 7
      %v11623 = vsub.s32 %v11620, %v11622
      %v11624 = vrot.slane %v11616, %v11623
      %v11626 = vunpack.c.l.s4 1983009808
      %v11627 = vunpack.c.0.s8 %v11626
      %v11628 = vlaneseq
      %v11629 = vshrl.u32 %v11628, 7
      %v11630 = vsub.s32 %v11627, %v11629
      %v11631 = vrot.slane %v11617, %v11630
      %v11632 = vcombine.low %v11624, %v11631
      %v11633 = vcombine.low %v11044, %v11052
      %v11634 = vcombine.low %v11060, %v11059
      %v11636 = vunpack.c.l.s4 1983009808
      %v11637 = vunpack.c.0.s8 %v11636
      %v11638 = vlaneseq
      %v11639 = vshrl.u32 %v11638, 7
      %v11640 = vsub.s32 %v11637, %v11639
      %v11641 = vrot.slane %v11633, %v11640
      %v11643 = vunpack.c.l.s4 1983009808
      %v11644 = vunpack.c.0.s8 %v11643
      %v11645 = vlaneseq
      %v11646 = vshrl.u32 %v11645, 7
      %v11647 = vsub.s32 %v11644, %v11646
      %v11648 = vrot.slane %v11634, %v11647
      %v11649 = vcombine.low %v11641, %v11648
      %v11650 = vcombine.low %v11061, %v11069
      %v11651 = vcombine.low %v11077, %v11076
      %v11653 = vunpack.c.l.s4 1983009808
      %v11654 = vunpack.c.0.s8 %v11653
      %v11655 = vlaneseq
      %v11656 = vshrl.u32 %v11655, 7
      %v11657 = vsub.s32 %v11654, %v11656
      %v11658 = vrot.slane %v11650, %v11657
      %v11660 = vunpack.c.l.s4 1983009808
      %v11661 = vunpack.c.0.s8 %v11660
      %v11662 = vlaneseq
      %v11663 = vshrl.u32 %v11662, 7
      %v11664 = vsub.s32 %v11661, %v11663
      %v11665 = vrot.slane %v11651, %v11664
      %v11666 = vcombine.low %v11658, %v11665
      %v11667 = vcombine.low %v11085, %v11093
      %v11668 = vcombine.low %v11092, %v11094
      %v11670 = vunpack.c.l.s4 1983009808
      %v11671 = vunpack.c.0.s8 %v11670
      %v11672 = vlaneseq
      %v11673 = vshrl.u32 %v11672, 7
      %v11674 = vsub.s32 %v11671, %v11673
      %v11675 = vrot.slane %v11667, %v11674
      %v11677 = vunpack.c.l.s4 1983009808
      %v11678 = vunpack.c.0.s8 %v11677
      %v11679 = vlaneseq
      %v11680 = vshrl.u32 %v11679, 7
      %v11681 = vsub.s32 %v11678, %v11680
      %v11682 = vrot.slane %v11668, %v11681
      %v11683 = vcombine.low %v11675, %v11682
      %v11684 = vcombine.low %v11102, %v11110
      %v11685 = vcombine.low %v11109, %v11111
      %v11687 = vunpack.c.l.s4 1983009808
      %v11688 = vunpack.c.0.s8 %v11687
      %v11689 = vlaneseq
      %v11690 = vshrl.u32 %v11689, 7
      %v11691 = vsub.s32 %v11688, %v11690
      %v11692 = vrot.slane %v11684, %v11691
      %v11694 = vunpack.c.l.s4 1983009808
      %v11695 = vunpack.c.0.s8 %v11694
      %v11696 = vlaneseq
      %v11697 = vshrl.u32 %v11696, 7
      %v11698 = vsub.s32 %v11695, %v11697
      %v11699 = vrot.slane %v11685, %v11698
      %v11700 = vcombine.low %v11692, %v11699
      %v11701 = vcombine.low %v11127, %v11126
      %v11702 = vcombine.low %v11128, %v11136
      %v11704 = vunpack.c.l.s4 1983009808
      %v11705 = vunpack.c.0.s8 %v11704
      %v11706 = vlaneseq
      %v11707 = vshrl.u32 %v11706, 7
      %v11708 = vsub.s32 %v11705, %v11707
      %v11709 = vrot.slane %v11701, %v11708
      %v11711 = vunpack.c.l.s4 1983009808
      %v11712 = vunpack.c.0.s8 %v11711
      %v11713 = vlaneseq
      %v11714 = vshrl.u32 %v11713, 7
      %v11715 = vsub.s32 %v11712, %v11714
      %v11716 = vrot.slane %v11702, %v11715
      %v11717 = vcombine.low %v11709, %v11716
      %v11718 = vcombine.low %v11144, %v11143
      %v11719 = vcombine.low %v11145, %v11153
      %v11721 = vunpack.c.l.s4 1983009808
      %v11722 = vunpack.c.0.s8 %v11721
      %v11723 = vlaneseq
      %v11724 = vshrl.u32 %v11723, 7
      %v11725 = vsub.s32 %v11722, %v11724
      %v11726 = vrot.slane %v11718, %v11725
      %v11728 = vunpack.c.l.s4 1983009808
      %v11729 = vunpack.c.0.s8 %v11728
      %v11730 = vlaneseq
      %v11731 = vshrl.u32 %v11730, 7
      %v11732 = vsub.s32 %v11729, %v11731
      %v11733 = vrot.slane %v11719, %v11732
      %v11734 = vcombine.low %v11726, %v11733
      %v11735 = vcombine.low %v11160, %v11161
      %v11736 = vcombine.low %v11169, %v11177
      %v11738 = vunpack.c.l.s4 1983009808
      %v11739 = vunpack.c.0.s8 %v11738
      %v11740 = vlaneseq
      %v11741 = vshrl.u32 %v11740, 7
      %v11742 = vsub.s32 %v11739, %v11741
      %v11743 = vrot.slane %v11735, %v11742
      %v11745 = vunpack.c.l.s4 1983009808
      %v11746 = vunpack.c.0.s8 %v11745
      %v11747 = vlaneseq
      %v11748 = vshrl.u32 %v11747, 7
      %v11749 = vsub.s32 %v11746, %v11748
      %v11750 = vrot.slane %v11736, %v11749
      %v11751 = vcombine.low %v11743, %v11750
      %v11752 = vcombine.low %v11176, %v11178
      %v11753 = vcombine.low %v11186, %v11194
      %v11755 = vunpack.c.l.s4 1983009808
      %v11756 = vunpack.c.0.s8 %v11755
      %v11757 = vlaneseq
      %v11758 = vshrl.u32 %v11757, 7
      %v11759 = vsub.s32 %v11756, %v11758
      %v11760 = vrot.slane %v11752, %v11759
      %v11762 = vunpack.c.l.s4 1983009808
      %v11763 = vunpack.c.0.s8 %v11762
      %v11764 = vlaneseq
      %v11765 = vshrl.u32 %v11764, 7
      %v11766 = vsub.s32 %v11763, %v11765
      %v11767 = vrot.slane %v11753, %v11766
      %v11768 = vcombine.low %v11760, %v11767
      %v11769 = vcombine.low %v11195, %v11203
      %v11770 = vcombine.low %v11211, %v11210
      %v11772 = vunpack.c.l.s4 1983009808
      %v11773 = vunpack.c.0.s8 %v11772
      %v11774 = vlaneseq
      %v11775 = vshrl.u32 %v11774, 7
      %v11776 = vsub.s32 %v11773, %v11775
      %v11777 = vrot.slane %v11769, %v11776
      %v11779 = vunpack.c.l.s4 1983009808
      %v11780 = vunpack.c.0.s8 %v11779
      %v11781 = vlaneseq
      %v11782 = vshrl.u32 %v11781, 7
      %v11783 = vsub.s32 %v11780, %v11782
      %v11784 = vrot.slane %v11770, %v11783
      %v11785 = vcombine.low %v11777, %v11784
      %v11786 = vcombine.low %v11212, %v11220
      %v11787 = vcombine.low %v11228, %v11227
      %v11789 = vunpack.c.l.s4 1983009808
      %v11790 = vunpack.c.0.s8 %v11789
      %v11791 = vlaneseq
      %v11792 = vshrl.u32 %v11791, 7
      %v11793 = vsub.s32 %v11790, %v11792
      %v11794 = vrot.slane %v11786, %v11793
      %v11796 = vunpack.c.l.s4 1983009808
      %v11797 = vunpack.c.0.s8 %v11796
      %v11798 = vlaneseq
      %v11799 = vshrl.u32 %v11798, 7
      %v11800 = vsub.s32 %v11797, %v11799
      %v11801 = vrot.slane %v11787, %v11800
      %v11802 = vcombine.low %v11794, %v11801
      %v11803 = vcombine.low %v11236, %v11244
      %v11804 = vcombine.low %v11243, %v11245
      %v11806 = vunpack.c.l.s4 1983009808
      %v11807 = vunpack.c.0.s8 %v11806
      %v11808 = vlaneseq
      %v11809 = vshrl.u32 %v11808, 7
      %v11810 = vsub.s32 %v11807, %v11809
      %v11811 = vrot.slane %v11803, %v11810
      %v11813 = vunpack.c.l.s4 1983009808
      %v11814 = vunpack.c.0.s8 %v11813
      %v11815 = vlaneseq
      %v11816 = vshrl.u32 %v11815, 7
      %v11817 = vsub.s32 %v11814, %v11816
      %v11818 = vrot.slane %v11804, %v11817
      %v11819 = vcombine.low %v11811, %v11818
      %v11820 = vcombine.low %v11253, %v11261
      %v11821 = vcombine.low %v11260, %v11262
      %v11823 = vunpack.c.l.s4 1983009808
      %v11824 = vunpack.c.0.s8 %v11823
      %v11825 = vlaneseq
      %v11826 = vshrl.u32 %v11825, 7
      %v11827 = vsub.s32 %v11824, %v11826
      %v11828 = vrot.slane %v11820, %v11827
      %v11830 = vunpack.c.l.s4 1983009808
      %v11831 = vunpack.c.0.s8 %v11830
      %v11832 = vlaneseq
      %v11833 = vshrl.u32 %v11832, 7
      %v11834 = vsub.s32 %v11831, %v11833
      %v11835 = vrot.slane %v11821, %v11834
      %v11836 = vcombine.low %v11828, %v11835
      %v11837 = vcombine.low %v11278, %v11277
      %v11838 = vcombine.low %v11279, %v11287
      %v11840 = vunpack.c.l.s4 1983009808
      %v11841 = vunpack.c.0.s8 %v11840
      %v11842 = vlaneseq
      %v11843 = vshrl.u32 %v11842, 7
      %v11844 = vsub.s32 %v11841, %v11843
      %v11845 = vrot.slane %v11837, %v11844
      %v11847 = vunpack.c.l.s4 1983009808
      %v11848 = vunpack.c.0.s8 %v11847
      %v11849 = vlaneseq
      %v11850 = vshrl.u32 %v11849, 7
      %v11851 = vsub.s32 %v11848, %v11850
      %v11852 = vrot.slane %v11838, %v11851
      %v11853 = vcombine.low %v11845, %v11852
      %v11854 = vcombine.low %v11295, %v11294
      %v11855 = vcombine.low %v11296, %v11304
      %v11857 = vunpack.c.l.s4 1983009808
      %v11858 = vunpack.c.0.s8 %v11857
      %v11859 = vlaneseq
      %v11860 = vshrl.u32 %v11859, 7
      %v11861 = vsub.s32 %v11858, %v11860
      %v11862 = vrot.slane %v11854, %v11861
      %v11864 = vunpack.c.l.s4 1983009808
      %v11865 = vunpack.c.0.s8 %v11864
      %v11866 = vlaneseq
      %v11867 = vshrl.u32 %v11866, 7
      %v11868 = vsub.s32 %v11865, %v11867
      %v11869 = vrot.slane %v11855, %v11868
      %v11870 = vcombine.low %v11862, %v11869
      %v11871 = vcombine.low %v11311, %v11312
      %v11872 = vcombine.low %v11320, %v11328
      %v11874 = vunpack.c.l.s4 1983009808
      %v11875 = vunpack.c.0.s8 %v11874
      %v11876 = vlaneseq
      %v11877 = vshrl.u32 %v11876, 7
      %v11878 = vsub.s32 %v11875, %v11877
      %v11879 = vrot.slane %v11871, %v11878
      %v11881 = vunpack.c.l.s4 1983009808
      %v11882 = vunpack.c.0.s8 %v11881
      %v11883 = vlaneseq
      %v11884 = vshrl.u32 %v11883, 7
      %v11885 = vsub.s32 %v11882, %v11884
      %v11886 = vrot.slane %v11872, %v11885
      %v11887 = vcombine.low %v11879, %v11886
      %v11888 = vcombine.low %v11327, %v11329
      %v11889 = vcombine.low %v11337, %v11345
      %v11891 = vunpack.c.l.s4 1983009808
      %v11892 = vunpack.c.0.s8 %v11891
      %v11893 = vlaneseq
      %v11894 = vshrl.u32 %v11893, 7
      %v11895 = vsub.s32 %v11892, %v11894
      %v11896 = vrot.slane %v11888, %v11895
      %v11898 = vunpack.c.l.s4 1983009808
      %v11899 = vunpack.c.0.s8 %v11898
      %v11900 = vlaneseq
      %v11901 = vshrl.u32 %v11900, 7
      %v11902 = vsub.s32 %v11899, %v11901
      %v11903 = vrot.slane %v11889, %v11902
      %v11904 = vcombine.low %v11896, %v11903
      %v11905 = vcombine.low %v11346, %v11354
      %v11906 = vcombine.low %v11362, %v11361
      %v11908 = vunpack.c.l.s4 1983009808
      %v11909 = vunpack.c.0.s8 %v11908
      %v11910 = vlaneseq
      %v11911 = vshrl.u32 %v11910, 7
      %v11912 = vsub.s32 %v11909, %v11911
      %v11913 = vrot.slane %v11905, %v11912
      %v11915 = vunpack.c.l.s4 1983009808
      %v11916 = vunpack.c.0.s8 %v11915
      %v11917 = vlaneseq
      %v11918 = vshrl.u32 %v11917, 7
      %v11919 = vsub.s32 %v11916, %v11918
      %v11920 = vrot.slane %v11906, %v11919
      %v11921 = vcombine.low %v11913, %v11920
      %v11922 = vcombine.low %v11363, %v11371
      %v11923 = vcombine.low %v11379, %v11378
      %v11925 = vunpack.c.l.s4 1983009808
      %v11926 = vunpack.c.0.s8 %v11925
      %v11927 = vlaneseq
      %v11928 = vshrl.u32 %v11927, 7
      %v11929 = vsub.s32 %v11926, %v11928
      %v11930 = vrot.slane %v11922, %v11929
      %v11932 = vunpack.c.l.s4 1983009808
      %v11933 = vunpack.c.0.s8 %v11932
      %v11934 = vlaneseq
      %v11935 = vshrl.u32 %v11934, 7
      %v11936 = vsub.s32 %v11933, %v11935
      %v11937 = vrot.slane %v11923, %v11936
      %v11938 = vcombine.low %v11930, %v11937
      %v11939 = vcombine.low %v11387, %v11395
      %v11940 = vcombine.low %v11394, %v11396
      %v11942 = vunpack.c.l.s4 1983009808
      %v11943 = vunpack.c.0.s8 %v11942
      %v11944 = vlaneseq
      %v11945 = vshrl.u32 %v11944, 7
      %v11946 = vsub.s32 %v11943, %v11945
      %v11947 = vrot.slane %v11939, %v11946
      %v11949 = vunpack.c.l.s4 1983009808
      %v11950 = vunpack.c.0.s8 %v11949
      %v11951 = vlaneseq
      %v11952 = vshrl.u32 %v11951, 7
      %v11953 = vsub.s32 %v11950, %v11952
      %v11954 = vrot.slane %v11940, %v11953
      %v11955 = vcombine.low %v11947, %v11954
      %v11956 = vcombine.low %v11404, %v11412
      %v11957 = vcombine.low %v11411, %v11413
      %v11959 = vunpack.c.l.s4 1983009808
      %v11960 = vunpack.c.0.s8 %v11959
      %v11961 = vlaneseq
      %v11962 = vshrl.u32 %v11961, 7
      %v11963 = vsub.s32 %v11960, %v11962
      %v11964 = vrot.slane %v11956, %v11963
      %v11966 = vunpack.c.l.s4 1983009808
      %v11967 = vunpack.c.0.s8 %v11966
      %v11968 = vlaneseq
      %v11969 = vshrl.u32 %v11968, 7
      %v11970 = vsub.s32 %v11967, %v11969
      %v11971 = vrot.slane %v11957, %v11970
      %v11972 = vcombine.low %v11964, %v11971
      %v11973 = vcombine.low %v11429, %v11428
      %v11974 = vcombine.low %v11430, %v11438
      %v11976 = vunpack.c.l.s4 1983009808
      %v11977 = vunpack.c.0.s8 %v11976
      %v11978 = vlaneseq
      %v11979 = vshrl.u32 %v11978, 7
      %v11980 = vsub.s32 %v11977, %v11979
      %v11981 = vrot.slane %v11973, %v11980
      %v11983 = vunpack.c.l.s4 1983009808
      %v11984 = vunpack.c.0.s8 %v11983
      %v11985 = vlaneseq
      %v11986 = vshrl.u32 %v11985, 7
      %v11987 = vsub.s32 %v11984, %v11986
      %v11988 = vrot.slane %v11974, %v11987
      %v11989 = vcombine.low %v11981, %v11988
      %v11990 = vcombine.low %v11446, %v11445
      %v11991 = vcombine.low %v11447, %v11455
      %v11993 = vunpack.c.l.s4 1983009808
      %v11994 = vunpack.c.0.s8 %v11993
      %v11995 = vlaneseq
      %v11996 = vshrl.u32 %v11995, 7
      %v11997 = vsub.s32 %v11994, %v11996
      %v11998 = vrot.slane %v11990, %v11997
      %v12000 = vunpack.c.l.s4 1983009808
      %v12001 = vunpack.c.0.s8 %v12000
      %v12002 = vlaneseq
      %v12003 = vshrl.u32 %v12002, 7
      %v12004 = vsub.s32 %v12001, %v12003
      %v12005 = vrot.slane %v11991, %v12004
      %v12006 = vcombine.low %v11998, %v12005
      %v12007 = vcombine.low %v11462, %v11463
      %v12008 = vcombine.low %v11471, %v11479
      %v12010 = vunpack.c.l.s4 1983009808
      %v12011 = vunpack.c.0.s8 %v12010
      %v12012 = vlaneseq
      %v12013 = vshrl.u32 %v12012, 7
      %v12014 = vsub.s32 %v12011, %v12013
      %v12015 = vrot.slane %v12007, %v12014
      %v12017 = vunpack.c.l.s4 1983009808
      %v12018 = vunpack.c.0.s8 %v12017
      %v12019 = vlaneseq
      %v12020 = vshrl.u32 %v12019, 7
      %v12021 = vsub.s32 %v12018, %v12020
      %v12022 = vrot.slane %v12008, %v12021
      %v12023 = vcombine.low %v12015, %v12022
      %v12024 = vcombine.low %v11478, %v11480
      %v12025 = vcombine.low %v11488, %v11496
      %v12027 = vunpack.c.l.s4 1983009808
      %v12028 = vunpack.c.0.s8 %v12027
      %v12029 = vlaneseq
      %v12030 = vshrl.u32 %v12029, 7
      %v12031 = vsub.s32 %v12028, %v12030
      %v12032 = vrot.slane %v12024, %v12031
      %v12034 = vunpack.c.l.s4 1983009808
      %v12035 = vunpack.c.0.s8 %v12034
      %v12036 = vlaneseq
      %v12037 = vshrl.u32 %v12036, 7
      %v12038 = vsub.s32 %v12035, %v12037
      %v12039 = vrot.slane %v12025, %v12038
      %v12040 = vcombine.low %v12032, %v12039
      %v12041 = vcombine.low %v11497, %v11505
      %v12042 = vcombine.low %v11513, %v11512
      %v12044 = vunpack.c.l.s4 1983009808
      %v12045 = vunpack.c.0.s8 %v12044
      %v12046 = vlaneseq
      %v12047 = vshrl.u32 %v12046, 7
      %v12048 = vsub.s32 %v12045, %v12047
      %v12049 = vrot.slane %v12041, %v12048
      %v12051 = vunpack.c.l.s4 1983009808
      %v12052 = vunpack.c.0.s8 %v12051
      %v12053 = vlaneseq
      %v12054 = vshrl.u32 %v12053, 7
      %v12055 = vsub.s32 %v12052, %v12054
      %v12056 = vrot.slane %v12042, %v12055
      %v12057 = vcombine.low %v12049, %v12056
      %v12058 = vcombine.low %v11514, %v11522
      %v12059 = vcombine.low %v11530, %v11529
      %v12061 = vunpack.c.l.s4 1983009808
      %v12062 = vunpack.c.0.s8 %v12061
      %v12063 = vlaneseq
      %v12064 = vshrl.u32 %v12063, 7
      %v12065 = vsub.s32 %v12062, %v12064
      %v12066 = vrot.slane %v12058, %v12065
      %v12068 = vunpack.c.l.s4 1983009808
      %v12069 = vunpack.c.0.s8 %v12068
      %v12070 = vlaneseq
      %v12071 = vshrl.u32 %v12070, 7
      %v12072 = vsub.s32 %v12069, %v12071
      %v12073 = vrot.slane %v12059, %v12072
      %v12074 = vcombine.low %v12066, %v12073
      %v12107 = vadd.f32 %v10859, %v11547
      %v12108 = vadd.f32 %v10860, %v11564
      %v12109 = vadd.f32 %v10861, %v11581
      %v12110 = vadd.f32 %v10862, %v11598
      %v12111 = vadd.f32 %v10863, %v11615
      %v12112 = vadd.f32 %v10864, %v11632
      %v12113 = vadd.f32 %v10865, %v11649
      %v12114 = vadd.f32 %v10866, %v11666
      %v12115 = vadd.f32 %v10867, %v11683
      %v12116 = vadd.f32 %v10868, %v11700
      %v12117 = vadd.f32 %v10869, %v11717
      %v12118 = vadd.f32 %v10870, %v11734
      %v12119 = vadd.f32 %v10871, %v11751
      %v12120 = vadd.f32 %v10872, %v11768
      %v12121 = vadd.f32 %v10873, %v11785
      %v12122 = vadd.f32 %v10874, %v11802
      %v12123 = vadd.f32 %v10875, %v11819
      %v12124 = vadd.f32 %v10876, %v11836
      %v12125 = vadd.f32 %v10877, %v11853
      %v12126 = vadd.f32 %v10878, %v11870
      %v12127 = vadd.f32 %v10879, %v11887
      %v12128 = vadd.f32 %v10880, %v11904
      %v12129 = vadd.f32 %v10881, %v11921
      %v12130 = vadd.f32 %v10882, %v11938
      %v12131 = vadd.f32 %v10883, %v11955
      %v12132 = vadd.f32 %v10884, %v11972
      %v12133 = vadd.f32 %v10885, %v11989
      %v12134 = vadd.f32 %v10886, %v12006
      %v12135 = vadd.f32 %v10887, %v12023
      %v12136 = vadd.f32 %v10888, %v12040
      %v12137 = vadd.f32 %v10889, %v12057
      %v12138 = vadd.f32 %v10890, %v12074
      %v12139 = vcombine.low %v12107, %v12111
      %v12140 = vcombine.high %v12107, %v12111
      %v12142 = vunpack.c.l.s4 1983009808
      %v12143 = vunpack.c.0.s8 %v12142
      %v12144 = vlaneseq
      %v12145 = vshrl.u32 %v12144, 7
      %v12146 = vsub.s32 %v12143, %v12145
      %v12147 = vrot.slane %v12139, %v12146
      %v12149 = vunpack.c.l.s4 1983009808
      %v12150 = vunpack.c.0.s8 %v12149
      %v12151 = vlaneseq
      %v12152 = vshrl.u32 %v12151, 7
      %v12153 = vsub.s32 %v12150, %v12152
      %v12154 = vrot.slane %v12140, %v12153
      %v12155 = vcombine.low %v12109, %v12113
      %v12156 = vcombine.high %v12109, %v12113
      %v12158 = vunpack.c.l.s4 1983009808
      %v12159 = vunpack.c.0.s8 %v12158
      %v12160 = vlaneseq
      %v12161 = vshrl.u32 %v12160, 7
      %v12162 = vsub.s32 %v12159, %v12161
      %v12163 = vrot.slane %v12155, %v12162
      %v12165 = vunpack.c.l.s4 1983009808
      %v12166 = vunpack.c.0.s8 %v12165
      %v12167 = vlaneseq
      %v12168 = vshrl.u32 %v12167, 7
      %v12169 = vsub.s32 %v12166, %v12168
      %v12170 = vrot.slane %v12156, %v12169
      %v12171 = vcombine.low %v12115, %v12119
      %v12172 = vcombine.high %v12115, %v12119
      %v12174 = vunpack.c.l.s4 1983009808
      %v12175 = vunpack.c.0.s8 %v12174
      %v12176 = vlaneseq
      %v12177 = vshrl.u32 %v12176, 7
      %v12178 = vsub.s32 %v12175, %v12177
      %v12179 = vrot.slane %v12171, %v12178
      %v12181 = vunpack.c.l.s4 1983009808
      %v12182 = vunpack.c.0.s8 %v12181
      %v12183 = vlaneseq
      %v12184 = vshrl.u32 %v12183, 7
      %v12185 = vsub.s32 %v12182, %v12184
      %v12186 = vrot.slane %v12172, %v12185
      %v12187 = vcombine.low %v12117, %v12121
      %v12188 = vcombine.high %v12117, %v12121
      %v12190 = vunpack.c.l.s4 1983009808
      %v12191 = vunpack.c.0.s8 %v12190
      %v12192 = vlaneseq
      %v12193 = vshrl.u32 %v12192, 7
      %v12194 = vsub.s32 %v12191, %v12193
      %v12195 = vrot.slane %v12187, %v12194
      %v12197 = vunpack.c.l.s4 1983009808
      %v12198 = vunpack.c.0.s8 %v12197
      %v12199 = vlaneseq
      %v12200 = vshrl.u32 %v12199, 7
      %v12201 = vsub.s32 %v12198, %v12200
      %v12202 = vrot.slane %v12188, %v12201
      %v12203 = vcombine.low %v12147, %v12163
      %v12204 = vcombine.high %v12147, %v12163
      %v12206 = vunpack.c.l.s4 1934713408
      %v12207 = vunpack.c.0.s8 %v12206
      %v12208 = vlaneseq
      %v12209 = vshrl.u32 %v12208, 7
      %v12210 = vsub.s32 %v12207, %v12209
      %v12211 = vrot.slane %v12203, %v12210
      %v12213 = vunpack.c.l.s4 1934713408
      %v12214 = vunpack.c.0.s8 %v12213
      %v12215 = vlaneseq
      %v12216 = vshrl.u32 %v12215, 7
      %v12217 = vsub.s32 %v12214, %v12216
      %v12218 = vrot.slane %v12204, %v12217
      %v12219 = vcombine.low %v12154, %v12170
      %v12220 = vcombine.high %v12154, %v12170
      %v12222 = vunpack.c.l.s4 1934713408
      %v12223 = vunpack.c.0.s8 %v12222
      %v12224 = vlaneseq
      %v12225 = vshrl.u32 %v12224, 7
      %v12226 = vsub.s32 %v12223, %v12225
      %v12227 = vrot.slane %v12219, %v12226
      %v12229 = vunpack.c.l.s4 1934713408
      %v12230 = vunpack.c.0.s8 %v12229
      %v12231 = vlaneseq
      %v12232 = vshrl.u32 %v12231, 7
      %v12233 = vsub.s32 %v12230, %v12232
      %v12234 = vrot.slane %v12220, %v12233
      %v12235 = vcombine.low %v12179, %v12195
      %v12236 = vcombine.high %v12179, %v12195
      %v12238 = vunpack.c.l.s4 1934713408
      %v12239 = vunpack.c.0.s8 %v12238
      %v12240 = vlaneseq
      %v12241 = vshrl.u32 %v12240, 7
      %v12242 = vsub.s32 %v12239, %v12241
      %v12243 = vrot.slane %v12235, %v12242
      %v12245 = vunpack.c.l.s4 1934713408
      %v12246 = vunpack.c.0.s8 %v12245
      %v12247 = vlaneseq
      %v12248 = vshrl.u32 %v12247, 7
      %v12249 = vsub.s32 %v12246, %v12248
      %v12250 = vrot.slane %v12236, %v12249
      %v12251 = vcombine.low %v12186, %v12202
      %v12252 = vcombine.high %v12186, %v12202
      %v12254 = vunpack.c.l.s4 1934713408
      %v12255 = vunpack.c.0.s8 %v12254
      %v12256 = vlaneseq
      %v12257 = vshrl.u32 %v12256, 7
      %v12258 = vsub.s32 %v12255, %v12257
      %v12259 = vrot.slane %v12251, %v12258
      %v12261 = vunpack.c.l.s4 1934713408
      %v12262 = vunpack.c.0.s8 %v12261
      %v12263 = vlaneseq
      %v12264 = vshrl.u32 %v12263, 7
      %v12265 = vsub.s32 %v12262, %v12264
      %v12266 = vrot.slane %v12252, %v12265
      %v12267 = vcombine.low %v12211, %v12243
      %v12268 = vcombine.high %v12211, %v12243
      %v12269 = vcombine.low %v12218, %v12250
      %v12270 = vcombine.high %v12218, %v12250
      %v12271 = vcombine.low %v12227, %v12259
      %v12272 = vcombine.high %v12227, %v12259
      %v12273 = vcombine.low %v12234, %v12266
      %v12274 = vcombine.high %v12234, %v12266
      %v12275 = vcombine.low %v12123, %v12127
      %v12276 = vcombine.high %v12123, %v12127
      %v12278 = vunpack.c.l.s4 1983009808
      %v12279 = vunpack.c.0.s8 %v12278
      %v12280 = vlaneseq
      %v12281 = vshrl.u32 %v12280, 7
      %v12282 = vsub.s32 %v12279, %v12281
      %v12283 = vrot.slane %v12275, %v12282
      %v12285 = vunpack.c.l.s4 1983009808
      %v12286 = vunpack.c.0.s8 %v12285
      %v12287 = vlaneseq
      %v12288 = vshrl.u32 %v12287, 7
      %v12289 = vsub.s32 %v12286, %v12288
      %v12290 = vrot.slane %v12276, %v12289
      %v12291 = vcombine.low %v12125, %v12129
      %v12292 = vcombine.high %v12125, %v12129
      %v12294 = vunpack.c.l.s4 1983009808
      %v12295 = vunpack.c.0.s8 %v12294
      %v12296 = vlaneseq
      %v12297 = vshrl.u32 %v12296, 7
      %v12298 = vsub.s32 %v12295, %v12297
      %v12299 = vrot.slane %v12291, %v12298
      %v12301 = vunpack.c.l.s4 1983009808
      %v12302 = vunpack.c.0.s8 %v12301
      %v12303 = vlaneseq
      %v12304 = vshrl.u32 %v12303, 7
      %v12305 = vsub.s32 %v12302, %v12304
      %v12306 = vrot.slane %v12292, %v12305
      %v12307 = vcombine.low %v12131, %v12135
      %v12308 = vcombine.high %v12131, %v12135
      %v12310 = vunpack.c.l.s4 1983009808
      %v12311 = vunpack.c.0.s8 %v12310
      %v12312 = vlaneseq
      %v12313 = vshrl.u32 %v12312, 7
      %v12314 = vsub.s32 %v12311, %v12313
      %v12315 = vrot.slane %v12307, %v12314
      %v12317 = vunpack.c.l.s4 1983009808
      %v12318 = vunpack.c.0.s8 %v12317
      %v12319 = vlaneseq
      %v12320 = vshrl.u32 %v12319, 7
      %v12321 = vsub.s32 %v12318, %v12320
      %v12322 = vrot.slane %v12308, %v12321
      %v12323 = vcombine.low %v12133, %v12137
      %v12324 = vcombine.high %v12133, %v12137
      %v12326 = vunpack.c.l.s4 1983009808
      %v12327 = vunpack.c.0.s8 %v12326
      %v12328 = vlaneseq
      %v12329 = vshrl.u32 %v12328, 7
      %v12330 = vsub.s32 %v12327, %v12329
      %v12331 = vrot.slane %v12323, %v12330
      %v12333 = vunpack.c.l.s4 1983009808
      %v12334 = vunpack.c.0.s8 %v12333
      %v12335 = vlaneseq
      %v12336 = vshrl.u32 %v12335, 7
      %v12337 = vsub.s32 %v12334, %v12336
      %v12338 = vrot.slane %v12324, %v12337
      %v12339 = vcombine.low %v12283, %v12299
      %v12340 = vcombine.high %v12283, %v12299
      %v12342 = vunpack.c.l.s4 1934713408
      %v12343 = vunpack.c.0.s8 %v12342
      %v12344 = vlaneseq
      %v12345 = vshrl.u32 %v12344, 7
      %v12346 = vsub.s32 %v12343, %v12345
      %v12347 = vrot.slane %v12339, %v12346
      %v12349 = vunpack.c.l.s4 1934713408
      %v12350 = vunpack.c.0.s8 %v12349
      %v12351 = vlaneseq
      %v12352 = vshrl.u32 %v12351, 7
      %v12353 = vsub.s32 %v12350, %v12352
      %v12354 = vrot.slane %v12340, %v12353
      %v12355 = vcombine.low %v12290, %v12306
      %v12356 = vcombine.high %v12290, %v12306
      %v12358 = vunpack.c.l.s4 1934713408
      %v12359 = vunpack.c.0.s8 %v12358
      %v12360 = vlaneseq
      %v12361 = vshrl.u32 %v12360, 7
      %v12362 = vsub.s32 %v12359, %v12361
      %v12363 = vrot.slane %v12355, %v12362
      %v12365 = vunpack.c.l.s4 1934713408
      %v12366 = vunpack.c.0.s8 %v12365
      %v12367 = vlaneseq
      %v12368 = vshrl.u32 %v12367, 7
      %v12369 = vsub.s32 %v12366, %v12368
      %v12370 = vrot.slane %v12356, %v12369
      %v12371 = vcombine.low %v12315, %v12331
      %v12372 = vcombine.high %v12315, %v12331
      %v12374 = vunpack.c.l.s4 1934713408
      %v12375 = vunpack.c.0.s8 %v12374
      %v12376 = vlaneseq
      %v12377 = vshrl.u32 %v12376, 7
      %v12378 = vsub.s32 %v12375, %v12377
      %v12379 = vrot.slane %v12371, %v12378
      %v12381 = vunpack.c.l.s4 1934713408
      %v12382 = vunpack.c.0.s8 %v12381
      %v12383 = vlaneseq
      %v12384 = vshrl.u32 %v12383, 7
      %v12385 = vsub.s32 %v12382, %v12384
      %v12386 = vrot.slane %v12372, %v12385
      %v12387 = vcombine.low %v12322, %v12338
      %v12388 = vcombine.high %v12322, %v12338
      %v12390 = vunpack.c.l.s4 1934713408
      %v12391 = vunpack.c.0.s8 %v12390
      %v12392 = vlaneseq
      %v12393 = vshrl.u32 %v12392, 7
      %v12394 = vsub.s32 %v12391, %v12393
      %v12395 = vrot.slane %v12387, %v12394
      %v12397 = vunpack.c.l.s4 1934713408
      %v12398 = vunpack.c.0.s8 %v12397
      %v12399 = vlaneseq
      %v12400 = vshrl.u32 %v12399, 7
      %v12401 = vsub.s32 %v12398, %v12400
      %v12402 = vrot.slane %v12388, %v12401
      %v12403 = vcombine.low %v12347, %v12379
      %v12404 = vcombine.high %v12347, %v12379
      %v12405 = vcombine.low %v12354, %v12386
      %v12406 = vcombine.high %v12354, %v12386
      %v12407 = vcombine.low %v12363, %v12395
      %v12408 = vcombine.high %v12363, %v12395
      %v12409 = vcombine.low %v12370, %v12402
      %v12410 = vcombine.high %v12370, %v12402
      %v12411 = vcombine.low %v12108, %v12112
      %v12412 = vcombine.high %v12108, %v12112
      %v12414 = vunpack.c.l.s4 1983009808
      %v12415 = vunpack.c.0.s8 %v12414
      %v12416 = vlaneseq
      %v12417 = vshrl.u32 %v12416, 7
      %v12418 = vsub.s32 %v12415, %v12417
      %v12419 = vrot.slane %v12411, %v12418
      %v12421 = vunpack.c.l.s4 1983009808
      %v12422 = vunpack.c.0.s8 %v12421
      %v12423 = vlaneseq
      %v12424 = vshrl.u32 %v12423, 7
      %v12425 = vsub.s32 %v12422, %v12424
      %v12426 = vrot.slane %v12412, %v12425
      %v12427 = vcombine.low %v12110, %v12114
      %v12428 = vcombine.high %v12110, %v12114
      %v12430 = vunpack.c.l.s4 1983009808
      %v12431 = vunpack.c.0.s8 %v12430
      %v12432 = vlaneseq
      %v12433 = vshrl.u32 %v12432, 7
      %v12434 = vsub.s32 %v12431, %v12433
      %v12435 = vrot.slane %v12427, %v12434
      %v12437 = vunpack.c.l.s4 1983009808
      %v12438 = vunpack.c.0.s8 %v12437
      %v12439 = vlaneseq
      %v12440 = vshrl.u32 %v12439, 7
      %v12441 = vsub.s32 %v12438, %v12440
      %v12442 = vrot.slane %v12428, %v12441
      %v12443 = vcombine.low %v12116, %v12120
      %v12444 = vcombine.high %v12116, %v12120
      %v12446 = vunpack.c.l.s4 1983009808
      %v12447 = vunpack.c.0.s8 %v12446
      %v12448 = vlaneseq
      %v12449 = vshrl.u32 %v12448, 7
      %v12450 = vsub.s32 %v12447, %v12449
      %v12451 = vrot.slane %v12443, %v12450
      %v12453 = vunpack.c.l.s4 1983009808
      %v12454 = vunpack.c.0.s8 %v12453
      %v12455 = vlaneseq
      %v12456 = vshrl.u32 %v12455, 7
      %v12457 = vsub.s32 %v12454, %v12456
      %v12458 = vrot.slane %v12444, %v12457
      %v12459 = vcombine.low %v12118, %v12122
      %v12460 = vcombine.high %v12118, %v12122
      %v12462 = vunpack.c.l.s4 1983009808
      %v12463 = vunpack.c.0.s8 %v12462
      %v12464 = vlaneseq
      %v12465 = vshrl.u32 %v12464, 7
      %v12466 = vsub.s32 %v12463, %v12465
      %v12467 = vrot.slane %v12459, %v12466
      %v12469 = vunpack.c.l.s4 1983009808
      %v12470 = vunpack.c.0.s8 %v12469
      %v12471 = vlaneseq
      %v12472 = vshrl.u32 %v12471, 7
      %v12473 = vsub.s32 %v12470, %v12472
      %v12474 = vrot.slane %v12460, %v12473
      %v12475 = vcombine.low %v12419, %v12435
      %v12476 = vcombine.high %v12419, %v12435
      %v12478 = vunpack.c.l.s4 1934713408
      %v12479 = vunpack.c.0.s8 %v12478
      %v12480 = vlaneseq
      %v12481 = vshrl.u32 %v12480, 7
      %v12482 = vsub.s32 %v12479, %v12481
      %v12483 = vrot.slane %v12475, %v12482
      %v12485 = vunpack.c.l.s4 1934713408
      %v12486 = vunpack.c.0.s8 %v12485
      %v12487 = vlaneseq
      %v12488 = vshrl.u32 %v12487, 7
      %v12489 = vsub.s32 %v12486, %v12488
      %v12490 = vrot.slane %v12476, %v12489
      %v12491 = vcombine.low %v12426, %v12442
      %v12492 = vcombine.high %v12426, %v12442
      %v12494 = vunpack.c.l.s4 1934713408
      %v12495 = vunpack.c.0.s8 %v12494
      %v12496 = vlaneseq
      %v12497 = vshrl.u32 %v12496, 7
      %v12498 = vsub.s32 %v12495, %v12497
      %v12499 = vrot.slane %v12491, %v12498
      %v12501 = vunpack.c.l.s4 1934713408
      %v12502 = vunpack.c.0.s8 %v12501
      %v12503 = vlaneseq
      %v12504 = vshrl.u32 %v12503, 7
      %v12505 = vsub.s32 %v12502, %v12504
      %v12506 = vrot.slane %v12492, %v12505
      %v12507 = vcombine.low %v12451, %v12467
      %v12508 = vcombine.high %v12451, %v12467
      %v12510 = vunpack.c.l.s4 1934713408
      %v12511 = vunpack.c.0.s8 %v12510
      %v12512 = vlaneseq
      %v12513 = vshrl.u32 %v12512, 7
      %v12514 = vsub.s32 %v12511, %v12513
      %v12515 = vrot.slane %v12507, %v12514
      %v12517 = vunpack.c.l.s4 1934713408
      %v12518 = vunpack.c.0.s8 %v12517
      %v12519 = vlaneseq
      %v12520 = vshrl.u32 %v12519, 7
      %v12521 = vsub.s32 %v12518, %v12520
      %v12522 = vrot.slane %v12508, %v12521
      %v12523 = vcombine.low %v12458, %v12474
      %v12524 = vcombine.high %v12458, %v12474
      %v12526 = vunpack.c.l.s4 1934713408
      %v12527 = vunpack.c.0.s8 %v12526
      %v12528 = vlaneseq
      %v12529 = vshrl.u32 %v12528, 7
      %v12530 = vsub.s32 %v12527, %v12529
      %v12531 = vrot.slane %v12523, %v12530
      %v12533 = vunpack.c.l.s4 1934713408
      %v12534 = vunpack.c.0.s8 %v12533
      %v12535 = vlaneseq
      %v12536 = vshrl.u32 %v12535, 7
      %v12537 = vsub.s32 %v12534, %v12536
      %v12538 = vrot.slane %v12524, %v12537
      %v12539 = vcombine.low %v12483, %v12515
      %v12540 = vcombine.high %v12483, %v12515
      %v12541 = vcombine.low %v12490, %v12522
      %v12542 = vcombine.high %v12490, %v12522
      %v12543 = vcombine.low %v12499, %v12531
      %v12544 = vcombine.high %v12499, %v12531
      %v12545 = vcombine.low %v12506, %v12538
      %v12546 = vcombine.high %v12506, %v12538
      %v12547 = vcombine.low %v12124, %v12128
      %v12548 = vcombine.high %v12124, %v12128
      %v12550 = vunpack.c.l.s4 1983009808
      %v12551 = vunpack.c.0.s8 %v12550
      %v12552 = vlaneseq
      %v12553 = vshrl.u32 %v12552, 7
      %v12554 = vsub.s32 %v12551, %v12553
      %v12555 = vrot.slane %v12547, %v12554
      %v12557 = vunpack.c.l.s4 1983009808
      %v12558 = vunpack.c.0.s8 %v12557
      %v12559 = vlaneseq
      %v12560 = vshrl.u32 %v12559, 7
      %v12561 = vsub.s32 %v12558, %v12560
      %v12562 = vrot.slane %v12548, %v12561
      %v12563 = vcombine.low %v12126, %v12130
      %v12564 = vcombine.high %v12126, %v12130
      %v12566 = vunpack.c.l.s4 1983009808
      %v12567 = vunpack.c.0.s8 %v12566
      %v12568 = vlaneseq
      %v12569 = vshrl.u32 %v12568, 7
      %v12570 = vsub.s32 %v12567, %v12569
      %v12571 = vrot.slane %v12563, %v12570
      %v12573 = vunpack.c.l.s4 1983009808
      %v12574 = vunpack.c.0.s8 %v12573
      %v12575 = vlaneseq
      %v12576 = vshrl.u32 %v12575, 7
      %v12577 = vsub.s32 %v12574, %v12576
      %v12578 = vrot.slane %v12564, %v12577
      %v12579 = vcombine.low %v12132, %v12136
      %v12580 = vcombine.high %v12132, %v12136
      %v12582 = vunpack.c.l.s4 1983009808
      %v12583 = vunpack.c.0.s8 %v12582
      %v12584 = vlaneseq
      %v12585 = vshrl.u32 %v12584, 7
      %v12586 = vsub.s32 %v12583, %v12585
      %v12587 = vrot.slane %v12579, %v12586
      %v12589 = vunpack.c.l.s4 1983009808
      %v12590 = vunpack.c.0.s8 %v12589
      %v12591 = vlaneseq
      %v12592 = vshrl.u32 %v12591, 7
      %v12593 = vsub.s32 %v12590, %v12592
      %v12594 = vrot.slane %v12580, %v12593
      %v12595 = vcombine.low %v12134, %v12138
      %v12596 = vcombine.high %v12134, %v12138
      %v12598 = vunpack.c.l.s4 1983009808
      %v12599 = vunpack.c.0.s8 %v12598
      %v12600 = vlaneseq
      %v12601 = vshrl.u32 %v12600, 7
      %v12602 = vsub.s32 %v12599, %v12601
      %v12603 = vrot.slane %v12595, %v12602
      %v12605 = vunpack.c.l.s4 1983009808
      %v12606 = vunpack.c.0.s8 %v12605
      %v12607 = vlaneseq
      %v12608 = vshrl.u32 %v12607, 7
      %v12609 = vsub.s32 %v12606, %v12608
      %v12610 = vrot.slane %v12596, %v12609
      %v12611 = vcombine.low %v12555, %v12571
      %v12612 = vcombine.high %v12555, %v12571
      %v12614 = vunpack.c.l.s4 1934713408
      %v12615 = vunpack.c.0.s8 %v12614
      %v12616 = vlaneseq
      %v12617 = vshrl.u32 %v12616, 7
      %v12618 = vsub.s32 %v12615, %v12617
      %v12619 = vrot.slane %v12611, %v12618
      %v12621 = vunpack.c.l.s4 1934713408
      %v12622 = vunpack.c.0.s8 %v12621
      %v12623 = vlaneseq
      %v12624 = vshrl.u32 %v12623, 7
      %v12625 = vsub.s32 %v12622, %v12624
      %v12626 = vrot.slane %v12612, %v12625
      %v12627 = vcombine.low %v12562, %v12578
      %v12628 = vcombine.high %v12562, %v12578
      %v12630 = vunpack.c.l.s4 1934713408
      %v12631 = vunpack.c.0.s8 %v12630
      %v12632 = vlaneseq
      %v12633 = vshrl.u32 %v12632, 7
      %v12634 = vsub.s32 %v12631, %v12633
      %v12635 = vrot.slane %v12627, %v12634
      %v12637 = vunpack.c.l.s4 1934713408
      %v12638 = vunpack.c.0.s8 %v12637
      %v12639 = vlaneseq
      %v12640 = vshrl.u32 %v12639, 7
      %v12641 = vsub.s32 %v12638, %v12640
      %v12642 = vrot.slane %v12628, %v12641
      %v12643 = vcombine.low %v12587, %v12603
      %v12644 = vcombine.high %v12587, %v12603
      %v12646 = vunpack.c.l.s4 1934713408
      %v12647 = vunpack.c.0.s8 %v12646
      %v12648 = vlaneseq
      %v12649 = vshrl.u32 %v12648, 7
      %v12650 = vsub.s32 %v12647, %v12649
      %v12651 = vrot.slane %v12643, %v12650
      %v12653 = vunpack.c.l.s4 1934713408
      %v12654 = vunpack.c.0.s8 %v12653
      %v12655 = vlaneseq
      %v12656 = vshrl.u32 %v12655, 7
      %v12657 = vsub.s32 %v12654, %v12656
      %v12658 = vrot.slane %v12644, %v12657
      %v12659 = vcombine.low %v12594, %v12610
      %v12660 = vcombine.high %v12594, %v12610
      %v12662 = vunpack.c.l.s4 1934713408
      %v12663 = vunpack.c.0.s8 %v12662
      %v12664 = vlaneseq
      %v12665 = vshrl.u32 %v12664, 7
      %v12666 = vsub.s32 %v12663, %v12665
      %v12667 = vrot.slane %v12659, %v12666
      %v12669 = vunpack.c.l.s4 1934713408
      %v12670 = vunpack.c.0.s8 %v12669
      %v12671 = vlaneseq
      %v12672 = vshrl.u32 %v12671, 7
      %v12673 = vsub.s32 %v12670, %v12672
      %v12674 = vrot.slane %v12660, %v12673
      %v12675 = vcombine.low %v12619, %v12651
      %v12676 = vcombine.high %v12619, %v12651
      %v12677 = vcombine.low %v12626, %v12658
      %v12678 = vcombine.high %v12626, %v12658
      %v12679 = vcombine.low %v12635, %v12667
      %v12680 = vcombine.high %v12635, %v12667
      %v12681 = vcombine.low %v12642, %v12674
      %v12682 = vcombine.high %v12642, %v12674
      %12685 = vrot.lane.b32.xlu0 %v12268, 4
      %v12686 = vpop.permute.xlu0 %12685
      %12687 = vrot.lane.b32.xlu0 %v12404, 4
      %v12688 = vpop.permute.xlu0 %12687
      %12693 = vrot.lane.b32.xlu0 %v12269, 8
      %v12694 = vpop.permute.xlu0 %12693
      %12695 = vrot.lane.b32.xlu0 %v12405, 8
      %v12696 = vpop.permute.xlu0 %12695
      %12701 = vrot.lane.b32.xlu0 %v12270, 12
      %v12702 = vpop.permute.xlu0 %12701
      %12703 = vrot.lane.b32.xlu0 %v12406, 12
      %v12704 = vpop.permute.xlu0 %12703
      %12709 = vrot.lane.b32.xlu0 %v12271, 16
      %v12710 = vpop.permute.xlu0 %12709
      %12711 = vrot.lane.b32.xlu0 %v12407, 16
      %v12712 = vpop.permute.xlu0 %12711
      %12717 = vrot.lane.b32.xlu0 %v12272, 20
      %v12718 = vpop.permute.xlu0 %12717
      %12719 = vrot.lane.b32.xlu0 %v12408, 20
      %v12720 = vpop.permute.xlu0 %12719
      %12725 = vrot.lane.b32.xlu0 %v12273, 24
      %v12726 = vpop.permute.xlu0 %12725
      %12727 = vrot.lane.b32.xlu0 %v12409, 24
      %v12728 = vpop.permute.xlu0 %12727
      %12733 = vrot.lane.b32.xlu0 %v12274, 28
      %v12734 = vpop.permute.xlu0 %12733
      %12735 = vrot.lane.b32.xlu0 %v12410, 28
      %v12736 = vpop.permute.xlu0 %12735
      %12741 = vrot.lane.b32.xlu0 %v12539, 32
      %v12742 = vpop.permute.xlu0 %12741
      %12743 = vrot.lane.b32.xlu0 %v12675, 32
      %v12744 = vpop.permute.xlu0 %12743
      %12749 = vrot.lane.b32.xlu0 %v12540, 36
      %v12750 = vpop.permute.xlu0 %12749
      %12751 = vrot.lane.b32.xlu0 %v12676, 36
      %v12752 = vpop.permute.xlu0 %12751
      %12757 = vrot.lane.b32.xlu0 %v12541, 40
      %v12758 = vpop.permute.xlu0 %12757
      %12759 = vrot.lane.b32.xlu0 %v12677, 40
      %v12760 = vpop.permute.xlu0 %12759
      %12765 = vrot.lane.b32.xlu0 %v12542, 44
      %v12766 = vpop.permute.xlu0 %12765
      %12767 = vrot.lane.b32.xlu0 %v12678, 44
      %v12768 = vpop.permute.xlu0 %12767
      %12773 = vrot.lane.b32.xlu0 %v12543, 48
      %v12774 = vpop.permute.xlu0 %12773
      %12775 = vrot.lane.b32.xlu0 %v12679, 48
      %v12776 = vpop.permute.xlu0 %12775
      %12781 = vrot.lane.b32.xlu0 %v12544, 52
      %v12782 = vpop.permute.xlu0 %12781
      %12783 = vrot.lane.b32.xlu0 %v12680, 52
      %v12784 = vpop.permute.xlu0 %12783
      %12789 = vrot.lane.b32.xlu0 %v12545, 56
      %v12790 = vpop.permute.xlu0 %12789
      %12791 = vrot.lane.b32.xlu0 %v12681, 56
      %v12792 = vpop.permute.xlu0 %12791
      %12797 = vrot.lane.b32.xlu0 %v12546, 60
      %v12798 = vpop.permute.xlu0 %12797
      %12799 = vrot.lane.b32.xlu0 %v12682, 60
      %v12800 = vpop.permute.xlu0 %12799
      %v12803 = vsel %vm2820, %v12267, %v12686
      %v12804 = vsel %vm2820, %v12403, %v12688
      %vm12805 = vcmask 64512
      %v12806 = vsel %vm12805, %v12803, %v12694
      %v12807 = vsel %vm12805, %v12804, %v12696
      %vm12808 = vcmask 97280
      %v12809 = vsel %vm12808, %v12806, %v12702
      %v12810 = vsel %vm12808, %v12807, %v12704
      %vm12811 = vcmask 130048
      %v12812 = vsel %vm12811, %v12809, %v12710
      %v12813 = vsel %vm12811, %v12810, %v12712
      %vm12814 = vcmask 162816
      %v12815 = vsel %vm12814, %v12812, %v12718
      %v12816 = vsel %vm12814, %v12813, %v12720
      %vm12817 = vcmask 195584
      %v12818 = vsel %vm12817, %v12815, %v12726
      %v12819 = vsel %vm12817, %v12816, %v12728
      %vm12820 = vcmask 228352
      %v12821 = vsel %vm12820, %v12818, %v12734
      %v12822 = vsel %vm12820, %v12819, %v12736
      %vm12823 = vcmask 261120
      %v12824 = vsel %vm12823, %v12821, %v12742
      %v12825 = vsel %vm12823, %v12822, %v12744
      %vm12826 = vcmask 293888
      %v12827 = vsel %vm12826, %v12824, %v12750
      %v12828 = vsel %vm12826, %v12825, %v12752
      %vm12829 = vcmask 326656
      %v12830 = vsel %vm12829, %v12827, %v12758
      %v12831 = vsel %vm12829, %v12828, %v12760
      %vm12832 = vcmask 359424
      %v12833 = vsel %vm12832, %v12830, %v12766
      %v12834 = vsel %vm12832, %v12831, %v12768
      %vm12835 = vcmask 392192
      %v12836 = vsel %vm12835, %v12833, %v12774
      %v12837 = vsel %vm12835, %v12834, %v12776
      %vm12838 = vcmask 424960
      %v12839 = vsel %vm12838, %v12836, %v12782
      %v12840 = vsel %vm12838, %v12837, %v12784
      %vm12841 = vcmask 457728
      %v12842 = vsel %vm12841, %v12839, %v12790
      %v12843 = vsel %vm12841, %v12840, %v12792
      %vm12844 = vcmask 490496
      %v12845 = vsel %vm12844, %v12842, %v12798
      %v12846 = vsel %vm12844, %v12843, %v12800
      %vm12847 = vcmask 523264
      %12848 = vst.msk [vmem:[%s224] sm:$0xff] %vm12847, %v12845
      %12849 = vst.msk [vmem:[%s224 + $0x8] sm:$0xff] %vm12847, %v12846
      %p12850 = scmp.lt.s32.totalorder %s16, 1
      %s12851 = scalar_select %p12850, %s16, 1
      %s12852 = smul.addr %s12851, 2
      %s12853 = smul.addr %s12852, 8
      %s12854 = scalar_lea.vmem %s5, %s12853
      // Predicated region
      $region41: #{residual_block.1} parent=39 // pred_check
        %p12855 = pneg %p144
      $region42: #{residual_block.1} parent=39 // pred_check_branch
        %12857 = sbr.rel (%p12855) target = $region44
      $region43: #{residual_block.1} parent=39 // pred_region
        _
      $region44: #{residual_block.1} parent=39 // pred_fallthru
        _
    $region40: #{residual_block.1} parent=5 // pred_fallthru
      _
    %p12858 = scmp.le.s32.totalorder 2, %s11
    // Predicated region
    $region45: #{residual_block.1} parent=5 // pred_check
      %p12859 = pneg %p12858
    $region46: #{residual_block.1} parent=5 // pred_check_branch
      %12861 = sbr.rel (%p12859) target = $region48
    $region47: #{residual_block.1} parent=5 // pred_region
      %s12862 = ssub.s32 %s11, 2
      // Predicated region
      $region49: #{residual_block.1} parent=47 // pred_check
        %p12863 = pneg %p150
      $region50: #{residual_block.1} parent=47 // pred_check_branch
        %12865 = sbr.rel (%p12863) target = $region52
      $region51: #{residual_block.1} parent=47 // pred_region
        %p12866 = scmp.lt.s32.totalorder %s17, 1
        %s12867 = scalar_select %p12866, %s17, 1
        %s12868 = smul.addr %s12867, 2
        %s12869 = smul.addr %s12868, 8
        %s12870 = scalar_lea.vmem %s5, %s12869
      $region52: #{residual_block.1} parent=47 // pred_fallthru
        _
    $region48: #{residual_block.1} parent=5 // pred_fallthru
      _
  $region6: #{residual_block.1} parent=0 // loop_footer
    %s15 = sadd.s32 1, %s11
  $region7: #{residual_block.1} parent=0 // loop_footer_branch
    %10 = sbr.rel target = $region3
  $region8: #{residual_block.1} parent=0 // loop_exit
    _

</llo_original>
